<compile_context>
chip_gen: v6e
topology: v6e:2x2x1
jax: 0.10.0
libtpu: 0.0.40
codegen_flags: <defaults>
</compile_context>

<pallas_src>
import functools

import numpy as np
import jax
import jax.numpy as jnp
from jax import lax
from jax.experimental import pallas as pl
from jax.experimental.pallas import tpu as pltpu


# Phase table: for output fine-grid phase bit d (0/1) and 3x3 kernel tap k,
# the tap reads the padded coarse buffer at (row offset, source phase bit).
_TAP = (((0, 1), (1, 0), (1, 1)),   # d == 0
        ((1, 0), (1, 1), (2, 0)))   # d == 1


def _phase_conv3x3(pad, wc_ref, bc, TH, W, C):
    """3x3 'same' conv on the 2x-upsampled grid in phase-compact layout.
    pad: (TH+2, W+2, 4C) haloed coarse VMEM scratch, channels ordered
    (di, dj, c).  wc_ref: (9C, C) rows ordered (kh, kw, ci).  Per-kh
    accumulation (K=3C) keeps the im2col temporary 3x smaller than K=9C.
    Returns (TH*W, 4C) f32, channel order (di, dj, c)."""
    w_kh = [wc_ref[k * 3 * C:(k + 1) * 3 * C, :] for k in range(3)]  # load once
    outs = []
    for di in range(2):
        for dj in range(2):
            acc = jnp.zeros((TH * W, C), jnp.float32)
            for kh in range(3):
                ro, ph = _TAP[di][kh]
                cols = [pad[ro:ro + TH, co:co + W,
                            (2 * ph + pw) * C:(2 * ph + pw + 1) * C]
                        for (co, pw) in _TAP[dj]]                 # 3 x (TH,W,C)
                cols = jnp.concatenate(cols, axis=-1).reshape(TH * W, 3 * C)
                acc = acc + jnp.dot(cols, w_kh[kh],
                                    preferred_element_type=jnp.float32)
            outs.append(acc + bc)                                  # (TH*W, C)
    return jnp.concatenate(outs, axis=-1)                          # (TH*W, 4C)


def _store_halo(pad, row, W, value, keep):
    """Write a halo row; zero it at the true image border (keep == False)."""
    @pl.when(keep)
    def _():
        pad[row:row + 1, 1:W + 1, :] = value

    @pl.when(jnp.logical_not(keep))
    def _():
        pad[row:row + 1, 1:W + 1, :] = jnp.zeros_like(value)


def _write_stats(st_ref, z):
    """Single stacked (2, 4C) f32 partial-stats store (sum, sumsq)."""
    st_ref[0, 0] = jnp.concatenate(
        [jnp.sum(z, axis=0, keepdims=True),
         jnp.sum(z * z, axis=0, keepdims=True)], axis=0)


def _deconv_conv_kernel(x_mid, x_top, x_bot, wup, bup, wc, bc,
                        z_ref, st_ref, pad, *, TH, W, C):
    # x_mid: (1,TH,W,Cin)  x_top/x_bot: (1,1,W,Cin) halo rows (clamped index)
    # wup: (Cin,4C) cdt    bup: (1,4C) f32   wc: (9C,C) cdt   bc: (1,C) f32
    # z_ref: (1,TH,W,4C)   st_ref: (1,1,2,4C) f32   pad: (TH+2,W+2,4C) cdt
    r = pl.program_id(1)
    n_r = pl.num_programs(1)
    cdt = pad.dtype

    # Zero only the left/right halo columns; all rows are overwritten below.
    pad[:, 0:1, :] = jnp.zeros((TH + 2, 1, 4 * C), cdt)
    pad[:, W + 1:W + 2, :] = jnp.zeros((TH + 2, 1, 4 * C), cdt)

    wup_v = wup[...]
    bup_v = bup[...]

    def deconv(xr):                              # (rows, W, Cin) -> (rows, W, 4C)
        rows = xr.shape[0]
        y = jnp.dot(xr.reshape(rows * W, xr.shape[-1]).astype(cdt), wup_v,
                    preferred_element_type=jnp.float32) + bup_v
        return y.reshape(rows, W, 4 * C).astype(cdt)

    pad[1:TH + 1, 1:W + 1, :] = deconv(x_mid[0])
    # Halo rows: recompute the (cheap) deconv of the neighbouring coarse row;
    # zero only at the true image border.
    _store_halo(pad, 0, W, deconv(x_top[0]), r > 0)
    _store_halo(pad, TH + 1, W, deconv(x_bot[0]), r < n_r - 1)

    z = _phase_conv3x3(pad, wc, bc[...], TH, W, C)          # (TH*W, 4C) f32
    z_ref[0] = z.reshape(TH, W, 4 * C).astype(z_ref.dtype)
    _write_stats(st_ref, z)


def _bnrelu_conv_kernel(z_mid, z_top, z_bot, s_ref, t_ref, wc, bc,
                        o_ref, st_ref, pad, *, TH, W, C):
    # BN1 affine + ReLU fused into conv2's input read (main + halo rows).
    r = pl.program_id(1)
    n_r = pl.num_programs(1)
    cdt = pad.dtype

    pad[:, 0:1, :] = jnp.zeros((TH + 2, 1, 4 * C), cdt)
    pad[:, W + 1:W + 2, :] = jnp.zeros((TH + 2, 1, 4 * C), cdt)

    s = s_ref[...]                                # (1, 4C) f32
    t = t_ref[...]

    def act(zr):                                  # (rows, W, 4C) -> BN+ReLU, cdt
        rows = zr.shape[0]
        a = jnp.maximum(zr.reshape(rows * W, 4 * C).astype(jnp.float32) * s + t,
                        0.0)
        return a.reshape(rows, W, 4 * C).astype(cdt)

    pad[1:TH + 1, 1:W + 1, :] = act(z_mid[0])
    _store_halo(pad, 0, W, act(z_top[0]), r > 0)
    _store_halo(pad, TH + 1, W, act(z_bot[0]), r < n_r - 1)

    z = _phase_conv3x3(pad, wc, bc[...], TH, W, C)
    o_ref[0] = z.reshape(TH, W, 4 * C).astype(o_ref.dtype)
    _write_stats(st_ref, z)


def _stats_to_affine(st, gamma, beta, n, C, eps=1e-5):
    """Fold per-(batch, row-tile) partial (sum, sumsq) over batch/tiles/phases
    into per-channel training-mode BN (biased variance) scale/shift.  Partials
    are f32; var is clamped at 0 to guard E[x^2]-mean^2 cancellation."""
    s = jnp.sum(st[..., 0, :], axis=(0, 1)).reshape(4, C).sum(axis=0)
    ss = jnp.sum(st[..., 1, :], axis=(0, 1)).reshape(4, C).sum(axis=0)
    mean = s / n
    var = jnp.maximum(ss / n - mean * mean, 0.0)
    scale = gamma * lax.rsqrt(var + eps)
    shift = beta - mean * scale
    return scale, shift


def _pick_row_tile(H, W, C, itemsize, budget_bytes=4 * 1024 * 1024):
    """Largest divisor of H whose fused-tile working set stays ~budget, so the
    pipeline has many steps and fits v7x's 64 MiB VMEM with headroom."""
    per_row = (W + 2) * 4 * C * itemsize          # padded scratch
    per_row += W * 4 * C * itemsize               # deconv / activation row
    per_row += W * 3 * C * itemsize * 4           # per-kh im2col strips
    per_row += W * 4 * C * 4                      # f32 phase accumulators
    per_row += W * 4 * C * itemsize * 2           # double-buffered out block
    th = max(1, min(H, budget_bytes // max(per_row, 1)))
    while H % th:
        th -= 1
    return th


def conv_up_forward(x_nchw, p, *, compute_dtype=jnp.bfloat16, tile_rows=None,
                    eps=1e-5):
    """ConvUp.forward: deconv(k=2,s=2) -> [conv3x3 + BN(train) + ReLU] x2.
    NCHW in / NCHW out (f32).  compute_dtype controls MXU operand / HBM
    intermediate precision (accumulation and BN stats stay f32)."""
    B, Cin, H, W = x_nchw.shape
    C = p["up_w"].shape[1]
    cdt = jnp.dtype(compute_dtype)
    TH = tile_rows if tile_rows is not None else _pick_row_tile(
        H, W, C, cdt.itemsize)
    assert H % TH == 0, (H, TH)
    nH = H // TH

    # --- layout plumbing (XLA glue) ---
    x = jnp.transpose(x_nchw, (0, 2, 3, 1))                            # (B,H,W,Cin)
    wup = jnp.transpose(p["up_w"], (0, 2, 3, 1)).reshape(Cin, 4 * C).astype(cdt)
    bup = jnp.tile(p["up_b"], 4).reshape(1, 4 * C).astype(jnp.float32)
    wc1 = jnp.transpose(p["c1_w"], (2, 3, 1, 0)).reshape(9 * C, C).astype(cdt)
    wc2 = jnp.transpose(p["c2_w"], (2, 3, 1, 0)).reshape(9 * C, C).astype(cdt)
    bc1 = p["c1_b"].reshape(1, C).astype(jnp.float32)
    bc2 = p["c2_b"].reshape(1, C).astype(jnp.float32)

    cparams = pltpu.CompilerParams(
        dimension_semantics=("parallel", "parallel"),   # megacore over (B, rows)
        vmem_limit_bytes=64 * 1024 * 1024)

    grid = (B, nH)
    row_idx = lambda b, r: (b, r, 0, 0)
    top_idx = lambda b, r: (b, jnp.maximum(r * TH - 1, 0), 0, 0)       # halo row
    bot_idx = lambda b, r: (b, jnp.minimum(r * TH + TH, H - 1), 0, 0)  # halo row
    bcast2 = lambda b, r: (0, 0)
    st_idx = lambda b, r: (b, r, 0, 0)

    # --- kernel 1: deconv + conv1 (+bias) + BN1 stat partials ---
    k1 = functools.partial(_deconv_conv_kernel, TH=TH, W=W, C=C)
    z1, st1 = pl.pallas_call(
        k1,
        grid=grid,
        in_specs=[
            pl.BlockSpec((1, TH, W, Cin), row_idx),
            pl.BlockSpec((1, 1, W, Cin), top_idx),
            pl.BlockSpec((1, 1, W, Cin), bot_idx),
            pl.BlockSpec((Cin, 4 * C), bcast2),
            pl.BlockSpec((1, 4 * C), bcast2),
            pl.BlockSpec((9 * C, C), bcast2),
            pl.BlockSpec((1, C), bcast2),
        ],
        out_specs=[
            pl.BlockSpec((1, TH, W, 4 * C), row_idx),
            pl.BlockSpec((1, 1, 2, 4 * C), st_idx),
        ],
        out_shape=[
            jax.ShapeDtypeStruct((B, H, W, 4 * C), cdt),
            jax.ShapeDtypeStruct((B, nH, 2, 4 * C), jnp.float32),
        ],
        scratch_shapes=[pltpu.VMEM((TH + 2, W + 2, 4 * C), cdt)],
        compiler_params=cparams,
    )(x, x, x, wup, bup, wc1, bc1)

    n = 4.0 * B * H * W
    sc1, sh1 = _stats_to_affine(st1, p["bn1_g"], p["bn1_b"], n, C, eps)
    sc1t = jnp.tile(sc1, 4).reshape(1, 4 * C)
    sh1t = jnp.tile(sh1, 4).reshape(1, 4 * C)

    # --- kernel 2: BN1 affine + ReLU fused into conv2's input read, + stats ---
    k2 = functools.partial(_bnrelu_conv_kernel, TH=TH, W=W, C=C)
    z2, st2 = pl.pallas_call(
        k2,
        grid=grid,
        in_specs=[
            pl.BlockSpec((1, TH, W, 4 * C), row_idx),
            pl.BlockSpec((1, 1, W, 4 * C), top_idx),
            pl.BlockSpec((1, 1, W, 4 * C), bot_idx),
            pl.BlockSpec((1, 4 * C), bcast2),
            pl.BlockSpec((1, 4 * C), bcast2),
            pl.BlockSpec((9 * C, C), bcast2),
            pl.BlockSpec((1, C), bcast2),
        ],
        out_specs=[
            pl.BlockSpec((1, TH, W, 4 * C), row_idx),
            pl.BlockSpec((1, 1, 2, 4 * C), st_idx),
        ],
        out_shape=[
            jax.ShapeDtypeStruct((B, H, W, 4 * C), cdt),
            jax.ShapeDtypeStruct((B, nH, 2, 4 * C), jnp.float32),
        ],
        scratch_shapes=[pltpu.VMEM((TH + 2, W + 2, 4 * C), cdt)],
        compiler_params=cparams,
    )(z1, z1, z1, sc1t, sh1t, wc2, bc2)

    # --- epilogue: BN2 affine + ReLU fused (by XLA) into the de-phase
    #     transpose; one read + one write of the final tensor. ---
    sc2, sh2 = _stats_to_affine(st2, p["bn2_g"], p["bn2_b"], n, C, eps)
    a2 = z2.astype(jnp.float32).reshape(B, H, W, 2, 2, C)
    a2 = jnp.maximum(a2 * sc2 + sh2, 0.0)
    out = jnp.transpose(a2, (0, 5, 1, 3, 2, 4)).reshape(B, C, 2 * H, 2 * W)
    return out


# ----------------------------------------------------------------------------
# Pure-JAX reference (independent lowering path) for a sanity check
# ----------------------------------------------------------------------------

def _ref_forward(x_nchw, p, eps=1e-5):
    x = jnp.transpose(x_nchw, (0, 2, 3, 1))
    B, H, W, Cin = x.shape
    Cout = p["up_w"].shape[1]
    t = jnp.einsum("bhwc,cokl->bhkwlo", x, p["up_w"])
    x = t.reshape(B, 2 * H, 2 * W, Cout) + p["up_b"]

    def conv_block(x, w, b, g, beta):
        y = jax.lax.conv_general_dilated(
            x, jnp.transpose(w, (2, 3, 1, 0)), window_strides=(1, 1),
            padding=((1, 1), (1, 1)), dimension_numbers=("NHWC", "HWIO", "NHWC"))
        y = y + b
        m = jnp.mean(y, axis=(0, 1, 2))
        v = jnp.mean((y - m) ** 2, axis=(0, 1, 2))
        y = (y - m) / jnp.sqrt(v + eps) * g + beta
        return jnp.maximum(y, 0.0)

    x = conv_block(x, p["c1_w"], p["c1_b"], p["bn1_g"], p["bn1_b"])
    x = conv_block(x, p["c2_w"], p["c2_b"], p["bn2_g"], p["bn2_b"])
    return jnp.transpose(x, (0, 3, 1, 2))


# ----------------------------------------------------------------------------
# Deterministic parameter init (synthetic weights, PyTorch layouts)
# ----------------------------------------------------------------------------

def init_params(key, cin, cout):
    ks = jax.random.split(key, 6)
    return {
        "up_w": 0.1 * jax.random.normal(ks[0], (cin, cout, 2, 2), jnp.float32),
        "up_b": 0.1 * jax.random.normal(ks[1], (cout,), jnp.float32),
        "c1_w": 0.1 * jax.random.normal(ks[2], (cout, cout, 3, 3), jnp.float32),
        "c1_b": 0.1 * jax.random.normal(ks[3], (cout,), jnp.float32),
        "c2_w": 0.1 * jax.random.normal(ks[4], (cout, cout, 3, 3), jnp.float32),
        "c2_b": 0.1 * jax.random.normal(ks[5], (cout,), jnp.float32),
        "bn1_g": jnp.ones((cout,), jnp.float32),
        "bn1_b": jnp.zeros((cout,), jnp.float32),
        "bn2_g": jnp.ones((cout,), jnp.float32),
        "bn2_b": jnp.zeros((cout,), jnp.float32),
    }


if __name__ == "__main__":
    key = jax.random.PRNGKey(0)
    kx, kp = jax.random.split(key)

    B, Cin, Cout, H, W = 2, 8, 8, 16, 16
    x = jax.random.normal(kx, (B, Cin, H, W), jnp.float32)   # NCHW, like PyTorch
    params = init_params(kp, Cin, Cout)

    ref = jax.block_until_ready(_ref_forward(x, params))

    # f32 path, explicit row tiling (nH=4) -> exercises halo logic, tight parity.
    fwd_f32 = jax.jit(functools.partial(conv_up_forward,
                                        compute_dtype=jnp.float32, tile_rows=4))
    out32 = jax.block_until_ready(fwd_f32(x, params))
    assert out32.shape == (B, Cout, 2 * H, 2 * W), out32.shape
    np.testing.assert_allclose(np.asarray(out32), np.asarray(ref),
                               rtol=1e-3, atol=1e-3)

    # bf16 MXU path (default), auto row-tile pick -> bf16-level tolerance.
    fwd_bf16 = jax.jit(functools.partial(conv_up_forward,
                                         compute_dtype=jnp.bfloat16))
    out16 = jax.block_until_ready(fwd_bf16(x, params))
    assert out16.shape == (B, Cout, 2 * H, 2 * W), out16.shape
    np.testing.assert_allclose(np.asarray(out16), np.asarray(ref),
                               rtol=1e-1, atol=1e-1)

    print("KERNEL_OK")
</pallas_src>

<mosaic_0001>
module attributes {stable_mosaic.version = 11 : i64} {
  func.func @_deconv_conv_kernel(%arg0: i32, %arg1: i32, %arg2: memref<1x4x16x8xf32, #tpu.memory_space<vmem>>, %arg3: memref<1x1x16x8xf32, #tpu.memory_space<vmem>>, %arg4: memref<1x1x16x8xf32, #tpu.memory_space<vmem>>, %arg5: memref<8x32xf32, #tpu.memory_space<vmem>>, %arg6: memref<1x32xf32, #tpu.memory_space<vmem>>, %arg7: memref<72x8xf32, #tpu.memory_space<vmem>>, %arg8: memref<1x8xf32, #tpu.memory_space<vmem>>, %arg9: memref<1x4x16x32xf32, #tpu.memory_space<vmem>>, %arg10: memref<1x1x2x32xf32, #tpu.memory_space<vmem>>, %arg11: memref<6x18x32xf32, #tpu.memory_space<vmem>>) attributes {dimension_semantics = [#tpu.dimension_semantics<parallel>, #tpu.dimension_semantics<parallel>], iteration_bounds = array<i64: 2, 4>, scalar_prefetch = 0 : i64, scratch_operands = 1 : i64, tpu.core_type = #tpu.core_type<tc>, window_params = [{transform_indices = @transform_0, window_bounds = array<i64: 1, 4, 16, 8>}, {transform_indices = @transform_1, window_bounds = array<i64: 1, 1, 16, 8>}, {transform_indices = @transform_2, window_bounds = array<i64: 1, 1, 16, 8>}, {pipeline_mode = #tpu.pipeline_mode<synchronous>, transform_indices = @transform_3, window_bounds = array<i64: 8, 32>}, {pipeline_mode = #tpu.pipeline_mode<synchronous>, transform_indices = @transform_4, window_bounds = array<i64: 1, 32>}, {pipeline_mode = #tpu.pipeline_mode<synchronous>, transform_indices = @transform_5, window_bounds = array<i64: 72, 8>}, {pipeline_mode = #tpu.pipeline_mode<synchronous>, transform_indices = @transform_6, window_bounds = array<i64: 1, 8>}, {transform_indices = @transform_7, window_bounds = array<i64: 1, 4, 16, 32>}, {transform_indices = @transform_8, window_bounds = array<i64: 1, 1, 2, 32>}]} {
    %cst = arith.constant 0.000000e+00 : f32
    %0 = vector.broadcast %cst : f32 to vector<6x1x32xf32>
    %c0 = arith.constant 0 : index
    %c0_0 = arith.constant 0 : index
    %c0_1 = arith.constant 0 : index
    %1 = vector.load %arg11[%c0, %c0_0, %c0_1] : memref<6x18x32xf32, #tpu.memory_space<vmem>>, vector<6x1x32xf32>
    tpu.vector_store %arg11[%c0, %c0_0, %c0_1], %0 {strides = array<i32>} : memref<6x18x32xf32, #tpu.memory_space<vmem>>, vector<6x1x32xf32>,
    %cst_2 = arith.constant 0.000000e+00 : f32
    %2 = vector.broadcast %cst_2 : f32 to vector<6x1x32xf32>
    %c0_3 = arith.constant 0 : index
    %c17 = arith.constant 17 : index
    %c0_4 = arith.constant 0 : index
    %3 = vector.load %arg11[%c0_3, %c17, %c0_4] : memref<6x18x32xf32, #tpu.memory_space<vmem>>, vector<6x1x32xf32>
    tpu.vector_store %arg11[%c0_3, %c17, %c0_4], %2 {strides = array<i32>} : memref<6x18x32xf32, #tpu.memory_space<vmem>>, vector<6x1x32xf32>,
    %c0_5 = arith.constant 0 : index
    %c0_6 = arith.constant 0 : index
    %4 = vector.load %arg5[%c0_5, %c0_6] : memref<8x32xf32, #tpu.memory_space<vmem>>, vector<8x32xf32>
    %c0_7 = arith.constant 0 : index
    %c0_8 = arith.constant 0 : index
    %5 = vector.load %arg6[%c0_7, %c0_8] : memref<1x32xf32, #tpu.memory_space<vmem>>, vector<1x32xf32>
    %c0_9 = arith.constant 0 : index
    %c0_10 = arith.constant 0 : index
    %c0_11 = arith.constant 0 : index
    %c0_12 = arith.constant 0 : index
    %6 = vector.load %arg2[%c0_9, %c0_10, %c0_11, %c0_12] : memref<1x4x16x8xf32, #tpu.memory_space<vmem>>, vector<1x4x16x8xf32>
    %7 = vector.shape_cast %6 : vector<1x4x16x8xf32> to vector<4x16x8xf32>
    %8 = vector.shape_cast %7 : vector<4x16x8xf32> to vector<64x8xf32>
    %cst_13 = arith.constant dense<0.000000e+00> : vector<64x32xf32>
    %9 = tpu.matmul %8, %4, %cst_13 {dimension_numbers = #tpu.dot_dimension_numbers<[1], [0], [0], [1], [0, 0, 1, 1], [], []>} : vector<64x8xf32>, vector<8x32xf32>, vector<64x32xf32> -> vector<64x32xf32>
    %10 = vector.broadcast %5 : vector<1x32xf32> to vector<64x32xf32>
    %11 = arith.addf %9, %10 : vector<64x32xf32>
    %12 = vector.shape_cast %11 : vector<64x32xf32> to vector<4x16x32xf32>
    %c1 = arith.constant 1 : index
    %c1_14 = arith.constant 1 : index
    %c0_15 = arith.constant 0 : index
    %13 = vector.load %arg11[%c1, %c1_14, %c0_15] : memref<6x18x32xf32, #tpu.memory_space<vmem>>, vector<4x16x32xf32>
    tpu.vector_store %arg11[%c1, %c1_14, %c0_15], %12 {strides = array<i32>} : memref<6x18x32xf32, #tpu.memory_space<vmem>>, vector<4x16x32xf32>,
    %c0_16 = arith.constant 0 : index
    %c0_17 = arith.constant 0 : index
    %c0_18 = arith.constant 0 : index
    %c0_19 = arith.constant 0 : index
    %14 = vector.load %arg3[%c0_16, %c0_17, %c0_18, %c0_19] : memref<1x1x16x8xf32, #tpu.memory_space<vmem>>, vector<1x1x16x8xf32>
    %15 = vector.shape_cast %14 : vector<1x1x16x8xf32> to vector<1x16x8xf32>
    %16 = vector.shape_cast %15 : vector<1x16x8xf32> to vector<16x8xf32>
    %cst_20 = arith.constant dense<0.000000e+00> : vector<16x32xf32>
    %17 = tpu.matmul %16, %4, %cst_20 {dimension_numbers = #tpu.dot_dimension_numbers<[1], [0], [0], [1], [0, 0, 1, 1], [], []>} : vector<16x8xf32>, vector<8x32xf32>, vector<16x32xf32> -> vector<16x32xf32>
    %18 = vector.broadcast %5 : vector<1x32xf32> to vector<16x32xf32>
    %19 = arith.addf %17, %18 : vector<16x32xf32>
    %20 = vector.shape_cast %19 : vector<16x32xf32> to vector<1x16x32xf32>
    %c0_i32 = arith.constant 0 : i32
    %21 = arith.cmpi sgt, %arg1, %c0_i32 : i32
    %22 = arith.extui %21 : i1 to i32
    %c0_i32_21 = arith.constant 0 : i32
    %23 = arith.cmpi ne, %22, %c0_i32_21 : i32
    scf.if %23 {
      %c0_168 = arith.constant 0 : index
      %c1_169 = arith.constant 1 : index
      %c0_170 = arith.constant 0 : index
      %154 = vector.load %arg11[%c0_168, %c1_169, %c0_170] : memref<6x18x32xf32, #tpu.memory_space<vmem>>, vector<1x16x32xf32>
      tpu.vector_store %arg11[%c0_168, %c1_169, %c0_170], %20 {strides = array<i32>} : memref<6x18x32xf32, #tpu.memory_space<vmem>>, vector<1x16x32xf32>,
    } else {
    }
    %true = arith.constant true
    %24 = arith.xori %21, %true : i1
    %25 = arith.extui %24 : i1 to i32
    %c0_i32_22 = arith.constant 0 : i32
    %26 = arith.cmpi ne, %25, %c0_i32_22 : i32
    scf.if %26 {
      %cst_168 = arith.constant 0.000000e+00 : f32
      %154 = vector.broadcast %cst_168 : f32 to vector<1x16x32xf32>
      %c0_169 = arith.constant 0 : index
      %c1_170 = arith.constant 1 : index
      %c0_171 = arith.constant 0 : index
      %155 = vector.load %arg11[%c0_169, %c1_170, %c0_171] : memref<6x18x32xf32, #tpu.memory_space<vmem>>, vector<1x16x32xf32>
      tpu.vector_store %arg11[%c0_169, %c1_170, %c0_171], %154 {strides = array<i32>} : memref<6x18x32xf32, #tpu.memory_space<vmem>>, vector<1x16x32xf32>,
    } else {
    }
    %c0_23 = arith.constant 0 : index
    %c0_24 = arith.constant 0 : index
    %c0_25 = arith.constant 0 : index
    %c0_26 = arith.constant 0 : index
    %27 = vector.load %arg4[%c0_23, %c0_24, %c0_25, %c0_26] : memref<1x1x16x8xf32, #tpu.memory_space<vmem>>, vector<1x1x16x8xf32>
    %28 = vector.shape_cast %27 : vector<1x1x16x8xf32> to vector<1x16x8xf32>
    %29 = vector.shape_cast %28 : vector<1x16x8xf32> to vector<16x8xf32>
    %cst_27 = arith.constant dense<0.000000e+00> : vector<16x32xf32>
    %30 = tpu.matmul %29, %4, %cst_27 {dimension_numbers = #tpu.dot_dimension_numbers<[1], [0], [0], [1], [0, 0, 1, 1], [], []>} : vector<16x8xf32>, vector<8x32xf32>, vector<16x32xf32> -> vector<16x32xf32>
    %31 = vector.broadcast %5 : vector<1x32xf32> to vector<16x32xf32>
    %32 = arith.addf %30, %31 : vector<16x32xf32>
    %33 = vector.shape_cast %32 : vector<16x32xf32> to vector<1x16x32xf32>
    %c3_i32 = arith.constant 3 : i32
    %34 = arith.cmpi slt, %arg1, %c3_i32 : i32
    %35 = arith.extui %34 : i1 to i32
    %c0_i32_28 = arith.constant 0 : i32
    %36 = arith.cmpi ne, %35, %c0_i32_28 : i32
    scf.if %36 {
      %c5 = arith.constant 5 : index
      %c1_168 = arith.constant 1 : index
      %c0_169 = arith.constant 0 : index
      %154 = vector.load %arg11[%c5, %c1_168, %c0_169] : memref<6x18x32xf32, #tpu.memory_space<vmem>>, vector<1x16x32xf32>
      tpu.vector_store %arg11[%c5, %c1_168, %c0_169], %33 {strides = array<i32>} : memref<6x18x32xf32, #tpu.memory_space<vmem>>, vector<1x16x32xf32>,
    } else {
    }
    %true_29 = arith.constant true
    %37 = arith.xori %34, %true_29 : i1
    %38 = arith.extui %37 : i1 to i32
    %c0_i32_30 = arith.constant 0 : i32
    %39 = arith.cmpi ne, %38, %c0_i32_30 : i32
    scf.if %39 {
      %cst_168 = arith.constant 0.000000e+00 : f32
      %154 = vector.broadcast %cst_168 : f32 to vector<1x16x32xf32>
      %c5 = arith.constant 5 : index
      %c1_169 = arith.constant 1 : index
      %c0_170 = arith.constant 0 : index
      %155 = vector.load %arg11[%c5, %c1_169, %c0_170] : memref<6x18x32xf32, #tpu.memory_space<vmem>>, vector<1x16x32xf32>
      tpu.vector_store %arg11[%c5, %c1_169, %c0_170], %154 {strides = array<i32>} : memref<6x18x32xf32, #tpu.memory_space<vmem>>, vector<1x16x32xf32>,
    } else {
    }
    %c0_31 = arith.constant 0 : index
    %c0_32 = arith.constant 0 : index
    %40 = vector.load %arg8[%c0_31, %c0_32] : memref<1x8xf32, #tpu.memory_space<vmem>>, vector<1x8xf32>
    %c0_33 = arith.constant 0 : index
    %c0_34 = arith.constant 0 : index
    %41 = vector.load %arg7[%c0_33, %c0_34] : memref<72x8xf32, #tpu.memory_space<vmem>>, vector<24x8xf32>
    %c24 = arith.constant 24 : index
    %c0_35 = arith.constant 0 : index
    %42 = vector.load %arg7[%c24, %c0_35] : memref<72x8xf32, #tpu.memory_space<vmem>>, vector<24x8xf32>
    %c48 = arith.constant 48 : index
    %c0_36 = arith.constant 0 : index
    %43 = vector.load %arg7[%c48, %c0_36] : memref<72x8xf32, #tpu.memory_space<vmem>>, vector<24x8xf32>
    %cst_37 = arith.constant 0.000000e+00 : f32
    %44 = vector.broadcast %cst_37 : f32 to vector<64x8xf32>
    %c0_38 = arith.constant 0 : index
    %c0_39 = arith.constant 0 : index
    %c24_40 = arith.constant 24 : index
    %45 = vector.load %arg11[%c0_38, %c0_39, %c24_40] : memref<6x18x32xf32, #tpu.memory_space<vmem>>, vector<4x16x8xf32>
    %c0_41 = arith.constant 0 : index
    %c1_42 = arith.constant 1 : index
    %c16 = arith.constant 16 : index
    %46 = vector.load %arg11[%c0_41, %c1_42, %c16] : memref<6x18x32xf32, #tpu.memory_space<vmem>>, vector<4x16x8xf32>
    %c0_43 = arith.constant 0 : index
    %c1_44 = arith.constant 1 : index
    %c24_45 = arith.constant 24 : index
    %47 = vector.load %arg11[%c0_43, %c1_44, %c24_45] : memref<6x18x32xf32, #tpu.memory_space<vmem>>, vector<4x16x8xf32>
    %48 = tpu.concatenate %45, %46, %47 in 2 : vector<4x16x8xf32>, vector<4x16x8xf32>, vector<4x16x8xf32> -> vector<4x16x24xf32>
    %49 = vector.shape_cast %48 : vector<4x16x24xf32> to vector<64x24xf32>
    %cst_46 = arith.constant dense<0.000000e+00> : vector<64x8xf32>
    %50 = tpu.matmul %49, %41, %cst_46 {dimension_numbers = #tpu.dot_dimension_numbers<[1], [0], [0], [1], [0, 0, 1, 1], [], []>} : vector<64x24xf32>, vector<24x8xf32>, vector<64x8xf32> -> vector<64x8xf32>
    %51 = arith.addf %44, %50 : vector<64x8xf32>
    %c1_47 = arith.constant 1 : index
    %c0_48 = arith.constant 0 : index
    %c8 = arith.constant 8 : index
    %52 = vector.load %arg11[%c1_47, %c0_48, %c8] : memref<6x18x32xf32, #tpu.memory_space<vmem>>, vector<4x16x8xf32>
    %c1_49 = arith.constant 1 : index
    %c1_50 = arith.constant 1 : index
    %c0_51 = arith.constant 0 : index
    %53 = vector.load %arg11[%c1_49, %c1_50, %c0_51] : memref<6x18x32xf32, #tpu.memory_space<vmem>>, vector<4x16x8xf32>
    %c1_52 = arith.constant 1 : index
    %c1_53 = arith.constant 1 : index
    %c8_54 = arith.constant 8 : index
    %54 = vector.load %arg11[%c1_52, %c1_53, %c8_54] : memref<6x18x32xf32, #tpu.memory_space<vmem>>, vector<4x16x8xf32>
    %55 = tpu.concatenate %52, %53, %54 in 2 : vector<4x16x8xf32>, vector<4x16x8xf32>, vector<4x16x8xf32> -> vector<4x16x24xf32>
    %56 = vector.shape_cast %55 : vector<4x16x24xf32> to vector<64x24xf32>
    %cst_55 = arith.constant dense<0.000000e+00> : vector<64x8xf32>
    %57 = tpu.matmul %56, %42, %cst_55 {dimension_numbers = #tpu.dot_dimension_numbers<[1], [0], [0], [1], [0, 0, 1, 1], [], []>} : vector<64x24xf32>, vector<24x8xf32>, vector<64x8xf32> -> vector<64x8xf32>
    %58 = arith.addf %51, %57 : vector<64x8xf32>
    %c1_56 = arith.constant 1 : index
    %c0_57 = arith.constant 0 : index
    %c24_58 = arith.constant 24 : index
    %59 = vector.load %arg11[%c1_56, %c0_57, %c24_58] : memref<6x18x32xf32, #tpu.memory_space<vmem>>, vector<4x16x8xf32>
    %c1_59 = arith.constant 1 : index
    %c1_60 = arith.constant 1 : index
    %c16_61 = arith.constant 16 : index
    %60 = vector.load %arg11[%c1_59, %c1_60, %c16_61] : memref<6x18x32xf32, #tpu.memory_space<vmem>>, vector<4x16x8xf32>
    %c1_62 = arith.constant 1 : index
    %c1_63 = arith.constant 1 : index
    %c24_64 = arith.constant 24 : index
    %61 = vector.load %arg11[%c1_62, %c1_63, %c24_64] : memref<6x18x32xf32, #tpu.memory_space<vmem>>, vector<4x16x8xf32>
    %62 = tpu.concatenate %59, %60, %61 in 2 : vector<4x16x8xf32>, vector<4x16x8xf32>, vector<4x16x8xf32> -> vector<4x16x24xf32>
    %63 = vector.shape_cast %62 : vector<4x16x24xf32> to vector<64x24xf32>
    %cst_65 = arith.constant dense<0.000000e+00> : vector<64x8xf32>
    %64 = tpu.matmul %63, %43, %cst_65 {dimension_numbers = #tpu.dot_dimension_numbers<[1], [0], [0], [1], [0, 0, 1, 1], [], []>} : vector<64x24xf32>, vector<24x8xf32>, vector<64x8xf32> -> vector<64x8xf32>
    %65 = arith.addf %58, %64 : vector<64x8xf32>
    %66 = vector.broadcast %40 : vector<1x8xf32> to vector<64x8xf32>
    %67 = arith.addf %65, %66 : vector<64x8xf32>
    %cst_66 = arith.constant 0.000000e+00 : f32
    %68 = vector.broadcast %cst_66 : f32 to vector<64x8xf32>
    %c0_67 = arith.constant 0 : index
    %c1_68 = arith.constant 1 : index
    %c16_69 = arith.constant 16 : index
    %69 = vector.load %arg11[%c0_67, %c1_68, %c16_69] : memref<6x18x32xf32, #tpu.memory_space<vmem>>, vector<4x16x8xf32>
    %c0_70 = arith.constant 0 : index
    %c1_71 = arith.constant 1 : index
    %c24_72 = arith.constant 24 : index
    %70 = vector.load %arg11[%c0_70, %c1_71, %c24_72] : memref<6x18x32xf32, #tpu.memory_space<vmem>>, vector<4x16x8xf32>
    %c0_73 = arith.constant 0 : index
    %c2 = arith.constant 2 : index
    %c16_74 = arith.constant 16 : index
    %71 = vector.load %arg11[%c0_73, %c2, %c16_74] : memref<6x18x32xf32, #tpu.memory_space<vmem>>, vector<4x16x8xf32>
    %72 = tpu.concatenate %69, %70, %71 in 2 : vector<4x16x8xf32>, vector<4x16x8xf32>, vector<4x16x8xf32> -> vector<4x16x24xf32>
    %73 = vector.shape_cast %72 : vector<4x16x24xf32> to vector<64x24xf32>
    %cst_75 = arith.constant dense<0.000000e+00> : vector<64x8xf32>
    %74 = tpu.matmul %73, %41, %cst_75 {dimension_numbers = #tpu.dot_dimension_numbers<[1], [0], [0], [1], [0, 0, 1, 1], [], []>} : vector<64x24xf32>, vector<24x8xf32>, vector<64x8xf32> -> vector<64x8xf32>
    %75 = arith.addf %68, %74 : vector<64x8xf32>
    %c1_76 = arith.constant 1 : index
    %c1_77 = arith.constant 1 : index
    %c0_78 = arith.constant 0 : index
    %76 = vector.load %arg11[%c1_76, %c1_77, %c0_78] : memref<6x18x32xf32, #tpu.memory_space<vmem>>, vector<4x16x8xf32>
    %c1_79 = arith.constant 1 : index
    %c1_80 = arith.constant 1 : index
    %c8_81 = arith.constant 8 : index
    %77 = vector.load %arg11[%c1_79, %c1_80, %c8_81] : memref<6x18x32xf32, #tpu.memory_space<vmem>>, vector<4x16x8xf32>
    %c1_82 = arith.constant 1 : index
    %c2_83 = arith.constant 2 : index
    %c0_84 = arith.constant 0 : index
    %78 = vector.load %arg11[%c1_82, %c2_83, %c0_84] : memref<6x18x32xf32, #tpu.memory_space<vmem>>, vector<4x16x8xf32>
    %79 = tpu.concatenate %76, %77, %78 in 2 : vector<4x16x8xf32>, vector<4x16x8xf32>, vector<4x16x8xf32> -> vector<4x16x24xf32>
    %80 = vector.shape_cast %79 : vector<4x16x24xf32> to vector<64x24xf32>
    %cst_85 = arith.constant dense<0.000000e+00> : vector<64x8xf32>
    %81 = tpu.matmul %80, %42, %cst_85 {dimension_numbers = #tpu.dot_dimension_numbers<[1], [0], [0], [1], [0, 0, 1, 1], [], []>} : vector<64x24xf32>, vector<24x8xf32>, vector<64x8xf32> -> vector<64x8xf32>
    %82 = arith.addf %75, %81 : vector<64x8xf32>
    %c1_86 = arith.constant 1 : index
    %c1_87 = arith.constant 1 : index
    %c16_88 = arith.constant 16 : index
    %83 = vector.load %arg11[%c1_86, %c1_87, %c16_88] : memref<6x18x32xf32, #tpu.memory_space<vmem>>, vector<4x16x8xf32>
    %c1_89 = arith.constant 1 : index
    %c1_90 = arith.constant 1 : index
    %c24_91 = arith.constant 24 : index
    %84 = vector.load %arg11[%c1_89, %c1_90, %c24_91] : memref<6x18x32xf32, #tpu.memory_space<vmem>>, vector<4x16x8xf32>
    %c1_92 = arith.constant 1 : index
    %c2_93 = arith.constant 2 : index
    %c16_94 = arith.constant 16 : index
    %85 = vector.load %arg11[%c1_92, %c2_93, %c16_94] : memref<6x18x32xf32, #tpu.memory_space<vmem>>, vector<4x16x8xf32>
    %86 = tpu.concatenate %83, %84, %85 in 2 : vector<4x16x8xf32>, vector<4x16x8xf32>, vector<4x16x8xf32> -> vector<4x16x24xf32>
    %87 = vector.shape_cast %86 : vector<4x16x24xf32> to vector<64x24xf32>
    %cst_95 = arith.constant dense<0.000000e+00> : vector<64x8xf32>
    %88 = tpu.matmul %87, %43, %cst_95 {dimension_numbers = #tpu.dot_dimension_numbers<[1], [0], [0], [1], [0, 0, 1, 1], [], []>} : vector<64x24xf32>, vector<24x8xf32>, vector<64x8xf32> -> vector<64x8xf32>
    %89 = arith.addf %82, %88 : vector<64x8xf32>
    %90 = vector.broadcast %40 : vector<1x8xf32> to vector<64x8xf32>
    %91 = arith.addf %89, %90 : vector<64x8xf32>
    %cst_96 = arith.constant 0.000000e+00 : f32
    %92 = vector.broadcast %cst_96 : f32 to vector<64x8xf32>
    %c1_97 = arith.constant 1 : index
    %c0_98 = arith.constant 0 : index
    %c8_99 = arith.constant 8 : index
    %93 = vector.load %arg11[%c1_97, %c0_98, %c8_99] : memref<6x18x32xf32, #tpu.memory_space<vmem>>, vector<4x16x8xf32>
    %c1_100 = arith.constant 1 : index
    %c1_101 = arith.constant 1 : index
    %c0_102 = arith.constant 0 : index
    %94 = vector.load %arg11[%c1_100, %c1_101, %c0_102] : memref<6x18x32xf32, #tpu.memory_space<vmem>>, vector<4x16x8xf32>
    %c1_103 = arith.constant 1 : index
    %c1_104 = arith.constant 1 : index
    %c8_105 = arith.constant 8 : index
    %95 = vector.load %arg11[%c1_103, %c1_104, %c8_105] : memref<6x18x32xf32, #tpu.memory_space<vmem>>, vector<4x16x8xf32>
    %96 = tpu.concatenate %93, %94, %95 in 2 : vector<4x16x8xf32>, vector<4x16x8xf32>, vector<4x16x8xf32> -> vector<4x16x24xf32>
    %97 = vector.shape_cast %96 : vector<4x16x24xf32> to vector<64x24xf32>
    %cst_106 = arith.constant dense<0.000000e+00> : vector<64x8xf32>
    %98 = tpu.matmul %97, %41, %cst_106 {dimension_numbers = #tpu.dot_dimension_numbers<[1], [0], [0], [1], [0, 0, 1, 1], [], []>} : vector<64x24xf32>, vector<24x8xf32>, vector<64x8xf32> -> vector<64x8xf32>
    %99 = arith.addf %92, %98 : vector<64x8xf32>
    %c1_107 = arith.constant 1 : index
    %c0_108 = arith.constant 0 : index
    %c24_109 = arith.constant 24 : index
    %100 = vector.load %arg11[%c1_107, %c0_108, %c24_109] : memref<6x18x32xf32, #tpu.memory_space<vmem>>, vector<4x16x8xf32>
    %c1_110 = arith.constant 1 : index
    %c1_111 = arith.constant 1 : index
    %c16_112 = arith.constant 16 : index
    %101 = vector.load %arg11[%c1_110, %c1_111, %c16_112] : memref<6x18x32xf32, #tpu.memory_space<vmem>>, vector<4x16x8xf32>
    %c1_113 = arith.constant 1 : index
    %c1_114 = arith.constant 1 : index
    %c24_115 = arith.constant 24 : index
    %102 = vector.load %arg11[%c1_113, %c1_114, %c24_115] : memref<6x18x32xf32, #tpu.memory_space<vmem>>, vector<4x16x8xf32>
    %103 = tpu.concatenate %100, %101, %102 in 2 : vector<4x16x8xf32>, vector<4x16x8xf32>, vector<4x16x8xf32> -> vector<4x16x24xf32>
    %104 = vector.shape_cast %103 : vector<4x16x24xf32> to vector<64x24xf32>
    %cst_116 = arith.constant dense<0.000000e+00> : vector<64x8xf32>
    %105 = tpu.matmul %104, %42, %cst_116 {dimension_numbers = #tpu.dot_dimension_numbers<[1], [0], [0], [1], [0, 0, 1, 1], [], []>} : vector<64x24xf32>, vector<24x8xf32>, vector<64x8xf32> -> vector<64x8xf32>
    %106 = arith.addf %99, %105 : vector<64x8xf32>
    %c2_117 = arith.constant 2 : index
    %c0_118 = arith.constant 0 : index
    %c8_119 = arith.constant 8 : index
    %107 = vector.load %arg11[%c2_117, %c0_118, %c8_119] : memref<6x18x32xf32, #tpu.memory_space<vmem>>, vector<4x16x8xf32>
    %c2_120 = arith.constant 2 : index
    %c1_121 = arith.constant 1 : index
    %c0_122 = arith.constant 0 : index
    %108 = vector.load %arg11[%c2_120, %c1_121, %c0_122] : memref<6x18x32xf32, #tpu.memory_space<vmem>>, vector<4x16x8xf32>
    %c2_123 = arith.constant 2 : index
    %c1_124 = arith.constant 1 : index
    %c8_125 = arith.constant 8 : index
    %109 = vector.load %arg11[%c2_123, %c1_124, %c8_125] : memref<6x18x32xf32, #tpu.memory_space<vmem>>, vector<4x16x8xf32>
    %110 = tpu.concatenate %107, %108, %109 in 2 : vector<4x16x8xf32>, vector<4x16x8xf32>, vector<4x16x8xf32> -> vector<4x16x24xf32>
    %111 = vector.shape_cast %110 : vector<4x16x24xf32> to vector<64x24xf32>
    %cst_126 = arith.constant dense<0.000000e+00> : vector<64x8xf32>
    %112 = tpu.matmul %111, %43, %cst_126 {dimension_numbers = #tpu.dot_dimension_numbers<[1], [0], [0], [1], [0, 0, 1, 1], [], []>} : vector<64x24xf32>, vector<24x8xf32>, vector<64x8xf32> -> vector<64x8xf32>
    %113 = arith.addf %106, %112 : vector<64x8xf32>
    %114 = vector.broadcast %40 : vector<1x8xf32> to vector<64x8xf32>
    %115 = arith.addf %113, %114 : vector<64x8xf32>
    %cst_127 = arith.constant 0.000000e+00 : f32
    %116 = vector.broadcast %cst_127 : f32 to vector<64x8xf32>
    %c1_128 = arith.constant 1 : index
    %c1_129 = arith.constant 1 : index
    %c0_130 = arith.constant 0 : index
    %117 = vector.load %arg11[%c1_128, %c1_129, %c0_130] : memref<6x18x32xf32, #tpu.memory_space<vmem>>, vector<4x16x8xf32>
    %c1_131 = arith.constant 1 : index
    %c1_132 = arith.constant 1 : index
    %c8_133 = arith.constant 8 : index
    %118 = vector.load %arg11[%c1_131, %c1_132, %c8_133] : memref<6x18x32xf32, #tpu.memory_space<vmem>>, vector<4x16x8xf32>
    %c1_134 = arith.constant 1 : index
    %c2_135 = arith.constant 2 : index
    %c0_136 = arith.constant 0 : index
    %119 = vector.load %arg11[%c1_134, %c2_135, %c0_136] : memref<6x18x32xf32, #tpu.memory_space<vmem>>, vector<4x16x8xf32>
    %120 = tpu.concatenate %117, %118, %119 in 2 : vector<4x16x8xf32>, vector<4x16x8xf32>, vector<4x16x8xf32> -> vector<4x16x24xf32>
    %121 = vector.shape_cast %120 : vector<4x16x24xf32> to vector<64x24xf32>
    %cst_137 = arith.constant dense<0.000000e+00> : vector<64x8xf32>
    %122 = tpu.matmul %121, %41, %cst_137 {dimension_numbers = #tpu.dot_dimension_numbers<[1], [0], [0], [1], [0, 0, 1, 1], [], []>} : vector<64x24xf32>, vector<24x8xf32>, vector<64x8xf32> -> vector<64x8xf32>
    %123 = arith.addf %116, %122 : vector<64x8xf32>
    %c1_138 = arith.constant 1 : index
    %c1_139 = arith.constant 1 : index
    %c16_140 = arith.constant 16 : index
    %124 = vector.load %arg11[%c1_138, %c1_139, %c16_140] : memref<6x18x32xf32, #tpu.memory_space<vmem>>, vector<4x16x8xf32>
    %c1_141 = arith.constant 1 : index
    %c1_142 = arith.constant 1 : index
    %c24_143 = arith.constant 24 : index
    %125 = vector.load %arg11[%c1_141, %c1_142, %c24_143] : memref<6x18x32xf32, #tpu.memory_space<vmem>>, vector<4x16x8xf32>
    %c1_144 = arith.constant 1 : index
    %c2_145 = arith.constant 2 : index
    %c16_146 = arith.constant 16 : index
    %126 = vector.load %arg11[%c1_144, %c2_145, %c16_146] : memref<6x18x32xf32, #tpu.memory_space<vmem>>, vector<4x16x8xf32>
    %127 = tpu.concatenate %124, %125, %126 in 2 : vector<4x16x8xf32>, vector<4x16x8xf32>, vector<4x16x8xf32> -> vector<4x16x24xf32>
    %128 = vector.shape_cast %127 : vector<4x16x24xf32> to vector<64x24xf32>
    %cst_147 = arith.constant dense<0.000000e+00> : vector<64x8xf32>
    %129 = tpu.matmul %128, %42, %cst_147 {dimension_numbers = #tpu.dot_dimension_numbers<[1], [0], [0], [1], [0, 0, 1, 1], [], []>} : vector<64x24xf32>, vector<24x8xf32>, vector<64x8xf32> -> vector<64x8xf32>
    %130 = arith.addf %123, %129 : vector<64x8xf32>
    %c2_148 = arith.constant 2 : index
    %c1_149 = arith.constant 1 : index
    %c0_150 = arith.constant 0 : index
    %131 = vector.load %arg11[%c2_148, %c1_149, %c0_150] : memref<6x18x32xf32, #tpu.memory_space<vmem>>, vector<4x16x8xf32>
    %c2_151 = arith.constant 2 : index
    %c1_152 = arith.constant 1 : index
    %c8_153 = arith.constant 8 : index
    %132 = vector.load %arg11[%c2_151, %c1_152, %c8_153] : memref<6x18x32xf32, #tpu.memory_space<vmem>>, vector<4x16x8xf32>
    %c2_154 = arith.constant 2 : index
    %c2_155 = arith.constant 2 : index
    %c0_156 = arith.constant 0 : index
    %133 = vector.load %arg11[%c2_154, %c2_155, %c0_156] : memref<6x18x32xf32, #tpu.memory_space<vmem>>, vector<4x16x8xf32>
    %134 = tpu.concatenate %131, %132, %133 in 2 : vector<4x16x8xf32>, vector<4x16x8xf32>, vector<4x16x8xf32> -> vector<4x16x24xf32>
    %135 = vector.shape_cast %134 : vector<4x16x24xf32> to vector<64x24xf32>
    %cst_157 = arith.constant dense<0.000000e+00> : vector<64x8xf32>
    %136 = tpu.matmul %135, %43, %cst_157 {dimension_numbers = #tpu.dot_dimension_numbers<[1], [0], [0], [1], [0, 0, 1, 1], [], []>} : vector<64x24xf32>, vector<24x8xf32>, vector<64x8xf32> -> vector<64x8xf32>
    %137 = arith.addf %130, %136 : vector<64x8xf32>
    %138 = vector.broadcast %40 : vector<1x8xf32> to vector<64x8xf32>
    %139 = arith.addf %137, %138 : vector<64x8xf32>
    %140 = tpu.concatenate %67, %91, %115, %139 in 1 : vector<64x8xf32>, vector<64x8xf32>, vector<64x8xf32>, vector<64x8xf32> -> vector<64x32xf32>
    %141 = vector.shape_cast %140 : vector<64x32xf32> to vector<4x16x32xf32>
    %c0_158 = arith.constant 0 : index
    %c0_159 = arith.constant 0 : index
    %c0_160 = arith.constant 0 : index
    %c0_161 = arith.constant 0 : index
    %142 = vector.load %arg9[%c0_158, %c0_159, %c0_160, %c0_161] : memref<1x4x16x32xf32, #tpu.memory_space<vmem>>, vector<1x4x16x32xf32>
    %143 = vector.shape_cast %142 : vector<1x4x16x32xf32> to vector<4x16x32xf32>
    %144 = vector.shape_cast %141 : vector<4x16x32xf32> to vector<1x4x16x32xf32>
    tpu.vector_store %arg9[%c0_158, %c0_159, %c0_160, %c0_161], %144 {strides = array<i32>} : memref<1x4x16x32xf32, #tpu.memory_space<vmem>>, vector<1x4x16x32xf32>,
    %cst_162 = arith.constant dense<0.000000e+00> : vector<32xf32>
    %145 = vector.multi_reduction <add>, %140, %cst_162 [0] : vector<64x32xf32> to vector<32xf32>
    %146 = vector.shape_cast %145 : vector<32xf32> to vector<1x32xf32>
    %147 = arith.mulf %140, %140 : vector<64x32xf32>
    %cst_163 = arith.constant dense<0.000000e+00> : vector<32xf32>
    %148 = vector.multi_reduction <add>, %147, %cst_163 [0] : vector<64x32xf32> to vector<32xf32>
    %149 = vector.shape_cast %148 : vector<32xf32> to vector<1x32xf32>
    %150 = tpu.concatenate %146, %149 in 0 : vector<1x32xf32>, vector<1x32xf32> -> vector<2x32xf32>
    %c0_164 = arith.constant 0 : index
    %c0_165 = arith.constant 0 : index
    %c0_166 = arith.constant 0 : index
    %c0_167 = arith.constant 0 : index
    %151 = vector.load %arg10[%c0_164, %c0_165, %c0_166, %c0_167] : memref<1x1x2x32xf32, #tpu.memory_space<vmem>>, vector<1x1x2x32xf32>
    %152 = vector.shape_cast %151 : vector<1x1x2x32xf32> to vector<2x32xf32>
    %153 = vector.shape_cast %150 : vector<2x32xf32> to vector<1x1x2x32xf32>
    tpu.vector_store %arg10[%c0_164, %c0_165, %c0_166, %c0_167], %153 {strides = array<i32>} : memref<1x1x2x32xf32, #tpu.memory_space<vmem>>, vector<1x1x2x32xf32>,
    return
  }
  func.func @transform_0(%arg0: i32, %arg1: i32) -> (i32, i32, i32, i32) {
    %c0_i32 = arith.constant 0 : i32
    %c0_i32_0 = arith.constant 0 : i32
    %c0_i32_1 = arith.constant 0 : i32
    return %arg0, %arg1, %c0_i32, %c0_i32_0 : i32, i32, i32, i32
  }
  func.func @transform_1(%arg0: i32, %arg1: i32) -> (i32, i32, i32, i32) {
    %c4_i32 = arith.constant 4 : i32
    %0 = arith.muli %arg1, %c4_i32 : i32
    %c1_i32 = arith.constant 1 : i32
    %1 = arith.subi %0, %c1_i32 : i32
    %c0_i32 = arith.constant 0 : i32
    %2 = arith.maxsi %1, %c0_i32 : i32
    %c0_i32_0 = arith.constant 0 : i32
    %c0_i32_1 = arith.constant 0 : i32
    %c0_i32_2 = arith.constant 0 : i32
    return %arg0, %2, %c0_i32_0, %c0_i32_1 : i32, i32, i32, i32
  }
  func.func @transform_2(%arg0: i32, %arg1: i32) -> (i32, i32, i32, i32) {
    %c4_i32 = arith.constant 4 : i32
    %0 = arith.muli %arg1, %c4_i32 : i32
    %c4_i32_0 = arith.constant 4 : i32
    %1 = arith.addi %0, %c4_i32_0 : i32
    %c15_i32 = arith.constant 15 : i32
    %2 = arith.minsi %1, %c15_i32 : i32
    %c0_i32 = arith.constant 0 : i32
    %c0_i32_1 = arith.constant 0 : i32
    %c0_i32_2 = arith.constant 0 : i32
    return %arg0, %2, %c0_i32, %c0_i32_1 : i32, i32, i32, i32
  }
  func.func @transform_3(%arg0: i32, %arg1: i32) -> (i32, i32) {
    %c0_i32 = arith.constant 0 : i32
    %c0_i32_0 = arith.constant 0 : i32
    %c0_i32_1 = arith.constant 0 : i32
    return %c0_i32, %c0_i32_0 : i32, i32
  }
  func.func @transform_4(%arg0: i32, %arg1: i32) -> (i32, i32) {
    %c0_i32 = arith.constant 0 : i32
    %c0_i32_0 = arith.constant 0 : i32
    %c0_i32_1 = arith.constant 0 : i32
    return %c0_i32, %c0_i32_0 : i32, i32
  }
  func.func @transform_5(%arg0: i32, %arg1: i32) -> (i32, i32) {
    %c0_i32 = arith.constant 0 : i32
    %c0_i32_0 = arith.constant 0 : i32
    %c0_i32_1 = arith.constant 0 : i32
    return %c0_i32, %c0_i32_0 : i32, i32
  }
  func.func @transform_6(%arg0: i32, %arg1: i32) -> (i32, i32) {
    %c0_i32 = arith.constant 0 : i32
    %c0_i32_0 = arith.constant 0 : i32
    %c0_i32_1 = arith.constant 0 : i32
    return %c0_i32, %c0_i32_0 : i32, i32
  }
  func.func @transform_7(%arg0: i32, %arg1: i32) -> (i32, i32, i32, i32) {
    %c0_i32 = arith.constant 0 : i32
    %c0_i32_0 = arith.constant 0 : i32
    %c0_i32_1 = arith.constant 0 : i32
    return %arg0, %arg1, %c0_i32, %c0_i32_0 : i32, i32, i32, i32
  }
  func.func @transform_8(%arg0: i32, %arg1: i32) -> (i32, i32, i32, i32) {
    %c0_i32 = arith.constant 0 : i32
    %c0_i32_0 = arith.constant 0 : i32
    %c0_i32_1 = arith.constant 0 : i32
    return %arg0, %arg1, %c0_i32, %c0_i32_0 : i32, i32, i32, i32
  }
}

module attributes {stable_mosaic.version = 11 : i64} {
  func.func @_bnrelu_conv_kernel(%arg0: i32, %arg1: i32, %arg2: memref<1x4x16x32xf32, #tpu.memory_space<vmem>>, %arg3: memref<1x1x16x32xf32, #tpu.memory_space<vmem>>, %arg4: memref<1x1x16x32xf32, #tpu.memory_space<vmem>>, %arg5: memref<1x32xf32, #tpu.memory_space<vmem>>, %arg6: memref<1x32xf32, #tpu.memory_space<vmem>>, %arg7: memref<72x8xf32, #tpu.memory_space<vmem>>, %arg8: memref<1x8xf32, #tpu.memory_space<vmem>>, %arg9: memref<1x4x16x32xf32, #tpu.memory_space<vmem>>, %arg10: memref<1x1x2x32xf32, #tpu.memory_space<vmem>>, %arg11: memref<6x18x32xf32, #tpu.memory_space<vmem>>) attributes {dimension_semantics = [#tpu.dimension_semantics<parallel>, #tpu.dimension_semantics<parallel>], iteration_bounds = array<i64: 2, 4>, scalar_prefetch = 0 : i64, scratch_operands = 1 : i64, tpu.core_type = #tpu.core_type<tc>, window_params = [{transform_indices = @transform_0, window_bounds = array<i64: 1, 4, 16, 32>}, {transform_indices = @transform_1, window_bounds = array<i64: 1, 1, 16, 32>}, {transform_indices = @transform_2, window_bounds = array<i64: 1, 1, 16, 32>}, {pipeline_mode = #tpu.pipeline_mode<synchronous>, transform_indices = @transform_3, window_bounds = array<i64: 1, 32>}, {pipeline_mode = #tpu.pipeline_mode<synchronous>, transform_indices = @transform_4, window_bounds = array<i64: 1, 32>}, {pipeline_mode = #tpu.pipeline_mode<synchronous>, transform_indices = @transform_5, window_bounds = array<i64: 72, 8>}, {pipeline_mode = #tpu.pipeline_mode<synchronous>, transform_indices = @transform_6, window_bounds = array<i64: 1, 8>}, {transform_indices = @transform_7, window_bounds = array<i64: 1, 4, 16, 32>}, {transform_indices = @transform_8, window_bounds = array<i64: 1, 1, 2, 32>}]} {
    %cst = arith.constant 0.000000e+00 : f32
    %0 = vector.broadcast %cst : f32 to vector<6x1x32xf32>
    %c0 = arith.constant 0 : index
    %c0_0 = arith.constant 0 : index
    %c0_1 = arith.constant 0 : index
    %1 = vector.load %arg11[%c0, %c0_0, %c0_1] : memref<6x18x32xf32, #tpu.memory_space<vmem>>, vector<6x1x32xf32>
    tpu.vector_store %arg11[%c0, %c0_0, %c0_1], %0 {strides = array<i32>} : memref<6x18x32xf32, #tpu.memory_space<vmem>>, vector<6x1x32xf32>,
    %cst_2 = arith.constant 0.000000e+00 : f32
    %2 = vector.broadcast %cst_2 : f32 to vector<6x1x32xf32>
    %c0_3 = arith.constant 0 : index
    %c17 = arith.constant 17 : index
    %c0_4 = arith.constant 0 : index
    %3 = vector.load %arg11[%c0_3, %c17, %c0_4] : memref<6x18x32xf32, #tpu.memory_space<vmem>>, vector<6x1x32xf32>
    tpu.vector_store %arg11[%c0_3, %c17, %c0_4], %2 {strides = array<i32>} : memref<6x18x32xf32, #tpu.memory_space<vmem>>, vector<6x1x32xf32>,
    %c0_5 = arith.constant 0 : index
    %c0_6 = arith.constant 0 : index
    %4 = vector.load %arg5[%c0_5, %c0_6] : memref<1x32xf32, #tpu.memory_space<vmem>>, vector<1x32xf32>
    %c0_7 = arith.constant 0 : index
    %c0_8 = arith.constant 0 : index
    %5 = vector.load %arg6[%c0_7, %c0_8] : memref<1x32xf32, #tpu.memory_space<vmem>>, vector<1x32xf32>
    %c0_9 = arith.constant 0 : index
    %c0_10 = arith.constant 0 : index
    %c0_11 = arith.constant 0 : index
    %c0_12 = arith.constant 0 : index
    %6 = vector.load %arg2[%c0_9, %c0_10, %c0_11, %c0_12] : memref<1x4x16x32xf32, #tpu.memory_space<vmem>>, vector<1x4x16x32xf32>
    %7 = vector.shape_cast %6 : vector<1x4x16x32xf32> to vector<4x16x32xf32>
    %8 = vector.shape_cast %7 : vector<4x16x32xf32> to vector<64x32xf32>
    %9 = vector.broadcast %4 : vector<1x32xf32> to vector<64x32xf32>
    %10 = arith.mulf %8, %9 : vector<64x32xf32>
    %11 = vector.broadcast %5 : vector<1x32xf32> to vector<64x32xf32>
    %12 = arith.addf %10, %11 : vector<64x32xf32>
    %cst_13 = arith.constant 0.000000e+00 : f32
    %13 = vector.broadcast %cst_13 : f32 to vector<64x32xf32>
    %14 = arith.maximumf %12, %13 : vector<64x32xf32>
    %15 = vector.shape_cast %14 : vector<64x32xf32> to vector<4x16x32xf32>
    %c1 = arith.constant 1 : index
    %c1_14 = arith.constant 1 : index
    %c0_15 = arith.constant 0 : index
    %16 = vector.load %arg11[%c1, %c1_14, %c0_15] : memref<6x18x32xf32, #tpu.memory_space<vmem>>, vector<4x16x32xf32>
    tpu.vector_store %arg11[%c1, %c1_14, %c0_15], %15 {strides = array<i32>} : memref<6x18x32xf32, #tpu.memory_space<vmem>>, vector<4x16x32xf32>,
    %c0_16 = arith.constant 0 : index
    %c0_17 = arith.constant 0 : index
    %c0_18 = arith.constant 0 : index
    %c0_19 = arith.constant 0 : index
    %17 = vector.load %arg3[%c0_16, %c0_17, %c0_18, %c0_19] : memref<1x1x16x32xf32, #tpu.memory_space<vmem>>, vector<1x1x16x32xf32>
    %18 = vector.shape_cast %17 : vector<1x1x16x32xf32> to vector<1x16x32xf32>
    %19 = vector.shape_cast %18 : vector<1x16x32xf32> to vector<16x32xf32>
    %20 = vector.broadcast %4 : vector<1x32xf32> to vector<16x32xf32>
    %21 = arith.mulf %19, %20 : vector<16x32xf32>
    %22 = vector.broadcast %5 : vector<1x32xf32> to vector<16x32xf32>
    %23 = arith.addf %21, %22 : vector<16x32xf32>
    %cst_20 = arith.constant 0.000000e+00 : f32
    %24 = vector.broadcast %cst_20 : f32 to vector<16x32xf32>
    %25 = arith.maximumf %23, %24 : vector<16x32xf32>
    %26 = vector.shape_cast %25 : vector<16x32xf32> to vector<1x16x32xf32>
    %c0_i32 = arith.constant 0 : i32
    %27 = arith.cmpi sgt, %arg1, %c0_i32 : i32
    %28 = arith.extui %27 : i1 to i32
    %c0_i32_21 = arith.constant 0 : i32
    %29 = arith.cmpi ne, %28, %c0_i32_21 : i32
    scf.if %29 {
      %c0_168 = arith.constant 0 : index
      %c1_169 = arith.constant 1 : index
      %c0_170 = arith.constant 0 : index
      %163 = vector.load %arg11[%c0_168, %c1_169, %c0_170] : memref<6x18x32xf32, #tpu.memory_space<vmem>>, vector<1x16x32xf32>
      tpu.vector_store %arg11[%c0_168, %c1_169, %c0_170], %26 {strides = array<i32>} : memref<6x18x32xf32, #tpu.memory_space<vmem>>, vector<1x16x32xf32>,
    } else {
    }
    %true = arith.constant true
    %30 = arith.xori %27, %true : i1
    %31 = arith.extui %30 : i1 to i32
    %c0_i32_22 = arith.constant 0 : i32
    %32 = arith.cmpi ne, %31, %c0_i32_22 : i32
    scf.if %32 {
      %cst_168 = arith.constant 0.000000e+00 : f32
      %163 = vector.broadcast %cst_168 : f32 to vector<1x16x32xf32>
      %c0_169 = arith.constant 0 : index
      %c1_170 = arith.constant 1 : index
      %c0_171 = arith.constant 0 : index
      %164 = vector.load %arg11[%c0_169, %c1_170, %c0_171] : memref<6x18x32xf32, #tpu.memory_space<vmem>>, vector<1x16x32xf32>
      tpu.vector_store %arg11[%c0_169, %c1_170, %c0_171], %163 {strides = array<i32>} : memref<6x18x32xf32, #tpu.memory_space<vmem>>, vector<1x16x32xf32>,
    } else {
    }
    %c0_23 = arith.constant 0 : index
    %c0_24 = arith.constant 0 : index
    %c0_25 = arith.constant 0 : index
    %c0_26 = arith.constant 0 : index
    %33 = vector.load %arg4[%c0_23, %c0_24, %c0_25, %c0_26] : memref<1x1x16x32xf32, #tpu.memory_space<vmem>>, vector<1x1x16x32xf32>
    %34 = vector.shape_cast %33 : vector<1x1x16x32xf32> to vector<1x16x32xf32>
    %35 = vector.shape_cast %34 : vector<1x16x32xf32> to vector<16x32xf32>
    %36 = vector.broadcast %4 : vector<1x32xf32> to vector<16x32xf32>
    %37 = arith.mulf %35, %36 : vector<16x32xf32>
    %38 = vector.broadcast %5 : vector<1x32xf32> to vector<16x32xf32>
    %39 = arith.addf %37, %38 : vector<16x32xf32>
    %cst_27 = arith.constant 0.000000e+00 : f32
    %40 = vector.broadcast %cst_27 : f32 to vector<16x32xf32>
    %41 = arith.maximumf %39, %40 : vector<16x32xf32>
    %42 = vector.shape_cast %41 : vector<16x32xf32> to vector<1x16x32xf32>
    %c3_i32 = arith.constant 3 : i32
    %43 = arith.cmpi slt, %arg1, %c3_i32 : i32
    %44 = arith.extui %43 : i1 to i32
    %c0_i32_28 = arith.constant 0 : i32
    %45 = arith.cmpi ne, %44, %c0_i32_28 : i32
    scf.if %45 {
      %c5 = arith.constant 5 : index
      %c1_168 = arith.constant 1 : index
      %c0_169 = arith.constant 0 : index
      %163 = vector.load %arg11[%c5, %c1_168, %c0_169] : memref<6x18x32xf32, #tpu.memory_space<vmem>>, vector<1x16x32xf32>
      tpu.vector_store %arg11[%c5, %c1_168, %c0_169], %42 {strides = array<i32>} : memref<6x18x32xf32, #tpu.memory_space<vmem>>, vector<1x16x32xf32>,
    } else {
    }
    %true_29 = arith.constant true
    %46 = arith.xori %43, %true_29 : i1
    %47 = arith.extui %46 : i1 to i32
    %c0_i32_30 = arith.constant 0 : i32
    %48 = arith.cmpi ne, %47, %c0_i32_30 : i32
    scf.if %48 {
      %cst_168 = arith.constant 0.000000e+00 : f32
      %163 = vector.broadcast %cst_168 : f32 to vector<1x16x32xf32>
      %c5 = arith.constant 5 : index
      %c1_169 = arith.constant 1 : index
      %c0_170 = arith.constant 0 : index
      %164 = vector.load %arg11[%c5, %c1_169, %c0_170] : memref<6x18x32xf32, #tpu.memory_space<vmem>>, vector<1x16x32xf32>
      tpu.vector_store %arg11[%c5, %c1_169, %c0_170], %163 {strides = array<i32>} : memref<6x18x32xf32, #tpu.memory_space<vmem>>, vector<1x16x32xf32>,
    } else {
    }
    %c0_31 = arith.constant 0 : index
    %c0_32 = arith.constant 0 : index
    %49 = vector.load %arg8[%c0_31, %c0_32] : memref<1x8xf32, #tpu.memory_space<vmem>>, vector<1x8xf32>
    %c0_33 = arith.constant 0 : index
    %c0_34 = arith.constant 0 : index
    %50 = vector.load %arg7[%c0_33, %c0_34] : memref<72x8xf32, #tpu.memory_space<vmem>>, vector<24x8xf32>
    %c24 = arith.constant 24 : index
    %c0_35 = arith.constant 0 : index
    %51 = vector.load %arg7[%c24, %c0_35] : memref<72x8xf32, #tpu.memory_space<vmem>>, vector<24x8xf32>
    %c48 = arith.constant 48 : index
    %c0_36 = arith.constant 0 : index
    %52 = vector.load %arg7[%c48, %c0_36] : memref<72x8xf32, #tpu.memory_space<vmem>>, vector<24x8xf32>
    %cst_37 = arith.constant 0.000000e+00 : f32
    %53 = vector.broadcast %cst_37 : f32 to vector<64x8xf32>
    %c0_38 = arith.constant 0 : index
    %c0_39 = arith.constant 0 : index
    %c24_40 = arith.constant 24 : index
    %54 = vector.load %arg11[%c0_38, %c0_39, %c24_40] : memref<6x18x32xf32, #tpu.memory_space<vmem>>, vector<4x16x8xf32>
    %c0_41 = arith.constant 0 : index
    %c1_42 = arith.constant 1 : index
    %c16 = arith.constant 16 : index
    %55 = vector.load %arg11[%c0_41, %c1_42, %c16] : memref<6x18x32xf32, #tpu.memory_space<vmem>>, vector<4x16x8xf32>
    %c0_43 = arith.constant 0 : index
    %c1_44 = arith.constant 1 : index
    %c24_45 = arith.constant 24 : index
    %56 = vector.load %arg11[%c0_43, %c1_44, %c24_45] : memref<6x18x32xf32, #tpu.memory_space<vmem>>, vector<4x16x8xf32>
    %57 = tpu.concatenate %54, %55, %56 in 2 : vector<4x16x8xf32>, vector<4x16x8xf32>, vector<4x16x8xf32> -> vector<4x16x24xf32>
    %58 = vector.shape_cast %57 : vector<4x16x24xf32> to vector<64x24xf32>
    %cst_46 = arith.constant dense<0.000000e+00> : vector<64x8xf32>
    %59 = tpu.matmul %58, %50, %cst_46 {dimension_numbers = #tpu.dot_dimension_numbers<[1], [0], [0], [1], [0, 0, 1, 1], [], []>} : vector<64x24xf32>, vector<24x8xf32>, vector<64x8xf32> -> vector<64x8xf32>
    %60 = arith.addf %53, %59 : vector<64x8xf32>
    %c1_47 = arith.constant 1 : index
    %c0_48 = arith.constant 0 : index
    %c8 = arith.constant 8 : index
    %61 = vector.load %arg11[%c1_47, %c0_48, %c8] : memref<6x18x32xf32, #tpu.memory_space<vmem>>, vector<4x16x8xf32>
    %c1_49 = arith.constant 1 : index
    %c1_50 = arith.constant 1 : index
    %c0_51 = arith.constant 0 : index
    %62 = vector.load %arg11[%c1_49, %c1_50, %c0_51] : memref<6x18x32xf32, #tpu.memory_space<vmem>>, vector<4x16x8xf32>
    %c1_52 = arith.constant 1 : index
    %c1_53 = arith.constant 1 : index
    %c8_54 = arith.constant 8 : index
    %63 = vector.load %arg11[%c1_52, %c1_53, %c8_54] : memref<6x18x32xf32, #tpu.memory_space<vmem>>, vector<4x16x8xf32>
    %64 = tpu.concatenate %61, %62, %63 in 2 : vector<4x16x8xf32>, vector<4x16x8xf32>, vector<4x16x8xf32> -> vector<4x16x24xf32>
    %65 = vector.shape_cast %64 : vector<4x16x24xf32> to vector<64x24xf32>
    %cst_55 = arith.constant dense<0.000000e+00> : vector<64x8xf32>
    %66 = tpu.matmul %65, %51, %cst_55 {dimension_numbers = #tpu.dot_dimension_numbers<[1], [0], [0], [1], [0, 0, 1, 1], [], []>} : vector<64x24xf32>, vector<24x8xf32>, vector<64x8xf32> -> vector<64x8xf32>
    %67 = arith.addf %60, %66 : vector<64x8xf32>
    %c1_56 = arith.constant 1 : index
    %c0_57 = arith.constant 0 : index
    %c24_58 = arith.constant 24 : index
    %68 = vector.load %arg11[%c1_56, %c0_57, %c24_58] : memref<6x18x32xf32, #tpu.memory_space<vmem>>, vector<4x16x8xf32>
    %c1_59 = arith.constant 1 : index
    %c1_60 = arith.constant 1 : index
    %c16_61 = arith.constant 16 : index
    %69 = vector.load %arg11[%c1_59, %c1_60, %c16_61] : memref<6x18x32xf32, #tpu.memory_space<vmem>>, vector<4x16x8xf32>
    %c1_62 = arith.constant 1 : index
    %c1_63 = arith.constant 1 : index
    %c24_64 = arith.constant 24 : index
    %70 = vector.load %arg11[%c1_62, %c1_63, %c24_64] : memref<6x18x32xf32, #tpu.memory_space<vmem>>, vector<4x16x8xf32>
    %71 = tpu.concatenate %68, %69, %70 in 2 : vector<4x16x8xf32>, vector<4x16x8xf32>, vector<4x16x8xf32> -> vector<4x16x24xf32>
    %72 = vector.shape_cast %71 : vector<4x16x24xf32> to vector<64x24xf32>
    %cst_65 = arith.constant dense<0.000000e+00> : vector<64x8xf32>
    %73 = tpu.matmul %72, %52, %cst_65 {dimension_numbers = #tpu.dot_dimension_numbers<[1], [0], [0], [1], [0, 0, 1, 1], [], []>} : vector<64x24xf32>, vector<24x8xf32>, vector<64x8xf32> -> vector<64x8xf32>
    %74 = arith.addf %67, %73 : vector<64x8xf32>
    %75 = vector.broadcast %49 : vector<1x8xf32> to vector<64x8xf32>
    %76 = arith.addf %74, %75 : vector<64x8xf32>
    %cst_66 = arith.constant 0.000000e+00 : f32
    %77 = vector.broadcast %cst_66 : f32 to vector<64x8xf32>
    %c0_67 = arith.constant 0 : index
    %c1_68 = arith.constant 1 : index
    %c16_69 = arith.constant 16 : index
    %78 = vector.load %arg11[%c0_67, %c1_68, %c16_69] : memref<6x18x32xf32, #tpu.memory_space<vmem>>, vector<4x16x8xf32>
    %c0_70 = arith.constant 0 : index
    %c1_71 = arith.constant 1 : index
    %c24_72 = arith.constant 24 : index
    %79 = vector.load %arg11[%c0_70, %c1_71, %c24_72] : memref<6x18x32xf32, #tpu.memory_space<vmem>>, vector<4x16x8xf32>
    %c0_73 = arith.constant 0 : index
    %c2 = arith.constant 2 : index
    %c16_74 = arith.constant 16 : index
    %80 = vector.load %arg11[%c0_73, %c2, %c16_74] : memref<6x18x32xf32, #tpu.memory_space<vmem>>, vector<4x16x8xf32>
    %81 = tpu.concatenate %78, %79, %80 in 2 : vector<4x16x8xf32>, vector<4x16x8xf32>, vector<4x16x8xf32> -> vector<4x16x24xf32>
    %82 = vector.shape_cast %81 : vector<4x16x24xf32> to vector<64x24xf32>
    %cst_75 = arith.constant dense<0.000000e+00> : vector<64x8xf32>
    %83 = tpu.matmul %82, %50, %cst_75 {dimension_numbers = #tpu.dot_dimension_numbers<[1], [0], [0], [1], [0, 0, 1, 1], [], []>} : vector<64x24xf32>, vector<24x8xf32>, vector<64x8xf32> -> vector<64x8xf32>
    %84 = arith.addf %77, %83 : vector<64x8xf32>
    %c1_76 = arith.constant 1 : index
    %c1_77 = arith.constant 1 : index
    %c0_78 = arith.constant 0 : index
    %85 = vector.load %arg11[%c1_76, %c1_77, %c0_78] : memref<6x18x32xf32, #tpu.memory_space<vmem>>, vector<4x16x8xf32>
    %c1_79 = arith.constant 1 : index
    %c1_80 = arith.constant 1 : index
    %c8_81 = arith.constant 8 : index
    %86 = vector.load %arg11[%c1_79, %c1_80, %c8_81] : memref<6x18x32xf32, #tpu.memory_space<vmem>>, vector<4x16x8xf32>
    %c1_82 = arith.constant 1 : index
    %c2_83 = arith.constant 2 : index
    %c0_84 = arith.constant 0 : index
    %87 = vector.load %arg11[%c1_82, %c2_83, %c0_84] : memref<6x18x32xf32, #tpu.memory_space<vmem>>, vector<4x16x8xf32>
    %88 = tpu.concatenate %85, %86, %87 in 2 : vector<4x16x8xf32>, vector<4x16x8xf32>, vector<4x16x8xf32> -> vector<4x16x24xf32>
    %89 = vector.shape_cast %88 : vector<4x16x24xf32> to vector<64x24xf32>
    %cst_85 = arith.constant dense<0.000000e+00> : vector<64x8xf32>
    %90 = tpu.matmul %89, %51, %cst_85 {dimension_numbers = #tpu.dot_dimension_numbers<[1], [0], [0], [1], [0, 0, 1, 1], [], []>} : vector<64x24xf32>, vector<24x8xf32>, vector<64x8xf32> -> vector<64x8xf32>
    %91 = arith.addf %84, %90 : vector<64x8xf32>
    %c1_86 = arith.constant 1 : index
    %c1_87 = arith.constant 1 : index
    %c16_88 = arith.constant 16 : index
    %92 = vector.load %arg11[%c1_86, %c1_87, %c16_88] : memref<6x18x32xf32, #tpu.memory_space<vmem>>, vector<4x16x8xf32>
    %c1_89 = arith.constant 1 : index
    %c1_90 = arith.constant 1 : index
    %c24_91 = arith.constant 24 : index
    %93 = vector.load %arg11[%c1_89, %c1_90, %c24_91] : memref<6x18x32xf32, #tpu.memory_space<vmem>>, vector<4x16x8xf32>
    %c1_92 = arith.constant 1 : index
    %c2_93 = arith.constant 2 : index
    %c16_94 = arith.constant 16 : index
    %94 = vector.load %arg11[%c1_92, %c2_93, %c16_94] : memref<6x18x32xf32, #tpu.memory_space<vmem>>, vector<4x16x8xf32>
    %95 = tpu.concatenate %92, %93, %94 in 2 : vector<4x16x8xf32>, vector<4x16x8xf32>, vector<4x16x8xf32> -> vector<4x16x24xf32>
    %96 = vector.shape_cast %95 : vector<4x16x24xf32> to vector<64x24xf32>
    %cst_95 = arith.constant dense<0.000000e+00> : vector<64x8xf32>
    %97 = tpu.matmul %96, %52, %cst_95 {dimension_numbers = #tpu.dot_dimension_numbers<[1], [0], [0], [1], [0, 0, 1, 1], [], []>} : vector<64x24xf32>, vector<24x8xf32>, vector<64x8xf32> -> vector<64x8xf32>
    %98 = arith.addf %91, %97 : vector<64x8xf32>
    %99 = vector.broadcast %49 : vector<1x8xf32> to vector<64x8xf32>
    %100 = arith.addf %98, %99 : vector<64x8xf32>
    %cst_96 = arith.constant 0.000000e+00 : f32
    %101 = vector.broadcast %cst_96 : f32 to vector<64x8xf32>
    %c1_97 = arith.constant 1 : index
    %c0_98 = arith.constant 0 : index
    %c8_99 = arith.constant 8 : index
    %102 = vector.load %arg11[%c1_97, %c0_98, %c8_99] : memref<6x18x32xf32, #tpu.memory_space<vmem>>, vector<4x16x8xf32>
    %c1_100 = arith.constant 1 : index
    %c1_101 = arith.constant 1 : index
    %c0_102 = arith.constant 0 : index
    %103 = vector.load %arg11[%c1_100, %c1_101, %c0_102] : memref<6x18x32xf32, #tpu.memory_space<vmem>>, vector<4x16x8xf32>
    %c1_103 = arith.constant 1 : index
    %c1_104 = arith.constant 1 : index
    %c8_105 = arith.constant 8 : index
    %104 = vector.load %arg11[%c1_103, %c1_104, %c8_105] : memref<6x18x32xf32, #tpu.memory_space<vmem>>, vector<4x16x8xf32>
    %105 = tpu.concatenate %102, %103, %104 in 2 : vector<4x16x8xf32>, vector<4x16x8xf32>, vector<4x16x8xf32> -> vector<4x16x24xf32>
    %106 = vector.shape_cast %105 : vector<4x16x24xf32> to vector<64x24xf32>
    %cst_106 = arith.constant dense<0.000000e+00> : vector<64x8xf32>
    %107 = tpu.matmul %106, %50, %cst_106 {dimension_numbers = #tpu.dot_dimension_numbers<[1], [0], [0], [1], [0, 0, 1, 1], [], []>} : vector<64x24xf32>, vector<24x8xf32>, vector<64x8xf32> -> vector<64x8xf32>
    %108 = arith.addf %101, %107 : vector<64x8xf32>
    %c1_107 = arith.constant 1 : index
    %c0_108 = arith.constant 0 : index
    %c24_109 = arith.constant 24 : index
    %109 = vector.load %arg11[%c1_107, %c0_108, %c24_109] : memref<6x18x32xf32, #tpu.memory_space<vmem>>, vector<4x16x8xf32>
    %c1_110 = arith.constant 1 : index
    %c1_111 = arith.constant 1 : index
    %c16_112 = arith.constant 16 : index
    %110 = vector.load %arg11[%c1_110, %c1_111, %c16_112] : memref<6x18x32xf32, #tpu.memory_space<vmem>>, vector<4x16x8xf32>
    %c1_113 = arith.constant 1 : index
    %c1_114 = arith.constant 1 : index
    %c24_115 = arith.constant 24 : index
    %111 = vector.load %arg11[%c1_113, %c1_114, %c24_115] : memref<6x18x32xf32, #tpu.memory_space<vmem>>, vector<4x16x8xf32>
    %112 = tpu.concatenate %109, %110, %111 in 2 : vector<4x16x8xf32>, vector<4x16x8xf32>, vector<4x16x8xf32> -> vector<4x16x24xf32>
    %113 = vector.shape_cast %112 : vector<4x16x24xf32> to vector<64x24xf32>
    %cst_116 = arith.constant dense<0.000000e+00> : vector<64x8xf32>
    %114 = tpu.matmul %113, %51, %cst_116 {dimension_numbers = #tpu.dot_dimension_numbers<[1], [0], [0], [1], [0, 0, 1, 1], [], []>} : vector<64x24xf32>, vector<24x8xf32>, vector<64x8xf32> -> vector<64x8xf32>
    %115 = arith.addf %108, %114 : vector<64x8xf32>
    %c2_117 = arith.constant 2 : index
    %c0_118 = arith.constant 0 : index
    %c8_119 = arith.constant 8 : index
    %116 = vector.load %arg11[%c2_117, %c0_118, %c8_119] : memref<6x18x32xf32, #tpu.memory_space<vmem>>, vector<4x16x8xf32>
    %c2_120 = arith.constant 2 : index
    %c1_121 = arith.constant 1 : index
    %c0_122 = arith.constant 0 : index
    %117 = vector.load %arg11[%c2_120, %c1_121, %c0_122] : memref<6x18x32xf32, #tpu.memory_space<vmem>>, vector<4x16x8xf32>
    %c2_123 = arith.constant 2 : index
    %c1_124 = arith.constant 1 : index
    %c8_125 = arith.constant 8 : index
    %118 = vector.load %arg11[%c2_123, %c1_124, %c8_125] : memref<6x18x32xf32, #tpu.memory_space<vmem>>, vector<4x16x8xf32>
    %119 = tpu.concatenate %116, %117, %118 in 2 : vector<4x16x8xf32>, vector<4x16x8xf32>, vector<4x16x8xf32> -> vector<4x16x24xf32>
    %120 = vector.shape_cast %119 : vector<4x16x24xf32> to vector<64x24xf32>
    %cst_126 = arith.constant dense<0.000000e+00> : vector<64x8xf32>
    %121 = tpu.matmul %120, %52, %cst_126 {dimension_numbers = #tpu.dot_dimension_numbers<[1], [0], [0], [1], [0, 0, 1, 1], [], []>} : vector<64x24xf32>, vector<24x8xf32>, vector<64x8xf32> -> vector<64x8xf32>
    %122 = arith.addf %115, %121 : vector<64x8xf32>
    %123 = vector.broadcast %49 : vector<1x8xf32> to vector<64x8xf32>
    %124 = arith.addf %122, %123 : vector<64x8xf32>
    %cst_127 = arith.constant 0.000000e+00 : f32
    %125 = vector.broadcast %cst_127 : f32 to vector<64x8xf32>
    %c1_128 = arith.constant 1 : index
    %c1_129 = arith.constant 1 : index
    %c0_130 = arith.constant 0 : index
    %126 = vector.load %arg11[%c1_128, %c1_129, %c0_130] : memref<6x18x32xf32, #tpu.memory_space<vmem>>, vector<4x16x8xf32>
    %c1_131 = arith.constant 1 : index
    %c1_132 = arith.constant 1 : index
    %c8_133 = arith.constant 8 : index
    %127 = vector.load %arg11[%c1_131, %c1_132, %c8_133] : memref<6x18x32xf32, #tpu.memory_space<vmem>>, vector<4x16x8xf32>
    %c1_134 = arith.constant 1 : index
    %c2_135 = arith.constant 2 : index
    %c0_136 = arith.constant 0 : index
    %128 = vector.load %arg11[%c1_134, %c2_135, %c0_136] : memref<6x18x32xf32, #tpu.memory_space<vmem>>, vector<4x16x8xf32>
    %129 = tpu.concatenate %126, %127, %128 in 2 : vector<4x16x8xf32>, vector<4x16x8xf32>, vector<4x16x8xf32> -> vector<4x16x24xf32>
    %130 = vector.shape_cast %129 : vector<4x16x24xf32> to vector<64x24xf32>
    %cst_137 = arith.constant dense<0.000000e+00> : vector<64x8xf32>
    %131 = tpu.matmul %130, %50, %cst_137 {dimension_numbers = #tpu.dot_dimension_numbers<[1], [0], [0], [1], [0, 0, 1, 1], [], []>} : vector<64x24xf32>, vector<24x8xf32>, vector<64x8xf32> -> vector<64x8xf32>
    %132 = arith.addf %125, %131 : vector<64x8xf32>
    %c1_138 = arith.constant 1 : index
    %c1_139 = arith.constant 1 : index
    %c16_140 = arith.constant 16 : index
    %133 = vector.load %arg11[%c1_138, %c1_139, %c16_140] : memref<6x18x32xf32, #tpu.memory_space<vmem>>, vector<4x16x8xf32>
    %c1_141 = arith.constant 1 : index
    %c1_142 = arith.constant 1 : index
    %c24_143 = arith.constant 24 : index
    %134 = vector.load %arg11[%c1_141, %c1_142, %c24_143] : memref<6x18x32xf32, #tpu.memory_space<vmem>>, vector<4x16x8xf32>
    %c1_144 = arith.constant 1 : index
    %c2_145 = arith.constant 2 : index
    %c16_146 = arith.constant 16 : index
    %135 = vector.load %arg11[%c1_144, %c2_145, %c16_146] : memref<6x18x32xf32, #tpu.memory_space<vmem>>, vector<4x16x8xf32>
    %136 = tpu.concatenate %133, %134, %135 in 2 : vector<4x16x8xf32>, vector<4x16x8xf32>, vector<4x16x8xf32> -> vector<4x16x24xf32>
    %137 = vector.shape_cast %136 : vector<4x16x24xf32> to vector<64x24xf32>
    %cst_147 = arith.constant dense<0.000000e+00> : vector<64x8xf32>
    %138 = tpu.matmul %137, %51, %cst_147 {dimension_numbers = #tpu.dot_dimension_numbers<[1], [0], [0], [1], [0, 0, 1, 1], [], []>} : vector<64x24xf32>, vector<24x8xf32>, vector<64x8xf32> -> vector<64x8xf32>
    %139 = arith.addf %132, %138 : vector<64x8xf32>
    %c2_148 = arith.constant 2 : index
    %c1_149 = arith.constant 1 : index
    %c0_150 = arith.constant 0 : index
    %140 = vector.load %arg11[%c2_148, %c1_149, %c0_150] : memref<6x18x32xf32, #tpu.memory_space<vmem>>, vector<4x16x8xf32>
    %c2_151 = arith.constant 2 : index
    %c1_152 = arith.constant 1 : index
    %c8_153 = arith.constant 8 : index
    %141 = vector.load %arg11[%c2_151, %c1_152, %c8_153] : memref<6x18x32xf32, #tpu.memory_space<vmem>>, vector<4x16x8xf32>
    %c2_154 = arith.constant 2 : index
    %c2_155 = arith.constant 2 : index
    %c0_156 = arith.constant 0 : index
    %142 = vector.load %arg11[%c2_154, %c2_155, %c0_156] : memref<6x18x32xf32, #tpu.memory_space<vmem>>, vector<4x16x8xf32>
    %143 = tpu.concatenate %140, %141, %142 in 2 : vector<4x16x8xf32>, vector<4x16x8xf32>, vector<4x16x8xf32> -> vector<4x16x24xf32>
    %144 = vector.shape_cast %143 : vector<4x16x24xf32> to vector<64x24xf32>
    %cst_157 = arith.constant dense<0.000000e+00> : vector<64x8xf32>
    %145 = tpu.matmul %144, %52, %cst_157 {dimension_numbers = #tpu.dot_dimension_numbers<[1], [0], [0], [1], [0, 0, 1, 1], [], []>} : vector<64x24xf32>, vector<24x8xf32>, vector<64x8xf32> -> vector<64x8xf32>
    %146 = arith.addf %139, %145 : vector<64x8xf32>
    %147 = vector.broadcast %49 : vector<1x8xf32> to vector<64x8xf32>
    %148 = arith.addf %146, %147 : vector<64x8xf32>
    %149 = tpu.concatenate %76, %100, %124, %148 in 1 : vector<64x8xf32>, vector<64x8xf32>, vector<64x8xf32>, vector<64x8xf32> -> vector<64x32xf32>
    %150 = vector.shape_cast %149 : vector<64x32xf32> to vector<4x16x32xf32>
    %c0_158 = arith.constant 0 : index
    %c0_159 = arith.constant 0 : index
    %c0_160 = arith.constant 0 : index
    %c0_161 = arith.constant 0 : index
    %151 = vector.load %arg9[%c0_158, %c0_159, %c0_160, %c0_161] : memref<1x4x16x32xf32, #tpu.memory_space<vmem>>, vector<1x4x16x32xf32>
    %152 = vector.shape_cast %151 : vector<1x4x16x32xf32> to vector<4x16x32xf32>
    %153 = vector.shape_cast %150 : vector<4x16x32xf32> to vector<1x4x16x32xf32>
    tpu.vector_store %arg9[%c0_158, %c0_159, %c0_160, %c0_161], %153 {strides = array<i32>} : memref<1x4x16x32xf32, #tpu.memory_space<vmem>>, vector<1x4x16x32xf32>,
    %cst_162 = arith.constant dense<0.000000e+00> : vector<32xf32>
    %154 = vector.multi_reduction <add>, %149, %cst_162 [0] : vector<64x32xf32> to vector<32xf32>
    %155 = vector.shape_cast %154 : vector<32xf32> to vector<1x32xf32>
    %156 = arith.mulf %149, %149 : vector<64x32xf32>
    %cst_163 = arith.constant dense<0.000000e+00> : vector<32xf32>
    %157 = vector.multi_reduction <add>, %156, %cst_163 [0] : vector<64x32xf32> to vector<32xf32>
    %158 = vector.shape_cast %157 : vector<32xf32> to vector<1x32xf32>
    %159 = tpu.concatenate %155, %158 in 0 : vector<1x32xf32>, vector<1x32xf32> -> vector<2x32xf32>
    %c0_164 = arith.constant 0 : index
    %c0_165 = arith.constant 0 : index
    %c0_166 = arith.constant 0 : index
    %c0_167 = arith.constant 0 : index
    %160 = vector.load %arg10[%c0_164, %c0_165, %c0_166, %c0_167] : memref<1x1x2x32xf32, #tpu.memory_space<vmem>>, vector<1x1x2x32xf32>
    %161 = vector.shape_cast %160 : vector<1x1x2x32xf32> to vector<2x32xf32>
    %162 = vector.shape_cast %159 : vector<2x32xf32> to vector<1x1x2x32xf32>
    tpu.vector_store %arg10[%c0_164, %c0_165, %c0_166, %c0_167], %162 {strides = array<i32>} : memref<1x1x2x32xf32, #tpu.memory_space<vmem>>, vector<1x1x2x32xf32>,
    return
  }
  func.func @transform_0(%arg0: i32, %arg1: i32) -> (i32, i32, i32, i32) {
    %c0_i32 = arith.constant 0 : i32
    %c0_i32_0 = arith.constant 0 : i32
    %c0_i32_1 = arith.constant 0 : i32
    return %arg0, %arg1, %c0_i32, %c0_i32_0 : i32, i32, i32, i32
  }
  func.func @transform_1(%arg0: i32, %arg1: i32) -> (i32, i32, i32, i32) {
    %c4_i32 = arith.constant 4 : i32
    %0 = arith.muli %arg1, %c4_i32 : i32
    %c1_i32 = arith.constant 1 : i32
    %1 = arith.subi %0, %c1_i32 : i32
    %c0_i32 = arith.constant 0 : i32
    %2 = arith.maxsi %1, %c0_i32 : i32
    %c0_i32_0 = arith.constant 0 : i32
    %c0_i32_1 = arith.constant 0 : i32
    %c0_i32_2 = arith.constant 0 : i32
    return %arg0, %2, %c0_i32_0, %c0_i32_1 : i32, i32, i32, i32
  }
  func.func @transform_2(%arg0: i32, %arg1: i32) -> (i32, i32, i32, i32) {
    %c4_i32 = arith.constant 4 : i32
    %0 = arith.muli %arg1, %c4_i32 : i32
    %c4_i32_0 = arith.constant 4 : i32
    %1 = arith.addi %0, %c4_i32_0 : i32
    %c15_i32 = arith.constant 15 : i32
    %2 = arith.minsi %1, %c15_i32 : i32
    %c0_i32 = arith.constant 0 : i32
    %c0_i32_1 = arith.constant 0 : i32
    %c0_i32_2 = arith.constant 0 : i32
    return %arg0, %2, %c0_i32, %c0_i32_1 : i32, i32, i32, i32
  }
  func.func @transform_3(%arg0: i32, %arg1: i32) -> (i32, i32) {
    %c0_i32 = arith.constant 0 : i32
    %c0_i32_0 = arith.constant 0 : i32
    %c0_i32_1 = arith.constant 0 : i32
    return %c0_i32, %c0_i32_0 : i32, i32
  }
  func.func @transform_4(%arg0: i32, %arg1: i32) -> (i32, i32) {
    %c0_i32 = arith.constant 0 : i32
    %c0_i32_0 = arith.constant 0 : i32
    %c0_i32_1 = arith.constant 0 : i32
    return %c0_i32, %c0_i32_0 : i32, i32
  }
  func.func @transform_5(%arg0: i32, %arg1: i32) -> (i32, i32) {
    %c0_i32 = arith.constant 0 : i32
    %c0_i32_0 = arith.constant 0 : i32
    %c0_i32_1 = arith.constant 0 : i32
    return %c0_i32, %c0_i32_0 : i32, i32
  }
  func.func @transform_6(%arg0: i32, %arg1: i32) -> (i32, i32) {
    %c0_i32 = arith.constant 0 : i32
    %c0_i32_0 = arith.constant 0 : i32
    %c0_i32_1 = arith.constant 0 : i32
    return %c0_i32, %c0_i32_0 : i32, i32
  }
  func.func @transform_7(%arg0: i32, %arg1: i32) -> (i32, i32, i32, i32) {
    %c0_i32 = arith.constant 0 : i32
    %c0_i32_0 = arith.constant 0 : i32
    %c0_i32_1 = arith.constant 0 : i32
    return %arg0, %arg1, %c0_i32, %c0_i32_0 : i32, i32, i32, i32
  }
  func.func @transform_8(%arg0: i32, %arg1: i32) -> (i32, i32, i32, i32) {
    %c0_i32 = arith.constant 0 : i32
    %c0_i32_0 = arith.constant 0 : i32
    %c0_i32_1 = arith.constant 0 : i32
    return %arg0, %arg1, %c0_i32, %c0_i32_0 : i32, i32, i32, i32
  }
}

</mosaic_0001>

<llo_original>
// kernel: tile.19
$region0: #{tile.19}
  %s0 = inlined_call_operand.vmem [shape: f32[4,8], index: 0, kind: input, shape index: {}]
  %s1 = inlined_call_operand.vmem [shape: f32[1,32], index: 1, kind: output, shape index: {}]
  $region1: #{tile.19} parent=0
    #allocation0 [shape = 'u8[4096]{0}', space=vmem, size = 0x1000, scoped, tag = 'scoped mem for output reshape']
    #allocation1 [shape = 'u8[4096]{0}', space=vmem, size = 0x1000, scoped, tag = 'scoped mem for input reshape']
    %s3 = sshll.u32 1, 4
    %s4 = ssub.s32 %s3, 1
    %v5 = vld [vmem:[%s0] sm:%s4]
    %6 = vst [vmem:[#allocation1] sm:%s4] %v5
    %v7 = vld [vmem:[#allocation1] sm:$0x1]
    %vm8 = vcmask 64512
    %9 = vst.msk [vmem:[#allocation0] sm:$0x1] %vm8, %v7
    %s10 = scalar_lea.vmem [#allocation1], 3
    %v11 = vld [vmem:[%s10] sm:$0x1]
    %12 = vrot.lane.b32.xlu0 %v11, 24
    %v13 = vpop.permute.xlu0 %12
    %vm14 = vcmask 261312
    %15 = vst.msk [vmem:[#allocation0] sm:$0x1] %vm14, %v13
    %s16 = scalar_lea.vmem [#allocation1], 2
    %v17 = vld [vmem:[%s16] sm:$0x1]
    %18 = vrot.lane.b32.xlu0 %v17, 16
    %v19 = vpop.permute.xlu0 %18
    %vm20 = vcmask 195712
    %21 = vst.msk [vmem:[#allocation0] sm:$0x1] %vm20, %v19
    %s22 = scalar_lea.vmem [#allocation1], 1
    %v23 = vld [vmem:[%s22] sm:$0x1]
    %24 = vrot.lane.b32.xlu0 %v23, 8
    %v25 = vpop.permute.xlu0 %24
    %vm26 = vcmask 130112
    %27 = vst.msk [vmem:[#allocation0] sm:$0x1] %vm26, %v25
    %s29 = sshll.u32 1, 1
    %s30 = ssub.s32 %s29, 1
    %v32 = vld [vmem:[#allocation0] sm:%s30]
    %s33 = sshll.u32 1, 1
    %s34 = ssub.s32 %s33, 1
    %35 = vst [vmem:[%s1] sm:%s34] %v32

// kernel: tile.18
$region0: #{tile.18}
  #allocation2 [shape = 's32[1]{0}', space=sflag, size = 0x4, scoped, tag = 'scoped memory for tile.18']
  %s0 = inlined_call_operand.hbm [shape: f32[8], index: 0, kind: input, shape index: {}]
  %s1 = inlined_call_operand.vmem [shape: f32[4,8], index: 1, kind: output, shape index: {}]
  $region1: #{tile.18} parent=0
    #allocation0 [shape = 'u8[512]{0}', space=vmem, size = 0x400, scoped, tag = 'operand span for operand 0']
    #allocation1 [shape = 's32[1]{0}', space=sflag, size = 0x4, scoped, tag = 'scoped memory for tile.18']
    %2 = vsyncpa [#allocation1], 0
    // Predicated region
    $region2: #{tile.18} parent=1 // pred_check
      _
    $region3: #{tile.18} parent=1 // pred_check_branch
      %4 = sbr.rel (0) target = $region5
    $region4: #{tile.18} parent=1 // pred_region
      %s6 = ssub.s32 16, 16
      %7 = vsyncadd [#allocation1], %s6
      %s9 = sshll.u32 [#allocation0], 4
      %s10 = int_to_ptr.vmem [resolvable:$true] %s9
      %12 = dma.hbm_to_vmem [thread:$0]  %s0, 16, %s10, [#allocation1]
    $region5: #{tile.18} parent=1 // pred_fallthru
      _
    // Predicated region
    $region6: #{tile.18} parent=1 // pred_check
      _
    $region7: #{tile.18} parent=1 // pred_check_branch
      %14 = sbr.rel (0) target = $region9
    $region8: #{tile.18} parent=1 // pred_region
      %15 = dma.done [#allocation1], 16
    $region9: #{tile.18} parent=1 // pred_fallthru
      _
    %v16 = vld [vmem:[#allocation0] ss:$0 sm:$0xff]
    %17 = vst [vmem:[%s1] sm:$0xf] %v16
    %18 = vsyncpa [#allocation1], 1

// kernel: tile.28
$region0: #{tile.28}
  #allocation0 [shape = 's32[1]{0}', space=sflag, size = 0x4, scoped, tag = 'scoped memory for tile.28']
  %s0 = inlined_call_operand.vmem [shape: f32[8], index: 0, kind: input, shape index: {}]
  %s1 = inlined_call_operand.vmem [shape: f32[4,8], index: 1, kind: output, shape index: {}]
  // Predicated region
  $region2: #{tile.28} parent=0 // pred_check
    _
  $region3: #{tile.28} parent=0 // pred_check_branch
    %3 = sbr.rel (0) target = $region5
  $region4: #{tile.28} parent=0 // pred_region
    _
  $region5: #{tile.28} parent=0 // pred_fallthru
    _
  %v4 = vld [vmem:[%s0] ss:$0 sm:$0xff]
  %5 = vst [vmem:[%s1] sm:$0xf] %v4

// kernel: conv_up_forward.3
$region0: #{conv_up_forward.3}
  #allocation0 [shape = 'u32[]', space=smem, size = 0x4, offset = 0x4, fixed_abs, tag = 'smem constant byte address 0x4 - core index']
  #allocation1 [shape = 'u32[144,128]{1,0:T(1,128)}', space=vmem, size = 0x12000, scoped, tag = 'internal scratch']
  #allocation2 [shape = 'f32[6,18,32]{2,1,0:T(8,128)}', space=vmem, size = 0x12000, scoped, tag = 'scratch operand']
  %s0 = inlined_call_operand.vmem [shape: f32[2,16,16,32], index: 0, kind: input, shape index: {}, may-alias: {0,1,2}]
  %s1 = inlined_call_operand.vmem [shape: f32[2,16,16,32], index: 1, kind: input, shape index: {}, may-alias: {0,1,2}]
  %s2 = inlined_call_operand.vmem [shape: f32[2,16,16,32], index: 2, kind: input, shape index: {}, may-alias: {0,1,2}]
  %s3 = inlined_call_operand.vmem [shape: f32[1,32], index: 3, kind: input, shape index: {}]
  %s4 = inlined_call_operand.vmem [shape: f32[1,32], index: 4, kind: input, shape index: {}]
  %s5 = inlined_call_operand.vmem [shape: f32[72,8], index: 5, kind: input, shape index: {}]
  %s6 = inlined_call_operand.vmem [shape: f32[1,8], index: 6, kind: input, shape index: {}]
  %s7 = inlined_call_operand.vmem [shape: f32[2,16,16,32], index: 7, kind: output, shape index: {0}]
  %s8 = inlined_call_operand.vmem [shape: f32[2,4,2,32], index: 8, kind: output, shape index: {1}]
  %9 = xla_tuple %s7, %s8
  %s10 = sld [smem:[#allocation0]]
  $region85: #{conv_up_forward.3} parent=0
    _
  %s12 = ssub.s32 1, %s10
  %s13 = scalar_select 0, %s12, %s10
  loop: start=0, step=1, limit=10
  $region2: #{conv_up_forward.3} parent=0 // loop_pre_header
    _
  $region3: #{conv_up_forward.3} parent=0 // loop_header
    %s15 = sphi 0, %s19
    %p16 = scmp.ge.s32.totalorder %s15, 10
    %s22 = sphi 0, %s34
    %s23 = sphi 0, %s30
    %s24 = sphi 0, %s22
    %s25 = sphi 0, %s23
    %s26 = sphi 0, %s24
    %s27 = sphi 0, %s25
    %s39 = sphi 0, %s41
    %s42 = sphi 0, %s39
    %s43 = sphi 0, %s42
    %s59 = sphi 0, %s43
    %s75 = sphi 0, %s77
    %s78 = sphi 0, %s75
    %s79 = sphi 0, %s78
    %s95 = sphi 0, %s79
    %s111 = sphi 0, %s113
    %s114 = sphi 0, %s111
    %s115 = sphi 0, %s114
    %s131 = sphi 0, %s115
    %s135 = sphi 0, %s135
    %s137 = sphi 0, %s135
    %s138 = sphi 0, %s137
    %s152 = sphi 0, %s138
    %s156 = sphi 0, %s156
    %s158 = sphi 0, %s156
    %s159 = sphi 0, %s158
    %s173 = sphi 0, %s159
    %s177 = sphi 0, %s177
    %s179 = sphi 0, %s177
    %s180 = sphi 0, %s179
    %s194 = sphi 0, %s180
    %s198 = sphi 0, %s198
    %s200 = sphi 0, %s198
    %s201 = sphi 0, %s200
    %s215 = sphi 0, %s201
    %s223 = sphi 0, %s225
    %s226 = sphi 0, %s223
    %s227 = sphi 0, %s226
    %s243 = sphi 0, %s227
    %s251 = sphi 0, %s253
    %s254 = sphi 0, %s251
    %s255 = sphi 0, %s254
    %s271 = sphi 0, %s255
  $region4: #{conv_up_forward.3} parent=0 // loop_header_branch
    %18 = sbr.rel (%p16) target = $region8
  $region5: #{conv_up_forward.3} parent=0 // loop_body
    %s20 = ssub.s32 %s15, 1
    %s21 = ssub.s32 %s15, 2
    %s28 = sadd.s32 1, %s23
    %p29 = scmp.ge.s32.totalorder %s28, 4
    %s30 = scalar_select %p29, 0, %s28
    %s31 = sadd.s32 1, %s22
    %s32 = scalar_select %p29, %s31, %s22
    %p33 = scmp.ge.s32.totalorder %s32, 2
    %s34 = scalar_select %p33, 0, %s32
    %s35 = ssub.s32 %s22, %s34
    %s36 = ssub.s32 %s23, %s30
    %s37 = sor.u32 %s35, %s36
    %p38 = scmp.eq.s32.totalorder %s37, 0
    %s40 = sadd.s32 %s39, 1
    %s41 = scalar_select %p38, %s39, %s40
    %p44 = pneg %p38
    %p45 = scmp.eq.s32.totalorder %s15, 7
    %p46 = por %p44, %p45
    %p47 = scmp.ne.s32.totalorder %s39, %s42
    %p48 = scmp.eq.s32.totalorder %s15, 0
    %p49 = por %p47, %p48
    %p50 = scmp.ne.s32.totalorder %s39, %s42
    %p51 = scmp.eq.s32.totalorder %s20, 7
    %p52 = por %p50, %p51
    %p53 = scmp.ne.s32.totalorder %s42, %s43
    %p54 = scmp.eq.s32.totalorder %s20, 0
    %p55 = por %p53, %p54
    %p56 = scmp.ne.s32.totalorder %s42, %s43
    %p57 = scmp.eq.s32.totalorder %s21, 7
    %p58 = por %p56, %p57
    %p60 = scmp.ne.s32.totalorder %s43, %s59
    %p61 = scmp.eq.s32.totalorder %s21, 0
    %p62 = por %p60, %p61
    %s63 = smul.u32 %s23, 4
    %s64 = ssub.s32 %s63, 1
    %p65 = scmp.gt.s32.totalorder %s64, 0
    %s66 = scalar_select %p65, %s64, 0
    %s67 = smul.u32 %s30, 4
    %s68 = ssub.s32 %s67, 1
    %p69 = scmp.gt.s32.totalorder %s68, 0
    %s70 = scalar_select %p69, %s68, 0
    %s71 = ssub.s32 %s22, %s34
    %s72 = ssub.s32 %s66, %s70
    %s73 = sor.u32 %s71, %s72
    %p74 = scmp.eq.s32.totalorder %s73, 0
    %s76 = sadd.s32 %s75, 1
    %s77 = scalar_select %p74, %s75, %s76
    %p80 = pneg %p74
    %p81 = scmp.eq.s32.totalorder %s15, 7
    %p82 = por %p80, %p81
    %p83 = scmp.ne.s32.totalorder %s75, %s78
    %p84 = scmp.eq.s32.totalorder %s15, 0
    %p85 = por %p83, %p84
    %p86 = scmp.ne.s32.totalorder %s75, %s78
    %p87 = scmp.eq.s32.totalorder %s20, 7
    %p88 = por %p86, %p87
    %p89 = scmp.ne.s32.totalorder %s78, %s79
    %p90 = scmp.eq.s32.totalorder %s20, 0
    %p91 = por %p89, %p90
    %p92 = scmp.ne.s32.totalorder %s78, %s79
    %p93 = scmp.eq.s32.totalorder %s21, 7
    %p94 = por %p92, %p93
    %p96 = scmp.ne.s32.totalorder %s79, %s95
    %p97 = scmp.eq.s32.totalorder %s21, 0
    %p98 = por %p96, %p97
    %s99 = smul.u32 %s23, 4
    %s100 = sadd.s32 %s99, 4
    %p101 = scmp.lt.s32.totalorder %s100, 15
    %s102 = scalar_select %p101, %s100, 15
    %s103 = smul.u32 %s30, 4
    %s104 = sadd.s32 %s103, 4
    %p105 = scmp.lt.s32.totalorder %s104, 15
    %s106 = scalar_select %p105, %s104, 15
    %s107 = ssub.s32 %s22, %s34
    %s108 = ssub.s32 %s102, %s106
    %s109 = sor.u32 %s107, %s108
    %p110 = scmp.eq.s32.totalorder %s109, 0
    %s112 = sadd.s32 %s111, 1
    %s113 = scalar_select %p110, %s111, %s112
    %p116 = pneg %p110
    %p117 = scmp.eq.s32.totalorder %s15, 7
    %p118 = por %p116, %p117
    %p119 = scmp.ne.s32.totalorder %s111, %s114
    %p120 = scmp.eq.s32.totalorder %s15, 0
    %p121 = por %p119, %p120
    %p122 = scmp.ne.s32.totalorder %s111, %s114
    %p123 = scmp.eq.s32.totalorder %s20, 7
    %p124 = por %p122, %p123
    %p125 = scmp.ne.s32.totalorder %s114, %s115
    %p126 = scmp.eq.s32.totalorder %s20, 0
    %p127 = por %p125, %p126
    %p128 = scmp.ne.s32.totalorder %s114, %s115
    %p129 = scmp.eq.s32.totalorder %s21, 7
    %p130 = por %p128, %p129
    %p132 = scmp.ne.s32.totalorder %s115, %s131
    %p133 = scmp.eq.s32.totalorder %s21, 0
    %p134 = por %p132, %p133
    %s136 = sadd.s32 %s135, 1
    %p139 = scmp.eq.s32.totalorder %s15, 7
    %p140 = scmp.ne.s32.totalorder %s135, %s137
    %p141 = scmp.eq.s32.totalorder %s15, 0
    %p142 = por %p140, %p141
    %p143 = scmp.ne.s32.totalorder %s135, %s137
    %p144 = scmp.eq.s32.totalorder %s20, 7
    %p145 = por %p143, %p144
    %p146 = scmp.ne.s32.totalorder %s137, %s138
    %p147 = scmp.eq.s32.totalorder %s20, 0
    %p148 = por %p146, %p147
    %p149 = scmp.ne.s32.totalorder %s137, %s138
    %p150 = scmp.eq.s32.totalorder %s21, 7
    %p151 = por %p149, %p150
    %p153 = scmp.ne.s32.totalorder %s138, %s152
    %p154 = scmp.eq.s32.totalorder %s21, 0
    %p155 = por %p153, %p154
    %s157 = sadd.s32 %s156, 1
    %p160 = scmp.eq.s32.totalorder %s15, 7
    %p161 = scmp.ne.s32.totalorder %s156, %s158
    %p162 = scmp.eq.s32.totalorder %s15, 0
    %p163 = por %p161, %p162
    %p164 = scmp.ne.s32.totalorder %s156, %s158
    %p165 = scmp.eq.s32.totalorder %s20, 7
    %p166 = por %p164, %p165
    %p167 = scmp.ne.s32.totalorder %s158, %s159
    %p168 = scmp.eq.s32.totalorder %s20, 0
    %p169 = por %p167, %p168
    %p170 = scmp.ne.s32.totalorder %s158, %s159
    %p171 = scmp.eq.s32.totalorder %s21, 7
    %p172 = por %p170, %p171
    %p174 = scmp.ne.s32.totalorder %s159, %s173
    %p175 = scmp.eq.s32.totalorder %s21, 0
    %p176 = por %p174, %p175
    %s178 = sadd.s32 %s177, 1
    %p181 = scmp.eq.s32.totalorder %s15, 7
    %p182 = scmp.ne.s32.totalorder %s177, %s179
    %p183 = scmp.eq.s32.totalorder %s15, 0
    %p184 = por %p182, %p183
    %p185 = scmp.ne.s32.totalorder %s177, %s179
    %p186 = scmp.eq.s32.totalorder %s20, 7
    %p187 = por %p185, %p186
    %p188 = scmp.ne.s32.totalorder %s179, %s180
    %p189 = scmp.eq.s32.totalorder %s20, 0
    %p190 = por %p188, %p189
    %p191 = scmp.ne.s32.totalorder %s179, %s180
    %p192 = scmp.eq.s32.totalorder %s21, 7
    %p193 = por %p191, %p192
    %p195 = scmp.ne.s32.totalorder %s180, %s194
    %p196 = scmp.eq.s32.totalorder %s21, 0
    %p197 = por %p195, %p196
    %s199 = sadd.s32 %s198, 1
    %p202 = scmp.eq.s32.totalorder %s15, 7
    %p203 = scmp.ne.s32.totalorder %s198, %s200
    %p204 = scmp.eq.s32.totalorder %s15, 0
    %p205 = por %p203, %p204
    %p206 = scmp.ne.s32.totalorder %s198, %s200
    %p207 = scmp.eq.s32.totalorder %s20, 7
    %p208 = por %p206, %p207
    %p209 = scmp.ne.s32.totalorder %s200, %s201
    %p210 = scmp.eq.s32.totalorder %s20, 0
    %p211 = por %p209, %p210
    %p212 = scmp.ne.s32.totalorder %s200, %s201
    %p213 = scmp.eq.s32.totalorder %s21, 7
    %p214 = por %p212, %p213
    %p216 = scmp.ne.s32.totalorder %s201, %s215
    %p217 = scmp.eq.s32.totalorder %s21, 0
    %p218 = por %p216, %p217
    %s219 = ssub.s32 %s22, %s34
    %s220 = ssub.s32 %s23, %s30
    %s221 = sor.u32 %s219, %s220
    %p222 = scmp.eq.s32.totalorder %s221, 0
    %s224 = sadd.s32 %s223, 1
    %s225 = scalar_select %p222, %s223, %s224
    %p228 = pneg %p222
    %p229 = scmp.eq.s32.totalorder %s15, 7
    %p230 = por %p228, %p229
    %p231 = scmp.ne.s32.totalorder %s223, %s226
    %p232 = scmp.eq.s32.totalorder %s15, 0
    %p233 = por %p231, %p232
    %p234 = scmp.ne.s32.totalorder %s223, %s226
    %p235 = scmp.eq.s32.totalorder %s20, 7
    %p236 = por %p234, %p235
    %p237 = scmp.ne.s32.totalorder %s226, %s227
    %p238 = scmp.eq.s32.totalorder %s20, 0
    %p239 = por %p237, %p238
    %p240 = scmp.ne.s32.totalorder %s226, %s227
    %p241 = scmp.eq.s32.totalorder %s21, 7
    %p242 = por %p240, %p241
    %p244 = scmp.ne.s32.totalorder %s227, %s243
    %p245 = scmp.eq.s32.totalorder %s21, 0
    %p246 = por %p244, %p245
    %s247 = ssub.s32 %s22, %s34
    %s248 = ssub.s32 %s23, %s30
    %s249 = sor.u32 %s247, %s248
    %p250 = scmp.eq.s32.totalorder %s249, 0
    %s252 = sadd.s32 %s251, 1
    %s253 = scalar_select %p250, %s251, %s252
    %p256 = pneg %p250
    %p257 = scmp.eq.s32.totalorder %s15, 7
    %p258 = por %p256, %p257
    %p259 = scmp.ne.s32.totalorder %s251, %s254
    %p260 = scmp.eq.s32.totalorder %s15, 0
    %p261 = por %p259, %p260
    %p262 = scmp.ne.s32.totalorder %s251, %s254
    %p263 = scmp.eq.s32.totalorder %s20, 7
    %p264 = por %p262, %p263
    %p265 = scmp.ne.s32.totalorder %s254, %s255
    %p266 = scmp.eq.s32.totalorder %s20, 0
    %p267 = por %p265, %p266
    %p268 = scmp.ne.s32.totalorder %s254, %s255
    %p269 = scmp.eq.s32.totalorder %s21, 7
    %p270 = por %p268, %p269
    %p272 = scmp.ne.s32.totalorder %s255, %s271
    %p273 = scmp.eq.s32.totalorder %s21, 0
    %p274 = por %p272, %p273
    %p275 = scmp.le.s32.totalorder 1, %s15
    %p276 = scmp.lt.s32.totalorder %s15, 9
    %p277 = pnand %p275, %p276
    %p278 = pneg %p277
    // Predicated region
    $region9: #{conv_up_forward.3} parent=5 // pred_check
      _
    $region10: #{conv_up_forward.3} parent=5 // pred_check_branch
      %280 = sbr.rel (%p277) target = $region12
    $region11: #{conv_up_forward.3} parent=5 // pred_region
      %s281 = ssub.s32 %s15, 1
      // Predicated region
      $region13: #{conv_up_forward.3} parent=11 // pred_check
        %p282 = pneg %p148
      $region14: #{conv_up_forward.3} parent=11 // pred_check_branch
        %284 = sbr.rel (%p282) target = $region16
      $region15: #{conv_up_forward.3} parent=11 // pred_region
        _
      $region16: #{conv_up_forward.3} parent=11 // pred_fallthru
        _
      // Predicated region
      $region17: #{conv_up_forward.3} parent=11 // pred_check
        %p285 = pneg %p169
      $region18: #{conv_up_forward.3} parent=11 // pred_check_branch
        %287 = sbr.rel (%p285) target = $region20
      $region19: #{conv_up_forward.3} parent=11 // pred_region
        _
      $region20: #{conv_up_forward.3} parent=11 // pred_fallthru
        _
      // Predicated region
      $region21: #{conv_up_forward.3} parent=11 // pred_check
        %p288 = pneg %p190
      $region22: #{conv_up_forward.3} parent=11 // pred_check_branch
        %290 = sbr.rel (%p288) target = $region24
      $region23: #{conv_up_forward.3} parent=11 // pred_region
        _
      $region24: #{conv_up_forward.3} parent=11 // pred_fallthru
        _
      // Predicated region
      $region25: #{conv_up_forward.3} parent=11 // pred_check
        %p291 = pneg %p211
      $region26: #{conv_up_forward.3} parent=11 // pred_check_branch
        %293 = sbr.rel (%p291) target = $region28
      $region27: #{conv_up_forward.3} parent=11 // pred_region
        _
      $region28: #{conv_up_forward.3} parent=11 // pred_fallthru
        _
    $region12: #{conv_up_forward.3} parent=5 // pred_fallthru
      _
    %p294 = scmp.lt.s32.totalorder %s15, 8
    // Predicated region
    $region29: #{conv_up_forward.3} parent=5 // pred_check
      %p295 = pneg %p294
    $region30: #{conv_up_forward.3} parent=5 // pred_check_branch
      %297 = sbr.rel (%p295) target = $region32
    $region31: #{conv_up_forward.3} parent=5 // pred_region
      // Predicated region
      $region33: #{conv_up_forward.3} parent=31 // pred_check
        %p298 = pneg %p49
      $region34: #{conv_up_forward.3} parent=31 // pred_check_branch
        %300 = sbr.rel (%p298) target = $region36
      $region35: #{conv_up_forward.3} parent=31 // pred_region
        %s301 = smul.u32 4, %s23
        %p302 = scmp.lt.s32.totalorder %s22, 1
        %s303 = scalar_select %p302, %s22, 1
        %p304 = scmp.lt.s32.totalorder %s301, 15
        %s305 = scalar_select %p304, %s301, 15
        %s306 = smul.addr %s305, 2
        %s307 = smul.addr %s303, 32
        %s308 = sadd.s32 %s306, %s307
        %s309 = smul.addr %s308, 8
        %s310 = scalar_lea.vmem %s0, %s309
        %s311 = smul.u32 4, %s23
      $region36: #{conv_up_forward.3} parent=31 // pred_fallthru
        _
      // Predicated region
      $region37: #{conv_up_forward.3} parent=31 // pred_check
        %p312 = pneg %p85
      $region38: #{conv_up_forward.3} parent=31 // pred_check_branch
        %314 = sbr.rel (%p312) target = $region40
      $region39: #{conv_up_forward.3} parent=31 // pred_region
        %s315 = smul.u32 %s23, 4
        %s316 = ssub.s32 %s315, 1
        %p317 = scmp.gt.s32.totalorder %s316, 0
        %s318 = scalar_select %p317, %s316, 0
        %p319 = scmp.lt.s32.totalorder %s22, 1
        %s320 = scalar_select %p319, %s22, 1
        %p321 = scmp.lt.s32.totalorder %s318, 15
        %s322 = scalar_select %p321, %s318, 15
        %s323 = smul.addr %s322, 2
        %s324 = smul.addr %s320, 32
        %s325 = sadd.s32 %s323, %s324
        %s326 = smul.addr %s325, 8
        %s327 = scalar_lea.vmem %s1, %s326
        %s328 = smul.u32 %s23, 4
        %s329 = ssub.s32 %s328, 1
        %p330 = scmp.gt.s32.totalorder %s329, 0
        %s331 = scalar_select %p330, %s329, 0
      $region40: #{conv_up_forward.3} parent=31 // pred_fallthru
        _
      // Predicated region
      $region41: #{conv_up_forward.3} parent=31 // pred_check
        %p332 = pneg %p121
      $region42: #{conv_up_forward.3} parent=31 // pred_check_branch
        %334 = sbr.rel (%p332) target = $region44
      $region43: #{conv_up_forward.3} parent=31 // pred_region
        %s335 = smul.u32 %s23, 4
        %s336 = sadd.s32 %s335, 4
        %p337 = scmp.lt.s32.totalorder %s336, 15
        %s338 = scalar_select %p337, %s336, 15
        %p339 = scmp.lt.s32.totalorder %s22, 1
        %s340 = scalar_select %p339, %s22, 1
        %p341 = scmp.lt.s32.totalorder %s338, 15
        %s342 = scalar_select %p341, %s338, 15
        %s343 = smul.addr %s342, 2
        %s344 = smul.addr %s340, 32
        %s345 = sadd.s32 %s343, %s344
        %s346 = smul.addr %s345, 8
        %s347 = scalar_lea.vmem %s2, %s346
        %s348 = smul.u32 %s23, 4
        %s349 = sadd.s32 %s348, 4
        %p350 = scmp.lt.s32.totalorder %s349, 15
        %s351 = scalar_select %p350, %s349, 15
      $region44: #{conv_up_forward.3} parent=31 // pred_fallthru
        _
    $region32: #{conv_up_forward.3} parent=5 // pred_fallthru
      _
    %p352 = scmp.le.s32.totalorder 1, %s15
    %p353 = scmp.lt.s32.totalorder %s15, 9
    %p354 = pnand %p352, %p353
    %p355 = pneg %p354
    // Predicated region
    $region45: #{conv_up_forward.3} parent=5 // pred_check
      _
    $region46: #{conv_up_forward.3} parent=5 // pred_check_branch
      %357 = sbr.rel (%p354) target = $region48
    $region47: #{conv_up_forward.3} parent=5 // pred_region
      %s358 = ssub.s32 %s15, 1
      %s359 = smul.u32 4, %s25
      %p360 = scmp.lt.s32.totalorder %s24, 1
      %s361 = scalar_select %p360, %s24, 1
      %p362 = scmp.lt.s32.totalorder %s359, 15
      %s363 = scalar_select %p362, %s359, 15
      %s364 = smul.addr %s363, 2
      %s365 = smul.addr %s361, 32
      %s366 = sadd.s32 %s364, %s365
      %s367 = smul.addr %s366, 8
      %s368 = scalar_lea.vmem %s0, %s367
      %p369 = pneg %p55
      %p370 = pneg %p52
      %s371 = smul.u32 %s25, 4
      %s372 = ssub.s32 %s371, 1
      %p373 = scmp.gt.s32.totalorder %s372, 0
      %s374 = scalar_select %p373, %s372, 0
      %p375 = scmp.lt.s32.totalorder %s24, 1
      %s376 = scalar_select %p375, %s24, 1
      %p377 = scmp.lt.s32.totalorder %s374, 15
      %s378 = scalar_select %p377, %s374, 15
      %s379 = smul.addr %s378, 2
      %s380 = smul.addr %s376, 32
      %s381 = sadd.s32 %s379, %s380
      %s382 = smul.addr %s381, 8
      %s383 = scalar_lea.vmem %s1, %s382
      %p384 = pneg %p91
      %p385 = pneg %p88
      %s386 = smul.u32 %s25, 4
      %s387 = sadd.s32 %s386, 4
      %p388 = scmp.lt.s32.totalorder %s387, 15
      %s389 = scalar_select %p388, %s387, 15
      %p390 = scmp.lt.s32.totalorder %s24, 1
      %s391 = scalar_select %p390, %s24, 1
      %p392 = scmp.lt.s32.totalorder %s389, 15
      %s393 = scalar_select %p392, %s389, 15
      %s394 = smul.addr %s393, 2
      %s395 = smul.addr %s391, 32
      %s396 = sadd.s32 %s394, %s395
      %s397 = smul.addr %s396, 8
      %s398 = scalar_lea.vmem %s2, %s397
      %p399 = pneg %p127
      %p400 = pneg %p124
      %p401 = pneg %p148
      %p402 = pneg %p145
      %p403 = pneg %p169
      %p404 = pneg %p166
      %p405 = pneg %p190
      %p406 = pneg %p187
      %p407 = pneg %p211
      %p408 = pneg %p208
      %p409 = pneg %p239
      %p410 = pneg %p236
      %s411 = smul.u32 4, %s25
      %p412 = scmp.lt.s32.totalorder %s24, 1
      %s413 = scalar_select %p412, %s24, 1
      %p414 = scmp.lt.s32.totalorder %s411, 15
      %s415 = scalar_select %p414, %s411, 15
      %s416 = smul.addr %s415, 2
      %s417 = smul.addr %s413, 32
      %s418 = sadd.s32 %s416, %s417
      %s419 = smul.addr %s418, 8
      %s420 = scalar_lea.vmem %s7, %s419
      %p421 = pneg %p267
      %p422 = pneg %p264
      %p423 = scmp.lt.s32.totalorder %s24, 1
      %s424 = scalar_select %p423, %s24, 1
      %p425 = scmp.lt.s32.totalorder %s25, 3
      %s426 = scalar_select %p425, %s25, 3
      %s427 = smul.addr %s424, 4
      %s428 = sadd.s32 %s426, %s427
      %s429 = smul.addr %s428, 2
      %s430 = scalar_lea.vmem %s8, %s429
      %s431 = smul.u32 4, %s25
      %p432 = scmp.lt.s32.totalorder %s24, 1
      %s433 = scalar_select %p432, %s24, 1
      %p434 = scmp.lt.s32.totalorder %s431, 15
      %s435 = scalar_select %p434, %s431, 15
      %s436 = smul.addr %s435, 2
      %s437 = smul.addr %s433, 32
      %s438 = sadd.s32 %s436, %s437
      %s439 = smul.addr %s438, 8
      %s440 = scalar_lea.vmem %s0, %s439
      %s441 = smul.u32 4, %s25
      %s442 = smul.u32 %s25, 4
      %s443 = ssub.s32 %s442, 1
      %p444 = scmp.gt.s32.totalorder %s443, 0
      %s445 = scalar_select %p444, %s443, 0
      %p446 = scmp.lt.s32.totalorder %s24, 1
      %s447 = scalar_select %p446, %s24, 1
      %p448 = scmp.lt.s32.totalorder %s445, 15
      %s449 = scalar_select %p448, %s445, 15
      %s450 = smul.addr %s449, 2
      %s451 = smul.addr %s447, 32
      %s452 = sadd.s32 %s450, %s451
      %s453 = smul.addr %s452, 8
      %s454 = scalar_lea.vmem %s1, %s453
      %s455 = smul.u32 %s25, 4
      %s456 = ssub.s32 %s455, 1
      %p457 = scmp.gt.s32.totalorder %s456, 0
      %s458 = scalar_select %p457, %s456, 0
      %s459 = smul.u32 %s25, 4
      %s460 = sadd.s32 %s459, 4
      %p461 = scmp.lt.s32.totalorder %s460, 15
      %s462 = scalar_select %p461, %s460, 15
      %p463 = scmp.lt.s32.totalorder %s24, 1
      %s464 = scalar_select %p463, %s24, 1
      %p465 = scmp.lt.s32.totalorder %s462, 15
      %s466 = scalar_select %p465, %s462, 15
      %s467 = smul.addr %s466, 2
      %s468 = smul.addr %s464, 32
      %s469 = sadd.s32 %s467, %s468
      %s470 = smul.addr %s469, 8
      %s471 = scalar_lea.vmem %s2, %s470
      %s472 = smul.u32 %s25, 4
      %s473 = sadd.s32 %s472, 4
      %p474 = scmp.lt.s32.totalorder %s473, 15
      %s475 = scalar_select %p474, %s473, 15
      %s476 = smul.u32 4, %s25
      %p477 = scmp.lt.s32.totalorder %s24, 1
      %s478 = scalar_select %p477, %s24, 1
      %p479 = scmp.lt.s32.totalorder %s476, 15
      %s480 = scalar_select %p479, %s476, 15
      %s481 = smul.addr %s480, 2
      %s482 = smul.addr %s478, 32
      %s483 = sadd.s32 %s481, %s482
      %s484 = smul.addr %s483, 8
      %s485 = scalar_lea.vmem %s7, %s484
      %s486 = smul.u32 4, %s25
      %p487 = scmp.lt.s32.totalorder %s24, 1
      %s488 = scalar_select %p487, %s24, 1
      %p489 = scmp.lt.s32.totalorder %s25, 3
      %s490 = scalar_select %p489, %s25, 3
      %s491 = smul.addr %s488, 4
      %s492 = sadd.s32 %s490, %s491
      %s493 = smul.addr %s492, 2
      %s494 = scalar_lea.vmem %s8, %s493
      %vm495 = vcmask 253952
      %496 = vst.msk [vmem:[#allocation2] sm:$0x1] %vm495, 0.0
      %497 = vst.msk [vmem:[#allocation2 + $0x18] sm:$0x1] %vm495, 0.0
      %498 = vst.msk [vmem:[#allocation2 + $0x30] sm:$0x1] %vm495, 0.0
      %499 = vst.msk [vmem:[#allocation2 + $0x48] sm:$0x1] %vm495, 0.0
      %500 = vst.msk [vmem:[#allocation2 + $0x60] sm:$0x1] %vm495, 0.0
      %501 = vst.msk [vmem:[#allocation2 + $0x78] sm:$0x1] %vm495, 0.0
      %502 = vst.msk [vmem:[#allocation2 + $0x11] sm:$0x1] %vm495, 0.0
      %503 = vst.msk [vmem:[#allocation2 + $0x29] sm:$0x1] %vm495, 0.0
      %504 = vst.msk [vmem:[#allocation2 + $0x41] sm:$0x1] %vm495, 0.0
      %505 = vst.msk [vmem:[#allocation2 + $0x59] sm:$0x1] %vm495, 0.0
      %506 = vst.msk [vmem:[#allocation2 + $0x71] sm:$0x1] %vm495, 0.0
      %507 = vst.msk [vmem:[#allocation2 + $0x89] sm:$0x1] %vm495, 0.0
      %v508 = vld [vmem:[%s3] sm:$0x1]
      %v509 = vld [vmem:[%s4] sm:$0x1]
      %v510 = vld [vmem:[%s440] sm:$0xff]
      %v511 = vld [vmem:[%s440 + $0x8] sm:$0xff]
      %v512 = vld [vmem:[%s440 + $0x10] sm:$0xff]
      %v513 = vld [vmem:[%s440 + $0x18] sm:$0xff]
      %v514 = vld [vmem:[%s440 + $0x20] sm:$0xff]
      %v515 = vld [vmem:[%s440 + $0x28] sm:$0xff]
      %v516 = vld [vmem:[%s440 + $0x30] sm:$0xff]
      %v517 = vld [vmem:[%s440 + $0x38] sm:$0xff]
      %v519 = vlaneseq
      %v520 = vshrl.u32 %v519, 7
      %v521 = vsub.s32 0, %v520
      %v522 = vrot.slane %v508, %v521
      %v524 = vmul.f32 %v510, %v522
      %v525 = vmul.f32 %v511, %v522
      %v526 = vmul.f32 %v512, %v522
      %v527 = vmul.f32 %v513, %v522
      %v528 = vmul.f32 %v514, %v522
      %v529 = vmul.f32 %v515, %v522
      %v530 = vmul.f32 %v516, %v522
      %v531 = vmul.f32 %v517, %v522
      %v533 = vlaneseq
      %v534 = vshrl.u32 %v533, 7
      %v535 = vsub.s32 0, %v534
      %v536 = vrot.slane %v509, %v535
      %v538 = vadd.f32 %v524, %v536
      %v539 = vadd.f32 %v525, %v536
      %v540 = vadd.f32 %v526, %v536
      %v541 = vadd.f32 %v527, %v536
      %v542 = vadd.f32 %v528, %v536
      %v543 = vadd.f32 %v529, %v536
      %v544 = vadd.f32 %v530, %v536
      %v545 = vadd.f32 %v531, %v536
      %v546 = vmax.f32 %v538, 0.0
      %v547 = vmax.f32 %v539, 0.0
      %v548 = vmax.f32 %v540, 0.0
      %v549 = vmax.f32 %v541, 0.0
      %v550 = vmax.f32 %v542, 0.0
      %v551 = vmax.f32 %v543, 0.0
      %v552 = vmax.f32 %v544, 0.0
      %v553 = vmax.f32 %v545, 0.0
      %s554 = scalar_lea.vmem [#allocation2], 24
      %vm555 = vcmask 261120
      %556 = vst.msk [vmem:[%s554 + $0x1] sm:$0xff] %vm555, %v546
      %557 = vst.msk [vmem:[%s554 + $0x9] sm:$0xff] %vm555, %v547
      %558 = vst.msk [vmem:[%s554 + $0x19] sm:$0xff] %vm555, %v548
      %559 = vst.msk [vmem:[%s554 + $0x21] sm:$0xff] %vm555, %v549
      %560 = vst.msk [vmem:[%s554 + $0x31] sm:$0xff] %vm555, %v550
      %561 = vst.msk [vmem:[%s554 + $0x39] sm:$0xff] %vm555, %v551
      %562 = vst.msk [vmem:[%s554 + $0x49] sm:$0xff] %vm555, %v552
      %563 = vst.msk [vmem:[%s554 + $0x51] sm:$0xff] %vm555, %v553
      %v564 = vld [vmem:[%s454] sm:$0xff]
      %v565 = vld [vmem:[%s454 + $0x8] sm:$0xff]
      %v566 = vmul.f32 %v564, %v522
      %v567 = vmul.f32 %v565, %v522
      %v568 = vadd.f32 %v566, %v536
      %v569 = vadd.f32 %v567, %v536
      %v570 = vmax.f32 %v568, 0.0
      %v571 = vmax.f32 %v569, 0.0
      %p572 = scmp.gt.s32.totalorder %s25, 0
      // Predicated region
      $region49: #{conv_up_forward.3} parent=47 // pred_check
        %p573 = pneg %p572
      $region50: #{conv_up_forward.3} parent=47 // pred_check_branch
        %575 = sbr.rel (%p573) target = $region52
      $region51: #{conv_up_forward.3} parent=47 // pred_region
        %576 = vst.msk [vmem:[#allocation2 + $0x1] sm:$0xff] %vm555, %v570
        %577 = vst.msk [vmem:[#allocation2 + $0x9] sm:$0xff] %vm555, %v571
      $region52: #{conv_up_forward.3} parent=47 // pred_fallthru
        _
      %p578 = scmp.le.s32.totalorder %s25, 0
      // Predicated region
      $region53: #{conv_up_forward.3} parent=47 // pred_check
        %p579 = pneg %p578
      $region54: #{conv_up_forward.3} parent=47 // pred_check_branch
        %581 = sbr.rel (%p579) target = $region56
      $region55: #{conv_up_forward.3} parent=47 // pred_region
        %582 = vst.msk [vmem:[#allocation2 + $0x1] sm:$0xff] %vm555, 0.0
        %583 = vst.msk [vmem:[#allocation2 + $0x9] sm:$0xff] %vm555, 0.0
      $region56: #{conv_up_forward.3} parent=47 // pred_fallthru
        _
      %v584 = vld [vmem:[%s471] sm:$0xff]
      %v585 = vld [vmem:[%s471 + $0x8] sm:$0xff]
      %v586 = vmul.f32 %v584, %v522
      %v587 = vmul.f32 %v585, %v522
      %v588 = vadd.f32 %v586, %v536
      %v589 = vadd.f32 %v587, %v536
      %v590 = vmax.f32 %v588, 0.0
      %v591 = vmax.f32 %v589, 0.0
      %p592 = scmp.lt.s32.totalorder %s25, 3
      // Predicated region
      $region57: #{conv_up_forward.3} parent=47 // pred_check
        %p593 = pneg %p592
      $region58: #{conv_up_forward.3} parent=47 // pred_check_branch
        %595 = sbr.rel (%p593) target = $region60
      $region59: #{conv_up_forward.3} parent=47 // pred_region
        %s596 = scalar_lea.vmem [#allocation2], 120
        %597 = vst.msk [vmem:[%s596 + $0x1] sm:$0xff] %vm555, %v590
        %598 = vst.msk [vmem:[%s596 + $0x9] sm:$0xff] %vm555, %v591
      $region60: #{conv_up_forward.3} parent=47 // pred_fallthru
        _
      %p599 = scmp.ge.s32.totalorder %s25, 3
      // Predicated region
      $region61: #{conv_up_forward.3} parent=47 // pred_check
        %p600 = pneg %p599
      $region62: #{conv_up_forward.3} parent=47 // pred_check_branch
        %602 = sbr.rel (%p600) target = $region64
      $region63: #{conv_up_forward.3} parent=47 // pred_region
        %s603 = scalar_lea.vmem [#allocation2], 120
        %604 = vst.msk [vmem:[%s603 + $0x1] sm:$0xff] %vm555, 0.0
        %605 = vst.msk [vmem:[%s603 + $0x9] sm:$0xff] %vm555, 0.0
      $region64: #{conv_up_forward.3} parent=47 // pred_fallthru
        _
      %v606 = vld [vmem:[%s6] sm:$0x1]
      %v607 = vld [vmem:[%s5] sm:$0xff]
      %v608 = vld [vmem:[%s5 + $0x8] sm:$0xff]
      %v609 = vld [vmem:[%s5 + $0x10] sm:$0xff]
      %v610 = vld [vmem:[%s5 + $0x18] sm:$0xff]
      %v611 = vld [vmem:[%s5 + $0x20] sm:$0xff]
      %v612 = vld [vmem:[%s5 + $0x28] sm:$0xff]
      %v613 = vld [vmem:[%s5 + $0x30] sm:$0xff]
      %v614 = vld [vmem:[%s5 + $0x38] sm:$0xff]
      %v615 = vld [vmem:[%s5 + $0x40] sm:$0xff]
      %v616 = vld [vmem:[#allocation2] sm:$0xff]
      %v617 = vld [vmem:[#allocation2 + $0x8] sm:$0xff]
      %v618 = vld [vmem:[#allocation2 + $0x18] sm:$0xff]
      %v619 = vld [vmem:[#allocation2 + $0x20] sm:$0xff]
      %v620 = vld [vmem:[#allocation2 + $0x30] sm:$0xff]
      %v621 = vld [vmem:[#allocation2 + $0x38] sm:$0xff]
      %v622 = vld [vmem:[#allocation2 + $0x48] sm:$0xff]
      %v623 = vld [vmem:[#allocation2 + $0x50] sm:$0xff]
      %v624 = vld [vmem:[#allocation2 + $0x1] sm:$0xff]
      %v625 = vld [vmem:[#allocation2 + $0x9] sm:$0xff]
      %v626 = vld [vmem:[#allocation2 + $0x19] sm:$0xff]
      %v627 = vld [vmem:[#allocation2 + $0x21] sm:$0xff]
      %v628 = vld [vmem:[#allocation2 + $0x31] sm:$0xff]
      %v629 = vld [vmem:[#allocation2 + $0x39] sm:$0xff]
      %v630 = vld [vmem:[#allocation2 + $0x49] sm:$0xff]
      %v631 = vld [vmem:[#allocation2 + $0x51] sm:$0xff]
      %640 = vrot.lane.b32.xlu0 %v616, 104
      %v641 = vpop.permute.xlu0 %640
      %642 = vrot.lane.b32.xlu0 %v617, 104
      %v643 = vpop.permute.xlu0 %642
      %644 = vrot.lane.b32.xlu0 %v618, 104
      %v645 = vpop.permute.xlu0 %644
      %646 = vrot.lane.b32.xlu0 %v619, 104
      %v647 = vpop.permute.xlu0 %646
      %648 = vrot.lane.b32.xlu0 %v620, 104
      %v649 = vpop.permute.xlu0 %648
      %650 = vrot.lane.b32.xlu0 %v621, 104
      %v651 = vpop.permute.xlu0 %650
      %652 = vrot.lane.b32.xlu0 %v622, 104
      %v653 = vpop.permute.xlu0 %652
      %654 = vrot.lane.b32.xlu0 %v623, 104
      %v655 = vpop.permute.xlu0 %654
      %672 = vrot.lane.b32.xlu0 %v624, 120
      %v673 = vpop.permute.xlu0 %672
      %674 = vrot.lane.b32.xlu0 %v625, 120
      %v675 = vpop.permute.xlu0 %674
      %676 = vrot.lane.b32.xlu0 %v626, 120
      %v677 = vpop.permute.xlu0 %676
      %678 = vrot.lane.b32.xlu0 %v627, 120
      %v679 = vpop.permute.xlu0 %678
      %680 = vrot.lane.b32.xlu0 %v628, 120
      %v681 = vpop.permute.xlu0 %680
      %682 = vrot.lane.b32.xlu0 %v629, 120
      %v683 = vpop.permute.xlu0 %682
      %684 = vrot.lane.b32.xlu0 %v630, 120
      %v685 = vpop.permute.xlu0 %684
      %686 = vrot.lane.b32.xlu0 %v631, 120
      %v687 = vpop.permute.xlu0 %686
      %vm696 = vcmask 64512
      %v697 = vsel %vm696, %v641, %v673
      %v698 = vsel %vm696, %v643, %v675
      %v699 = vsel %vm696, %v645, %v677
      %v700 = vsel %vm696, %v647, %v679
      %v701 = vsel %vm696, %v649, %v681
      %v702 = vsel %vm696, %v651, %v683
      %v703 = vsel %vm696, %v653, %v685
      %v704 = vsel %vm696, %v655, %v687
      %vm705 = vcmask 130048
      %v706 = vsel %vm705, %v697, %v673
      %v707 = vsel %vm705, %v698, %v675
      %v708 = vsel %vm705, %v699, %v677
      %v709 = vsel %vm705, %v700, %v679
      %v710 = vsel %vm705, %v701, %v681
      %v711 = vsel %vm705, %v702, %v683
      %v712 = vsel %vm705, %v703, %v685
      %v713 = vsel %vm705, %v704, %v687
      %v714 = vld [vmem:[%s554] sm:$0xff]
      %v715 = vld [vmem:[%s554 + $0x8] sm:$0xff]
      %v716 = vld [vmem:[%s554 + $0x18] sm:$0xff]
      %v717 = vld [vmem:[%s554 + $0x20] sm:$0xff]
      %v718 = vld [vmem:[%s554 + $0x30] sm:$0xff]
      %v719 = vld [vmem:[%s554 + $0x38] sm:$0xff]
      %v720 = vld [vmem:[%s554 + $0x48] sm:$0xff]
      %v721 = vld [vmem:[%s554 + $0x50] sm:$0xff]
      %v722 = vld [vmem:[%s554 + $0x1] sm:$0xff]
      %v723 = vld [vmem:[%s554 + $0x9] sm:$0xff]
      %v724 = vld [vmem:[%s554 + $0x19] sm:$0xff]
      %v725 = vld [vmem:[%s554 + $0x21] sm:$0xff]
      %v726 = vld [vmem:[%s554 + $0x31] sm:$0xff]
      %v727 = vld [vmem:[%s554 + $0x39] sm:$0xff]
      %v728 = vld [vmem:[%s554 + $0x49] sm:$0xff]
      %v729 = vld [vmem:[%s554 + $0x51] sm:$0xff]
      %738 = vrot.lane.b32.xlu0 %v714, 120
      %v739 = vpop.permute.xlu0 %738
      %740 = vrot.lane.b32.xlu0 %v715, 120
      %v741 = vpop.permute.xlu0 %740
      %742 = vrot.lane.b32.xlu0 %v716, 120
      %v743 = vpop.permute.xlu0 %742
      %744 = vrot.lane.b32.xlu0 %v717, 120
      %v745 = vpop.permute.xlu0 %744
      %746 = vrot.lane.b32.xlu0 %v718, 120
      %v747 = vpop.permute.xlu0 %746
      %748 = vrot.lane.b32.xlu0 %v719, 120
      %v749 = vpop.permute.xlu0 %748
      %750 = vrot.lane.b32.xlu0 %v720, 120
      %v751 = vpop.permute.xlu0 %750
      %752 = vrot.lane.b32.xlu0 %v721, 120
      %v753 = vpop.permute.xlu0 %752
      %770 = vrot.lane.b32.xlu0 %v722, 8
      %v771 = vpop.permute.xlu0 %770
      %772 = vrot.lane.b32.xlu0 %v723, 8
      %v773 = vpop.permute.xlu0 %772
      %774 = vrot.lane.b32.xlu0 %v724, 8
      %v775 = vpop.permute.xlu0 %774
      %776 = vrot.lane.b32.xlu0 %v725, 8
      %v777 = vpop.permute.xlu0 %776
      %778 = vrot.lane.b32.xlu0 %v726, 8
      %v779 = vpop.permute.xlu0 %778
      %780 = vrot.lane.b32.xlu0 %v727, 8
      %v781 = vpop.permute.xlu0 %780
      %782 = vrot.lane.b32.xlu0 %v728, 8
      %v783 = vpop.permute.xlu0 %782
      %784 = vrot.lane.b32.xlu0 %v729, 8
      %v785 = vpop.permute.xlu0 %784
      %v794 = vsel %vm696, %v739, %v771
      %v795 = vsel %vm696, %v741, %v773
      %v796 = vsel %vm696, %v743, %v775
      %v797 = vsel %vm696, %v745, %v777
      %v798 = vsel %vm696, %v747, %v779
      %v799 = vsel %vm696, %v749, %v781
      %v800 = vsel %vm696, %v751, %v783
      %v801 = vsel %vm696, %v753, %v785
      %v802 = vsel %vm705, %v794, %v771
      %v803 = vsel %vm705, %v795, %v773
      %v804 = vsel %vm705, %v796, %v775
      %v805 = vsel %vm705, %v797, %v777
      %v806 = vsel %vm705, %v798, %v779
      %v807 = vsel %vm705, %v799, %v781
      %v808 = vsel %vm705, %v800, %v783
      %v809 = vsel %vm705, %v801, %v785
      %vm810 = vcmask 195584
      %v812 = vsel %vm810, %v802, 0
      %v815 = vsel %vm810, %v803, 0
      %v818 = vsel %vm810, %v804, 0
      %v821 = vsel %vm810, %v805, 0
      %v824 = vsel %vm810, %v806, 0
      %v827 = vsel %vm810, %v807, 0
      %v830 = vsel %vm810, %v808, 0
      %v833 = vsel %vm810, %v809, 0
      %835 = vmatprep.subr.mxu0 0.0
      %836 = vmatpush1.msra.mxu0 0.0
      %837 = vmatprep.subr.mxu0 0.0
      %838 = vmatpush1.msra.mxu0 0.0
      %839 = vmatprep.subr.mxu0 0.0
      %840 = vmatpush1.msra.mxu0 0.0
      %841 = vmatprep.subr.mxu0 0.0
      %842 = vmatpush1.msra.mxu0 0.0
      %843 = vmatprep.subr.mxu0 0.0
      %844 = vmatpush1.msra.mxu0 0.0
      %845 = vmatprep.subr.mxu0 0.0
      %846 = vmatpush1.msra.mxu0 0.0
      %847 = vmatprep.subr.mxu0 0.0
      %848 = vmatpush1.msra.mxu0 0.0
      %849 = vmatprep.subr.mxu0 0.0
      %850 = vmatpush1.msra.mxu0 0.0
      %851 = vmatprep.subr.mxu0 0.0
      %852 = vmatpush1.msra.mxu0 0.0
      %853 = vmatprep.subr.mxu0 0.0
      %854 = vmatpush1.msra.mxu0 0.0
      %855 = vmatprep.subr.mxu0 0.0
      %856 = vmatpush1.msra.mxu0 0.0
      %857 = vmatprep.subr.mxu0 0.0
      %858 = vmatpush1.msra.mxu0 0.0
      %859 = vmatprep.subr.mxu0 0.0
      %860 = vmatpush1.msra.mxu0 0.0
      %861 = vmatprep.subr.mxu0 0.0
      %862 = vmatpush1.msra.mxu0 %v612
      %863 = vmatprep.subr.mxu0 0.0
      %864 = vmatpush1.msra.mxu0 %v611
      %865 = vmatprep.subr.mxu0 0.0
      %866 = vmatpush1.msra.mxu0 %v610
      %867 = vmatprep.subr.mxu0 0.0
      %868 = vmatpush2.msra.mxu0 0.0
      %869 = vmatprep.subr.mxu0 0.0
      %870 = vmatpush2.msra.mxu0 0.0
      %871 = vmatprep.subr.mxu0 0.0
      %872 = vmatpush2.msra.mxu0 0.0
      %873 = vmatprep.subr.mxu0 0.0
      %874 = vmatpush2.msra.mxu0 0.0
      %875 = vmatprep.subr.mxu0 0.0
      %876 = vmatpush2.msra.mxu0 0.0
      %877 = vmatprep.subr.mxu0 0.0
      %878 = vmatpush2.msra.mxu0 0.0
      %879 = vmatprep.subr.mxu0 0.0
      %880 = vmatpush2.msra.mxu0 0.0
      %881 = vmatprep.subr.mxu0 0.0
      %882 = vmatpush2.msra.mxu0 0.0
      %883 = vmatprep.subr.mxu0 0.0
      %884 = vmatpush2.msra.mxu0 0.0
      %885 = vmatprep.subr.mxu0 0.0
      %886 = vmatpush2.msra.mxu0 0.0
      %887 = vmatprep.subr.mxu0 0.0
      %888 = vmatpush2.msra.mxu0 0.0
      %889 = vmatprep.subr.mxu0 0.0
      %890 = vmatpush2.msra.mxu0 0.0
      %891 = vmatprep.subr.mxu0 0.0
      %892 = vmatpush2.msra.mxu0 0.0
      %893 = vmatprep.subr.mxu0 0.0
      %894 = vmatpush2.msra.mxu0 0.0
      %895 = vmatprep.subr.mxu0 0.0
      %896 = vmatpush2.msra.mxu0 0.0
      %897 = vmatprep.subr.mxu0 0.0
      %898 = vmatpush2.msra.mxu0 0.0
      %899 = vmatprep.mubr.f32.mxu0 0.0
      %900 = vmatmul.mubr.f32.gmra.mxu0 %v812
      %v901 = vpop.f32.mrf.mxu0
      %v902 = vadd.f32 0.0, %v901
      %v903 = vpop.f32.mrf.mxu0
      %904 = vmatprep.mubr.f32.mxu0 0.0
      %905 = vmatmul.mubr.f32.gmra.mxu0 %v815
      %v906 = vpop.f32.mrf.mxu0
      %v907 = vadd.f32 0.0, %v906
      %v908 = vpop.f32.mrf.mxu0
      %909 = vmatprep.mubr.f32.mxu0 0.0
      %910 = vmatmul.mubr.f32.gmra.mxu0 %v818
      %v911 = vpop.f32.mrf.mxu0
      %v912 = vadd.f32 0.0, %v911
      %v913 = vpop.f32.mrf.mxu0
      %914 = vmatprep.mubr.f32.mxu0 0.0
      %915 = vmatmul.mubr.f32.gmra.mxu0 %v821
      %v916 = vpop.f32.mrf.mxu0
      %v917 = vadd.f32 0.0, %v916
      %v918 = vpop.f32.mrf.mxu0
      %919 = vmatprep.mubr.f32.mxu0 0.0
      %920 = vmatmul.mubr.f32.gmra.mxu0 %v824
      %v921 = vpop.f32.mrf.mxu0
      %v922 = vadd.f32 0.0, %v921
      %v923 = vpop.f32.mrf.mxu0
      %924 = vmatprep.mubr.f32.mxu0 0.0
      %925 = vmatmul.mubr.f32.gmra.mxu0 %v827
      %v926 = vpop.f32.mrf.mxu0
      %v927 = vadd.f32 0.0, %v926
      %v928 = vpop.f32.mrf.mxu0
      %929 = vmatprep.mubr.f32.mxu0 0.0
      %930 = vmatmul.mubr.f32.gmra.mxu0 %v830
      %v931 = vpop.f32.mrf.mxu0
      %v932 = vadd.f32 0.0, %v931
      %v933 = vpop.f32.mrf.mxu0
      %934 = vmatprep.mubr.f32.mxu0 0.0
      %935 = vmatmul.mubr.f32.gmra.mxu0 %v833
      %v936 = vpop.f32.mrf.mxu0
      %v937 = vadd.f32 0.0, %v936
      %v938 = vpop.f32.mrf.mxu0
      %939 = vdwg.mxu0
      %v941 = vsel %vm810, %v706, 0
      %v944 = vsel %vm810, %v707, 0
      %v947 = vsel %vm810, %v708, 0
      %v950 = vsel %vm810, %v709, 0
      %v953 = vsel %vm810, %v710, 0
      %v956 = vsel %vm810, %v711, 0
      %v959 = vsel %vm810, %v712, 0
      %v962 = vsel %vm810, %v713, 0
      %964 = vmatprep.subr.mxu0 0.0
      %965 = vmatpush1.msra.mxu0 0.0
      %966 = vmatprep.subr.mxu0 0.0
      %967 = vmatpush1.msra.mxu0 0.0
      %968 = vmatprep.subr.mxu0 0.0
      %969 = vmatpush1.msra.mxu0 0.0
      %970 = vmatprep.subr.mxu0 0.0
      %971 = vmatpush1.msra.mxu0 0.0
      %972 = vmatprep.subr.mxu0 0.0
      %973 = vmatpush1.msra.mxu0 0.0
      %974 = vmatprep.subr.mxu0 0.0
      %975 = vmatpush1.msra.mxu0 0.0
      %976 = vmatprep.subr.mxu0 0.0
      %977 = vmatpush1.msra.mxu0 0.0
      %978 = vmatprep.subr.mxu0 0.0
      %979 = vmatpush1.msra.mxu0 0.0
      %980 = vmatprep.subr.mxu0 0.0
      %981 = vmatpush1.msra.mxu0 0.0
      %982 = vmatprep.subr.mxu0 0.0
      %983 = vmatpush1.msra.mxu0 0.0
      %984 = vmatprep.subr.mxu0 0.0
      %985 = vmatpush1.msra.mxu0 0.0
      %986 = vmatprep.subr.mxu0 0.0
      %987 = vmatpush1.msra.mxu0 0.0
      %988 = vmatprep.subr.mxu0 0.0
      %989 = vmatpush1.msra.mxu0 0.0
      %990 = vmatprep.subr.mxu0 0.0
      %991 = vmatpush1.msra.mxu0 %v609
      %992 = vmatprep.subr.mxu0 0.0
      %993 = vmatpush1.msra.mxu0 %v608
      %994 = vmatprep.subr.mxu0 0.0
      %995 = vmatpush1.msra.mxu0 %v607
      %996 = vmatprep.subr.mxu0 0.0
      %997 = vmatpush2.msra.mxu0 0.0
      %998 = vmatprep.subr.mxu0 0.0
      %999 = vmatpush2.msra.mxu0 0.0
      %1000 = vmatprep.subr.mxu0 0.0
      %1001 = vmatpush2.msra.mxu0 0.0
      %1002 = vmatprep.subr.mxu0 0.0
      %1003 = vmatpush2.msra.mxu0 0.0
      %1004 = vmatprep.subr.mxu0 0.0
      %1005 = vmatpush2.msra.mxu0 0.0
      %1006 = vmatprep.subr.mxu0 0.0
      %1007 = vmatpush2.msra.mxu0 0.0
      %1008 = vmatprep.subr.mxu0 0.0
      %1009 = vmatpush2.msra.mxu0 0.0
      %1010 = vmatprep.subr.mxu0 0.0
      %1011 = vmatpush2.msra.mxu0 0.0
      %1012 = vmatprep.subr.mxu0 0.0
      %1013 = vmatpush2.msra.mxu0 0.0
      %1014 = vmatprep.subr.mxu0 0.0
      %1015 = vmatpush2.msra.mxu0 0.0
      %1016 = vmatprep.subr.mxu0 0.0
      %1017 = vmatpush2.msra.mxu0 0.0
      %1018 = vmatprep.subr.mxu0 0.0
      %1019 = vmatpush2.msra.mxu0 0.0
      %1020 = vmatprep.subr.mxu0 0.0
      %1021 = vmatpush2.msra.mxu0 0.0
      %1022 = vmatprep.subr.mxu0 0.0
      %1023 = vmatpush2.msra.mxu0 0.0
      %1024 = vmatprep.subr.mxu0 0.0
      %1025 = vmatpush2.msra.mxu0 0.0
      %1026 = vmatprep.subr.mxu0 0.0
      %1027 = vmatpush2.msra.mxu0 0.0
      %1028 = vmatprep.mubr.f32.mxu0 0.0
      %1029 = vmatmul.mubr.f32.gmra.mxu0 %v941
      %v1030 = vpop.f32.mrf.mxu0
      %v1031 = vadd.f32 %v902, %v1030
      %v1032 = vpop.f32.mrf.mxu0
      %1033 = vmatprep.mubr.f32.mxu0 0.0
      %1034 = vmatmul.mubr.f32.gmra.mxu0 %v944
      %v1035 = vpop.f32.mrf.mxu0
      %v1036 = vadd.f32 %v907, %v1035
      %v1037 = vpop.f32.mrf.mxu0
      %1038 = vmatprep.mubr.f32.mxu0 0.0
      %1039 = vmatmul.mubr.f32.gmra.mxu0 %v947
      %v1040 = vpop.f32.mrf.mxu0
      %v1041 = vadd.f32 %v912, %v1040
      %v1042 = vpop.f32.mrf.mxu0
      %1043 = vmatprep.mubr.f32.mxu0 0.0
      %1044 = vmatmul.mubr.f32.gmra.mxu0 %v950
      %v1045 = vpop.f32.mrf.mxu0
      %v1046 = vadd.f32 %v917, %v1045
      %v1047 = vpop.f32.mrf.mxu0
      %1048 = vmatprep.mubr.f32.mxu0 0.0
      %1049 = vmatmul.mubr.f32.gmra.mxu0 %v953
      %v1050 = vpop.f32.mrf.mxu0
      %v1051 = vadd.f32 %v922, %v1050
      %v1052 = vpop.f32.mrf.mxu0
      %1053 = vmatprep.mubr.f32.mxu0 0.0
      %1054 = vmatmul.mubr.f32.gmra.mxu0 %v956
      %v1055 = vpop.f32.mrf.mxu0
      %v1056 = vadd.f32 %v927, %v1055
      %v1057 = vpop.f32.mrf.mxu0
      %1058 = vmatprep.mubr.f32.mxu0 0.0
      %1059 = vmatmul.mubr.f32.gmra.mxu0 %v959
      %v1060 = vpop.f32.mrf.mxu0
      %v1061 = vadd.f32 %v932, %v1060
      %v1062 = vpop.f32.mrf.mxu0
      %1063 = vmatprep.mubr.f32.mxu0 0.0
      %1064 = vmatmul.mubr.f32.gmra.mxu0 %v962
      %v1065 = vpop.f32.mrf.mxu0
      %v1066 = vadd.f32 %v937, %v1065
      %v1067 = vpop.f32.mrf.mxu0
      %1068 = vdwg.mxu0
      %1069 = vrot.lane.b32.xlu0 %v714, 104
      %v1070 = vpop.permute.xlu0 %1069
      %1071 = vrot.lane.b32.xlu0 %v715, 104
      %v1072 = vpop.permute.xlu0 %1071
      %1073 = vrot.lane.b32.xlu0 %v716, 104
      %v1074 = vpop.permute.xlu0 %1073
      %1075 = vrot.lane.b32.xlu0 %v717, 104
      %v1076 = vpop.permute.xlu0 %1075
      %1077 = vrot.lane.b32.xlu0 %v718, 104
      %v1078 = vpop.permute.xlu0 %1077
      %1079 = vrot.lane.b32.xlu0 %v719, 104
      %v1080 = vpop.permute.xlu0 %1079
      %1081 = vrot.lane.b32.xlu0 %v720, 104
      %v1082 = vpop.permute.xlu0 %1081
      %1083 = vrot.lane.b32.xlu0 %v721, 104
      %v1084 = vpop.permute.xlu0 %1083
      %1093 = vrot.lane.b32.xlu0 %v722, 120
      %v1094 = vpop.permute.xlu0 %1093
      %1095 = vrot.lane.b32.xlu0 %v723, 120
      %v1096 = vpop.permute.xlu0 %1095
      %1097 = vrot.lane.b32.xlu0 %v724, 120
      %v1098 = vpop.permute.xlu0 %1097
      %1099 = vrot.lane.b32.xlu0 %v725, 120
      %v1100 = vpop.permute.xlu0 %1099
      %1101 = vrot.lane.b32.xlu0 %v726, 120
      %v1102 = vpop.permute.xlu0 %1101
      %1103 = vrot.lane.b32.xlu0 %v727, 120
      %v1104 = vpop.permute.xlu0 %1103
      %1105 = vrot.lane.b32.xlu0 %v728, 120
      %v1106 = vpop.permute.xlu0 %1105
      %1107 = vrot.lane.b32.xlu0 %v729, 120
      %v1108 = vpop.permute.xlu0 %1107
      %v1117 = vsel %vm696, %v1070, %v1094
      %v1118 = vsel %vm696, %v1072, %v1096
      %v1119 = vsel %vm696, %v1074, %v1098
      %v1120 = vsel %vm696, %v1076, %v1100
      %v1121 = vsel %vm696, %v1078, %v1102
      %v1122 = vsel %vm696, %v1080, %v1104
      %v1123 = vsel %vm696, %v1082, %v1106
      %v1124 = vsel %vm696, %v1084, %v1108
      %v1125 = vsel %vm705, %v1117, %v1094
      %v1126 = vsel %vm705, %v1118, %v1096
      %v1127 = vsel %vm705, %v1119, %v1098
      %v1128 = vsel %vm705, %v1120, %v1100
      %v1129 = vsel %vm705, %v1121, %v1102
      %v1130 = vsel %vm705, %v1122, %v1104
      %v1131 = vsel %vm705, %v1123, %v1106
      %v1132 = vsel %vm705, %v1124, %v1108
      %v1134 = vsel %vm810, %v1125, 0
      %v1137 = vsel %vm810, %v1126, 0
      %v1140 = vsel %vm810, %v1127, 0
      %v1143 = vsel %vm810, %v1128, 0
      %v1146 = vsel %vm810, %v1129, 0
      %v1149 = vsel %vm810, %v1130, 0
      %v1152 = vsel %vm810, %v1131, 0
      %v1155 = vsel %vm810, %v1132, 0
      %1157 = vmatprep.subr.mxu0 0.0
      %1158 = vmatpush1.msra.mxu0 0.0
      %1159 = vmatprep.subr.mxu0 0.0
      %1160 = vmatpush1.msra.mxu0 0.0
      %1161 = vmatprep.subr.mxu0 0.0
      %1162 = vmatpush1.msra.mxu0 0.0
      %1163 = vmatprep.subr.mxu0 0.0
      %1164 = vmatpush1.msra.mxu0 0.0
      %1165 = vmatprep.subr.mxu0 0.0
      %1166 = vmatpush1.msra.mxu0 0.0
      %1167 = vmatprep.subr.mxu0 0.0
      %1168 = vmatpush1.msra.mxu0 0.0
      %1169 = vmatprep.subr.mxu0 0.0
      %1170 = vmatpush1.msra.mxu0 0.0
      %1171 = vmatprep.subr.mxu0 0.0
      %1172 = vmatpush1.msra.mxu0 0.0
      %1173 = vmatprep.subr.mxu0 0.0
      %1174 = vmatpush1.msra.mxu0 0.0
      %1175 = vmatprep.subr.mxu0 0.0
      %1176 = vmatpush1.msra.mxu0 0.0
      %1177 = vmatprep.subr.mxu0 0.0
      %1178 = vmatpush1.msra.mxu0 0.0
      %1179 = vmatprep.subr.mxu0 0.0
      %1180 = vmatpush1.msra.mxu0 0.0
      %1181 = vmatprep.subr.mxu0 0.0
      %1182 = vmatpush1.msra.mxu0 0.0
      %1183 = vmatprep.subr.mxu0 0.0
      %1184 = vmatpush1.msra.mxu0 %v615
      %1185 = vmatprep.subr.mxu0 0.0
      %1186 = vmatpush1.msra.mxu0 %v614
      %1187 = vmatprep.subr.mxu0 0.0
      %1188 = vmatpush1.msra.mxu0 %v613
      %1189 = vmatprep.subr.mxu0 0.0
      %1190 = vmatpush2.msra.mxu0 0.0
      %1191 = vmatprep.subr.mxu0 0.0
      %1192 = vmatpush2.msra.mxu0 0.0
      %1193 = vmatprep.subr.mxu0 0.0
      %1194 = vmatpush2.msra.mxu0 0.0
      %1195 = vmatprep.subr.mxu0 0.0
      %1196 = vmatpush2.msra.mxu0 0.0
      %1197 = vmatprep.subr.mxu0 0.0
      %1198 = vmatpush2.msra.mxu0 0.0
      %1199 = vmatprep.subr.mxu0 0.0
      %1200 = vmatpush2.msra.mxu0 0.0
      %1201 = vmatprep.subr.mxu0 0.0
      %1202 = vmatpush2.msra.mxu0 0.0
      %1203 = vmatprep.subr.mxu0 0.0
      %1204 = vmatpush2.msra.mxu0 0.0
      %1205 = vmatprep.subr.mxu0 0.0
      %1206 = vmatpush2.msra.mxu0 0.0
      %1207 = vmatprep.subr.mxu0 0.0
      %1208 = vmatpush2.msra.mxu0 0.0
      %1209 = vmatprep.subr.mxu0 0.0
      %1210 = vmatpush2.msra.mxu0 0.0
      %1211 = vmatprep.subr.mxu0 0.0
      %1212 = vmatpush2.msra.mxu0 0.0
      %1213 = vmatprep.subr.mxu0 0.0
      %1214 = vmatpush2.msra.mxu0 0.0
      %1215 = vmatprep.subr.mxu0 0.0
      %1216 = vmatpush2.msra.mxu0 0.0
      %1217 = vmatprep.subr.mxu0 0.0
      %1218 = vmatpush2.msra.mxu0 0.0
      %1219 = vmatprep.subr.mxu0 0.0
      %1220 = vmatpush2.msra.mxu0 0.0
      %1221 = vmatprep.mubr.f32.mxu0 0.0
      %1222 = vmatmul.mubr.f32.gmra.mxu0 %v1134
      %v1223 = vpop.f32.mrf.mxu0
      %v1224 = vadd.f32 0.0, %v1223
      %v1225 = vpop.f32.mrf.mxu0
      %1226 = vmatprep.mubr.f32.mxu0 0.0
      %1227 = vmatmul.mubr.f32.gmra.mxu0 %v1137
      %v1228 = vpop.f32.mrf.mxu0
      %v1229 = vadd.f32 0.0, %v1228
      %v1230 = vpop.f32.mrf.mxu0
      %1231 = vmatprep.mubr.f32.mxu0 0.0
      %1232 = vmatmul.mubr.f32.gmra.mxu0 %v1140
      %v1233 = vpop.f32.mrf.mxu0
      %v1234 = vadd.f32 0.0, %v1233
      %v1235 = vpop.f32.mrf.mxu0
      %1236 = vmatprep.mubr.f32.mxu0 0.0
      %1237 = vmatmul.mubr.f32.gmra.mxu0 %v1143
      %v1238 = vpop.f32.mrf.mxu0
      %v1239 = vadd.f32 0.0, %v1238
      %v1240 = vpop.f32.mrf.mxu0
      %1241 = vmatprep.mubr.f32.mxu0 0.0
      %1242 = vmatmul.mubr.f32.gmra.mxu0 %v1146
      %v1243 = vpop.f32.mrf.mxu0
      %v1244 = vadd.f32 0.0, %v1243
      %v1245 = vpop.f32.mrf.mxu0
      %1246 = vmatprep.mubr.f32.mxu0 0.0
      %1247 = vmatmul.mubr.f32.gmra.mxu0 %v1149
      %v1248 = vpop.f32.mrf.mxu0
      %v1249 = vadd.f32 0.0, %v1248
      %v1250 = vpop.f32.mrf.mxu0
      %1251 = vmatprep.mubr.f32.mxu0 0.0
      %1252 = vmatmul.mubr.f32.gmra.mxu0 %v1152
      %v1253 = vpop.f32.mrf.mxu0
      %v1254 = vadd.f32 0.0, %v1253
      %v1255 = vpop.f32.mrf.mxu0
      %1256 = vmatprep.mubr.f32.mxu0 0.0
      %1257 = vmatmul.mubr.f32.gmra.mxu0 %v1155
      %v1258 = vpop.f32.mrf.mxu0
      %v1259 = vadd.f32 0.0, %v1258
      %v1260 = vpop.f32.mrf.mxu0
      %1261 = vdwg.mxu0
      %v1262 = vadd.f32 %v1031, %v1224
      %v1263 = vadd.f32 %v1036, %v1229
      %v1264 = vadd.f32 %v1041, %v1234
      %v1265 = vadd.f32 %v1046, %v1239
      %v1266 = vadd.f32 %v1051, %v1244
      %v1267 = vadd.f32 %v1056, %v1249
      %v1268 = vadd.f32 %v1061, %v1254
      %v1269 = vadd.f32 %v1066, %v1259
      %v1271 = vlaneseq
      %v1272 = vshrl.u32 %v1271, 7
      %v1273 = vsub.s32 0, %v1272
      %v1274 = vrot.slane %v606, %v1273
      %v1276 = vadd.f32 %v1262, %v1274
      %v1277 = vadd.f32 %v1263, %v1274
      %v1278 = vadd.f32 %v1264, %v1274
      %v1279 = vadd.f32 %v1265, %v1274
      %v1280 = vadd.f32 %v1266, %v1274
      %v1281 = vadd.f32 %v1267, %v1274
      %v1282 = vadd.f32 %v1268, %v1274
      %v1283 = vadd.f32 %v1269, %v1274
      %v1284 = vld [vmem:[#allocation2 + $0x2] sm:$0xff]
      %v1285 = vld [vmem:[#allocation2 + $0xa] sm:$0xff]
      %v1286 = vld [vmem:[#allocation2 + $0x1a] sm:$0xff]
      %v1287 = vld [vmem:[#allocation2 + $0x22] sm:$0xff]
      %v1288 = vld [vmem:[#allocation2 + $0x32] sm:$0xff]
      %v1289 = vld [vmem:[#allocation2 + $0x3a] sm:$0xff]
      %v1290 = vld [vmem:[#allocation2 + $0x4a] sm:$0xff]
      %v1291 = vld [vmem:[#allocation2 + $0x52] sm:$0xff]
      %1292 = vrot.lane.b32.xlu0 %v624, 112
      %v1293 = vpop.permute.xlu0 %1292
      %1294 = vrot.lane.b32.xlu0 %v625, 112
      %v1295 = vpop.permute.xlu0 %1294
      %1296 = vrot.lane.b32.xlu0 %v626, 112
      %v1297 = vpop.permute.xlu0 %1296
      %1298 = vrot.lane.b32.xlu0 %v627, 112
      %v1299 = vpop.permute.xlu0 %1298
      %1300 = vrot.lane.b32.xlu0 %v628, 112
      %v1301 = vpop.permute.xlu0 %1300
      %1302 = vrot.lane.b32.xlu0 %v629, 112
      %v1303 = vpop.permute.xlu0 %1302
      %1304 = vrot.lane.b32.xlu0 %v630, 112
      %v1305 = vpop.permute.xlu0 %1304
      %1306 = vrot.lane.b32.xlu0 %v631, 112
      %v1307 = vpop.permute.xlu0 %1306
      %v1316 = vsel %vm705, %v1293, %v1284
      %v1317 = vsel %vm705, %v1295, %v1285
      %v1318 = vsel %vm705, %v1297, %v1286
      %v1319 = vsel %vm705, %v1299, %v1287
      %v1320 = vsel %vm705, %v1301, %v1288
      %v1321 = vsel %vm705, %v1303, %v1289
      %v1322 = vsel %vm705, %v1305, %v1290
      %v1323 = vsel %vm705, %v1307, %v1291
      %v1324 = vld [vmem:[%s554 + $0x2] sm:$0xff]
      %v1325 = vld [vmem:[%s554 + $0xa] sm:$0xff]
      %v1326 = vld [vmem:[%s554 + $0x1a] sm:$0xff]
      %v1327 = vld [vmem:[%s554 + $0x22] sm:$0xff]
      %v1328 = vld [vmem:[%s554 + $0x32] sm:$0xff]
      %v1329 = vld [vmem:[%s554 + $0x3a] sm:$0xff]
      %v1330 = vld [vmem:[%s554 + $0x4a] sm:$0xff]
      %v1331 = vld [vmem:[%s554 + $0x52] sm:$0xff]
      %1340 = vrot.lane.b32.xlu0 %v1324, 16
      %v1341 = vpop.permute.xlu0 %1340
      %1342 = vrot.lane.b32.xlu0 %v1325, 16
      %v1343 = vpop.permute.xlu0 %1342
      %1344 = vrot.lane.b32.xlu0 %v1326, 16
      %v1345 = vpop.permute.xlu0 %1344
      %1346 = vrot.lane.b32.xlu0 %v1327, 16
      %v1347 = vpop.permute.xlu0 %1346
      %1348 = vrot.lane.b32.xlu0 %v1328, 16
      %v1349 = vpop.permute.xlu0 %1348
      %1350 = vrot.lane.b32.xlu0 %v1329, 16
      %v1351 = vpop.permute.xlu0 %1350
      %1352 = vrot.lane.b32.xlu0 %v1330, 16
      %v1353 = vpop.permute.xlu0 %1352
      %1354 = vrot.lane.b32.xlu0 %v1331, 16
      %v1355 = vpop.permute.xlu0 %1354
      %v1364 = vsel %vm705, %v722, %v1341
      %v1365 = vsel %vm705, %v723, %v1343
      %v1366 = vsel %vm705, %v724, %v1345
      %v1367 = vsel %vm705, %v725, %v1347
      %v1368 = vsel %vm705, %v726, %v1349
      %v1369 = vsel %vm705, %v727, %v1351
      %v1370 = vsel %vm705, %v728, %v1353
      %v1371 = vsel %vm705, %v729, %v1355
      %v1373 = vsel %vm810, %v1364, 0
      %v1376 = vsel %vm810, %v1365, 0
      %v1379 = vsel %vm810, %v1366, 0
      %v1382 = vsel %vm810, %v1367, 0
      %v1385 = vsel %vm810, %v1368, 0
      %v1388 = vsel %vm810, %v1369, 0
      %v1391 = vsel %vm810, %v1370, 0
      %v1394 = vsel %vm810, %v1371, 0
      %1396 = vmatprep.subr.mxu0 0.0
      %1397 = vmatpush1.msra.mxu0 0.0
      %1398 = vmatprep.subr.mxu0 0.0
      %1399 = vmatpush1.msra.mxu0 0.0
      %1400 = vmatprep.subr.mxu0 0.0
      %1401 = vmatpush1.msra.mxu0 0.0
      %1402 = vmatprep.subr.mxu0 0.0
      %1403 = vmatpush1.msra.mxu0 0.0
      %1404 = vmatprep.subr.mxu0 0.0
      %1405 = vmatpush1.msra.mxu0 0.0
      %1406 = vmatprep.subr.mxu0 0.0
      %1407 = vmatpush1.msra.mxu0 0.0
      %1408 = vmatprep.subr.mxu0 0.0
      %1409 = vmatpush1.msra.mxu0 0.0
      %1410 = vmatprep.subr.mxu0 0.0
      %1411 = vmatpush1.msra.mxu0 0.0
      %1412 = vmatprep.subr.mxu0 0.0
      %1413 = vmatpush1.msra.mxu0 0.0
      %1414 = vmatprep.subr.mxu0 0.0
      %1415 = vmatpush1.msra.mxu0 0.0
      %1416 = vmatprep.subr.mxu0 0.0
      %1417 = vmatpush1.msra.mxu0 0.0
      %1418 = vmatprep.subr.mxu0 0.0
      %1419 = vmatpush1.msra.mxu0 0.0
      %1420 = vmatprep.subr.mxu0 0.0
      %1421 = vmatpush1.msra.mxu0 0.0
      %1422 = vmatprep.subr.mxu0 0.0
      %1423 = vmatpush1.msra.mxu0 %v612
      %1424 = vmatprep.subr.mxu0 0.0
      %1425 = vmatpush1.msra.mxu0 %v611
      %1426 = vmatprep.subr.mxu0 0.0
      %1427 = vmatpush1.msra.mxu0 %v610
      %1428 = vmatprep.subr.mxu0 0.0
      %1429 = vmatpush2.msra.mxu0 0.0
      %1430 = vmatprep.subr.mxu0 0.0
      %1431 = vmatpush2.msra.mxu0 0.0
      %1432 = vmatprep.subr.mxu0 0.0
      %1433 = vmatpush2.msra.mxu0 0.0
      %1434 = vmatprep.subr.mxu0 0.0
      %1435 = vmatpush2.msra.mxu0 0.0
      %1436 = vmatprep.subr.mxu0 0.0
      %1437 = vmatpush2.msra.mxu0 0.0
      %1438 = vmatprep.subr.mxu0 0.0
      %1439 = vmatpush2.msra.mxu0 0.0
      %1440 = vmatprep.subr.mxu0 0.0
      %1441 = vmatpush2.msra.mxu0 0.0
      %1442 = vmatprep.subr.mxu0 0.0
      %1443 = vmatpush2.msra.mxu0 0.0
      %1444 = vmatprep.subr.mxu0 0.0
      %1445 = vmatpush2.msra.mxu0 0.0
      %1446 = vmatprep.subr.mxu0 0.0
      %1447 = vmatpush2.msra.mxu0 0.0
      %1448 = vmatprep.subr.mxu0 0.0
      %1449 = vmatpush2.msra.mxu0 0.0
      %1450 = vmatprep.subr.mxu0 0.0
      %1451 = vmatpush2.msra.mxu0 0.0
      %1452 = vmatprep.subr.mxu0 0.0
      %1453 = vmatpush2.msra.mxu0 0.0
      %1454 = vmatprep.subr.mxu0 0.0
      %1455 = vmatpush2.msra.mxu0 0.0
      %1456 = vmatprep.subr.mxu0 0.0
      %1457 = vmatpush2.msra.mxu0 0.0
      %1458 = vmatprep.subr.mxu0 0.0
      %1459 = vmatpush2.msra.mxu0 0.0
      %1460 = vmatprep.mubr.f32.mxu0 0.0
      %1461 = vmatmul.mubr.f32.gmra.mxu0 %v1373
      %v1462 = vpop.f32.mrf.mxu0
      %v1463 = vadd.f32 0.0, %v1462
      %v1464 = vpop.f32.mrf.mxu0
      %1465 = vmatprep.mubr.f32.mxu0 0.0
      %1466 = vmatmul.mubr.f32.gmra.mxu0 %v1376
      %v1467 = vpop.f32.mrf.mxu0
      %v1468 = vadd.f32 0.0, %v1467
      %v1469 = vpop.f32.mrf.mxu0
      %1470 = vmatprep.mubr.f32.mxu0 0.0
      %1471 = vmatmul.mubr.f32.gmra.mxu0 %v1379
      %v1472 = vpop.f32.mrf.mxu0
      %v1473 = vadd.f32 0.0, %v1472
      %v1474 = vpop.f32.mrf.mxu0
      %1475 = vmatprep.mubr.f32.mxu0 0.0
      %1476 = vmatmul.mubr.f32.gmra.mxu0 %v1382
      %v1477 = vpop.f32.mrf.mxu0
      %v1478 = vadd.f32 0.0, %v1477
      %v1479 = vpop.f32.mrf.mxu0
      %1480 = vmatprep.mubr.f32.mxu0 0.0
      %1481 = vmatmul.mubr.f32.gmra.mxu0 %v1385
      %v1482 = vpop.f32.mrf.mxu0
      %v1483 = vadd.f32 0.0, %v1482
      %v1484 = vpop.f32.mrf.mxu0
      %1485 = vmatprep.mubr.f32.mxu0 0.0
      %1486 = vmatmul.mubr.f32.gmra.mxu0 %v1388
      %v1487 = vpop.f32.mrf.mxu0
      %v1488 = vadd.f32 0.0, %v1487
      %v1489 = vpop.f32.mrf.mxu0
      %1490 = vmatprep.mubr.f32.mxu0 0.0
      %1491 = vmatmul.mubr.f32.gmra.mxu0 %v1391
      %v1492 = vpop.f32.mrf.mxu0
      %v1493 = vadd.f32 0.0, %v1492
      %v1494 = vpop.f32.mrf.mxu0
      %1495 = vmatprep.mubr.f32.mxu0 0.0
      %1496 = vmatmul.mubr.f32.gmra.mxu0 %v1394
      %v1497 = vpop.f32.mrf.mxu0
      %v1498 = vadd.f32 0.0, %v1497
      %v1499 = vpop.f32.mrf.mxu0
      %1500 = vdwg.mxu0
      %v1502 = vsel %vm810, %v1316, 0
      %v1505 = vsel %vm810, %v1317, 0
      %v1508 = vsel %vm810, %v1318, 0
      %v1511 = vsel %vm810, %v1319, 0
      %v1514 = vsel %vm810, %v1320, 0
      %v1517 = vsel %vm810, %v1321, 0
      %v1520 = vsel %vm810, %v1322, 0
      %v1523 = vsel %vm810, %v1323, 0
      %1525 = vmatprep.subr.mxu0 0.0
      %1526 = vmatpush1.msra.mxu0 0.0
      %1527 = vmatprep.subr.mxu0 0.0
      %1528 = vmatpush1.msra.mxu0 0.0
      %1529 = vmatprep.subr.mxu0 0.0
      %1530 = vmatpush1.msra.mxu0 0.0
      %1531 = vmatprep.subr.mxu0 0.0
      %1532 = vmatpush1.msra.mxu0 0.0
      %1533 = vmatprep.subr.mxu0 0.0
      %1534 = vmatpush1.msra.mxu0 0.0
      %1535 = vmatprep.subr.mxu0 0.0
      %1536 = vmatpush1.msra.mxu0 0.0
      %1537 = vmatprep.subr.mxu0 0.0
      %1538 = vmatpush1.msra.mxu0 0.0
      %1539 = vmatprep.subr.mxu0 0.0
      %1540 = vmatpush1.msra.mxu0 0.0
      %1541 = vmatprep.subr.mxu0 0.0
      %1542 = vmatpush1.msra.mxu0 0.0
      %1543 = vmatprep.subr.mxu0 0.0
      %1544 = vmatpush1.msra.mxu0 0.0
      %1545 = vmatprep.subr.mxu0 0.0
      %1546 = vmatpush1.msra.mxu0 0.0
      %1547 = vmatprep.subr.mxu0 0.0
      %1548 = vmatpush1.msra.mxu0 0.0
      %1549 = vmatprep.subr.mxu0 0.0
      %1550 = vmatpush1.msra.mxu0 0.0
      %1551 = vmatprep.subr.mxu0 0.0
      %1552 = vmatpush1.msra.mxu0 %v609
      %1553 = vmatprep.subr.mxu0 0.0
      %1554 = vmatpush1.msra.mxu0 %v608
      %1555 = vmatprep.subr.mxu0 0.0
      %1556 = vmatpush1.msra.mxu0 %v607
      %1557 = vmatprep.subr.mxu0 0.0
      %1558 = vmatpush2.msra.mxu0 0.0
      %1559 = vmatprep.subr.mxu0 0.0
      %1560 = vmatpush2.msra.mxu0 0.0
      %1561 = vmatprep.subr.mxu0 0.0
      %1562 = vmatpush2.msra.mxu0 0.0
      %1563 = vmatprep.subr.mxu0 0.0
      %1564 = vmatpush2.msra.mxu0 0.0
      %1565 = vmatprep.subr.mxu0 0.0
      %1566 = vmatpush2.msra.mxu0 0.0
      %1567 = vmatprep.subr.mxu0 0.0
      %1568 = vmatpush2.msra.mxu0 0.0
      %1569 = vmatprep.subr.mxu0 0.0
      %1570 = vmatpush2.msra.mxu0 0.0
      %1571 = vmatprep.subr.mxu0 0.0
      %1572 = vmatpush2.msra.mxu0 0.0
      %1573 = vmatprep.subr.mxu0 0.0
      %1574 = vmatpush2.msra.mxu0 0.0
      %1575 = vmatprep.subr.mxu0 0.0
      %1576 = vmatpush2.msra.mxu0 0.0
      %1577 = vmatprep.subr.mxu0 0.0
      %1578 = vmatpush2.msra.mxu0 0.0
      %1579 = vmatprep.subr.mxu0 0.0
      %1580 = vmatpush2.msra.mxu0 0.0
      %1581 = vmatprep.subr.mxu0 0.0
      %1582 = vmatpush2.msra.mxu0 0.0
      %1583 = vmatprep.subr.mxu0 0.0
      %1584 = vmatpush2.msra.mxu0 0.0
      %1585 = vmatprep.subr.mxu0 0.0
      %1586 = vmatpush2.msra.mxu0 0.0
      %1587 = vmatprep.subr.mxu0 0.0
      %1588 = vmatpush2.msra.mxu0 0.0
      %1589 = vmatprep.mubr.f32.mxu0 0.0
      %1590 = vmatmul.mubr.f32.gmra.mxu0 %v1502
      %v1591 = vpop.f32.mrf.mxu0
      %v1592 = vadd.f32 %v1463, %v1591
      %v1593 = vpop.f32.mrf.mxu0
      %1594 = vmatprep.mubr.f32.mxu0 0.0
      %1595 = vmatmul.mubr.f32.gmra.mxu0 %v1505
      %v1596 = vpop.f32.mrf.mxu0
      %v1597 = vadd.f32 %v1468, %v1596
      %v1598 = vpop.f32.mrf.mxu0
      %1599 = vmatprep.mubr.f32.mxu0 0.0
      %1600 = vmatmul.mubr.f32.gmra.mxu0 %v1508
      %v1601 = vpop.f32.mrf.mxu0
      %v1602 = vadd.f32 %v1473, %v1601
      %v1603 = vpop.f32.mrf.mxu0
      %1604 = vmatprep.mubr.f32.mxu0 0.0
      %1605 = vmatmul.mubr.f32.gmra.mxu0 %v1511
      %v1606 = vpop.f32.mrf.mxu0
      %v1607 = vadd.f32 %v1478, %v1606
      %v1608 = vpop.f32.mrf.mxu0
      %1609 = vmatprep.mubr.f32.mxu0 0.0
      %1610 = vmatmul.mubr.f32.gmra.mxu0 %v1514
      %v1611 = vpop.f32.mrf.mxu0
      %v1612 = vadd.f32 %v1483, %v1611
      %v1613 = vpop.f32.mrf.mxu0
      %1614 = vmatprep.mubr.f32.mxu0 0.0
      %1615 = vmatmul.mubr.f32.gmra.mxu0 %v1517
      %v1616 = vpop.f32.mrf.mxu0
      %v1617 = vadd.f32 %v1488, %v1616
      %v1618 = vpop.f32.mrf.mxu0
      %1619 = vmatprep.mubr.f32.mxu0 0.0
      %1620 = vmatmul.mubr.f32.gmra.mxu0 %v1520
      %v1621 = vpop.f32.mrf.mxu0
      %v1622 = vadd.f32 %v1493, %v1621
      %v1623 = vpop.f32.mrf.mxu0
      %1624 = vmatprep.mubr.f32.mxu0 0.0
      %1625 = vmatmul.mubr.f32.gmra.mxu0 %v1523
      %v1626 = vpop.f32.mrf.mxu0
      %v1627 = vadd.f32 %v1498, %v1626
      %v1628 = vpop.f32.mrf.mxu0
      %1629 = vdwg.mxu0
      %1630 = vrot.lane.b32.xlu0 %v722, 112
      %v1631 = vpop.permute.xlu0 %1630
      %1632 = vrot.lane.b32.xlu0 %v723, 112
      %v1633 = vpop.permute.xlu0 %1632
      %1634 = vrot.lane.b32.xlu0 %v724, 112
      %v1635 = vpop.permute.xlu0 %1634
      %1636 = vrot.lane.b32.xlu0 %v725, 112
      %v1637 = vpop.permute.xlu0 %1636
      %1638 = vrot.lane.b32.xlu0 %v726, 112
      %v1639 = vpop.permute.xlu0 %1638
      %1640 = vrot.lane.b32.xlu0 %v727, 112
      %v1641 = vpop.permute.xlu0 %1640
      %1642 = vrot.lane.b32.xlu0 %v728, 112
      %v1643 = vpop.permute.xlu0 %1642
      %1644 = vrot.lane.b32.xlu0 %v729, 112
      %v1645 = vpop.permute.xlu0 %1644
      %v1654 = vsel %vm705, %v1631, %v1324
      %v1655 = vsel %vm705, %v1633, %v1325
      %v1656 = vsel %vm705, %v1635, %v1326
      %v1657 = vsel %vm705, %v1637, %v1327
      %v1658 = vsel %vm705, %v1639, %v1328
      %v1659 = vsel %vm705, %v1641, %v1329
      %v1660 = vsel %vm705, %v1643, %v1330
      %v1661 = vsel %vm705, %v1645, %v1331
      %v1663 = vsel %vm810, %v1654, 0
      %v1666 = vsel %vm810, %v1655, 0
      %v1669 = vsel %vm810, %v1656, 0
      %v1672 = vsel %vm810, %v1657, 0
      %v1675 = vsel %vm810, %v1658, 0
      %v1678 = vsel %vm810, %v1659, 0
      %v1681 = vsel %vm810, %v1660, 0
      %v1684 = vsel %vm810, %v1661, 0
      %1686 = vmatprep.subr.mxu0 0.0
      %1687 = vmatpush1.msra.mxu0 0.0
      %1688 = vmatprep.subr.mxu0 0.0
      %1689 = vmatpush1.msra.mxu0 0.0
      %1690 = vmatprep.subr.mxu0 0.0
      %1691 = vmatpush1.msra.mxu0 0.0
      %1692 = vmatprep.subr.mxu0 0.0
      %1693 = vmatpush1.msra.mxu0 0.0
      %1694 = vmatprep.subr.mxu0 0.0
      %1695 = vmatpush1.msra.mxu0 0.0
      %1696 = vmatprep.subr.mxu0 0.0
      %1697 = vmatpush1.msra.mxu0 0.0
      %1698 = vmatprep.subr.mxu0 0.0
      %1699 = vmatpush1.msra.mxu0 0.0
      %1700 = vmatprep.subr.mxu0 0.0
      %1701 = vmatpush1.msra.mxu0 0.0
      %1702 = vmatprep.subr.mxu0 0.0
      %1703 = vmatpush1.msra.mxu0 0.0
      %1704 = vmatprep.subr.mxu0 0.0
      %1705 = vmatpush1.msra.mxu0 0.0
      %1706 = vmatprep.subr.mxu0 0.0
      %1707 = vmatpush1.msra.mxu0 0.0
      %1708 = vmatprep.subr.mxu0 0.0
      %1709 = vmatpush1.msra.mxu0 0.0
      %1710 = vmatprep.subr.mxu0 0.0
      %1711 = vmatpush1.msra.mxu0 0.0
      %1712 = vmatprep.subr.mxu0 0.0
      %1713 = vmatpush1.msra.mxu0 %v615
      %1714 = vmatprep.subr.mxu0 0.0
      %1715 = vmatpush1.msra.mxu0 %v614
      %1716 = vmatprep.subr.mxu0 0.0
      %1717 = vmatpush1.msra.mxu0 %v613
      %1718 = vmatprep.subr.mxu0 0.0
      %1719 = vmatpush2.msra.mxu0 0.0
      %1720 = vmatprep.subr.mxu0 0.0
      %1721 = vmatpush2.msra.mxu0 0.0
      %1722 = vmatprep.subr.mxu0 0.0
      %1723 = vmatpush2.msra.mxu0 0.0
      %1724 = vmatprep.subr.mxu0 0.0
      %1725 = vmatpush2.msra.mxu0 0.0
      %1726 = vmatprep.subr.mxu0 0.0
      %1727 = vmatpush2.msra.mxu0 0.0
      %1728 = vmatprep.subr.mxu0 0.0
      %1729 = vmatpush2.msra.mxu0 0.0
      %1730 = vmatprep.subr.mxu0 0.0
      %1731 = vmatpush2.msra.mxu0 0.0
      %1732 = vmatprep.subr.mxu0 0.0
      %1733 = vmatpush2.msra.mxu0 0.0
      %1734 = vmatprep.subr.mxu0 0.0
      %1735 = vmatpush2.msra.mxu0 0.0
      %1736 = vmatprep.subr.mxu0 0.0
      %1737 = vmatpush2.msra.mxu0 0.0
      %1738 = vmatprep.subr.mxu0 0.0
      %1739 = vmatpush2.msra.mxu0 0.0
      %1740 = vmatprep.subr.mxu0 0.0
      %1741 = vmatpush2.msra.mxu0 0.0
      %1742 = vmatprep.subr.mxu0 0.0
      %1743 = vmatpush2.msra.mxu0 0.0
      %1744 = vmatprep.subr.mxu0 0.0
      %1745 = vmatpush2.msra.mxu0 0.0
      %1746 = vmatprep.subr.mxu0 0.0
      %1747 = vmatpush2.msra.mxu0 0.0
      %1748 = vmatprep.subr.mxu0 0.0
      %1749 = vmatpush2.msra.mxu0 0.0
      %1750 = vmatprep.mubr.f32.mxu0 0.0
      %1751 = vmatmul.mubr.f32.gmra.mxu0 %v1663
      %v1752 = vpop.f32.mrf.mxu0
      %v1753 = vadd.f32 0.0, %v1752
      %v1754 = vpop.f32.mrf.mxu0
      %1755 = vmatprep.mubr.f32.mxu0 0.0
      %1756 = vmatmul.mubr.f32.gmra.mxu0 %v1666
      %v1757 = vpop.f32.mrf.mxu0
      %v1758 = vadd.f32 0.0, %v1757
      %v1759 = vpop.f32.mrf.mxu0
      %1760 = vmatprep.mubr.f32.mxu0 0.0
      %1761 = vmatmul.mubr.f32.gmra.mxu0 %v1669
      %v1762 = vpop.f32.mrf.mxu0
      %v1763 = vadd.f32 0.0, %v1762
      %v1764 = vpop.f32.mrf.mxu0
      %1765 = vmatprep.mubr.f32.mxu0 0.0
      %1766 = vmatmul.mubr.f32.gmra.mxu0 %v1672
      %v1767 = vpop.f32.mrf.mxu0
      %v1768 = vadd.f32 0.0, %v1767
      %v1769 = vpop.f32.mrf.mxu0
      %1770 = vmatprep.mubr.f32.mxu0 0.0
      %1771 = vmatmul.mubr.f32.gmra.mxu0 %v1675
      %v1772 = vpop.f32.mrf.mxu0
      %v1773 = vadd.f32 0.0, %v1772
      %v1774 = vpop.f32.mrf.mxu0
      %1775 = vmatprep.mubr.f32.mxu0 0.0
      %1776 = vmatmul.mubr.f32.gmra.mxu0 %v1678
      %v1777 = vpop.f32.mrf.mxu0
      %v1778 = vadd.f32 0.0, %v1777
      %v1779 = vpop.f32.mrf.mxu0
      %1780 = vmatprep.mubr.f32.mxu0 0.0
      %1781 = vmatmul.mubr.f32.gmra.mxu0 %v1681
      %v1782 = vpop.f32.mrf.mxu0
      %v1783 = vadd.f32 0.0, %v1782
      %v1784 = vpop.f32.mrf.mxu0
      %1785 = vmatprep.mubr.f32.mxu0 0.0
      %1786 = vmatmul.mubr.f32.gmra.mxu0 %v1684
      %v1787 = vpop.f32.mrf.mxu0
      %v1788 = vadd.f32 0.0, %v1787
      %v1789 = vpop.f32.mrf.mxu0
      %1790 = vdwg.mxu0
      %v1791 = vadd.f32 %v1592, %v1753
      %v1792 = vadd.f32 %v1597, %v1758
      %v1793 = vadd.f32 %v1602, %v1763
      %v1794 = vadd.f32 %v1607, %v1768
      %v1795 = vadd.f32 %v1612, %v1773
      %v1796 = vadd.f32 %v1617, %v1778
      %v1797 = vadd.f32 %v1622, %v1783
      %v1798 = vadd.f32 %v1627, %v1788
      %v1799 = vadd.f32 %v1791, %v1274
      %v1800 = vadd.f32 %v1792, %v1274
      %v1801 = vadd.f32 %v1793, %v1274
      %v1802 = vadd.f32 %v1794, %v1274
      %v1803 = vadd.f32 %v1795, %v1274
      %v1804 = vadd.f32 %v1796, %v1274
      %v1805 = vadd.f32 %v1797, %v1274
      %v1806 = vadd.f32 %v1798, %v1274
      %1807 = vmatprep.subr.mxu0 0.0
      %1808 = vmatpush1.msra.mxu0 0.0
      %1809 = vmatprep.subr.mxu0 0.0
      %1810 = vmatpush1.msra.mxu0 0.0
      %1811 = vmatprep.subr.mxu0 0.0
      %1812 = vmatpush1.msra.mxu0 0.0
      %1813 = vmatprep.subr.mxu0 0.0
      %1814 = vmatpush1.msra.mxu0 0.0
      %1815 = vmatprep.subr.mxu0 0.0
      %1816 = vmatpush1.msra.mxu0 0.0
      %1817 = vmatprep.subr.mxu0 0.0
      %1818 = vmatpush1.msra.mxu0 0.0
      %1819 = vmatprep.subr.mxu0 0.0
      %1820 = vmatpush1.msra.mxu0 0.0
      %1821 = vmatprep.subr.mxu0 0.0
      %1822 = vmatpush1.msra.mxu0 0.0
      %1823 = vmatprep.subr.mxu0 0.0
      %1824 = vmatpush1.msra.mxu0 0.0
      %1825 = vmatprep.subr.mxu0 0.0
      %1826 = vmatpush1.msra.mxu0 0.0
      %1827 = vmatprep.subr.mxu0 0.0
      %1828 = vmatpush1.msra.mxu0 0.0
      %1829 = vmatprep.subr.mxu0 0.0
      %1830 = vmatpush1.msra.mxu0 0.0
      %1831 = vmatprep.subr.mxu0 0.0
      %1832 = vmatpush1.msra.mxu0 0.0
      %1833 = vmatprep.subr.mxu0 0.0
      %1834 = vmatpush1.msra.mxu0 %v612
      %1835 = vmatprep.subr.mxu0 0.0
      %1836 = vmatpush1.msra.mxu0 %v611
      %1837 = vmatprep.subr.mxu0 0.0
      %1838 = vmatpush1.msra.mxu0 %v610
      %1839 = vmatprep.subr.mxu0 0.0
      %1840 = vmatpush2.msra.mxu0 0.0
      %1841 = vmatprep.subr.mxu0 0.0
      %1842 = vmatpush2.msra.mxu0 0.0
      %1843 = vmatprep.subr.mxu0 0.0
      %1844 = vmatpush2.msra.mxu0 0.0
      %1845 = vmatprep.subr.mxu0 0.0
      %1846 = vmatpush2.msra.mxu0 0.0
      %1847 = vmatprep.subr.mxu0 0.0
      %1848 = vmatpush2.msra.mxu0 0.0
      %1849 = vmatprep.subr.mxu0 0.0
      %1850 = vmatpush2.msra.mxu0 0.0
      %1851 = vmatprep.subr.mxu0 0.0
      %1852 = vmatpush2.msra.mxu0 0.0
      %1853 = vmatprep.subr.mxu0 0.0
      %1854 = vmatpush2.msra.mxu0 0.0
      %1855 = vmatprep.subr.mxu0 0.0
      %1856 = vmatpush2.msra.mxu0 0.0
      %1857 = vmatprep.subr.mxu0 0.0
      %1858 = vmatpush2.msra.mxu0 0.0
      %1859 = vmatprep.subr.mxu0 0.0
      %1860 = vmatpush2.msra.mxu0 0.0
      %1861 = vmatprep.subr.mxu0 0.0
      %1862 = vmatpush2.msra.mxu0 0.0
      %1863 = vmatprep.subr.mxu0 0.0
      %1864 = vmatpush2.msra.mxu0 0.0
      %1865 = vmatprep.subr.mxu0 0.0
      %1866 = vmatpush2.msra.mxu0 0.0
      %1867 = vmatprep.subr.mxu0 0.0
      %1868 = vmatpush2.msra.mxu0 0.0
      %1869 = vmatprep.subr.mxu0 0.0
      %1870 = vmatpush2.msra.mxu0 0.0
      %1871 = vmatprep.mubr.f32.mxu0 0.0
      %1872 = vmatmul.mubr.f32.gmra.mxu0 %v1134
      %v1873 = vpop.f32.mrf.mxu0
      %v1874 = vadd.f32 0.0, %v1873
      %v1875 = vpop.f32.mrf.mxu0
      %1876 = vmatprep.mubr.f32.mxu0 0.0
      %1877 = vmatmul.mubr.f32.gmra.mxu0 %v1137
      %v1878 = vpop.f32.mrf.mxu0
      %v1879 = vadd.f32 0.0, %v1878
      %v1880 = vpop.f32.mrf.mxu0
      %1881 = vmatprep.mubr.f32.mxu0 0.0
      %1882 = vmatmul.mubr.f32.gmra.mxu0 %v1140
      %v1883 = vpop.f32.mrf.mxu0
      %v1884 = vadd.f32 0.0, %v1883
      %v1885 = vpop.f32.mrf.mxu0
      %1886 = vmatprep.mubr.f32.mxu0 0.0
      %1887 = vmatmul.mubr.f32.gmra.mxu0 %v1143
      %v1888 = vpop.f32.mrf.mxu0
      %v1889 = vadd.f32 0.0, %v1888
      %v1890 = vpop.f32.mrf.mxu0
      %1891 = vmatprep.mubr.f32.mxu0 0.0
      %1892 = vmatmul.mubr.f32.gmra.mxu0 %v1146
      %v1893 = vpop.f32.mrf.mxu0
      %v1894 = vadd.f32 0.0, %v1893
      %v1895 = vpop.f32.mrf.mxu0
      %1896 = vmatprep.mubr.f32.mxu0 0.0
      %1897 = vmatmul.mubr.f32.gmra.mxu0 %v1149
      %v1898 = vpop.f32.mrf.mxu0
      %v1899 = vadd.f32 0.0, %v1898
      %v1900 = vpop.f32.mrf.mxu0
      %1901 = vmatprep.mubr.f32.mxu0 0.0
      %1902 = vmatmul.mubr.f32.gmra.mxu0 %v1152
      %v1903 = vpop.f32.mrf.mxu0
      %v1904 = vadd.f32 0.0, %v1903
      %v1905 = vpop.f32.mrf.mxu0
      %1906 = vmatprep.mubr.f32.mxu0 0.0
      %1907 = vmatmul.mubr.f32.gmra.mxu0 %v1155
      %v1908 = vpop.f32.mrf.mxu0
      %v1909 = vadd.f32 0.0, %v1908
      %v1910 = vpop.f32.mrf.mxu0
      %1911 = vdwg.mxu0
      %1912 = vmatprep.subr.mxu0 0.0
      %1913 = vmatpush1.msra.mxu0 0.0
      %1914 = vmatprep.subr.mxu0 0.0
      %1915 = vmatpush1.msra.mxu0 0.0
      %1916 = vmatprep.subr.mxu0 0.0
      %1917 = vmatpush1.msra.mxu0 0.0
      %1918 = vmatprep.subr.mxu0 0.0
      %1919 = vmatpush1.msra.mxu0 0.0
      %1920 = vmatprep.subr.mxu0 0.0
      %1921 = vmatpush1.msra.mxu0 0.0
      %1922 = vmatprep.subr.mxu0 0.0
      %1923 = vmatpush1.msra.mxu0 0.0
      %1924 = vmatprep.subr.mxu0 0.0
      %1925 = vmatpush1.msra.mxu0 0.0
      %1926 = vmatprep.subr.mxu0 0.0
      %1927 = vmatpush1.msra.mxu0 0.0
      %1928 = vmatprep.subr.mxu0 0.0
      %1929 = vmatpush1.msra.mxu0 0.0
      %1930 = vmatprep.subr.mxu0 0.0
      %1931 = vmatpush1.msra.mxu0 0.0
      %1932 = vmatprep.subr.mxu0 0.0
      %1933 = vmatpush1.msra.mxu0 0.0
      %1934 = vmatprep.subr.mxu0 0.0
      %1935 = vmatpush1.msra.mxu0 0.0
      %1936 = vmatprep.subr.mxu0 0.0
      %1937 = vmatpush1.msra.mxu0 0.0
      %1938 = vmatprep.subr.mxu0 0.0
      %1939 = vmatpush1.msra.mxu0 %v609
      %1940 = vmatprep.subr.mxu0 0.0
      %1941 = vmatpush1.msra.mxu0 %v608
      %1942 = vmatprep.subr.mxu0 0.0
      %1943 = vmatpush1.msra.mxu0 %v607
      %1944 = vmatprep.subr.mxu0 0.0
      %1945 = vmatpush2.msra.mxu0 0.0
      %1946 = vmatprep.subr.mxu0 0.0
      %1947 = vmatpush2.msra.mxu0 0.0
      %1948 = vmatprep.subr.mxu0 0.0
      %1949 = vmatpush2.msra.mxu0 0.0
      %1950 = vmatprep.subr.mxu0 0.0
      %1951 = vmatpush2.msra.mxu0 0.0
      %1952 = vmatprep.subr.mxu0 0.0
      %1953 = vmatpush2.msra.mxu0 0.0
      %1954 = vmatprep.subr.mxu0 0.0
      %1955 = vmatpush2.msra.mxu0 0.0
      %1956 = vmatprep.subr.mxu0 0.0
      %1957 = vmatpush2.msra.mxu0 0.0
      %1958 = vmatprep.subr.mxu0 0.0
      %1959 = vmatpush2.msra.mxu0 0.0
      %1960 = vmatprep.subr.mxu0 0.0
      %1961 = vmatpush2.msra.mxu0 0.0
      %1962 = vmatprep.subr.mxu0 0.0
      %1963 = vmatpush2.msra.mxu0 0.0
      %1964 = vmatprep.subr.mxu0 0.0
      %1965 = vmatpush2.msra.mxu0 0.0
      %1966 = vmatprep.subr.mxu0 0.0
      %1967 = vmatpush2.msra.mxu0 0.0
      %1968 = vmatprep.subr.mxu0 0.0
      %1969 = vmatpush2.msra.mxu0 0.0
      %1970 = vmatprep.subr.mxu0 0.0
      %1971 = vmatpush2.msra.mxu0 0.0
      %1972 = vmatprep.subr.mxu0 0.0
      %1973 = vmatpush2.msra.mxu0 0.0
      %1974 = vmatprep.subr.mxu0 0.0
      %1975 = vmatpush2.msra.mxu0 0.0
      %1976 = vmatprep.mubr.f32.mxu0 0.0
      %1977 = vmatmul.mubr.f32.gmra.mxu0 %v812
      %v1978 = vpop.f32.mrf.mxu0
      %v1979 = vadd.f32 %v1874, %v1978
      %v1980 = vpop.f32.mrf.mxu0
      %1981 = vmatprep.mubr.f32.mxu0 0.0
      %1982 = vmatmul.mubr.f32.gmra.mxu0 %v815
      %v1983 = vpop.f32.mrf.mxu0
      %v1984 = vadd.f32 %v1879, %v1983
      %v1985 = vpop.f32.mrf.mxu0
      %1986 = vmatprep.mubr.f32.mxu0 0.0
      %1987 = vmatmul.mubr.f32.gmra.mxu0 %v818
      %v1988 = vpop.f32.mrf.mxu0
      %v1989 = vadd.f32 %v1884, %v1988
      %v1990 = vpop.f32.mrf.mxu0
      %1991 = vmatprep.mubr.f32.mxu0 0.0
      %1992 = vmatmul.mubr.f32.gmra.mxu0 %v821
      %v1993 = vpop.f32.mrf.mxu0
      %v1994 = vadd.f32 %v1889, %v1993
      %v1995 = vpop.f32.mrf.mxu0
      %1996 = vmatprep.mubr.f32.mxu0 0.0
      %1997 = vmatmul.mubr.f32.gmra.mxu0 %v824
      %v1998 = vpop.f32.mrf.mxu0
      %v1999 = vadd.f32 %v1894, %v1998
      %v2000 = vpop.f32.mrf.mxu0
      %2001 = vmatprep.mubr.f32.mxu0 0.0
      %2002 = vmatmul.mubr.f32.gmra.mxu0 %v827
      %v2003 = vpop.f32.mrf.mxu0
      %v2004 = vadd.f32 %v1899, %v2003
      %v2005 = vpop.f32.mrf.mxu0
      %2006 = vmatprep.mubr.f32.mxu0 0.0
      %2007 = vmatmul.mubr.f32.gmra.mxu0 %v830
      %v2008 = vpop.f32.mrf.mxu0
      %v2009 = vadd.f32 %v1904, %v2008
      %v2010 = vpop.f32.mrf.mxu0
      %2011 = vmatprep.mubr.f32.mxu0 0.0
      %2012 = vmatmul.mubr.f32.gmra.mxu0 %v833
      %v2013 = vpop.f32.mrf.mxu0
      %v2014 = vadd.f32 %v1909, %v2013
      %v2015 = vpop.f32.mrf.mxu0
      %2016 = vdwg.mxu0
      %s2017 = scalar_lea.vmem [#allocation2], 48
      %v2018 = vld [vmem:[%s2017] sm:$0xff]
      %v2019 = vld [vmem:[%s2017 + $0x8] sm:$0xff]
      %v2020 = vld [vmem:[%s2017 + $0x18] sm:$0xff]
      %v2021 = vld [vmem:[%s2017 + $0x20] sm:$0xff]
      %v2022 = vld [vmem:[%s2017 + $0x30] sm:$0xff]
      %v2023 = vld [vmem:[%s2017 + $0x38] sm:$0xff]
      %v2024 = vld [vmem:[%s2017 + $0x48] sm:$0xff]
      %v2025 = vld [vmem:[%s2017 + $0x50] sm:$0xff]
      %v2026 = vld [vmem:[%s2017 + $0x1] sm:$0xff]
      %v2027 = vld [vmem:[%s2017 + $0x9] sm:$0xff]
      %v2028 = vld [vmem:[%s2017 + $0x19] sm:$0xff]
      %v2029 = vld [vmem:[%s2017 + $0x21] sm:$0xff]
      %v2030 = vld [vmem:[%s2017 + $0x31] sm:$0xff]
      %v2031 = vld [vmem:[%s2017 + $0x39] sm:$0xff]
      %v2032 = vld [vmem:[%s2017 + $0x49] sm:$0xff]
      %v2033 = vld [vmem:[%s2017 + $0x51] sm:$0xff]
      %2042 = vrot.lane.b32.xlu0 %v2018, 120
      %v2043 = vpop.permute.xlu0 %2042
      %2044 = vrot.lane.b32.xlu0 %v2019, 120
      %v2045 = vpop.permute.xlu0 %2044
      %2046 = vrot.lane.b32.xlu0 %v2020, 120
      %v2047 = vpop.permute.xlu0 %2046
      %2048 = vrot.lane.b32.xlu0 %v2021, 120
      %v2049 = vpop.permute.xlu0 %2048
      %2050 = vrot.lane.b32.xlu0 %v2022, 120
      %v2051 = vpop.permute.xlu0 %2050
      %2052 = vrot.lane.b32.xlu0 %v2023, 120
      %v2053 = vpop.permute.xlu0 %2052
      %2054 = vrot.lane.b32.xlu0 %v2024, 120
      %v2055 = vpop.permute.xlu0 %2054
      %2056 = vrot.lane.b32.xlu0 %v2025, 120
      %v2057 = vpop.permute.xlu0 %2056
      %2074 = vrot.lane.b32.xlu0 %v2026, 8
      %v2075 = vpop.permute.xlu0 %2074
      %2076 = vrot.lane.b32.xlu0 %v2027, 8
      %v2077 = vpop.permute.xlu0 %2076
      %2078 = vrot.lane.b32.xlu0 %v2028, 8
      %v2079 = vpop.permute.xlu0 %2078
      %2080 = vrot.lane.b32.xlu0 %v2029, 8
      %v2081 = vpop.permute.xlu0 %2080
      %2082 = vrot.lane.b32.xlu0 %v2030, 8
      %v2083 = vpop.permute.xlu0 %2082
      %2084 = vrot.lane.b32.xlu0 %v2031, 8
      %v2085 = vpop.permute.xlu0 %2084
      %2086 = vrot.lane.b32.xlu0 %v2032, 8
      %v2087 = vpop.permute.xlu0 %2086
      %2088 = vrot.lane.b32.xlu0 %v2033, 8
      %v2089 = vpop.permute.xlu0 %2088
      %v2098 = vsel %vm696, %v2043, %v2075
      %v2099 = vsel %vm696, %v2045, %v2077
      %v2100 = vsel %vm696, %v2047, %v2079
      %v2101 = vsel %vm696, %v2049, %v2081
      %v2102 = vsel %vm696, %v2051, %v2083
      %v2103 = vsel %vm696, %v2053, %v2085
      %v2104 = vsel %vm696, %v2055, %v2087
      %v2105 = vsel %vm696, %v2057, %v2089
      %v2106 = vsel %vm705, %v2098, %v2075
      %v2107 = vsel %vm705, %v2099, %v2077
      %v2108 = vsel %vm705, %v2100, %v2079
      %v2109 = vsel %vm705, %v2101, %v2081
      %v2110 = vsel %vm705, %v2102, %v2083
      %v2111 = vsel %vm705, %v2103, %v2085
      %v2112 = vsel %vm705, %v2104, %v2087
      %v2113 = vsel %vm705, %v2105, %v2089
      %v2115 = vsel %vm810, %v2106, 0
      %v2118 = vsel %vm810, %v2107, 0
      %v2121 = vsel %vm810, %v2108, 0
      %v2124 = vsel %vm810, %v2109, 0
      %v2127 = vsel %vm810, %v2110, 0
      %v2130 = vsel %vm810, %v2111, 0
      %v2133 = vsel %vm810, %v2112, 0
      %v2136 = vsel %vm810, %v2113, 0
      %2138 = vmatprep.subr.mxu0 0.0
      %2139 = vmatpush1.msra.mxu0 0.0
      %2140 = vmatprep.subr.mxu0 0.0
      %2141 = vmatpush1.msra.mxu0 0.0
      %2142 = vmatprep.subr.mxu0 0.0
      %2143 = vmatpush1.msra.mxu0 0.0
      %2144 = vmatprep.subr.mxu0 0.0
      %2145 = vmatpush1.msra.mxu0 0.0
      %2146 = vmatprep.subr.mxu0 0.0
      %2147 = vmatpush1.msra.mxu0 0.0
      %2148 = vmatprep.subr.mxu0 0.0
      %2149 = vmatpush1.msra.mxu0 0.0
      %2150 = vmatprep.subr.mxu0 0.0
      %2151 = vmatpush1.msra.mxu0 0.0
      %2152 = vmatprep.subr.mxu0 0.0
      %2153 = vmatpush1.msra.mxu0 0.0
      %2154 = vmatprep.subr.mxu0 0.0
      %2155 = vmatpush1.msra.mxu0 0.0
      %2156 = vmatprep.subr.mxu0 0.0
      %2157 = vmatpush1.msra.mxu0 0.0
      %2158 = vmatprep.subr.mxu0 0.0
      %2159 = vmatpush1.msra.mxu0 0.0
      %2160 = vmatprep.subr.mxu0 0.0
      %2161 = vmatpush1.msra.mxu0 0.0
      %2162 = vmatprep.subr.mxu0 0.0
      %2163 = vmatpush1.msra.mxu0 0.0
      %2164 = vmatprep.subr.mxu0 0.0
      %2165 = vmatpush1.msra.mxu0 %v615
      %2166 = vmatprep.subr.mxu0 0.0
      %2167 = vmatpush1.msra.mxu0 %v614
      %2168 = vmatprep.subr.mxu0 0.0
      %2169 = vmatpush1.msra.mxu0 %v613
      %2170 = vmatprep.subr.mxu0 0.0
      %2171 = vmatpush2.msra.mxu0 0.0
      %2172 = vmatprep.subr.mxu0 0.0
      %2173 = vmatpush2.msra.mxu0 0.0
      %2174 = vmatprep.subr.mxu0 0.0
      %2175 = vmatpush2.msra.mxu0 0.0
      %2176 = vmatprep.subr.mxu0 0.0
      %2177 = vmatpush2.msra.mxu0 0.0
      %2178 = vmatprep.subr.mxu0 0.0
      %2179 = vmatpush2.msra.mxu0 0.0
      %2180 = vmatprep.subr.mxu0 0.0
      %2181 = vmatpush2.msra.mxu0 0.0
      %2182 = vmatprep.subr.mxu0 0.0
      %2183 = vmatpush2.msra.mxu0 0.0
      %2184 = vmatprep.subr.mxu0 0.0
      %2185 = vmatpush2.msra.mxu0 0.0
      %2186 = vmatprep.subr.mxu0 0.0
      %2187 = vmatpush2.msra.mxu0 0.0
      %2188 = vmatprep.subr.mxu0 0.0
      %2189 = vmatpush2.msra.mxu0 0.0
      %2190 = vmatprep.subr.mxu0 0.0
      %2191 = vmatpush2.msra.mxu0 0.0
      %2192 = vmatprep.subr.mxu0 0.0
      %2193 = vmatpush2.msra.mxu0 0.0
      %2194 = vmatprep.subr.mxu0 0.0
      %2195 = vmatpush2.msra.mxu0 0.0
      %2196 = vmatprep.subr.mxu0 0.0
      %2197 = vmatpush2.msra.mxu0 0.0
      %2198 = vmatprep.subr.mxu0 0.0
      %2199 = vmatpush2.msra.mxu0 0.0
      %2200 = vmatprep.subr.mxu0 0.0
      %2201 = vmatpush2.msra.mxu0 0.0
      %2202 = vmatprep.mubr.f32.mxu0 0.0
      %2203 = vmatmul.mubr.f32.gmra.mxu0 %v2115
      %v2204 = vpop.f32.mrf.mxu0
      %v2205 = vadd.f32 0.0, %v2204
      %v2206 = vpop.f32.mrf.mxu0
      %2207 = vmatprep.mubr.f32.mxu0 0.0
      %2208 = vmatmul.mubr.f32.gmra.mxu0 %v2118
      %v2209 = vpop.f32.mrf.mxu0
      %v2210 = vadd.f32 0.0, %v2209
      %v2211 = vpop.f32.mrf.mxu0
      %2212 = vmatprep.mubr.f32.mxu0 0.0
      %2213 = vmatmul.mubr.f32.gmra.mxu0 %v2121
      %v2214 = vpop.f32.mrf.mxu0
      %v2215 = vadd.f32 0.0, %v2214
      %v2216 = vpop.f32.mrf.mxu0
      %2217 = vmatprep.mubr.f32.mxu0 0.0
      %2218 = vmatmul.mubr.f32.gmra.mxu0 %v2124
      %v2219 = vpop.f32.mrf.mxu0
      %v2220 = vadd.f32 0.0, %v2219
      %v2221 = vpop.f32.mrf.mxu0
      %2222 = vmatprep.mubr.f32.mxu0 0.0
      %2223 = vmatmul.mubr.f32.gmra.mxu0 %v2127
      %v2224 = vpop.f32.mrf.mxu0
      %v2225 = vadd.f32 0.0, %v2224
      %v2226 = vpop.f32.mrf.mxu0
      %2227 = vmatprep.mubr.f32.mxu0 0.0
      %2228 = vmatmul.mubr.f32.gmra.mxu0 %v2130
      %v2229 = vpop.f32.mrf.mxu0
      %v2230 = vadd.f32 0.0, %v2229
      %v2231 = vpop.f32.mrf.mxu0
      %2232 = vmatprep.mubr.f32.mxu0 0.0
      %2233 = vmatmul.mubr.f32.gmra.mxu0 %v2133
      %v2234 = vpop.f32.mrf.mxu0
      %v2235 = vadd.f32 0.0, %v2234
      %v2236 = vpop.f32.mrf.mxu0
      %2237 = vmatprep.mubr.f32.mxu0 0.0
      %2238 = vmatmul.mubr.f32.gmra.mxu0 %v2136
      %v2239 = vpop.f32.mrf.mxu0
      %v2240 = vadd.f32 0.0, %v2239
      %v2241 = vpop.f32.mrf.mxu0
      %2242 = vdwg.mxu0
      %v2243 = vadd.f32 %v1979, %v2205
      %v2244 = vadd.f32 %v1984, %v2210
      %v2245 = vadd.f32 %v1989, %v2215
      %v2246 = vadd.f32 %v1994, %v2220
      %v2247 = vadd.f32 %v1999, %v2225
      %v2248 = vadd.f32 %v2004, %v2230
      %v2249 = vadd.f32 %v2009, %v2235
      %v2250 = vadd.f32 %v2014, %v2240
      %v2251 = vadd.f32 %v2243, %v1274
      %v2252 = vadd.f32 %v2244, %v1274
      %v2253 = vadd.f32 %v2245, %v1274
      %v2254 = vadd.f32 %v2246, %v1274
      %v2255 = vadd.f32 %v2247, %v1274
      %v2256 = vadd.f32 %v2248, %v1274
      %v2257 = vadd.f32 %v2249, %v1274
      %v2258 = vadd.f32 %v2250, %v1274
      %2259 = vmatprep.subr.mxu0 0.0
      %2260 = vmatpush1.msra.mxu0 0.0
      %2261 = vmatprep.subr.mxu0 0.0
      %2262 = vmatpush1.msra.mxu0 0.0
      %2263 = vmatprep.subr.mxu0 0.0
      %2264 = vmatpush1.msra.mxu0 0.0
      %2265 = vmatprep.subr.mxu0 0.0
      %2266 = vmatpush1.msra.mxu0 0.0
      %2267 = vmatprep.subr.mxu0 0.0
      %2268 = vmatpush1.msra.mxu0 0.0
      %2269 = vmatprep.subr.mxu0 0.0
      %2270 = vmatpush1.msra.mxu0 0.0
      %2271 = vmatprep.subr.mxu0 0.0
      %2272 = vmatpush1.msra.mxu0 0.0
      %2273 = vmatprep.subr.mxu0 0.0
      %2274 = vmatpush1.msra.mxu0 0.0
      %2275 = vmatprep.subr.mxu0 0.0
      %2276 = vmatpush1.msra.mxu0 0.0
      %2277 = vmatprep.subr.mxu0 0.0
      %2278 = vmatpush1.msra.mxu0 0.0
      %2279 = vmatprep.subr.mxu0 0.0
      %2280 = vmatpush1.msra.mxu0 0.0
      %2281 = vmatprep.subr.mxu0 0.0
      %2282 = vmatpush1.msra.mxu0 0.0
      %2283 = vmatprep.subr.mxu0 0.0
      %2284 = vmatpush1.msra.mxu0 0.0
      %2285 = vmatprep.subr.mxu0 0.0
      %2286 = vmatpush1.msra.mxu0 %v612
      %2287 = vmatprep.subr.mxu0 0.0
      %2288 = vmatpush1.msra.mxu0 %v611
      %2289 = vmatprep.subr.mxu0 0.0
      %2290 = vmatpush1.msra.mxu0 %v610
      %2291 = vmatprep.subr.mxu0 0.0
      %2292 = vmatpush2.msra.mxu0 0.0
      %2293 = vmatprep.subr.mxu0 0.0
      %2294 = vmatpush2.msra.mxu0 0.0
      %2295 = vmatprep.subr.mxu0 0.0
      %2296 = vmatpush2.msra.mxu0 0.0
      %2297 = vmatprep.subr.mxu0 0.0
      %2298 = vmatpush2.msra.mxu0 0.0
      %2299 = vmatprep.subr.mxu0 0.0
      %2300 = vmatpush2.msra.mxu0 0.0
      %2301 = vmatprep.subr.mxu0 0.0
      %2302 = vmatpush2.msra.mxu0 0.0
      %2303 = vmatprep.subr.mxu0 0.0
      %2304 = vmatpush2.msra.mxu0 0.0
      %2305 = vmatprep.subr.mxu0 0.0
      %2306 = vmatpush2.msra.mxu0 0.0
      %2307 = vmatprep.subr.mxu0 0.0
      %2308 = vmatpush2.msra.mxu0 0.0
      %2309 = vmatprep.subr.mxu0 0.0
      %2310 = vmatpush2.msra.mxu0 0.0
      %2311 = vmatprep.subr.mxu0 0.0
      %2312 = vmatpush2.msra.mxu0 0.0
      %2313 = vmatprep.subr.mxu0 0.0
      %2314 = vmatpush2.msra.mxu0 0.0
      %2315 = vmatprep.subr.mxu0 0.0
      %2316 = vmatpush2.msra.mxu0 0.0
      %2317 = vmatprep.subr.mxu0 0.0
      %2318 = vmatpush2.msra.mxu0 0.0
      %2319 = vmatprep.subr.mxu0 0.0
      %2320 = vmatpush2.msra.mxu0 0.0
      %2321 = vmatprep.subr.mxu0 0.0
      %2322 = vmatpush2.msra.mxu0 0.0
      %2323 = vmatprep.mubr.f32.mxu0 0.0
      %2324 = vmatmul.mubr.f32.gmra.mxu0 %v1663
      %v2325 = vpop.f32.mrf.mxu0
      %v2326 = vadd.f32 0.0, %v2325
      %v2327 = vpop.f32.mrf.mxu0
      %2328 = vmatprep.mubr.f32.mxu0 0.0
      %2329 = vmatmul.mubr.f32.gmra.mxu0 %v1666
      %v2330 = vpop.f32.mrf.mxu0
      %v2331 = vadd.f32 0.0, %v2330
      %v2332 = vpop.f32.mrf.mxu0
      %2333 = vmatprep.mubr.f32.mxu0 0.0
      %2334 = vmatmul.mubr.f32.gmra.mxu0 %v1669
      %v2335 = vpop.f32.mrf.mxu0
      %v2336 = vadd.f32 0.0, %v2335
      %v2337 = vpop.f32.mrf.mxu0
      %2338 = vmatprep.mubr.f32.mxu0 0.0
      %2339 = vmatmul.mubr.f32.gmra.mxu0 %v1672
      %v2340 = vpop.f32.mrf.mxu0
      %v2341 = vadd.f32 0.0, %v2340
      %v2342 = vpop.f32.mrf.mxu0
      %2343 = vmatprep.mubr.f32.mxu0 0.0
      %2344 = vmatmul.mubr.f32.gmra.mxu0 %v1675
      %v2345 = vpop.f32.mrf.mxu0
      %v2346 = vadd.f32 0.0, %v2345
      %v2347 = vpop.f32.mrf.mxu0
      %2348 = vmatprep.mubr.f32.mxu0 0.0
      %2349 = vmatmul.mubr.f32.gmra.mxu0 %v1678
      %v2350 = vpop.f32.mrf.mxu0
      %v2351 = vadd.f32 0.0, %v2350
      %v2352 = vpop.f32.mrf.mxu0
      %2353 = vmatprep.mubr.f32.mxu0 0.0
      %2354 = vmatmul.mubr.f32.gmra.mxu0 %v1681
      %v2355 = vpop.f32.mrf.mxu0
      %v2356 = vadd.f32 0.0, %v2355
      %v2357 = vpop.f32.mrf.mxu0
      %2358 = vmatprep.mubr.f32.mxu0 0.0
      %2359 = vmatmul.mubr.f32.gmra.mxu0 %v1684
      %v2360 = vpop.f32.mrf.mxu0
      %v2361 = vadd.f32 0.0, %v2360
      %v2362 = vpop.f32.mrf.mxu0
      %2363 = vdwg.mxu0
      %2364 = vmatprep.subr.mxu0 0.0
      %2365 = vmatpush1.msra.mxu0 0.0
      %2366 = vmatprep.subr.mxu0 0.0
      %2367 = vmatpush1.msra.mxu0 0.0
      %2368 = vmatprep.subr.mxu0 0.0
      %2369 = vmatpush1.msra.mxu0 0.0
      %2370 = vmatprep.subr.mxu0 0.0
      %2371 = vmatpush1.msra.mxu0 0.0
      %2372 = vmatprep.subr.mxu0 0.0
      %2373 = vmatpush1.msra.mxu0 0.0
      %2374 = vmatprep.subr.mxu0 0.0
      %2375 = vmatpush1.msra.mxu0 0.0
      %2376 = vmatprep.subr.mxu0 0.0
      %2377 = vmatpush1.msra.mxu0 0.0
      %2378 = vmatprep.subr.mxu0 0.0
      %2379 = vmatpush1.msra.mxu0 0.0
      %2380 = vmatprep.subr.mxu0 0.0
      %2381 = vmatpush1.msra.mxu0 0.0
      %2382 = vmatprep.subr.mxu0 0.0
      %2383 = vmatpush1.msra.mxu0 0.0
      %2384 = vmatprep.subr.mxu0 0.0
      %2385 = vmatpush1.msra.mxu0 0.0
      %2386 = vmatprep.subr.mxu0 0.0
      %2387 = vmatpush1.msra.mxu0 0.0
      %2388 = vmatprep.subr.mxu0 0.0
      %2389 = vmatpush1.msra.mxu0 0.0
      %2390 = vmatprep.subr.mxu0 0.0
      %2391 = vmatpush1.msra.mxu0 %v609
      %2392 = vmatprep.subr.mxu0 0.0
      %2393 = vmatpush1.msra.mxu0 %v608
      %2394 = vmatprep.subr.mxu0 0.0
      %2395 = vmatpush1.msra.mxu0 %v607
      %2396 = vmatprep.subr.mxu0 0.0
      %2397 = vmatpush2.msra.mxu0 0.0
      %2398 = vmatprep.subr.mxu0 0.0
      %2399 = vmatpush2.msra.mxu0 0.0
      %2400 = vmatprep.subr.mxu0 0.0
      %2401 = vmatpush2.msra.mxu0 0.0
      %2402 = vmatprep.subr.mxu0 0.0
      %2403 = vmatpush2.msra.mxu0 0.0
      %2404 = vmatprep.subr.mxu0 0.0
      %2405 = vmatpush2.msra.mxu0 0.0
      %2406 = vmatprep.subr.mxu0 0.0
      %2407 = vmatpush2.msra.mxu0 0.0
      %2408 = vmatprep.subr.mxu0 0.0
      %2409 = vmatpush2.msra.mxu0 0.0
      %2410 = vmatprep.subr.mxu0 0.0
      %2411 = vmatpush2.msra.mxu0 0.0
      %2412 = vmatprep.subr.mxu0 0.0
      %2413 = vmatpush2.msra.mxu0 0.0
      %2414 = vmatprep.subr.mxu0 0.0
      %2415 = vmatpush2.msra.mxu0 0.0
      %2416 = vmatprep.subr.mxu0 0.0
      %2417 = vmatpush2.msra.mxu0 0.0
      %2418 = vmatprep.subr.mxu0 0.0
      %2419 = vmatpush2.msra.mxu0 0.0
      %2420 = vmatprep.subr.mxu0 0.0
      %2421 = vmatpush2.msra.mxu0 0.0
      %2422 = vmatprep.subr.mxu0 0.0
      %2423 = vmatpush2.msra.mxu0 0.0
      %2424 = vmatprep.subr.mxu0 0.0
      %2425 = vmatpush2.msra.mxu0 0.0
      %2426 = vmatprep.subr.mxu0 0.0
      %2427 = vmatpush2.msra.mxu0 0.0
      %2428 = vmatprep.mubr.f32.mxu0 0.0
      %2429 = vmatmul.mubr.f32.gmra.mxu0 %v1373
      %v2430 = vpop.f32.mrf.mxu0
      %v2431 = vadd.f32 %v2326, %v2430
      %v2432 = vpop.f32.mrf.mxu0
      %2433 = vmatprep.mubr.f32.mxu0 0.0
      %2434 = vmatmul.mubr.f32.gmra.mxu0 %v1376
      %v2435 = vpop.f32.mrf.mxu0
      %v2436 = vadd.f32 %v2331, %v2435
      %v2437 = vpop.f32.mrf.mxu0
      %2438 = vmatprep.mubr.f32.mxu0 0.0
      %2439 = vmatmul.mubr.f32.gmra.mxu0 %v1379
      %v2440 = vpop.f32.mrf.mxu0
      %v2441 = vadd.f32 %v2336, %v2440
      %v2442 = vpop.f32.mrf.mxu0
      %2443 = vmatprep.mubr.f32.mxu0 0.0
      %2444 = vmatmul.mubr.f32.gmra.mxu0 %v1382
      %v2445 = vpop.f32.mrf.mxu0
      %v2446 = vadd.f32 %v2341, %v2445
      %v2447 = vpop.f32.mrf.mxu0
      %2448 = vmatprep.mubr.f32.mxu0 0.0
      %2449 = vmatmul.mubr.f32.gmra.mxu0 %v1385
      %v2450 = vpop.f32.mrf.mxu0
      %v2451 = vadd.f32 %v2346, %v2450
      %v2452 = vpop.f32.mrf.mxu0
      %2453 = vmatprep.mubr.f32.mxu0 0.0
      %2454 = vmatmul.mubr.f32.gmra.mxu0 %v1388
      %v2455 = vpop.f32.mrf.mxu0
      %v2456 = vadd.f32 %v2351, %v2455
      %v2457 = vpop.f32.mrf.mxu0
      %2458 = vmatprep.mubr.f32.mxu0 0.0
      %2459 = vmatmul.mubr.f32.gmra.mxu0 %v1391
      %v2460 = vpop.f32.mrf.mxu0
      %v2461 = vadd.f32 %v2356, %v2460
      %v2462 = vpop.f32.mrf.mxu0
      %2463 = vmatprep.mubr.f32.mxu0 0.0
      %2464 = vmatmul.mubr.f32.gmra.mxu0 %v1394
      %v2465 = vpop.f32.mrf.mxu0
      %v2466 = vadd.f32 %v2361, %v2465
      %v2467 = vpop.f32.mrf.mxu0
      %2468 = vdwg.mxu0
      %v2469 = vld [vmem:[%s2017 + $0x2] sm:$0xff]
      %v2470 = vld [vmem:[%s2017 + $0xa] sm:$0xff]
      %v2471 = vld [vmem:[%s2017 + $0x1a] sm:$0xff]
      %v2472 = vld [vmem:[%s2017 + $0x22] sm:$0xff]
      %v2473 = vld [vmem:[%s2017 + $0x32] sm:$0xff]
      %v2474 = vld [vmem:[%s2017 + $0x3a] sm:$0xff]
      %v2475 = vld [vmem:[%s2017 + $0x4a] sm:$0xff]
      %v2476 = vld [vmem:[%s2017 + $0x52] sm:$0xff]
      %2485 = vrot.lane.b32.xlu0 %v2469, 16
      %v2486 = vpop.permute.xlu0 %2485
      %2487 = vrot.lane.b32.xlu0 %v2470, 16
      %v2488 = vpop.permute.xlu0 %2487
      %2489 = vrot.lane.b32.xlu0 %v2471, 16
      %v2490 = vpop.permute.xlu0 %2489
      %2491 = vrot.lane.b32.xlu0 %v2472, 16
      %v2492 = vpop.permute.xlu0 %2491
      %2493 = vrot.lane.b32.xlu0 %v2473, 16
      %v2494 = vpop.permute.xlu0 %2493
      %2495 = vrot.lane.b32.xlu0 %v2474, 16
      %v2496 = vpop.permute.xlu0 %2495
      %2497 = vrot.lane.b32.xlu0 %v2475, 16
      %v2498 = vpop.permute.xlu0 %2497
      %2499 = vrot.lane.b32.xlu0 %v2476, 16
      %v2500 = vpop.permute.xlu0 %2499
      %v2509 = vsel %vm705, %v2026, %v2486
      %v2510 = vsel %vm705, %v2027, %v2488
      %v2511 = vsel %vm705, %v2028, %v2490
      %v2512 = vsel %vm705, %v2029, %v2492
      %v2513 = vsel %vm705, %v2030, %v2494
      %v2514 = vsel %vm705, %v2031, %v2496
      %v2515 = vsel %vm705, %v2032, %v2498
      %v2516 = vsel %vm705, %v2033, %v2500
      %v2518 = vsel %vm810, %v2509, 0
      %v2521 = vsel %vm810, %v2510, 0
      %v2524 = vsel %vm810, %v2511, 0
      %v2527 = vsel %vm810, %v2512, 0
      %v2530 = vsel %vm810, %v2513, 0
      %v2533 = vsel %vm810, %v2514, 0
      %v2536 = vsel %vm810, %v2515, 0
      %v2539 = vsel %vm810, %v2516, 0
      %2541 = vmatprep.subr.mxu0 0.0
      %2542 = vmatpush1.msra.mxu0 0.0
      %2543 = vmatprep.subr.mxu0 0.0
      %2544 = vmatpush1.msra.mxu0 0.0
      %2545 = vmatprep.subr.mxu0 0.0
      %2546 = vmatpush1.msra.mxu0 0.0
      %2547 = vmatprep.subr.mxu0 0.0
      %2548 = vmatpush1.msra.mxu0 0.0
      %2549 = vmatprep.subr.mxu0 0.0
      %2550 = vmatpush1.msra.mxu0 0.0
      %2551 = vmatprep.subr.mxu0 0.0
      %2552 = vmatpush1.msra.mxu0 0.0
      %2553 = vmatprep.subr.mxu0 0.0
      %2554 = vmatpush1.msra.mxu0 0.0
      %2555 = vmatprep.subr.mxu0 0.0
      %2556 = vmatpush1.msra.mxu0 0.0
      %2557 = vmatprep.subr.mxu0 0.0
      %2558 = vmatpush1.msra.mxu0 0.0
      %2559 = vmatprep.subr.mxu0 0.0
      %2560 = vmatpush1.msra.mxu0 0.0
      %2561 = vmatprep.subr.mxu0 0.0
      %2562 = vmatpush1.msra.mxu0 0.0
      %2563 = vmatprep.subr.mxu0 0.0
      %2564 = vmatpush1.msra.mxu0 0.0
      %2565 = vmatprep.subr.mxu0 0.0
      %2566 = vmatpush1.msra.mxu0 0.0
      %2567 = vmatprep.subr.mxu0 0.0
      %2568 = vmatpush1.msra.mxu0 %v615
      %2569 = vmatprep.subr.mxu0 0.0
      %2570 = vmatpush1.msra.mxu0 %v614
      %2571 = vmatprep.subr.mxu0 0.0
      %2572 = vmatpush1.msra.mxu0 %v613
      %2573 = vmatprep.subr.mxu0 0.0
      %2574 = vmatpush2.msra.mxu0 0.0
      %2575 = vmatprep.subr.mxu0 0.0
      %2576 = vmatpush2.msra.mxu0 0.0
      %2577 = vmatprep.subr.mxu0 0.0
      %2578 = vmatpush2.msra.mxu0 0.0
      %2579 = vmatprep.subr.mxu0 0.0
      %2580 = vmatpush2.msra.mxu0 0.0
      %2581 = vmatprep.subr.mxu0 0.0
      %2582 = vmatpush2.msra.mxu0 0.0
      %2583 = vmatprep.subr.mxu0 0.0
      %2584 = vmatpush2.msra.mxu0 0.0
      %2585 = vmatprep.subr.mxu0 0.0
      %2586 = vmatpush2.msra.mxu0 0.0
      %2587 = vmatprep.subr.mxu0 0.0
      %2588 = vmatpush2.msra.mxu0 0.0
      %2589 = vmatprep.subr.mxu0 0.0
      %2590 = vmatpush2.msra.mxu0 0.0
      %2591 = vmatprep.subr.mxu0 0.0
      %2592 = vmatpush2.msra.mxu0 0.0
      %2593 = vmatprep.subr.mxu0 0.0
      %2594 = vmatpush2.msra.mxu0 0.0
      %2595 = vmatprep.subr.mxu0 0.0
      %2596 = vmatpush2.msra.mxu0 0.0
      %2597 = vmatprep.subr.mxu0 0.0
      %2598 = vmatpush2.msra.mxu0 0.0
      %2599 = vmatprep.subr.mxu0 0.0
      %2600 = vmatpush2.msra.mxu0 0.0
      %2601 = vmatprep.subr.mxu0 0.0
      %2602 = vmatpush2.msra.mxu0 0.0
      %2603 = vmatprep.subr.mxu0 0.0
      %2604 = vmatpush2.msra.mxu0 0.0
      %2605 = vmatprep.mubr.f32.mxu0 0.0
      %2606 = vmatmul.mubr.f32.gmra.mxu0 %v2518
      %v2607 = vpop.f32.mrf.mxu0
      %v2608 = vadd.f32 0.0, %v2607
      %v2609 = vpop.f32.mrf.mxu0
      %2610 = vmatprep.mubr.f32.mxu0 0.0
      %2611 = vmatmul.mubr.f32.gmra.mxu0 %v2521
      %v2612 = vpop.f32.mrf.mxu0
      %v2613 = vadd.f32 0.0, %v2612
      %v2614 = vpop.f32.mrf.mxu0
      %2615 = vmatprep.mubr.f32.mxu0 0.0
      %2616 = vmatmul.mubr.f32.gmra.mxu0 %v2524
      %v2617 = vpop.f32.mrf.mxu0
      %v2618 = vadd.f32 0.0, %v2617
      %v2619 = vpop.f32.mrf.mxu0
      %2620 = vmatprep.mubr.f32.mxu0 0.0
      %2621 = vmatmul.mubr.f32.gmra.mxu0 %v2527
      %v2622 = vpop.f32.mrf.mxu0
      %v2623 = vadd.f32 0.0, %v2622
      %v2624 = vpop.f32.mrf.mxu0
      %2625 = vmatprep.mubr.f32.mxu0 0.0
      %2626 = vmatmul.mubr.f32.gmra.mxu0 %v2530
      %v2627 = vpop.f32.mrf.mxu0
      %v2628 = vadd.f32 0.0, %v2627
      %v2629 = vpop.f32.mrf.mxu0
      %2630 = vmatprep.mubr.f32.mxu0 0.0
      %2631 = vmatmul.mubr.f32.gmra.mxu0 %v2533
      %v2632 = vpop.f32.mrf.mxu0
      %v2633 = vadd.f32 0.0, %v2632
      %v2634 = vpop.f32.mrf.mxu0
      %2635 = vmatprep.mubr.f32.mxu0 0.0
      %2636 = vmatmul.mubr.f32.gmra.mxu0 %v2536
      %v2637 = vpop.f32.mrf.mxu0
      %v2638 = vadd.f32 0.0, %v2637
      %v2639 = vpop.f32.mrf.mxu0
      %2640 = vmatprep.mubr.f32.mxu0 0.0
      %2641 = vmatmul.mubr.f32.gmra.mxu0 %v2539
      %v2642 = vpop.f32.mrf.mxu0
      %v2643 = vadd.f32 0.0, %v2642
      %v2644 = vpop.f32.mrf.mxu0
      %2645 = vdwg.mxu0
      %v2646 = vadd.f32 %v2431, %v2608
      %v2647 = vadd.f32 %v2436, %v2613
      %v2648 = vadd.f32 %v2441, %v2618
      %v2649 = vadd.f32 %v2446, %v2623
      %v2650 = vadd.f32 %v2451, %v2628
      %v2651 = vadd.f32 %v2456, %v2633
      %v2652 = vadd.f32 %v2461, %v2638
      %v2653 = vadd.f32 %v2466, %v2643
      %v2654 = vadd.f32 %v2646, %v1274
      %v2655 = vadd.f32 %v2647, %v1274
      %v2656 = vadd.f32 %v2648, %v1274
      %v2657 = vadd.f32 %v2649, %v1274
      %v2658 = vadd.f32 %v2650, %v1274
      %v2659 = vadd.f32 %v2651, %v1274
      %v2660 = vadd.f32 %v2652, %v1274
      %v2661 = vadd.f32 %v2653, %v1274
      %2670 = vrot.lane.b32.xlu0 %v1799, 8
      %v2671 = vpop.permute.xlu0 %2670
      %2672 = vrot.lane.b32.xlu0 %v1800, 8
      %v2673 = vpop.permute.xlu0 %2672
      %2674 = vrot.lane.b32.xlu0 %v1801, 8
      %v2675 = vpop.permute.xlu0 %2674
      %2676 = vrot.lane.b32.xlu0 %v1802, 8
      %v2677 = vpop.permute.xlu0 %2676
      %2678 = vrot.lane.b32.xlu0 %v1803, 8
      %v2679 = vpop.permute.xlu0 %2678
      %2680 = vrot.lane.b32.xlu0 %v1804, 8
      %v2681 = vpop.permute.xlu0 %2680
      %2682 = vrot.lane.b32.xlu0 %v1805, 8
      %v2683 = vpop.permute.xlu0 %2682
      %2684 = vrot.lane.b32.xlu0 %v1806, 8
      %v2685 = vpop.permute.xlu0 %2684
      %2702 = vrot.lane.b32.xlu0 %v2251, 16
      %v2703 = vpop.permute.xlu0 %2702
      %2704 = vrot.lane.b32.xlu0 %v2252, 16
      %v2705 = vpop.permute.xlu0 %2704
      %2706 = vrot.lane.b32.xlu0 %v2253, 16
      %v2707 = vpop.permute.xlu0 %2706
      %2708 = vrot.lane.b32.xlu0 %v2254, 16
      %v2709 = vpop.permute.xlu0 %2708
      %2710 = vrot.lane.b32.xlu0 %v2255, 16
      %v2711 = vpop.permute.xlu0 %2710
      %2712 = vrot.lane.b32.xlu0 %v2256, 16
      %v2713 = vpop.permute.xlu0 %2712
      %2714 = vrot.lane.b32.xlu0 %v2257, 16
      %v2715 = vpop.permute.xlu0 %2714
      %2716 = vrot.lane.b32.xlu0 %v2258, 16
      %v2717 = vpop.permute.xlu0 %2716
      %2734 = vrot.lane.b32.xlu0 %v2654, 24
      %v2735 = vpop.permute.xlu0 %2734
      %2736 = vrot.lane.b32.xlu0 %v2655, 24
      %v2737 = vpop.permute.xlu0 %2736
      %2738 = vrot.lane.b32.xlu0 %v2656, 24
      %v2739 = vpop.permute.xlu0 %2738
      %2740 = vrot.lane.b32.xlu0 %v2657, 24
      %v2741 = vpop.permute.xlu0 %2740
      %2742 = vrot.lane.b32.xlu0 %v2658, 24
      %v2743 = vpop.permute.xlu0 %2742
      %2744 = vrot.lane.b32.xlu0 %v2659, 24
      %v2745 = vpop.permute.xlu0 %2744
      %2746 = vrot.lane.b32.xlu0 %v2660, 24
      %v2747 = vpop.permute.xlu0 %2746
      %2748 = vrot.lane.b32.xlu0 %v2661, 24
      %v2749 = vpop.permute.xlu0 %2748
      %v2758 = vsel %vm696, %v1276, %v2671
      %v2759 = vsel %vm696, %v1277, %v2673
      %v2760 = vsel %vm696, %v1278, %v2675
      %v2761 = vsel %vm696, %v1279, %v2677
      %v2762 = vsel %vm696, %v1280, %v2679
      %v2763 = vsel %vm696, %v1281, %v2681
      %v2764 = vsel %vm696, %v1282, %v2683
      %v2765 = vsel %vm696, %v1283, %v2685
      %v2766 = vsel %vm705, %v2758, %v2703
      %v2767 = vsel %vm705, %v2759, %v2705
      %v2768 = vsel %vm705, %v2760, %v2707
      %v2769 = vsel %vm705, %v2761, %v2709
      %v2770 = vsel %vm705, %v2762, %v2711
      %v2771 = vsel %vm705, %v2763, %v2713
      %v2772 = vsel %vm705, %v2764, %v2715
      %v2773 = vsel %vm705, %v2765, %v2717
      %v2774 = vsel %vm810, %v2766, %v2735
      %v2775 = vsel %vm810, %v2767, %v2737
      %v2776 = vsel %vm810, %v2768, %v2739
      %v2777 = vsel %vm810, %v2769, %v2741
      %v2778 = vsel %vm810, %v2770, %v2743
      %v2779 = vsel %vm810, %v2771, %v2745
      %v2780 = vsel %vm810, %v2772, %v2747
      %v2781 = vsel %vm810, %v2773, %v2749
      %2782 = vst.msk [vmem:[%s485] sm:$0xff] %vm555, %v2774
      %2783 = vst.msk [vmem:[%s485 + $0x8] sm:$0xff] %vm555, %v2775
      %2784 = vst.msk [vmem:[%s485 + $0x10] sm:$0xff] %vm555, %v2776
      %2785 = vst.msk [vmem:[%s485 + $0x18] sm:$0xff] %vm555, %v2777
      %2786 = vst.msk [vmem:[%s485 + $0x20] sm:$0xff] %vm555, %v2778
      %2787 = vst.msk [vmem:[%s485 + $0x28] sm:$0xff] %vm555, %v2779
      %2788 = vst.msk [vmem:[%s485 + $0x30] sm:$0xff] %vm555, %v2780
      %2789 = vst.msk [vmem:[%s485 + $0x38] sm:$0xff] %vm555, %v2781
      %v2790 = vsel %vm555, %v2774, 0.0
      %v2791 = vsel %vm555, %v2775, 0.0
      %v2792 = vadd.f32 %v2790, %v2791
      %v2793 = vsel %vm555, %v2776, 0.0
      %v2794 = vadd.f32 %v2792, %v2793
      %v2795 = vsel %vm555, %v2777, 0.0
      %v2796 = vadd.f32 %v2794, %v2795
      %v2797 = vsel %vm555, %v2778, 0.0
      %v2798 = vadd.f32 %v2796, %v2797
      %v2799 = vsel %vm555, %v2779, 0.0
      %v2800 = vadd.f32 %v2798, %v2799
      %v2801 = vsel %vm555, %v2780, 0.0
      %v2802 = vadd.f32 %v2800, %v2801
      %v2803 = vsel %vm555, %v2781, 0.0
      %v2804 = vadd.f32 %v2802, %v2803
      %v2805 = vrot.slane %v2804, 4
      %v2806 = vadd.f32 %v2804, %v2805
      %v2807 = vrot.slane %v2806, 2
      %v2808 = vadd.f32 %v2806, %v2807
      %v2809 = vrot.slane %v2808, 1
      %v2810 = vadd.f32 %v2808, %v2809
      %v2811 = vmul.f32 %v2774, %v2774
      %v2812 = vmul.f32 %v2775, %v2775
      %v2813 = vmul.f32 %v2776, %v2776
      %v2814 = vmul.f32 %v2777, %v2777
      %v2815 = vmul.f32 %v2778, %v2778
      %v2816 = vmul.f32 %v2779, %v2779
      %v2817 = vmul.f32 %v2780, %v2780
      %v2818 = vmul.f32 %v2781, %v2781
      %v2819 = vsel %vm555, %v2811, 0.0
      %v2820 = vsel %vm555, %v2812, 0.0
      %v2821 = vadd.f32 %v2819, %v2820
      %v2822 = vsel %vm555, %v2813, 0.0
      %v2823 = vadd.f32 %v2821, %v2822
      %v2824 = vsel %vm555, %v2814, 0.0
      %v2825 = vadd.f32 %v2823, %v2824
      %v2826 = vsel %vm555, %v2815, 0.0
      %v2827 = vadd.f32 %v2825, %v2826
      %v2828 = vsel %vm555, %v2816, 0.0
      %v2829 = vadd.f32 %v2827, %v2828
      %v2830 = vsel %vm555, %v2817, 0.0
      %v2831 = vadd.f32 %v2829, %v2830
      %v2832 = vsel %vm555, %v2818, 0.0
      %v2833 = vadd.f32 %v2831, %v2832
      %v2834 = vrot.slane %v2833, 4
      %v2835 = vadd.f32 %v2833, %v2834
      %v2836 = vrot.slane %v2835, 2
      %v2837 = vadd.f32 %v2835, %v2836
      %v2838 = vrot.slane %v2837, 1
      %v2839 = vadd.f32 %v2837, %v2838
      %vm2840 = vcmask 1040384
      %v2841 = vsel %vm2840, %v2810, %v2839
      %vm2842 = vcmask 254976
      %2843 = vst.msk [vmem:[%s494] sm:$0x3] %vm2842, %v2841
      %s2844 = smul.u32 4, %s25
      %p2845 = scmp.lt.s32.totalorder %s24, 1
      %s2846 = scalar_select %p2845, %s24, 1
      %p2847 = scmp.lt.s32.totalorder %s2844, 15
      %s2848 = scalar_select %p2847, %s2844, 15
      %s2849 = smul.addr %s2848, 2
      %s2850 = smul.addr %s2846, 32
      %s2851 = sadd.s32 %s2849, %s2850
      %s2852 = smul.addr %s2851, 8
      %s2853 = scalar_lea.vmem %s7, %s2852
      %p2854 = scmp.lt.s32.totalorder %s24, 1
      %s2855 = scalar_select %p2854, %s24, 1
      %p2856 = scmp.lt.s32.totalorder %s25, 3
      %s2857 = scalar_select %p2856, %s25, 3
      %s2858 = smul.addr %s2855, 4
      %s2859 = sadd.s32 %s2857, %s2858
      %s2860 = smul.addr %s2859, 2
      %s2861 = scalar_lea.vmem %s8, %s2860
      // Predicated region
      $region65: #{conv_up_forward.3} parent=47 // pred_check
        %p2862 = pneg %p236
      $region66: #{conv_up_forward.3} parent=47 // pred_check_branch
        %2864 = sbr.rel (%p2862) target = $region68
      $region67: #{conv_up_forward.3} parent=47 // pred_region
        %s2865 = smul.u32 4, %s25
      $region68: #{conv_up_forward.3} parent=47 // pred_fallthru
        _
      // Predicated region
      $region69: #{conv_up_forward.3} parent=47 // pred_check
        %p2866 = pneg %p264
      $region70: #{conv_up_forward.3} parent=47 // pred_check_branch
        %2868 = sbr.rel (%p2866) target = $region72
      $region71: #{conv_up_forward.3} parent=47 // pred_region
        _
      $region72: #{conv_up_forward.3} parent=47 // pred_fallthru
        _
    $region48: #{conv_up_forward.3} parent=5 // pred_fallthru
      _
    %p2869 = scmp.le.s32.totalorder 2, %s15
    // Predicated region
    $region73: #{conv_up_forward.3} parent=5 // pred_check
      %p2870 = pneg %p2869
    $region74: #{conv_up_forward.3} parent=5 // pred_check_branch
      %2872 = sbr.rel (%p2870) target = $region76
    $region75: #{conv_up_forward.3} parent=5 // pred_region
      %s2873 = ssub.s32 %s15, 2
      // Predicated region
      $region77: #{conv_up_forward.3} parent=75 // pred_check
        %p2874 = pneg %p242
      $region78: #{conv_up_forward.3} parent=75 // pred_check_branch
        %2876 = sbr.rel (%p2874) target = $region80
      $region79: #{conv_up_forward.3} parent=75 // pred_region
        %s2877 = smul.u32 4, %s27
        %p2878 = scmp.lt.s32.totalorder %s26, 1
        %s2879 = scalar_select %p2878, %s26, 1
        %p2880 = scmp.lt.s32.totalorder %s2877, 15
        %s2881 = scalar_select %p2880, %s2877, 15
        %s2882 = smul.addr %s2881, 2
        %s2883 = smul.addr %s2879, 32
        %s2884 = sadd.s32 %s2882, %s2883
        %s2885 = smul.addr %s2884, 8
        %s2886 = scalar_lea.vmem %s7, %s2885
      $region80: #{conv_up_forward.3} parent=75 // pred_fallthru
        _
      // Predicated region
      $region81: #{conv_up_forward.3} parent=75 // pred_check
        %p2887 = pneg %p270
      $region82: #{conv_up_forward.3} parent=75 // pred_check_branch
        %2889 = sbr.rel (%p2887) target = $region84
      $region83: #{conv_up_forward.3} parent=75 // pred_region
        %p2890 = scmp.lt.s32.totalorder %s26, 1
        %s2891 = scalar_select %p2890, %s26, 1
        %p2892 = scmp.lt.s32.totalorder %s27, 3
        %s2893 = scalar_select %p2892, %s27, 3
        %s2894 = smul.addr %s2891, 4
        %s2895 = sadd.s32 %s2893, %s2894
        %s2896 = smul.addr %s2895, 2
        %s2897 = scalar_lea.vmem %s8, %s2896
      $region84: #{conv_up_forward.3} parent=75 // pred_fallthru
        _
    $region76: #{conv_up_forward.3} parent=5 // pred_fallthru
      _
  $region6: #{conv_up_forward.3} parent=0 // loop_footer
    %s19 = sadd.s32 1, %s15
  $region7: #{conv_up_forward.3} parent=0 // loop_footer_branch
    %14 = sbr.rel target = $region3
  $region8: #{conv_up_forward.3} parent=0 // loop_exit
    _

// kernel: conv_up_forward.2
$region0: #{conv_up_forward.2}
  #allocation0 [shape = 'u32[]', space=smem, size = 0x4, offset = 0x4, fixed_abs, tag = 'smem constant byte address 0x4 - core index']
  #allocation1 [shape = 'u32[144,128]{1,0:T(1,128)}', space=vmem, size = 0x12000, scoped, tag = 'internal scratch']
  #allocation2 [shape = 'f32[6,18,32]{2,1,0:T(8,128)}', space=vmem, size = 0x12000, scoped, tag = 'scratch operand']
  %s0 = inlined_call_operand.vmem [shape: f32[2,16,16,8], index: 0, kind: input, shape index: {}, may-alias: {0,1,2}]
  %s1 = inlined_call_operand.vmem [shape: f32[2,16,16,8], index: 1, kind: input, shape index: {}, may-alias: {0,1,2}]
  %s2 = inlined_call_operand.vmem [shape: f32[2,16,16,8], index: 2, kind: input, shape index: {}, may-alias: {0,1,2}]
  %s3 = inlined_call_operand.vmem [shape: f32[8,32], index: 3, kind: input, shape index: {}]
  %s4 = inlined_call_operand.vmem [shape: f32[1,32], index: 4, kind: input, shape index: {}]
  %s5 = inlined_call_operand.vmem [shape: f32[72,8], index: 5, kind: input, shape index: {}]
  %s6 = inlined_call_operand.vmem [shape: f32[1,8], index: 6, kind: input, shape index: {}]
  %s7 = inlined_call_operand.vmem [shape: f32[2,16,16,32], index: 7, kind: output, shape index: {0}]
  %s8 = inlined_call_operand.vmem [shape: f32[2,4,2,32], index: 8, kind: output, shape index: {1}]
  %9 = xla_tuple %s7, %s8
  %s10 = sld [smem:[#allocation0]]
  $region85: #{conv_up_forward.2} parent=0
    _
  %s12 = ssub.s32 1, %s10
  %s13 = scalar_select 0, %s12, %s10
  loop: start=0, step=1, limit=10
  $region2: #{conv_up_forward.2} parent=0 // loop_pre_header
    _
  $region3: #{conv_up_forward.2} parent=0 // loop_header
    %s15 = sphi 0, %s19
    %p16 = scmp.ge.s32.totalorder %s15, 10
    %s22 = sphi 0, %s34
    %s23 = sphi 0, %s30
    %s24 = sphi 0, %s22
    %s25 = sphi 0, %s23
    %s26 = sphi 0, %s24
    %s27 = sphi 0, %s25
    %s39 = sphi 0, %s41
    %s42 = sphi 0, %s39
    %s43 = sphi 0, %s42
    %s59 = sphi 0, %s43
    %s75 = sphi 0, %s77
    %s78 = sphi 0, %s75
    %s79 = sphi 0, %s78
    %s95 = sphi 0, %s79
    %s111 = sphi 0, %s113
    %s114 = sphi 0, %s111
    %s115 = sphi 0, %s114
    %s131 = sphi 0, %s115
    %s135 = sphi 0, %s135
    %s137 = sphi 0, %s135
    %s138 = sphi 0, %s137
    %s152 = sphi 0, %s138
    %s156 = sphi 0, %s156
    %s158 = sphi 0, %s156
    %s159 = sphi 0, %s158
    %s173 = sphi 0, %s159
    %s177 = sphi 0, %s177
    %s179 = sphi 0, %s177
    %s180 = sphi 0, %s179
    %s194 = sphi 0, %s180
    %s198 = sphi 0, %s198
    %s200 = sphi 0, %s198
    %s201 = sphi 0, %s200
    %s215 = sphi 0, %s201
    %s223 = sphi 0, %s225
    %s226 = sphi 0, %s223
    %s227 = sphi 0, %s226
    %s243 = sphi 0, %s227
    %s251 = sphi 0, %s253
    %s254 = sphi 0, %s251
    %s255 = sphi 0, %s254
    %s271 = sphi 0, %s255
  $region4: #{conv_up_forward.2} parent=0 // loop_header_branch
    %18 = sbr.rel (%p16) target = $region8
  $region5: #{conv_up_forward.2} parent=0 // loop_body
    %s20 = ssub.s32 %s15, 1
    %s21 = ssub.s32 %s15, 2
    %s28 = sadd.s32 1, %s23
    %p29 = scmp.ge.s32.totalorder %s28, 4
    %s30 = scalar_select %p29, 0, %s28
    %s31 = sadd.s32 1, %s22
    %s32 = scalar_select %p29, %s31, %s22
    %p33 = scmp.ge.s32.totalorder %s32, 2
    %s34 = scalar_select %p33, 0, %s32
    %s35 = ssub.s32 %s22, %s34
    %s36 = ssub.s32 %s23, %s30
    %s37 = sor.u32 %s35, %s36
    %p38 = scmp.eq.s32.totalorder %s37, 0
    %s40 = sadd.s32 %s39, 1
    %s41 = scalar_select %p38, %s39, %s40
    %p44 = pneg %p38
    %p45 = scmp.eq.s32.totalorder %s15, 7
    %p46 = por %p44, %p45
    %p47 = scmp.ne.s32.totalorder %s39, %s42
    %p48 = scmp.eq.s32.totalorder %s15, 0
    %p49 = por %p47, %p48
    %p50 = scmp.ne.s32.totalorder %s39, %s42
    %p51 = scmp.eq.s32.totalorder %s20, 7
    %p52 = por %p50, %p51
    %p53 = scmp.ne.s32.totalorder %s42, %s43
    %p54 = scmp.eq.s32.totalorder %s20, 0
    %p55 = por %p53, %p54
    %p56 = scmp.ne.s32.totalorder %s42, %s43
    %p57 = scmp.eq.s32.totalorder %s21, 7
    %p58 = por %p56, %p57
    %p60 = scmp.ne.s32.totalorder %s43, %s59
    %p61 = scmp.eq.s32.totalorder %s21, 0
    %p62 = por %p60, %p61
    %s63 = smul.u32 %s23, 4
    %s64 = ssub.s32 %s63, 1
    %p65 = scmp.gt.s32.totalorder %s64, 0
    %s66 = scalar_select %p65, %s64, 0
    %s67 = smul.u32 %s30, 4
    %s68 = ssub.s32 %s67, 1
    %p69 = scmp.gt.s32.totalorder %s68, 0
    %s70 = scalar_select %p69, %s68, 0
    %s71 = ssub.s32 %s22, %s34
    %s72 = ssub.s32 %s66, %s70
    %s73 = sor.u32 %s71, %s72
    %p74 = scmp.eq.s32.totalorder %s73, 0
    %s76 = sadd.s32 %s75, 1
    %s77 = scalar_select %p74, %s75, %s76
    %p80 = pneg %p74
    %p81 = scmp.eq.s32.totalorder %s15, 7
    %p82 = por %p80, %p81
    %p83 = scmp.ne.s32.totalorder %s75, %s78
    %p84 = scmp.eq.s32.totalorder %s15, 0
    %p85 = por %p83, %p84
    %p86 = scmp.ne.s32.totalorder %s75, %s78
    %p87 = scmp.eq.s32.totalorder %s20, 7
    %p88 = por %p86, %p87
    %p89 = scmp.ne.s32.totalorder %s78, %s79
    %p90 = scmp.eq.s32.totalorder %s20, 0
    %p91 = por %p89, %p90
    %p92 = scmp.ne.s32.totalorder %s78, %s79
    %p93 = scmp.eq.s32.totalorder %s21, 7
    %p94 = por %p92, %p93
    %p96 = scmp.ne.s32.totalorder %s79, %s95
    %p97 = scmp.eq.s32.totalorder %s21, 0
    %p98 = por %p96, %p97
    %s99 = smul.u32 %s23, 4
    %s100 = sadd.s32 %s99, 4
    %p101 = scmp.lt.s32.totalorder %s100, 15
    %s102 = scalar_select %p101, %s100, 15
    %s103 = smul.u32 %s30, 4
    %s104 = sadd.s32 %s103, 4
    %p105 = scmp.lt.s32.totalorder %s104, 15
    %s106 = scalar_select %p105, %s104, 15
    %s107 = ssub.s32 %s22, %s34
    %s108 = ssub.s32 %s102, %s106
    %s109 = sor.u32 %s107, %s108
    %p110 = scmp.eq.s32.totalorder %s109, 0
    %s112 = sadd.s32 %s111, 1
    %s113 = scalar_select %p110, %s111, %s112
    %p116 = pneg %p110
    %p117 = scmp.eq.s32.totalorder %s15, 7
    %p118 = por %p116, %p117
    %p119 = scmp.ne.s32.totalorder %s111, %s114
    %p120 = scmp.eq.s32.totalorder %s15, 0
    %p121 = por %p119, %p120
    %p122 = scmp.ne.s32.totalorder %s111, %s114
    %p123 = scmp.eq.s32.totalorder %s20, 7
    %p124 = por %p122, %p123
    %p125 = scmp.ne.s32.totalorder %s114, %s115
    %p126 = scmp.eq.s32.totalorder %s20, 0
    %p127 = por %p125, %p126
    %p128 = scmp.ne.s32.totalorder %s114, %s115
    %p129 = scmp.eq.s32.totalorder %s21, 7
    %p130 = por %p128, %p129
    %p132 = scmp.ne.s32.totalorder %s115, %s131
    %p133 = scmp.eq.s32.totalorder %s21, 0
    %p134 = por %p132, %p133
    %s136 = sadd.s32 %s135, 1
    %p139 = scmp.eq.s32.totalorder %s15, 7
    %p140 = scmp.ne.s32.totalorder %s135, %s137
    %p141 = scmp.eq.s32.totalorder %s15, 0
    %p142 = por %p140, %p141
    %p143 = scmp.ne.s32.totalorder %s135, %s137
    %p144 = scmp.eq.s32.totalorder %s20, 7
    %p145 = por %p143, %p144
    %p146 = scmp.ne.s32.totalorder %s137, %s138
    %p147 = scmp.eq.s32.totalorder %s20, 0
    %p148 = por %p146, %p147
    %p149 = scmp.ne.s32.totalorder %s137, %s138
    %p150 = scmp.eq.s32.totalorder %s21, 7
    %p151 = por %p149, %p150
    %p153 = scmp.ne.s32.totalorder %s138, %s152
    %p154 = scmp.eq.s32.totalorder %s21, 0
    %p155 = por %p153, %p154
    %s157 = sadd.s32 %s156, 1
    %p160 = scmp.eq.s32.totalorder %s15, 7
    %p161 = scmp.ne.s32.totalorder %s156, %s158
    %p162 = scmp.eq.s32.totalorder %s15, 0
    %p163 = por %p161, %p162
    %p164 = scmp.ne.s32.totalorder %s156, %s158
    %p165 = scmp.eq.s32.totalorder %s20, 7
    %p166 = por %p164, %p165
    %p167 = scmp.ne.s32.totalorder %s158, %s159
    %p168 = scmp.eq.s32.totalorder %s20, 0
    %p169 = por %p167, %p168
    %p170 = scmp.ne.s32.totalorder %s158, %s159
    %p171 = scmp.eq.s32.totalorder %s21, 7
    %p172 = por %p170, %p171
    %p174 = scmp.ne.s32.totalorder %s159, %s173
    %p175 = scmp.eq.s32.totalorder %s21, 0
    %p176 = por %p174, %p175
    %s178 = sadd.s32 %s177, 1
    %p181 = scmp.eq.s32.totalorder %s15, 7
    %p182 = scmp.ne.s32.totalorder %s177, %s179
    %p183 = scmp.eq.s32.totalorder %s15, 0
    %p184 = por %p182, %p183
    %p185 = scmp.ne.s32.totalorder %s177, %s179
    %p186 = scmp.eq.s32.totalorder %s20, 7
    %p187 = por %p185, %p186
    %p188 = scmp.ne.s32.totalorder %s179, %s180
    %p189 = scmp.eq.s32.totalorder %s20, 0
    %p190 = por %p188, %p189
    %p191 = scmp.ne.s32.totalorder %s179, %s180
    %p192 = scmp.eq.s32.totalorder %s21, 7
    %p193 = por %p191, %p192
    %p195 = scmp.ne.s32.totalorder %s180, %s194
    %p196 = scmp.eq.s32.totalorder %s21, 0
    %p197 = por %p195, %p196
    %s199 = sadd.s32 %s198, 1
    %p202 = scmp.eq.s32.totalorder %s15, 7
    %p203 = scmp.ne.s32.totalorder %s198, %s200
    %p204 = scmp.eq.s32.totalorder %s15, 0
    %p205 = por %p203, %p204
    %p206 = scmp.ne.s32.totalorder %s198, %s200
    %p207 = scmp.eq.s32.totalorder %s20, 7
    %p208 = por %p206, %p207
    %p209 = scmp.ne.s32.totalorder %s200, %s201
    %p210 = scmp.eq.s32.totalorder %s20, 0
    %p211 = por %p209, %p210
    %p212 = scmp.ne.s32.totalorder %s200, %s201
    %p213 = scmp.eq.s32.totalorder %s21, 7
    %p214 = por %p212, %p213
    %p216 = scmp.ne.s32.totalorder %s201, %s215
    %p217 = scmp.eq.s32.totalorder %s21, 0
    %p218 = por %p216, %p217
    %s219 = ssub.s32 %s22, %s34
    %s220 = ssub.s32 %s23, %s30
    %s221 = sor.u32 %s219, %s220
    %p222 = scmp.eq.s32.totalorder %s221, 0
    %s224 = sadd.s32 %s223, 1
    %s225 = scalar_select %p222, %s223, %s224
    %p228 = pneg %p222
    %p229 = scmp.eq.s32.totalorder %s15, 7
    %p230 = por %p228, %p229
    %p231 = scmp.ne.s32.totalorder %s223, %s226
    %p232 = scmp.eq.s32.totalorder %s15, 0
    %p233 = por %p231, %p232
    %p234 = scmp.ne.s32.totalorder %s223, %s226
    %p235 = scmp.eq.s32.totalorder %s20, 7
    %p236 = por %p234, %p235
    %p237 = scmp.ne.s32.totalorder %s226, %s227
    %p238 = scmp.eq.s32.totalorder %s20, 0
    %p239 = por %p237, %p238
    %p240 = scmp.ne.s32.totalorder %s226, %s227
    %p241 = scmp.eq.s32.totalorder %s21, 7
    %p242 = por %p240, %p241
    %p244 = scmp.ne.s32.totalorder %s227, %s243
    %p245 = scmp.eq.s32.totalorder %s21, 0
    %p246 = por %p244, %p245
    %s247 = ssub.s32 %s22, %s34
    %s248 = ssub.s32 %s23, %s30
    %s249 = sor.u32 %s247, %s248
    %p250 = scmp.eq.s32.totalorder %s249, 0
    %s252 = sadd.s32 %s251, 1
    %s253 = scalar_select %p250, %s251, %s252
    %p256 = pneg %p250
    %p257 = scmp.eq.s32.totalorder %s15, 7
    %p258 = por %p256, %p257
    %p259 = scmp.ne.s32.totalorder %s251, %s254
    %p260 = scmp.eq.s32.totalorder %s15, 0
    %p261 = por %p259, %p260
    %p262 = scmp.ne.s32.totalorder %s251, %s254
    %p263 = scmp.eq.s32.totalorder %s20, 7
    %p264 = por %p262, %p263
    %p265 = scmp.ne.s32.totalorder %s254, %s255
    %p266 = scmp.eq.s32.totalorder %s20, 0
    %p267 = por %p265, %p266
    %p268 = scmp.ne.s32.totalorder %s254, %s255
    %p269 = scmp.eq.s32.totalorder %s21, 7
    %p270 = por %p268, %p269
    %p272 = scmp.ne.s32.totalorder %s255, %s271
    %p273 = scmp.eq.s32.totalorder %s21, 0
    %p274 = por %p272, %p273
    %p275 = scmp.le.s32.totalorder 1, %s15
    %p276 = scmp.lt.s32.totalorder %s15, 9
    %p277 = pnand %p275, %p276
    %p278 = pneg %p277
    // Predicated region
    $region9: #{conv_up_forward.2} parent=5 // pred_check
      _
    $region10: #{conv_up_forward.2} parent=5 // pred_check_branch
      %280 = sbr.rel (%p277) target = $region12
    $region11: #{conv_up_forward.2} parent=5 // pred_region
      %s281 = ssub.s32 %s15, 1
      // Predicated region
      $region13: #{conv_up_forward.2} parent=11 // pred_check
        %p282 = pneg %p148
      $region14: #{conv_up_forward.2} parent=11 // pred_check_branch
        %284 = sbr.rel (%p282) target = $region16
      $region15: #{conv_up_forward.2} parent=11 // pred_region
        _
      $region16: #{conv_up_forward.2} parent=11 // pred_fallthru
        _
      // Predicated region
      $region17: #{conv_up_forward.2} parent=11 // pred_check
        %p285 = pneg %p169
      $region18: #{conv_up_forward.2} parent=11 // pred_check_branch
        %287 = sbr.rel (%p285) target = $region20
      $region19: #{conv_up_forward.2} parent=11 // pred_region
        _
      $region20: #{conv_up_forward.2} parent=11 // pred_fallthru
        _
      // Predicated region
      $region21: #{conv_up_forward.2} parent=11 // pred_check
        %p288 = pneg %p190
      $region22: #{conv_up_forward.2} parent=11 // pred_check_branch
        %290 = sbr.rel (%p288) target = $region24
      $region23: #{conv_up_forward.2} parent=11 // pred_region
        _
      $region24: #{conv_up_forward.2} parent=11 // pred_fallthru
        _
      // Predicated region
      $region25: #{conv_up_forward.2} parent=11 // pred_check
        %p291 = pneg %p211
      $region26: #{conv_up_forward.2} parent=11 // pred_check_branch
        %293 = sbr.rel (%p291) target = $region28
      $region27: #{conv_up_forward.2} parent=11 // pred_region
        _
      $region28: #{conv_up_forward.2} parent=11 // pred_fallthru
        _
    $region12: #{conv_up_forward.2} parent=5 // pred_fallthru
      _
    %p294 = scmp.lt.s32.totalorder %s15, 8
    // Predicated region
    $region29: #{conv_up_forward.2} parent=5 // pred_check
      %p295 = pneg %p294
    $region30: #{conv_up_forward.2} parent=5 // pred_check_branch
      %297 = sbr.rel (%p295) target = $region32
    $region31: #{conv_up_forward.2} parent=5 // pred_region
      // Predicated region
      $region33: #{conv_up_forward.2} parent=31 // pred_check
        %p298 = pneg %p49
      $region34: #{conv_up_forward.2} parent=31 // pred_check_branch
        %300 = sbr.rel (%p298) target = $region36
      $region35: #{conv_up_forward.2} parent=31 // pred_region
        %s301 = smul.u32 4, %s23
        %p302 = scmp.lt.s32.totalorder %s22, 1
        %s303 = scalar_select %p302, %s22, 1
        %p304 = scmp.lt.s32.totalorder %s301, 15
        %s305 = scalar_select %p304, %s301, 15
        %s306 = smul.addr %s305, 2
        %s307 = smul.addr %s303, 32
        %s308 = sadd.s32 %s306, %s307
        %s309 = smul.addr %s308, 8
        %s310 = scalar_lea.vmem %s0, %s309
        %s311 = smul.u32 4, %s23
      $region36: #{conv_up_forward.2} parent=31 // pred_fallthru
        _
      // Predicated region
      $region37: #{conv_up_forward.2} parent=31 // pred_check
        %p312 = pneg %p85
      $region38: #{conv_up_forward.2} parent=31 // pred_check_branch
        %314 = sbr.rel (%p312) target = $region40
      $region39: #{conv_up_forward.2} parent=31 // pred_region
        %s315 = smul.u32 %s23, 4
        %s316 = ssub.s32 %s315, 1
        %p317 = scmp.gt.s32.totalorder %s316, 0
        %s318 = scalar_select %p317, %s316, 0
        %p319 = scmp.lt.s32.totalorder %s22, 1
        %s320 = scalar_select %p319, %s22, 1
        %p321 = scmp.lt.s32.totalorder %s318, 15
        %s322 = scalar_select %p321, %s318, 15
        %s323 = smul.addr %s322, 2
        %s324 = smul.addr %s320, 32
        %s325 = sadd.s32 %s323, %s324
        %s326 = smul.addr %s325, 8
        %s327 = scalar_lea.vmem %s1, %s326
        %s328 = smul.u32 %s23, 4
        %s329 = ssub.s32 %s328, 1
        %p330 = scmp.gt.s32.totalorder %s329, 0
        %s331 = scalar_select %p330, %s329, 0
      $region40: #{conv_up_forward.2} parent=31 // pred_fallthru
        _
      // Predicated region
      $region41: #{conv_up_forward.2} parent=31 // pred_check
        %p332 = pneg %p121
      $region42: #{conv_up_forward.2} parent=31 // pred_check_branch
        %334 = sbr.rel (%p332) target = $region44
      $region43: #{conv_up_forward.2} parent=31 // pred_region
        %s335 = smul.u32 %s23, 4
        %s336 = sadd.s32 %s335, 4
        %p337 = scmp.lt.s32.totalorder %s336, 15
        %s338 = scalar_select %p337, %s336, 15
        %p339 = scmp.lt.s32.totalorder %s22, 1
        %s340 = scalar_select %p339, %s22, 1
        %p341 = scmp.lt.s32.totalorder %s338, 15
        %s342 = scalar_select %p341, %s338, 15
        %s343 = smul.addr %s342, 2
        %s344 = smul.addr %s340, 32
        %s345 = sadd.s32 %s343, %s344
        %s346 = smul.addr %s345, 8
        %s347 = scalar_lea.vmem %s2, %s346
        %s348 = smul.u32 %s23, 4
        %s349 = sadd.s32 %s348, 4
        %p350 = scmp.lt.s32.totalorder %s349, 15
        %s351 = scalar_select %p350, %s349, 15
      $region44: #{conv_up_forward.2} parent=31 // pred_fallthru
        _
    $region32: #{conv_up_forward.2} parent=5 // pred_fallthru
      _
    %p352 = scmp.le.s32.totalorder 1, %s15
    %p353 = scmp.lt.s32.totalorder %s15, 9
    %p354 = pnand %p352, %p353
    %p355 = pneg %p354
    // Predicated region
    $region45: #{conv_up_forward.2} parent=5 // pred_check
      _
    $region46: #{conv_up_forward.2} parent=5 // pred_check_branch
      %357 = sbr.rel (%p354) target = $region48
    $region47: #{conv_up_forward.2} parent=5 // pred_region
      %s358 = ssub.s32 %s15, 1
      %s359 = smul.u32 4, %s25
      %p360 = scmp.lt.s32.totalorder %s24, 1
      %s361 = scalar_select %p360, %s24, 1
      %p362 = scmp.lt.s32.totalorder %s359, 15
      %s363 = scalar_select %p362, %s359, 15
      %s364 = smul.addr %s363, 2
      %s365 = smul.addr %s361, 32
      %s366 = sadd.s32 %s364, %s365
      %s367 = smul.addr %s366, 8
      %s368 = scalar_lea.vmem %s0, %s367
      %p369 = pneg %p55
      %p370 = pneg %p52
      %s371 = smul.u32 %s25, 4
      %s372 = ssub.s32 %s371, 1
      %p373 = scmp.gt.s32.totalorder %s372, 0
      %s374 = scalar_select %p373, %s372, 0
      %p375 = scmp.lt.s32.totalorder %s24, 1
      %s376 = scalar_select %p375, %s24, 1
      %p377 = scmp.lt.s32.totalorder %s374, 15
      %s378 = scalar_select %p377, %s374, 15
      %s379 = smul.addr %s378, 2
      %s380 = smul.addr %s376, 32
      %s381 = sadd.s32 %s379, %s380
      %s382 = smul.addr %s381, 8
      %s383 = scalar_lea.vmem %s1, %s382
      %p384 = pneg %p91
      %p385 = pneg %p88
      %s386 = smul.u32 %s25, 4
      %s387 = sadd.s32 %s386, 4
      %p388 = scmp.lt.s32.totalorder %s387, 15
      %s389 = scalar_select %p388, %s387, 15
      %p390 = scmp.lt.s32.totalorder %s24, 1
      %s391 = scalar_select %p390, %s24, 1
      %p392 = scmp.lt.s32.totalorder %s389, 15
      %s393 = scalar_select %p392, %s389, 15
      %s394 = smul.addr %s393, 2
      %s395 = smul.addr %s391, 32
      %s396 = sadd.s32 %s394, %s395
      %s397 = smul.addr %s396, 8
      %s398 = scalar_lea.vmem %s2, %s397
      %p399 = pneg %p127
      %p400 = pneg %p124
      %p401 = pneg %p148
      %p402 = pneg %p145
      %p403 = pneg %p169
      %p404 = pneg %p166
      %p405 = pneg %p190
      %p406 = pneg %p187
      %p407 = pneg %p211
      %p408 = pneg %p208
      %p409 = pneg %p239
      %p410 = pneg %p236
      %s411 = smul.u32 4, %s25
      %p412 = scmp.lt.s32.totalorder %s24, 1
      %s413 = scalar_select %p412, %s24, 1
      %p414 = scmp.lt.s32.totalorder %s411, 15
      %s415 = scalar_select %p414, %s411, 15
      %s416 = smul.addr %s415, 2
      %s417 = smul.addr %s413, 32
      %s418 = sadd.s32 %s416, %s417
      %s419 = smul.addr %s418, 8
      %s420 = scalar_lea.vmem %s7, %s419
      %p421 = pneg %p267
      %p422 = pneg %p264
      %p423 = scmp.lt.s32.totalorder %s24, 1
      %s424 = scalar_select %p423, %s24, 1
      %p425 = scmp.lt.s32.totalorder %s25, 3
      %s426 = scalar_select %p425, %s25, 3
      %s427 = smul.addr %s424, 4
      %s428 = sadd.s32 %s426, %s427
      %s429 = smul.addr %s428, 2
      %s430 = scalar_lea.vmem %s8, %s429
      %s431 = smul.u32 4, %s25
      %p432 = scmp.lt.s32.totalorder %s24, 1
      %s433 = scalar_select %p432, %s24, 1
      %p434 = scmp.lt.s32.totalorder %s431, 15
      %s435 = scalar_select %p434, %s431, 15
      %s436 = smul.addr %s435, 2
      %s437 = smul.addr %s433, 32
      %s438 = sadd.s32 %s436, %s437
      %s439 = smul.addr %s438, 8
      %s440 = scalar_lea.vmem %s0, %s439
      %s441 = smul.u32 4, %s25
      %s442 = smul.u32 %s25, 4
      %s443 = ssub.s32 %s442, 1
      %p444 = scmp.gt.s32.totalorder %s443, 0
      %s445 = scalar_select %p444, %s443, 0
      %p446 = scmp.lt.s32.totalorder %s24, 1
      %s447 = scalar_select %p446, %s24, 1
      %p448 = scmp.lt.s32.totalorder %s445, 15
      %s449 = scalar_select %p448, %s445, 15
      %s450 = smul.addr %s449, 2
      %s451 = smul.addr %s447, 32
      %s452 = sadd.s32 %s450, %s451
      %s453 = smul.addr %s452, 8
      %s454 = scalar_lea.vmem %s1, %s453
      %s455 = smul.u32 %s25, 4
      %s456 = ssub.s32 %s455, 1
      %p457 = scmp.gt.s32.totalorder %s456, 0
      %s458 = scalar_select %p457, %s456, 0
      %s459 = smul.u32 %s25, 4
      %s460 = sadd.s32 %s459, 4
      %p461 = scmp.lt.s32.totalorder %s460, 15
      %s462 = scalar_select %p461, %s460, 15
      %p463 = scmp.lt.s32.totalorder %s24, 1
      %s464 = scalar_select %p463, %s24, 1
      %p465 = scmp.lt.s32.totalorder %s462, 15
      %s466 = scalar_select %p465, %s462, 15
      %s467 = smul.addr %s466, 2
      %s468 = smul.addr %s464, 32
      %s469 = sadd.s32 %s467, %s468
      %s470 = smul.addr %s469, 8
      %s471 = scalar_lea.vmem %s2, %s470
      %s472 = smul.u32 %s25, 4
      %s473 = sadd.s32 %s472, 4
      %p474 = scmp.lt.s32.totalorder %s473, 15
      %s475 = scalar_select %p474, %s473, 15
      %s476 = smul.u32 4, %s25
      %p477 = scmp.lt.s32.totalorder %s24, 1
      %s478 = scalar_select %p477, %s24, 1
      %p479 = scmp.lt.s32.totalorder %s476, 15
      %s480 = scalar_select %p479, %s476, 15
      %s481 = smul.addr %s480, 2
      %s482 = smul.addr %s478, 32
      %s483 = sadd.s32 %s481, %s482
      %s484 = smul.addr %s483, 8
      %s485 = scalar_lea.vmem %s7, %s484
      %s486 = smul.u32 4, %s25
      %p487 = scmp.lt.s32.totalorder %s24, 1
      %s488 = scalar_select %p487, %s24, 1
      %p489 = scmp.lt.s32.totalorder %s25, 3
      %s490 = scalar_select %p489, %s25, 3
      %s491 = smul.addr %s488, 4
      %s492 = sadd.s32 %s490, %s491
      %s493 = smul.addr %s492, 2
      %s494 = scalar_lea.vmem %s8, %s493
      %vm495 = vcmask 253952
      %496 = vst.msk [vmem:[#allocation2] sm:$0x1] %vm495, 0.0
      %497 = vst.msk [vmem:[#allocation2 + $0x18] sm:$0x1] %vm495, 0.0
      %498 = vst.msk [vmem:[#allocation2 + $0x30] sm:$0x1] %vm495, 0.0
      %499 = vst.msk [vmem:[#allocation2 + $0x48] sm:$0x1] %vm495, 0.0
      %500 = vst.msk [vmem:[#allocation2 + $0x60] sm:$0x1] %vm495, 0.0
      %501 = vst.msk [vmem:[#allocation2 + $0x78] sm:$0x1] %vm495, 0.0
      %502 = vst.msk [vmem:[#allocation2 + $0x11] sm:$0x1] %vm495, 0.0
      %503 = vst.msk [vmem:[#allocation2 + $0x29] sm:$0x1] %vm495, 0.0
      %504 = vst.msk [vmem:[#allocation2 + $0x41] sm:$0x1] %vm495, 0.0
      %505 = vst.msk [vmem:[#allocation2 + $0x59] sm:$0x1] %vm495, 0.0
      %506 = vst.msk [vmem:[#allocation2 + $0x71] sm:$0x1] %vm495, 0.0
      %507 = vst.msk [vmem:[#allocation2 + $0x89] sm:$0x1] %vm495, 0.0
      %v508 = vld [vmem:[%s3] sm:$0xff]
      %v509 = vld [vmem:[%s4] sm:$0x1]
      %v510 = vld [vmem:[%s440] sm:$0xff]
      %v511 = vld [vmem:[%s440 + $0x8] sm:$0xff]
      %v512 = vld [vmem:[%s440 + $0x10] sm:$0xff]
      %v513 = vld [vmem:[%s440 + $0x18] sm:$0xff]
      %v514 = vld [vmem:[%s440 + $0x20] sm:$0xff]
      %v515 = vld [vmem:[%s440 + $0x28] sm:$0xff]
      %v516 = vld [vmem:[%s440 + $0x30] sm:$0xff]
      %v517 = vld [vmem:[%s440 + $0x38] sm:$0xff]
      %v519 = vlaneseq
      %v520 = vshrl.u32 %v519, 7
      %v521 = vsub.s32 0, %v520
      %v522 = vrot.slane %v509, %v521
      %vm524 = vcmask 64512
      %v526 = vsel %vm524, %v510, 0
      %v529 = vsel %vm524, %v511, 0
      %v532 = vsel %vm524, %v512, 0
      %v535 = vsel %vm524, %v513, 0
      %v538 = vsel %vm524, %v514, 0
      %v541 = vsel %vm524, %v515, 0
      %v544 = vsel %vm524, %v516, 0
      %v547 = vsel %vm524, %v517, 0
      %549 = vmatprep.subr.mxu0 0.0
      %550 = vmatpush1.msra.mxu0 0.0
      %551 = vmatprep.subr.mxu0 0.0
      %552 = vmatpush1.msra.mxu0 0.0
      %553 = vmatprep.subr.mxu0 0.0
      %554 = vmatpush1.msra.mxu0 0.0
      %555 = vmatprep.subr.mxu0 0.0
      %556 = vmatpush1.msra.mxu0 0.0
      %557 = vmatprep.subr.mxu0 0.0
      %558 = vmatpush1.msra.mxu0 0.0
      %559 = vmatprep.subr.mxu0 0.0
      %560 = vmatpush1.msra.mxu0 0.0
      %561 = vmatprep.subr.mxu0 0.0
      %562 = vmatpush1.msra.mxu0 0.0
      %563 = vmatprep.subr.mxu0 0.0
      %564 = vmatpush1.msra.mxu0 0.0
      %565 = vmatprep.subr.mxu0 0.0
      %566 = vmatpush1.msra.mxu0 0.0
      %567 = vmatprep.subr.mxu0 0.0
      %568 = vmatpush1.msra.mxu0 0.0
      %569 = vmatprep.subr.mxu0 0.0
      %570 = vmatpush1.msra.mxu0 0.0
      %571 = vmatprep.subr.mxu0 0.0
      %572 = vmatpush1.msra.mxu0 0.0
      %573 = vmatprep.subr.mxu0 0.0
      %574 = vmatpush1.msra.mxu0 0.0
      %575 = vmatprep.subr.mxu0 0.0
      %576 = vmatpush1.msra.mxu0 0.0
      %577 = vmatprep.subr.mxu0 0.0
      %578 = vmatpush1.msra.mxu0 0.0
      %579 = vmatprep.subr.mxu0 0.0
      %580 = vmatpush1.msra.mxu0 %v508
      %581 = vmatprep.subr.mxu0 0.0
      %582 = vmatpush2.msra.mxu0 0.0
      %583 = vmatprep.subr.mxu0 0.0
      %584 = vmatpush2.msra.mxu0 0.0
      %585 = vmatprep.subr.mxu0 0.0
      %586 = vmatpush2.msra.mxu0 0.0
      %587 = vmatprep.subr.mxu0 0.0
      %588 = vmatpush2.msra.mxu0 0.0
      %589 = vmatprep.subr.mxu0 0.0
      %590 = vmatpush2.msra.mxu0 0.0
      %591 = vmatprep.subr.mxu0 0.0
      %592 = vmatpush2.msra.mxu0 0.0
      %593 = vmatprep.subr.mxu0 0.0
      %594 = vmatpush2.msra.mxu0 0.0
      %595 = vmatprep.subr.mxu0 0.0
      %596 = vmatpush2.msra.mxu0 0.0
      %597 = vmatprep.subr.mxu0 0.0
      %598 = vmatpush2.msra.mxu0 0.0
      %599 = vmatprep.subr.mxu0 0.0
      %600 = vmatpush2.msra.mxu0 0.0
      %601 = vmatprep.subr.mxu0 0.0
      %602 = vmatpush2.msra.mxu0 0.0
      %603 = vmatprep.subr.mxu0 0.0
      %604 = vmatpush2.msra.mxu0 0.0
      %605 = vmatprep.subr.mxu0 0.0
      %606 = vmatpush2.msra.mxu0 0.0
      %607 = vmatprep.subr.mxu0 0.0
      %608 = vmatpush2.msra.mxu0 0.0
      %609 = vmatprep.subr.mxu0 0.0
      %610 = vmatpush2.msra.mxu0 0.0
      %611 = vmatprep.subr.mxu0 0.0
      %612 = vmatpush2.msra.mxu0 0.0
      %613 = vmatprep.mubr.f32.mxu0 0.0
      %614 = vmatmul.mubr.f32.gmra.mxu0 %v526
      %v615 = vpop.f32.mrf.mxu0
      %v616 = vadd.f32 %v522, %v615
      %v617 = vpop.f32.mrf.mxu0
      %618 = vmatprep.mubr.f32.mxu0 0.0
      %619 = vmatmul.mubr.f32.gmra.mxu0 %v529
      %v620 = vpop.f32.mrf.mxu0
      %v621 = vadd.f32 %v522, %v620
      %v622 = vpop.f32.mrf.mxu0
      %623 = vmatprep.mubr.f32.mxu0 0.0
      %624 = vmatmul.mubr.f32.gmra.mxu0 %v532
      %v625 = vpop.f32.mrf.mxu0
      %v626 = vadd.f32 %v522, %v625
      %v627 = vpop.f32.mrf.mxu0
      %628 = vmatprep.mubr.f32.mxu0 0.0
      %629 = vmatmul.mubr.f32.gmra.mxu0 %v535
      %v630 = vpop.f32.mrf.mxu0
      %v631 = vadd.f32 %v522, %v630
      %v632 = vpop.f32.mrf.mxu0
      %633 = vmatprep.mubr.f32.mxu0 0.0
      %634 = vmatmul.mubr.f32.gmra.mxu0 %v538
      %v635 = vpop.f32.mrf.mxu0
      %v636 = vadd.f32 %v522, %v635
      %v637 = vpop.f32.mrf.mxu0
      %638 = vmatprep.mubr.f32.mxu0 0.0
      %639 = vmatmul.mubr.f32.gmra.mxu0 %v541
      %v640 = vpop.f32.mrf.mxu0
      %v641 = vadd.f32 %v522, %v640
      %v642 = vpop.f32.mrf.mxu0
      %643 = vmatprep.mubr.f32.mxu0 0.0
      %644 = vmatmul.mubr.f32.gmra.mxu0 %v544
      %v645 = vpop.f32.mrf.mxu0
      %v646 = vadd.f32 %v522, %v645
      %v647 = vpop.f32.mrf.mxu0
      %648 = vmatprep.mubr.f32.mxu0 0.0
      %649 = vmatmul.mubr.f32.gmra.mxu0 %v547
      %v650 = vpop.f32.mrf.mxu0
      %v651 = vadd.f32 %v522, %v650
      %v652 = vpop.f32.mrf.mxu0
      %653 = vdwg.mxu0
      %s654 = scalar_lea.vmem [#allocation2], 24
      %vm655 = vcmask 261120
      %656 = vst.msk [vmem:[%s654 + $0x1] sm:$0xff] %vm655, %v616
      %657 = vst.msk [vmem:[%s654 + $0x9] sm:$0xff] %vm655, %v621
      %658 = vst.msk [vmem:[%s654 + $0x19] sm:$0xff] %vm655, %v626
      %659 = vst.msk [vmem:[%s654 + $0x21] sm:$0xff] %vm655, %v631
      %660 = vst.msk [vmem:[%s654 + $0x31] sm:$0xff] %vm655, %v636
      %661 = vst.msk [vmem:[%s654 + $0x39] sm:$0xff] %vm655, %v641
      %662 = vst.msk [vmem:[%s654 + $0x49] sm:$0xff] %vm655, %v646
      %663 = vst.msk [vmem:[%s654 + $0x51] sm:$0xff] %vm655, %v651
      %v664 = vld [vmem:[%s454] sm:$0xff]
      %v665 = vld [vmem:[%s454 + $0x8] sm:$0xff]
      %v667 = vsel %vm524, %v664, 0
      %v670 = vsel %vm524, %v665, 0
      %672 = vmatprep.subr.mxu0 0.0
      %673 = vmatpush1.msra.mxu0 0.0
      %674 = vmatprep.subr.mxu0 0.0
      %675 = vmatpush1.msra.mxu0 0.0
      %676 = vmatprep.subr.mxu0 0.0
      %677 = vmatpush1.msra.mxu0 0.0
      %678 = vmatprep.subr.mxu0 0.0
      %679 = vmatpush1.msra.mxu0 0.0
      %680 = vmatprep.subr.mxu0 0.0
      %681 = vmatpush1.msra.mxu0 0.0
      %682 = vmatprep.subr.mxu0 0.0
      %683 = vmatpush1.msra.mxu0 0.0
      %684 = vmatprep.subr.mxu0 0.0
      %685 = vmatpush1.msra.mxu0 0.0
      %686 = vmatprep.subr.mxu0 0.0
      %687 = vmatpush1.msra.mxu0 0.0
      %688 = vmatprep.subr.mxu0 0.0
      %689 = vmatpush1.msra.mxu0 0.0
      %690 = vmatprep.subr.mxu0 0.0
      %691 = vmatpush1.msra.mxu0 0.0
      %692 = vmatprep.subr.mxu0 0.0
      %693 = vmatpush1.msra.mxu0 0.0
      %694 = vmatprep.subr.mxu0 0.0
      %695 = vmatpush1.msra.mxu0 0.0
      %696 = vmatprep.subr.mxu0 0.0
      %697 = vmatpush1.msra.mxu0 0.0
      %698 = vmatprep.subr.mxu0 0.0
      %699 = vmatpush1.msra.mxu0 0.0
      %700 = vmatprep.subr.mxu0 0.0
      %701 = vmatpush1.msra.mxu0 0.0
      %702 = vmatprep.subr.mxu0 0.0
      %703 = vmatpush1.msra.mxu0 %v508
      %704 = vmatprep.subr.mxu0 0.0
      %705 = vmatpush2.msra.mxu0 0.0
      %706 = vmatprep.subr.mxu0 0.0
      %707 = vmatpush2.msra.mxu0 0.0
      %708 = vmatprep.subr.mxu0 0.0
      %709 = vmatpush2.msra.mxu0 0.0
      %710 = vmatprep.subr.mxu0 0.0
      %711 = vmatpush2.msra.mxu0 0.0
      %712 = vmatprep.subr.mxu0 0.0
      %713 = vmatpush2.msra.mxu0 0.0
      %714 = vmatprep.subr.mxu0 0.0
      %715 = vmatpush2.msra.mxu0 0.0
      %716 = vmatprep.subr.mxu0 0.0
      %717 = vmatpush2.msra.mxu0 0.0
      %718 = vmatprep.subr.mxu0 0.0
      %719 = vmatpush2.msra.mxu0 0.0
      %720 = vmatprep.subr.mxu0 0.0
      %721 = vmatpush2.msra.mxu0 0.0
      %722 = vmatprep.subr.mxu0 0.0
      %723 = vmatpush2.msra.mxu0 0.0
      %724 = vmatprep.subr.mxu0 0.0
      %725 = vmatpush2.msra.mxu0 0.0
      %726 = vmatprep.subr.mxu0 0.0
      %727 = vmatpush2.msra.mxu0 0.0
      %728 = vmatprep.subr.mxu0 0.0
      %729 = vmatpush2.msra.mxu0 0.0
      %730 = vmatprep.subr.mxu0 0.0
      %731 = vmatpush2.msra.mxu0 0.0
      %732 = vmatprep.subr.mxu0 0.0
      %733 = vmatpush2.msra.mxu0 0.0
      %734 = vmatprep.subr.mxu0 0.0
      %735 = vmatpush2.msra.mxu0 0.0
      %736 = vmatprep.mubr.f32.mxu0 0.0
      %737 = vmatmul.mubr.f32.gmra.mxu0 %v667
      %v738 = vpop.f32.mrf.mxu0
      %v739 = vadd.f32 %v522, %v738
      %v740 = vpop.f32.mrf.mxu0
      %741 = vmatprep.mubr.f32.mxu0 0.0
      %742 = vmatmul.mubr.f32.gmra.mxu0 %v670
      %v743 = vpop.f32.mrf.mxu0
      %v744 = vadd.f32 %v522, %v743
      %v745 = vpop.f32.mrf.mxu0
      %746 = vdwg.mxu0
      %p747 = scmp.gt.s32.totalorder %s25, 0
      // Predicated region
      $region49: #{conv_up_forward.2} parent=47 // pred_check
        %p748 = pneg %p747
      $region50: #{conv_up_forward.2} parent=47 // pred_check_branch
        %750 = sbr.rel (%p748) target = $region52
      $region51: #{conv_up_forward.2} parent=47 // pred_region
        %751 = vst.msk [vmem:[#allocation2 + $0x1] sm:$0xff] %vm655, %v739
        %752 = vst.msk [vmem:[#allocation2 + $0x9] sm:$0xff] %vm655, %v744
      $region52: #{conv_up_forward.2} parent=47 // pred_fallthru
        _
      %p753 = scmp.le.s32.totalorder %s25, 0
      // Predicated region
      $region53: #{conv_up_forward.2} parent=47 // pred_check
        %p754 = pneg %p753
      $region54: #{conv_up_forward.2} parent=47 // pred_check_branch
        %756 = sbr.rel (%p754) target = $region56
      $region55: #{conv_up_forward.2} parent=47 // pred_region
        %757 = vst.msk [vmem:[#allocation2 + $0x1] sm:$0xff] %vm655, 0.0
        %758 = vst.msk [vmem:[#allocation2 + $0x9] sm:$0xff] %vm655, 0.0
      $region56: #{conv_up_forward.2} parent=47 // pred_fallthru
        _
      %v759 = vld [vmem:[%s471] sm:$0xff]
      %v760 = vld [vmem:[%s471 + $0x8] sm:$0xff]
      %v762 = vsel %vm524, %v759, 0
      %v765 = vsel %vm524, %v760, 0
      %767 = vmatprep.subr.mxu0 0.0
      %768 = vmatpush1.msra.mxu0 0.0
      %769 = vmatprep.subr.mxu0 0.0
      %770 = vmatpush1.msra.mxu0 0.0
      %771 = vmatprep.subr.mxu0 0.0
      %772 = vmatpush1.msra.mxu0 0.0
      %773 = vmatprep.subr.mxu0 0.0
      %774 = vmatpush1.msra.mxu0 0.0
      %775 = vmatprep.subr.mxu0 0.0
      %776 = vmatpush1.msra.mxu0 0.0
      %777 = vmatprep.subr.mxu0 0.0
      %778 = vmatpush1.msra.mxu0 0.0
      %779 = vmatprep.subr.mxu0 0.0
      %780 = vmatpush1.msra.mxu0 0.0
      %781 = vmatprep.subr.mxu0 0.0
      %782 = vmatpush1.msra.mxu0 0.0
      %783 = vmatprep.subr.mxu0 0.0
      %784 = vmatpush1.msra.mxu0 0.0
      %785 = vmatprep.subr.mxu0 0.0
      %786 = vmatpush1.msra.mxu0 0.0
      %787 = vmatprep.subr.mxu0 0.0
      %788 = vmatpush1.msra.mxu0 0.0
      %789 = vmatprep.subr.mxu0 0.0
      %790 = vmatpush1.msra.mxu0 0.0
      %791 = vmatprep.subr.mxu0 0.0
      %792 = vmatpush1.msra.mxu0 0.0
      %793 = vmatprep.subr.mxu0 0.0
      %794 = vmatpush1.msra.mxu0 0.0
      %795 = vmatprep.subr.mxu0 0.0
      %796 = vmatpush1.msra.mxu0 0.0
      %797 = vmatprep.subr.mxu0 0.0
      %798 = vmatpush1.msra.mxu0 %v508
      %799 = vmatprep.subr.mxu0 0.0
      %800 = vmatpush2.msra.mxu0 0.0
      %801 = vmatprep.subr.mxu0 0.0
      %802 = vmatpush2.msra.mxu0 0.0
      %803 = vmatprep.subr.mxu0 0.0
      %804 = vmatpush2.msra.mxu0 0.0
      %805 = vmatprep.subr.mxu0 0.0
      %806 = vmatpush2.msra.mxu0 0.0
      %807 = vmatprep.subr.mxu0 0.0
      %808 = vmatpush2.msra.mxu0 0.0
      %809 = vmatprep.subr.mxu0 0.0
      %810 = vmatpush2.msra.mxu0 0.0
      %811 = vmatprep.subr.mxu0 0.0
      %812 = vmatpush2.msra.mxu0 0.0
      %813 = vmatprep.subr.mxu0 0.0
      %814 = vmatpush2.msra.mxu0 0.0
      %815 = vmatprep.subr.mxu0 0.0
      %816 = vmatpush2.msra.mxu0 0.0
      %817 = vmatprep.subr.mxu0 0.0
      %818 = vmatpush2.msra.mxu0 0.0
      %819 = vmatprep.subr.mxu0 0.0
      %820 = vmatpush2.msra.mxu0 0.0
      %821 = vmatprep.subr.mxu0 0.0
      %822 = vmatpush2.msra.mxu0 0.0
      %823 = vmatprep.subr.mxu0 0.0
      %824 = vmatpush2.msra.mxu0 0.0
      %825 = vmatprep.subr.mxu0 0.0
      %826 = vmatpush2.msra.mxu0 0.0
      %827 = vmatprep.subr.mxu0 0.0
      %828 = vmatpush2.msra.mxu0 0.0
      %829 = vmatprep.subr.mxu0 0.0
      %830 = vmatpush2.msra.mxu0 0.0
      %831 = vmatprep.mubr.f32.mxu0 0.0
      %832 = vmatmul.mubr.f32.gmra.mxu0 %v762
      %v833 = vpop.f32.mrf.mxu0
      %v834 = vadd.f32 %v522, %v833
      %v835 = vpop.f32.mrf.mxu0
      %836 = vmatprep.mubr.f32.mxu0 0.0
      %837 = vmatmul.mubr.f32.gmra.mxu0 %v765
      %v838 = vpop.f32.mrf.mxu0
      %v839 = vadd.f32 %v522, %v838
      %v840 = vpop.f32.mrf.mxu0
      %841 = vdwg.mxu0
      %p842 = scmp.lt.s32.totalorder %s25, 3
      // Predicated region
      $region57: #{conv_up_forward.2} parent=47 // pred_check
        %p843 = pneg %p842
      $region58: #{conv_up_forward.2} parent=47 // pred_check_branch
        %845 = sbr.rel (%p843) target = $region60
      $region59: #{conv_up_forward.2} parent=47 // pred_region
        %s846 = scalar_lea.vmem [#allocation2], 120
        %847 = vst.msk [vmem:[%s846 + $0x1] sm:$0xff] %vm655, %v834
        %848 = vst.msk [vmem:[%s846 + $0x9] sm:$0xff] %vm655, %v839
      $region60: #{conv_up_forward.2} parent=47 // pred_fallthru
        _
      %p849 = scmp.ge.s32.totalorder %s25, 3
      // Predicated region
      $region61: #{conv_up_forward.2} parent=47 // pred_check
        %p850 = pneg %p849
      $region62: #{conv_up_forward.2} parent=47 // pred_check_branch
        %852 = sbr.rel (%p850) target = $region64
      $region63: #{conv_up_forward.2} parent=47 // pred_region
        %s853 = scalar_lea.vmem [#allocation2], 120
        %854 = vst.msk [vmem:[%s853 + $0x1] sm:$0xff] %vm655, 0.0
        %855 = vst.msk [vmem:[%s853 + $0x9] sm:$0xff] %vm655, 0.0
      $region64: #{conv_up_forward.2} parent=47 // pred_fallthru
        _
      %v856 = vld [vmem:[%s6] sm:$0x1]
      %v857 = vld [vmem:[%s5] sm:$0xff]
      %v858 = vld [vmem:[%s5 + $0x8] sm:$0xff]
      %v859 = vld [vmem:[%s5 + $0x10] sm:$0xff]
      %v860 = vld [vmem:[%s5 + $0x18] sm:$0xff]
      %v861 = vld [vmem:[%s5 + $0x20] sm:$0xff]
      %v862 = vld [vmem:[%s5 + $0x28] sm:$0xff]
      %v863 = vld [vmem:[%s5 + $0x30] sm:$0xff]
      %v864 = vld [vmem:[%s5 + $0x38] sm:$0xff]
      %v865 = vld [vmem:[%s5 + $0x40] sm:$0xff]
      %v866 = vld [vmem:[#allocation2] sm:$0xff]
      %v867 = vld [vmem:[#allocation2 + $0x8] sm:$0xff]
      %v868 = vld [vmem:[#allocation2 + $0x18] sm:$0xff]
      %v869 = vld [vmem:[#allocation2 + $0x20] sm:$0xff]
      %v870 = vld [vmem:[#allocation2 + $0x30] sm:$0xff]
      %v871 = vld [vmem:[#allocation2 + $0x38] sm:$0xff]
      %v872 = vld [vmem:[#allocation2 + $0x48] sm:$0xff]
      %v873 = vld [vmem:[#allocation2 + $0x50] sm:$0xff]
      %v874 = vld [vmem:[#allocation2 + $0x1] sm:$0xff]
      %v875 = vld [vmem:[#allocation2 + $0x9] sm:$0xff]
      %v876 = vld [vmem:[#allocation2 + $0x19] sm:$0xff]
      %v877 = vld [vmem:[#allocation2 + $0x21] sm:$0xff]
      %v878 = vld [vmem:[#allocation2 + $0x31] sm:$0xff]
      %v879 = vld [vmem:[#allocation2 + $0x39] sm:$0xff]
      %v880 = vld [vmem:[#allocation2 + $0x49] sm:$0xff]
      %v881 = vld [vmem:[#allocation2 + $0x51] sm:$0xff]
      %890 = vrot.lane.b32.xlu0 %v866, 104
      %v891 = vpop.permute.xlu0 %890
      %892 = vrot.lane.b32.xlu0 %v867, 104
      %v893 = vpop.permute.xlu0 %892
      %894 = vrot.lane.b32.xlu0 %v868, 104
      %v895 = vpop.permute.xlu0 %894
      %896 = vrot.lane.b32.xlu0 %v869, 104
      %v897 = vpop.permute.xlu0 %896
      %898 = vrot.lane.b32.xlu0 %v870, 104
      %v899 = vpop.permute.xlu0 %898
      %900 = vrot.lane.b32.xlu0 %v871, 104
      %v901 = vpop.permute.xlu0 %900
      %902 = vrot.lane.b32.xlu0 %v872, 104
      %v903 = vpop.permute.xlu0 %902
      %904 = vrot.lane.b32.xlu0 %v873, 104
      %v905 = vpop.permute.xlu0 %904
      %922 = vrot.lane.b32.xlu0 %v874, 120
      %v923 = vpop.permute.xlu0 %922
      %924 = vrot.lane.b32.xlu0 %v875, 120
      %v925 = vpop.permute.xlu0 %924
      %926 = vrot.lane.b32.xlu0 %v876, 120
      %v927 = vpop.permute.xlu0 %926
      %928 = vrot.lane.b32.xlu0 %v877, 120
      %v929 = vpop.permute.xlu0 %928
      %930 = vrot.lane.b32.xlu0 %v878, 120
      %v931 = vpop.permute.xlu0 %930
      %932 = vrot.lane.b32.xlu0 %v879, 120
      %v933 = vpop.permute.xlu0 %932
      %934 = vrot.lane.b32.xlu0 %v880, 120
      %v935 = vpop.permute.xlu0 %934
      %936 = vrot.lane.b32.xlu0 %v881, 120
      %v937 = vpop.permute.xlu0 %936
      %v946 = vsel %vm524, %v891, %v923
      %v947 = vsel %vm524, %v893, %v925
      %v948 = vsel %vm524, %v895, %v927
      %v949 = vsel %vm524, %v897, %v929
      %v950 = vsel %vm524, %v899, %v931
      %v951 = vsel %vm524, %v901, %v933
      %v952 = vsel %vm524, %v903, %v935
      %v953 = vsel %vm524, %v905, %v937
      %vm954 = vcmask 130048
      %v955 = vsel %vm954, %v946, %v923
      %v956 = vsel %vm954, %v947, %v925
      %v957 = vsel %vm954, %v948, %v927
      %v958 = vsel %vm954, %v949, %v929
      %v959 = vsel %vm954, %v950, %v931
      %v960 = vsel %vm954, %v951, %v933
      %v961 = vsel %vm954, %v952, %v935
      %v962 = vsel %vm954, %v953, %v937
      %v963 = vld [vmem:[%s654] sm:$0xff]
      %v964 = vld [vmem:[%s654 + $0x8] sm:$0xff]
      %v965 = vld [vmem:[%s654 + $0x18] sm:$0xff]
      %v966 = vld [vmem:[%s654 + $0x20] sm:$0xff]
      %v967 = vld [vmem:[%s654 + $0x30] sm:$0xff]
      %v968 = vld [vmem:[%s654 + $0x38] sm:$0xff]
      %v969 = vld [vmem:[%s654 + $0x48] sm:$0xff]
      %v970 = vld [vmem:[%s654 + $0x50] sm:$0xff]
      %v971 = vld [vmem:[%s654 + $0x1] sm:$0xff]
      %v972 = vld [vmem:[%s654 + $0x9] sm:$0xff]
      %v973 = vld [vmem:[%s654 + $0x19] sm:$0xff]
      %v974 = vld [vmem:[%s654 + $0x21] sm:$0xff]
      %v975 = vld [vmem:[%s654 + $0x31] sm:$0xff]
      %v976 = vld [vmem:[%s654 + $0x39] sm:$0xff]
      %v977 = vld [vmem:[%s654 + $0x49] sm:$0xff]
      %v978 = vld [vmem:[%s654 + $0x51] sm:$0xff]
      %987 = vrot.lane.b32.xlu0 %v963, 120
      %v988 = vpop.permute.xlu0 %987
      %989 = vrot.lane.b32.xlu0 %v964, 120
      %v990 = vpop.permute.xlu0 %989
      %991 = vrot.lane.b32.xlu0 %v965, 120
      %v992 = vpop.permute.xlu0 %991
      %993 = vrot.lane.b32.xlu0 %v966, 120
      %v994 = vpop.permute.xlu0 %993
      %995 = vrot.lane.b32.xlu0 %v967, 120
      %v996 = vpop.permute.xlu0 %995
      %997 = vrot.lane.b32.xlu0 %v968, 120
      %v998 = vpop.permute.xlu0 %997
      %999 = vrot.lane.b32.xlu0 %v969, 120
      %v1000 = vpop.permute.xlu0 %999
      %1001 = vrot.lane.b32.xlu0 %v970, 120
      %v1002 = vpop.permute.xlu0 %1001
      %1019 = vrot.lane.b32.xlu0 %v971, 8
      %v1020 = vpop.permute.xlu0 %1019
      %1021 = vrot.lane.b32.xlu0 %v972, 8
      %v1022 = vpop.permute.xlu0 %1021
      %1023 = vrot.lane.b32.xlu0 %v973, 8
      %v1024 = vpop.permute.xlu0 %1023
      %1025 = vrot.lane.b32.xlu0 %v974, 8
      %v1026 = vpop.permute.xlu0 %1025
      %1027 = vrot.lane.b32.xlu0 %v975, 8
      %v1028 = vpop.permute.xlu0 %1027
      %1029 = vrot.lane.b32.xlu0 %v976, 8
      %v1030 = vpop.permute.xlu0 %1029
      %1031 = vrot.lane.b32.xlu0 %v977, 8
      %v1032 = vpop.permute.xlu0 %1031
      %1033 = vrot.lane.b32.xlu0 %v978, 8
      %v1034 = vpop.permute.xlu0 %1033
      %v1043 = vsel %vm524, %v988, %v1020
      %v1044 = vsel %vm524, %v990, %v1022
      %v1045 = vsel %vm524, %v992, %v1024
      %v1046 = vsel %vm524, %v994, %v1026
      %v1047 = vsel %vm524, %v996, %v1028
      %v1048 = vsel %vm524, %v998, %v1030
      %v1049 = vsel %vm524, %v1000, %v1032
      %v1050 = vsel %vm524, %v1002, %v1034
      %v1051 = vsel %vm954, %v1043, %v1020
      %v1052 = vsel %vm954, %v1044, %v1022
      %v1053 = vsel %vm954, %v1045, %v1024
      %v1054 = vsel %vm954, %v1046, %v1026
      %v1055 = vsel %vm954, %v1047, %v1028
      %v1056 = vsel %vm954, %v1048, %v1030
      %v1057 = vsel %vm954, %v1049, %v1032
      %v1058 = vsel %vm954, %v1050, %v1034
      %vm1059 = vcmask 195584
      %v1061 = vsel %vm1059, %v1051, 0
      %v1064 = vsel %vm1059, %v1052, 0
      %v1067 = vsel %vm1059, %v1053, 0
      %v1070 = vsel %vm1059, %v1054, 0
      %v1073 = vsel %vm1059, %v1055, 0
      %v1076 = vsel %vm1059, %v1056, 0
      %v1079 = vsel %vm1059, %v1057, 0
      %v1082 = vsel %vm1059, %v1058, 0
      %1084 = vmatprep.subr.mxu0 0.0
      %1085 = vmatpush1.msra.mxu0 0.0
      %1086 = vmatprep.subr.mxu0 0.0
      %1087 = vmatpush1.msra.mxu0 0.0
      %1088 = vmatprep.subr.mxu0 0.0
      %1089 = vmatpush1.msra.mxu0 0.0
      %1090 = vmatprep.subr.mxu0 0.0
      %1091 = vmatpush1.msra.mxu0 0.0
      %1092 = vmatprep.subr.mxu0 0.0
      %1093 = vmatpush1.msra.mxu0 0.0
      %1094 = vmatprep.subr.mxu0 0.0
      %1095 = vmatpush1.msra.mxu0 0.0
      %1096 = vmatprep.subr.mxu0 0.0
      %1097 = vmatpush1.msra.mxu0 0.0
      %1098 = vmatprep.subr.mxu0 0.0
      %1099 = vmatpush1.msra.mxu0 0.0
      %1100 = vmatprep.subr.mxu0 0.0
      %1101 = vmatpush1.msra.mxu0 0.0
      %1102 = vmatprep.subr.mxu0 0.0
      %1103 = vmatpush1.msra.mxu0 0.0
      %1104 = vmatprep.subr.mxu0 0.0
      %1105 = vmatpush1.msra.mxu0 0.0
      %1106 = vmatprep.subr.mxu0 0.0
      %1107 = vmatpush1.msra.mxu0 0.0
      %1108 = vmatprep.subr.mxu0 0.0
      %1109 = vmatpush1.msra.mxu0 0.0
      %1110 = vmatprep.subr.mxu0 0.0
      %1111 = vmatpush1.msra.mxu0 %v862
      %1112 = vmatprep.subr.mxu0 0.0
      %1113 = vmatpush1.msra.mxu0 %v861
      %1114 = vmatprep.subr.mxu0 0.0
      %1115 = vmatpush1.msra.mxu0 %v860
      %1116 = vmatprep.subr.mxu0 0.0
      %1117 = vmatpush2.msra.mxu0 0.0
      %1118 = vmatprep.subr.mxu0 0.0
      %1119 = vmatpush2.msra.mxu0 0.0
      %1120 = vmatprep.subr.mxu0 0.0
      %1121 = vmatpush2.msra.mxu0 0.0
      %1122 = vmatprep.subr.mxu0 0.0
      %1123 = vmatpush2.msra.mxu0 0.0
      %1124 = vmatprep.subr.mxu0 0.0
      %1125 = vmatpush2.msra.mxu0 0.0
      %1126 = vmatprep.subr.mxu0 0.0
      %1127 = vmatpush2.msra.mxu0 0.0
      %1128 = vmatprep.subr.mxu0 0.0
      %1129 = vmatpush2.msra.mxu0 0.0
      %1130 = vmatprep.subr.mxu0 0.0
      %1131 = vmatpush2.msra.mxu0 0.0
      %1132 = vmatprep.subr.mxu0 0.0
      %1133 = vmatpush2.msra.mxu0 0.0
      %1134 = vmatprep.subr.mxu0 0.0
      %1135 = vmatpush2.msra.mxu0 0.0
      %1136 = vmatprep.subr.mxu0 0.0
      %1137 = vmatpush2.msra.mxu0 0.0
      %1138 = vmatprep.subr.mxu0 0.0
      %1139 = vmatpush2.msra.mxu0 0.0
      %1140 = vmatprep.subr.mxu0 0.0
      %1141 = vmatpush2.msra.mxu0 0.0
      %1142 = vmatprep.subr.mxu0 0.0
      %1143 = vmatpush2.msra.mxu0 0.0
      %1144 = vmatprep.subr.mxu0 0.0
      %1145 = vmatpush2.msra.mxu0 0.0
      %1146 = vmatprep.subr.mxu0 0.0
      %1147 = vmatpush2.msra.mxu0 0.0
      %1148 = vmatprep.mubr.f32.mxu0 0.0
      %1149 = vmatmul.mubr.f32.gmra.mxu0 %v1061
      %v1150 = vpop.f32.mrf.mxu0
      %v1151 = vadd.f32 0.0, %v1150
      %v1152 = vpop.f32.mrf.mxu0
      %1153 = vmatprep.mubr.f32.mxu0 0.0
      %1154 = vmatmul.mubr.f32.gmra.mxu0 %v1064
      %v1155 = vpop.f32.mrf.mxu0
      %v1156 = vadd.f32 0.0, %v1155
      %v1157 = vpop.f32.mrf.mxu0
      %1158 = vmatprep.mubr.f32.mxu0 0.0
      %1159 = vmatmul.mubr.f32.gmra.mxu0 %v1067
      %v1160 = vpop.f32.mrf.mxu0
      %v1161 = vadd.f32 0.0, %v1160
      %v1162 = vpop.f32.mrf.mxu0
      %1163 = vmatprep.mubr.f32.mxu0 0.0
      %1164 = vmatmul.mubr.f32.gmra.mxu0 %v1070
      %v1165 = vpop.f32.mrf.mxu0
      %v1166 = vadd.f32 0.0, %v1165
      %v1167 = vpop.f32.mrf.mxu0
      %1168 = vmatprep.mubr.f32.mxu0 0.0
      %1169 = vmatmul.mubr.f32.gmra.mxu0 %v1073
      %v1170 = vpop.f32.mrf.mxu0
      %v1171 = vadd.f32 0.0, %v1170
      %v1172 = vpop.f32.mrf.mxu0
      %1173 = vmatprep.mubr.f32.mxu0 0.0
      %1174 = vmatmul.mubr.f32.gmra.mxu0 %v1076
      %v1175 = vpop.f32.mrf.mxu0
      %v1176 = vadd.f32 0.0, %v1175
      %v1177 = vpop.f32.mrf.mxu0
      %1178 = vmatprep.mubr.f32.mxu0 0.0
      %1179 = vmatmul.mubr.f32.gmra.mxu0 %v1079
      %v1180 = vpop.f32.mrf.mxu0
      %v1181 = vadd.f32 0.0, %v1180
      %v1182 = vpop.f32.mrf.mxu0
      %1183 = vmatprep.mubr.f32.mxu0 0.0
      %1184 = vmatmul.mubr.f32.gmra.mxu0 %v1082
      %v1185 = vpop.f32.mrf.mxu0
      %v1186 = vadd.f32 0.0, %v1185
      %v1187 = vpop.f32.mrf.mxu0
      %1188 = vdwg.mxu0
      %v1190 = vsel %vm1059, %v955, 0
      %v1193 = vsel %vm1059, %v956, 0
      %v1196 = vsel %vm1059, %v957, 0
      %v1199 = vsel %vm1059, %v958, 0
      %v1202 = vsel %vm1059, %v959, 0
      %v1205 = vsel %vm1059, %v960, 0
      %v1208 = vsel %vm1059, %v961, 0
      %v1211 = vsel %vm1059, %v962, 0
      %1213 = vmatprep.subr.mxu0 0.0
      %1214 = vmatpush1.msra.mxu0 0.0
      %1215 = vmatprep.subr.mxu0 0.0
      %1216 = vmatpush1.msra.mxu0 0.0
      %1217 = vmatprep.subr.mxu0 0.0
      %1218 = vmatpush1.msra.mxu0 0.0
      %1219 = vmatprep.subr.mxu0 0.0
      %1220 = vmatpush1.msra.mxu0 0.0
      %1221 = vmatprep.subr.mxu0 0.0
      %1222 = vmatpush1.msra.mxu0 0.0
      %1223 = vmatprep.subr.mxu0 0.0
      %1224 = vmatpush1.msra.mxu0 0.0
      %1225 = vmatprep.subr.mxu0 0.0
      %1226 = vmatpush1.msra.mxu0 0.0
      %1227 = vmatprep.subr.mxu0 0.0
      %1228 = vmatpush1.msra.mxu0 0.0
      %1229 = vmatprep.subr.mxu0 0.0
      %1230 = vmatpush1.msra.mxu0 0.0
      %1231 = vmatprep.subr.mxu0 0.0
      %1232 = vmatpush1.msra.mxu0 0.0
      %1233 = vmatprep.subr.mxu0 0.0
      %1234 = vmatpush1.msra.mxu0 0.0
      %1235 = vmatprep.subr.mxu0 0.0
      %1236 = vmatpush1.msra.mxu0 0.0
      %1237 = vmatprep.subr.mxu0 0.0
      %1238 = vmatpush1.msra.mxu0 0.0
      %1239 = vmatprep.subr.mxu0 0.0
      %1240 = vmatpush1.msra.mxu0 %v859
      %1241 = vmatprep.subr.mxu0 0.0
      %1242 = vmatpush1.msra.mxu0 %v858
      %1243 = vmatprep.subr.mxu0 0.0
      %1244 = vmatpush1.msra.mxu0 %v857
      %1245 = vmatprep.subr.mxu0 0.0
      %1246 = vmatpush2.msra.mxu0 0.0
      %1247 = vmatprep.subr.mxu0 0.0
      %1248 = vmatpush2.msra.mxu0 0.0
      %1249 = vmatprep.subr.mxu0 0.0
      %1250 = vmatpush2.msra.mxu0 0.0
      %1251 = vmatprep.subr.mxu0 0.0
      %1252 = vmatpush2.msra.mxu0 0.0
      %1253 = vmatprep.subr.mxu0 0.0
      %1254 = vmatpush2.msra.mxu0 0.0
      %1255 = vmatprep.subr.mxu0 0.0
      %1256 = vmatpush2.msra.mxu0 0.0
      %1257 = vmatprep.subr.mxu0 0.0
      %1258 = vmatpush2.msra.mxu0 0.0
      %1259 = vmatprep.subr.mxu0 0.0
      %1260 = vmatpush2.msra.mxu0 0.0
      %1261 = vmatprep.subr.mxu0 0.0
      %1262 = vmatpush2.msra.mxu0 0.0
      %1263 = vmatprep.subr.mxu0 0.0
      %1264 = vmatpush2.msra.mxu0 0.0
      %1265 = vmatprep.subr.mxu0 0.0
      %1266 = vmatpush2.msra.mxu0 0.0
      %1267 = vmatprep.subr.mxu0 0.0
      %1268 = vmatpush2.msra.mxu0 0.0
      %1269 = vmatprep.subr.mxu0 0.0
      %1270 = vmatpush2.msra.mxu0 0.0
      %1271 = vmatprep.subr.mxu0 0.0
      %1272 = vmatpush2.msra.mxu0 0.0
      %1273 = vmatprep.subr.mxu0 0.0
      %1274 = vmatpush2.msra.mxu0 0.0
      %1275 = vmatprep.subr.mxu0 0.0
      %1276 = vmatpush2.msra.mxu0 0.0
      %1277 = vmatprep.mubr.f32.mxu0 0.0
      %1278 = vmatmul.mubr.f32.gmra.mxu0 %v1190
      %v1279 = vpop.f32.mrf.mxu0
      %v1280 = vadd.f32 %v1151, %v1279
      %v1281 = vpop.f32.mrf.mxu0
      %1282 = vmatprep.mubr.f32.mxu0 0.0
      %1283 = vmatmul.mubr.f32.gmra.mxu0 %v1193
      %v1284 = vpop.f32.mrf.mxu0
      %v1285 = vadd.f32 %v1156, %v1284
      %v1286 = vpop.f32.mrf.mxu0
      %1287 = vmatprep.mubr.f32.mxu0 0.0
      %1288 = vmatmul.mubr.f32.gmra.mxu0 %v1196
      %v1289 = vpop.f32.mrf.mxu0
      %v1290 = vadd.f32 %v1161, %v1289
      %v1291 = vpop.f32.mrf.mxu0
      %1292 = vmatprep.mubr.f32.mxu0 0.0
      %1293 = vmatmul.mubr.f32.gmra.mxu0 %v1199
      %v1294 = vpop.f32.mrf.mxu0
      %v1295 = vadd.f32 %v1166, %v1294
      %v1296 = vpop.f32.mrf.mxu0
      %1297 = vmatprep.mubr.f32.mxu0 0.0
      %1298 = vmatmul.mubr.f32.gmra.mxu0 %v1202
      %v1299 = vpop.f32.mrf.mxu0
      %v1300 = vadd.f32 %v1171, %v1299
      %v1301 = vpop.f32.mrf.mxu0
      %1302 = vmatprep.mubr.f32.mxu0 0.0
      %1303 = vmatmul.mubr.f32.gmra.mxu0 %v1205
      %v1304 = vpop.f32.mrf.mxu0
      %v1305 = vadd.f32 %v1176, %v1304
      %v1306 = vpop.f32.mrf.mxu0
      %1307 = vmatprep.mubr.f32.mxu0 0.0
      %1308 = vmatmul.mubr.f32.gmra.mxu0 %v1208
      %v1309 = vpop.f32.mrf.mxu0
      %v1310 = vadd.f32 %v1181, %v1309
      %v1311 = vpop.f32.mrf.mxu0
      %1312 = vmatprep.mubr.f32.mxu0 0.0
      %1313 = vmatmul.mubr.f32.gmra.mxu0 %v1211
      %v1314 = vpop.f32.mrf.mxu0
      %v1315 = vadd.f32 %v1186, %v1314
      %v1316 = vpop.f32.mrf.mxu0
      %1317 = vdwg.mxu0
      %1318 = vrot.lane.b32.xlu0 %v963, 104
      %v1319 = vpop.permute.xlu0 %1318
      %1320 = vrot.lane.b32.xlu0 %v964, 104
      %v1321 = vpop.permute.xlu0 %1320
      %1322 = vrot.lane.b32.xlu0 %v965, 104
      %v1323 = vpop.permute.xlu0 %1322
      %1324 = vrot.lane.b32.xlu0 %v966, 104
      %v1325 = vpop.permute.xlu0 %1324
      %1326 = vrot.lane.b32.xlu0 %v967, 104
      %v1327 = vpop.permute.xlu0 %1326
      %1328 = vrot.lane.b32.xlu0 %v968, 104
      %v1329 = vpop.permute.xlu0 %1328
      %1330 = vrot.lane.b32.xlu0 %v969, 104
      %v1331 = vpop.permute.xlu0 %1330
      %1332 = vrot.lane.b32.xlu0 %v970, 104
      %v1333 = vpop.permute.xlu0 %1332
      %1342 = vrot.lane.b32.xlu0 %v971, 120
      %v1343 = vpop.permute.xlu0 %1342
      %1344 = vrot.lane.b32.xlu0 %v972, 120
      %v1345 = vpop.permute.xlu0 %1344
      %1346 = vrot.lane.b32.xlu0 %v973, 120
      %v1347 = vpop.permute.xlu0 %1346
      %1348 = vrot.lane.b32.xlu0 %v974, 120
      %v1349 = vpop.permute.xlu0 %1348
      %1350 = vrot.lane.b32.xlu0 %v975, 120
      %v1351 = vpop.permute.xlu0 %1350
      %1352 = vrot.lane.b32.xlu0 %v976, 120
      %v1353 = vpop.permute.xlu0 %1352
      %1354 = vrot.lane.b32.xlu0 %v977, 120
      %v1355 = vpop.permute.xlu0 %1354
      %1356 = vrot.lane.b32.xlu0 %v978, 120
      %v1357 = vpop.permute.xlu0 %1356
      %v1366 = vsel %vm524, %v1319, %v1343
      %v1367 = vsel %vm524, %v1321, %v1345
      %v1368 = vsel %vm524, %v1323, %v1347
      %v1369 = vsel %vm524, %v1325, %v1349
      %v1370 = vsel %vm524, %v1327, %v1351
      %v1371 = vsel %vm524, %v1329, %v1353
      %v1372 = vsel %vm524, %v1331, %v1355
      %v1373 = vsel %vm524, %v1333, %v1357
      %v1374 = vsel %vm954, %v1366, %v1343
      %v1375 = vsel %vm954, %v1367, %v1345
      %v1376 = vsel %vm954, %v1368, %v1347
      %v1377 = vsel %vm954, %v1369, %v1349
      %v1378 = vsel %vm954, %v1370, %v1351
      %v1379 = vsel %vm954, %v1371, %v1353
      %v1380 = vsel %vm954, %v1372, %v1355
      %v1381 = vsel %vm954, %v1373, %v1357
      %v1383 = vsel %vm1059, %v1374, 0
      %v1386 = vsel %vm1059, %v1375, 0
      %v1389 = vsel %vm1059, %v1376, 0
      %v1392 = vsel %vm1059, %v1377, 0
      %v1395 = vsel %vm1059, %v1378, 0
      %v1398 = vsel %vm1059, %v1379, 0
      %v1401 = vsel %vm1059, %v1380, 0
      %v1404 = vsel %vm1059, %v1381, 0
      %1406 = vmatprep.subr.mxu0 0.0
      %1407 = vmatpush1.msra.mxu0 0.0
      %1408 = vmatprep.subr.mxu0 0.0
      %1409 = vmatpush1.msra.mxu0 0.0
      %1410 = vmatprep.subr.mxu0 0.0
      %1411 = vmatpush1.msra.mxu0 0.0
      %1412 = vmatprep.subr.mxu0 0.0
      %1413 = vmatpush1.msra.mxu0 0.0
      %1414 = vmatprep.subr.mxu0 0.0
      %1415 = vmatpush1.msra.mxu0 0.0
      %1416 = vmatprep.subr.mxu0 0.0
      %1417 = vmatpush1.msra.mxu0 0.0
      %1418 = vmatprep.subr.mxu0 0.0
      %1419 = vmatpush1.msra.mxu0 0.0
      %1420 = vmatprep.subr.mxu0 0.0
      %1421 = vmatpush1.msra.mxu0 0.0
      %1422 = vmatprep.subr.mxu0 0.0
      %1423 = vmatpush1.msra.mxu0 0.0
      %1424 = vmatprep.subr.mxu0 0.0
      %1425 = vmatpush1.msra.mxu0 0.0
      %1426 = vmatprep.subr.mxu0 0.0
      %1427 = vmatpush1.msra.mxu0 0.0
      %1428 = vmatprep.subr.mxu0 0.0
      %1429 = vmatpush1.msra.mxu0 0.0
      %1430 = vmatprep.subr.mxu0 0.0
      %1431 = vmatpush1.msra.mxu0 0.0
      %1432 = vmatprep.subr.mxu0 0.0
      %1433 = vmatpush1.msra.mxu0 %v865
      %1434 = vmatprep.subr.mxu0 0.0
      %1435 = vmatpush1.msra.mxu0 %v864
      %1436 = vmatprep.subr.mxu0 0.0
      %1437 = vmatpush1.msra.mxu0 %v863
      %1438 = vmatprep.subr.mxu0 0.0
      %1439 = vmatpush2.msra.mxu0 0.0
      %1440 = vmatprep.subr.mxu0 0.0
      %1441 = vmatpush2.msra.mxu0 0.0
      %1442 = vmatprep.subr.mxu0 0.0
      %1443 = vmatpush2.msra.mxu0 0.0
      %1444 = vmatprep.subr.mxu0 0.0
      %1445 = vmatpush2.msra.mxu0 0.0
      %1446 = vmatprep.subr.mxu0 0.0
      %1447 = vmatpush2.msra.mxu0 0.0
      %1448 = vmatprep.subr.mxu0 0.0
      %1449 = vmatpush2.msra.mxu0 0.0
      %1450 = vmatprep.subr.mxu0 0.0
      %1451 = vmatpush2.msra.mxu0 0.0
      %1452 = vmatprep.subr.mxu0 0.0
      %1453 = vmatpush2.msra.mxu0 0.0
      %1454 = vmatprep.subr.mxu0 0.0
      %1455 = vmatpush2.msra.mxu0 0.0
      %1456 = vmatprep.subr.mxu0 0.0
      %1457 = vmatpush2.msra.mxu0 0.0
      %1458 = vmatprep.subr.mxu0 0.0
      %1459 = vmatpush2.msra.mxu0 0.0
      %1460 = vmatprep.subr.mxu0 0.0
      %1461 = vmatpush2.msra.mxu0 0.0
      %1462 = vmatprep.subr.mxu0 0.0
      %1463 = vmatpush2.msra.mxu0 0.0
      %1464 = vmatprep.subr.mxu0 0.0
      %1465 = vmatpush2.msra.mxu0 0.0
      %1466 = vmatprep.subr.mxu0 0.0
      %1467 = vmatpush2.msra.mxu0 0.0
      %1468 = vmatprep.subr.mxu0 0.0
      %1469 = vmatpush2.msra.mxu0 0.0
      %1470 = vmatprep.mubr.f32.mxu0 0.0
      %1471 = vmatmul.mubr.f32.gmra.mxu0 %v1383
      %v1472 = vpop.f32.mrf.mxu0
      %v1473 = vadd.f32 0.0, %v1472
      %v1474 = vpop.f32.mrf.mxu0
      %1475 = vmatprep.mubr.f32.mxu0 0.0
      %1476 = vmatmul.mubr.f32.gmra.mxu0 %v1386
      %v1477 = vpop.f32.mrf.mxu0
      %v1478 = vadd.f32 0.0, %v1477
      %v1479 = vpop.f32.mrf.mxu0
      %1480 = vmatprep.mubr.f32.mxu0 0.0
      %1481 = vmatmul.mubr.f32.gmra.mxu0 %v1389
      %v1482 = vpop.f32.mrf.mxu0
      %v1483 = vadd.f32 0.0, %v1482
      %v1484 = vpop.f32.mrf.mxu0
      %1485 = vmatprep.mubr.f32.mxu0 0.0
      %1486 = vmatmul.mubr.f32.gmra.mxu0 %v1392
      %v1487 = vpop.f32.mrf.mxu0
      %v1488 = vadd.f32 0.0, %v1487
      %v1489 = vpop.f32.mrf.mxu0
      %1490 = vmatprep.mubr.f32.mxu0 0.0
      %1491 = vmatmul.mubr.f32.gmra.mxu0 %v1395
      %v1492 = vpop.f32.mrf.mxu0
      %v1493 = vadd.f32 0.0, %v1492
      %v1494 = vpop.f32.mrf.mxu0
      %1495 = vmatprep.mubr.f32.mxu0 0.0
      %1496 = vmatmul.mubr.f32.gmra.mxu0 %v1398
      %v1497 = vpop.f32.mrf.mxu0
      %v1498 = vadd.f32 0.0, %v1497
      %v1499 = vpop.f32.mrf.mxu0
      %1500 = vmatprep.mubr.f32.mxu0 0.0
      %1501 = vmatmul.mubr.f32.gmra.mxu0 %v1401
      %v1502 = vpop.f32.mrf.mxu0
      %v1503 = vadd.f32 0.0, %v1502
      %v1504 = vpop.f32.mrf.mxu0
      %1505 = vmatprep.mubr.f32.mxu0 0.0
      %1506 = vmatmul.mubr.f32.gmra.mxu0 %v1404
      %v1507 = vpop.f32.mrf.mxu0
      %v1508 = vadd.f32 0.0, %v1507
      %v1509 = vpop.f32.mrf.mxu0
      %1510 = vdwg.mxu0
      %v1511 = vadd.f32 %v1280, %v1473
      %v1512 = vadd.f32 %v1285, %v1478
      %v1513 = vadd.f32 %v1290, %v1483
      %v1514 = vadd.f32 %v1295, %v1488
      %v1515 = vadd.f32 %v1300, %v1493
      %v1516 = vadd.f32 %v1305, %v1498
      %v1517 = vadd.f32 %v1310, %v1503
      %v1518 = vadd.f32 %v1315, %v1508
      %v1520 = vlaneseq
      %v1521 = vshrl.u32 %v1520, 7
      %v1522 = vsub.s32 0, %v1521
      %v1523 = vrot.slane %v856, %v1522
      %v1525 = vadd.f32 %v1511, %v1523
      %v1526 = vadd.f32 %v1512, %v1523
      %v1527 = vadd.f32 %v1513, %v1523
      %v1528 = vadd.f32 %v1514, %v1523
      %v1529 = vadd.f32 %v1515, %v1523
      %v1530 = vadd.f32 %v1516, %v1523
      %v1531 = vadd.f32 %v1517, %v1523
      %v1532 = vadd.f32 %v1518, %v1523
      %v1533 = vld [vmem:[#allocation2 + $0x2] sm:$0xff]
      %v1534 = vld [vmem:[#allocation2 + $0xa] sm:$0xff]
      %v1535 = vld [vmem:[#allocation2 + $0x1a] sm:$0xff]
      %v1536 = vld [vmem:[#allocation2 + $0x22] sm:$0xff]
      %v1537 = vld [vmem:[#allocation2 + $0x32] sm:$0xff]
      %v1538 = vld [vmem:[#allocation2 + $0x3a] sm:$0xff]
      %v1539 = vld [vmem:[#allocation2 + $0x4a] sm:$0xff]
      %v1540 = vld [vmem:[#allocation2 + $0x52] sm:$0xff]
      %1541 = vrot.lane.b32.xlu0 %v874, 112
      %v1542 = vpop.permute.xlu0 %1541
      %1543 = vrot.lane.b32.xlu0 %v875, 112
      %v1544 = vpop.permute.xlu0 %1543
      %1545 = vrot.lane.b32.xlu0 %v876, 112
      %v1546 = vpop.permute.xlu0 %1545
      %1547 = vrot.lane.b32.xlu0 %v877, 112
      %v1548 = vpop.permute.xlu0 %1547
      %1549 = vrot.lane.b32.xlu0 %v878, 112
      %v1550 = vpop.permute.xlu0 %1549
      %1551 = vrot.lane.b32.xlu0 %v879, 112
      %v1552 = vpop.permute.xlu0 %1551
      %1553 = vrot.lane.b32.xlu0 %v880, 112
      %v1554 = vpop.permute.xlu0 %1553
      %1555 = vrot.lane.b32.xlu0 %v881, 112
      %v1556 = vpop.permute.xlu0 %1555
      %v1565 = vsel %vm954, %v1542, %v1533
      %v1566 = vsel %vm954, %v1544, %v1534
      %v1567 = vsel %vm954, %v1546, %v1535
      %v1568 = vsel %vm954, %v1548, %v1536
      %v1569 = vsel %vm954, %v1550, %v1537
      %v1570 = vsel %vm954, %v1552, %v1538
      %v1571 = vsel %vm954, %v1554, %v1539
      %v1572 = vsel %vm954, %v1556, %v1540
      %v1573 = vld [vmem:[%s654 + $0x2] sm:$0xff]
      %v1574 = vld [vmem:[%s654 + $0xa] sm:$0xff]
      %v1575 = vld [vmem:[%s654 + $0x1a] sm:$0xff]
      %v1576 = vld [vmem:[%s654 + $0x22] sm:$0xff]
      %v1577 = vld [vmem:[%s654 + $0x32] sm:$0xff]
      %v1578 = vld [vmem:[%s654 + $0x3a] sm:$0xff]
      %v1579 = vld [vmem:[%s654 + $0x4a] sm:$0xff]
      %v1580 = vld [vmem:[%s654 + $0x52] sm:$0xff]
      %1589 = vrot.lane.b32.xlu0 %v1573, 16
      %v1590 = vpop.permute.xlu0 %1589
      %1591 = vrot.lane.b32.xlu0 %v1574, 16
      %v1592 = vpop.permute.xlu0 %1591
      %1593 = vrot.lane.b32.xlu0 %v1575, 16
      %v1594 = vpop.permute.xlu0 %1593
      %1595 = vrot.lane.b32.xlu0 %v1576, 16
      %v1596 = vpop.permute.xlu0 %1595
      %1597 = vrot.lane.b32.xlu0 %v1577, 16
      %v1598 = vpop.permute.xlu0 %1597
      %1599 = vrot.lane.b32.xlu0 %v1578, 16
      %v1600 = vpop.permute.xlu0 %1599
      %1601 = vrot.lane.b32.xlu0 %v1579, 16
      %v1602 = vpop.permute.xlu0 %1601
      %1603 = vrot.lane.b32.xlu0 %v1580, 16
      %v1604 = vpop.permute.xlu0 %1603
      %v1613 = vsel %vm954, %v971, %v1590
      %v1614 = vsel %vm954, %v972, %v1592
      %v1615 = vsel %vm954, %v973, %v1594
      %v1616 = vsel %vm954, %v974, %v1596
      %v1617 = vsel %vm954, %v975, %v1598
      %v1618 = vsel %vm954, %v976, %v1600
      %v1619 = vsel %vm954, %v977, %v1602
      %v1620 = vsel %vm954, %v978, %v1604
      %v1622 = vsel %vm1059, %v1613, 0
      %v1625 = vsel %vm1059, %v1614, 0
      %v1628 = vsel %vm1059, %v1615, 0
      %v1631 = vsel %vm1059, %v1616, 0
      %v1634 = vsel %vm1059, %v1617, 0
      %v1637 = vsel %vm1059, %v1618, 0
      %v1640 = vsel %vm1059, %v1619, 0
      %v1643 = vsel %vm1059, %v1620, 0
      %1645 = vmatprep.subr.mxu0 0.0
      %1646 = vmatpush1.msra.mxu0 0.0
      %1647 = vmatprep.subr.mxu0 0.0
      %1648 = vmatpush1.msra.mxu0 0.0
      %1649 = vmatprep.subr.mxu0 0.0
      %1650 = vmatpush1.msra.mxu0 0.0
      %1651 = vmatprep.subr.mxu0 0.0
      %1652 = vmatpush1.msra.mxu0 0.0
      %1653 = vmatprep.subr.mxu0 0.0
      %1654 = vmatpush1.msra.mxu0 0.0
      %1655 = vmatprep.subr.mxu0 0.0
      %1656 = vmatpush1.msra.mxu0 0.0
      %1657 = vmatprep.subr.mxu0 0.0
      %1658 = vmatpush1.msra.mxu0 0.0
      %1659 = vmatprep.subr.mxu0 0.0
      %1660 = vmatpush1.msra.mxu0 0.0
      %1661 = vmatprep.subr.mxu0 0.0
      %1662 = vmatpush1.msra.mxu0 0.0
      %1663 = vmatprep.subr.mxu0 0.0
      %1664 = vmatpush1.msra.mxu0 0.0
      %1665 = vmatprep.subr.mxu0 0.0
      %1666 = vmatpush1.msra.mxu0 0.0
      %1667 = vmatprep.subr.mxu0 0.0
      %1668 = vmatpush1.msra.mxu0 0.0
      %1669 = vmatprep.subr.mxu0 0.0
      %1670 = vmatpush1.msra.mxu0 0.0
      %1671 = vmatprep.subr.mxu0 0.0
      %1672 = vmatpush1.msra.mxu0 %v862
      %1673 = vmatprep.subr.mxu0 0.0
      %1674 = vmatpush1.msra.mxu0 %v861
      %1675 = vmatprep.subr.mxu0 0.0
      %1676 = vmatpush1.msra.mxu0 %v860
      %1677 = vmatprep.subr.mxu0 0.0
      %1678 = vmatpush2.msra.mxu0 0.0
      %1679 = vmatprep.subr.mxu0 0.0
      %1680 = vmatpush2.msra.mxu0 0.0
      %1681 = vmatprep.subr.mxu0 0.0
      %1682 = vmatpush2.msra.mxu0 0.0
      %1683 = vmatprep.subr.mxu0 0.0
      %1684 = vmatpush2.msra.mxu0 0.0
      %1685 = vmatprep.subr.mxu0 0.0
      %1686 = vmatpush2.msra.mxu0 0.0
      %1687 = vmatprep.subr.mxu0 0.0
      %1688 = vmatpush2.msra.mxu0 0.0
      %1689 = vmatprep.subr.mxu0 0.0
      %1690 = vmatpush2.msra.mxu0 0.0
      %1691 = vmatprep.subr.mxu0 0.0
      %1692 = vmatpush2.msra.mxu0 0.0
      %1693 = vmatprep.subr.mxu0 0.0
      %1694 = vmatpush2.msra.mxu0 0.0
      %1695 = vmatprep.subr.mxu0 0.0
      %1696 = vmatpush2.msra.mxu0 0.0
      %1697 = vmatprep.subr.mxu0 0.0
      %1698 = vmatpush2.msra.mxu0 0.0
      %1699 = vmatprep.subr.mxu0 0.0
      %1700 = vmatpush2.msra.mxu0 0.0
      %1701 = vmatprep.subr.mxu0 0.0
      %1702 = vmatpush2.msra.mxu0 0.0
      %1703 = vmatprep.subr.mxu0 0.0
      %1704 = vmatpush2.msra.mxu0 0.0
      %1705 = vmatprep.subr.mxu0 0.0
      %1706 = vmatpush2.msra.mxu0 0.0
      %1707 = vmatprep.subr.mxu0 0.0
      %1708 = vmatpush2.msra.mxu0 0.0
      %1709 = vmatprep.mubr.f32.mxu0 0.0
      %1710 = vmatmul.mubr.f32.gmra.mxu0 %v1622
      %v1711 = vpop.f32.mrf.mxu0
      %v1712 = vadd.f32 0.0, %v1711
      %v1713 = vpop.f32.mrf.mxu0
      %1714 = vmatprep.mubr.f32.mxu0 0.0
      %1715 = vmatmul.mubr.f32.gmra.mxu0 %v1625
      %v1716 = vpop.f32.mrf.mxu0
      %v1717 = vadd.f32 0.0, %v1716
      %v1718 = vpop.f32.mrf.mxu0
      %1719 = vmatprep.mubr.f32.mxu0 0.0
      %1720 = vmatmul.mubr.f32.gmra.mxu0 %v1628
      %v1721 = vpop.f32.mrf.mxu0
      %v1722 = vadd.f32 0.0, %v1721
      %v1723 = vpop.f32.mrf.mxu0
      %1724 = vmatprep.mubr.f32.mxu0 0.0
      %1725 = vmatmul.mubr.f32.gmra.mxu0 %v1631
      %v1726 = vpop.f32.mrf.mxu0
      %v1727 = vadd.f32 0.0, %v1726
      %v1728 = vpop.f32.mrf.mxu0
      %1729 = vmatprep.mubr.f32.mxu0 0.0
      %1730 = vmatmul.mubr.f32.gmra.mxu0 %v1634
      %v1731 = vpop.f32.mrf.mxu0
      %v1732 = vadd.f32 0.0, %v1731
      %v1733 = vpop.f32.mrf.mxu0
      %1734 = vmatprep.mubr.f32.mxu0 0.0
      %1735 = vmatmul.mubr.f32.gmra.mxu0 %v1637
      %v1736 = vpop.f32.mrf.mxu0
      %v1737 = vadd.f32 0.0, %v1736
      %v1738 = vpop.f32.mrf.mxu0
      %1739 = vmatprep.mubr.f32.mxu0 0.0
      %1740 = vmatmul.mubr.f32.gmra.mxu0 %v1640
      %v1741 = vpop.f32.mrf.mxu0
      %v1742 = vadd.f32 0.0, %v1741
      %v1743 = vpop.f32.mrf.mxu0
      %1744 = vmatprep.mubr.f32.mxu0 0.0
      %1745 = vmatmul.mubr.f32.gmra.mxu0 %v1643
      %v1746 = vpop.f32.mrf.mxu0
      %v1747 = vadd.f32 0.0, %v1746
      %v1748 = vpop.f32.mrf.mxu0
      %1749 = vdwg.mxu0
      %v1751 = vsel %vm1059, %v1565, 0
      %v1754 = vsel %vm1059, %v1566, 0
      %v1757 = vsel %vm1059, %v1567, 0
      %v1760 = vsel %vm1059, %v1568, 0
      %v1763 = vsel %vm1059, %v1569, 0
      %v1766 = vsel %vm1059, %v1570, 0
      %v1769 = vsel %vm1059, %v1571, 0
      %v1772 = vsel %vm1059, %v1572, 0
      %1774 = vmatprep.subr.mxu0 0.0
      %1775 = vmatpush1.msra.mxu0 0.0
      %1776 = vmatprep.subr.mxu0 0.0
      %1777 = vmatpush1.msra.mxu0 0.0
      %1778 = vmatprep.subr.mxu0 0.0
      %1779 = vmatpush1.msra.mxu0 0.0
      %1780 = vmatprep.subr.mxu0 0.0
      %1781 = vmatpush1.msra.mxu0 0.0
      %1782 = vmatprep.subr.mxu0 0.0
      %1783 = vmatpush1.msra.mxu0 0.0
      %1784 = vmatprep.subr.mxu0 0.0
      %1785 = vmatpush1.msra.mxu0 0.0
      %1786 = vmatprep.subr.mxu0 0.0
      %1787 = vmatpush1.msra.mxu0 0.0
      %1788 = vmatprep.subr.mxu0 0.0
      %1789 = vmatpush1.msra.mxu0 0.0
      %1790 = vmatprep.subr.mxu0 0.0
      %1791 = vmatpush1.msra.mxu0 0.0
      %1792 = vmatprep.subr.mxu0 0.0
      %1793 = vmatpush1.msra.mxu0 0.0
      %1794 = vmatprep.subr.mxu0 0.0
      %1795 = vmatpush1.msra.mxu0 0.0
      %1796 = vmatprep.subr.mxu0 0.0
      %1797 = vmatpush1.msra.mxu0 0.0
      %1798 = vmatprep.subr.mxu0 0.0
      %1799 = vmatpush1.msra.mxu0 0.0
      %1800 = vmatprep.subr.mxu0 0.0
      %1801 = vmatpush1.msra.mxu0 %v859
      %1802 = vmatprep.subr.mxu0 0.0
      %1803 = vmatpush1.msra.mxu0 %v858
      %1804 = vmatprep.subr.mxu0 0.0
      %1805 = vmatpush1.msra.mxu0 %v857
      %1806 = vmatprep.subr.mxu0 0.0
      %1807 = vmatpush2.msra.mxu0 0.0
      %1808 = vmatprep.subr.mxu0 0.0
      %1809 = vmatpush2.msra.mxu0 0.0
      %1810 = vmatprep.subr.mxu0 0.0
      %1811 = vmatpush2.msra.mxu0 0.0
      %1812 = vmatprep.subr.mxu0 0.0
      %1813 = vmatpush2.msra.mxu0 0.0
      %1814 = vmatprep.subr.mxu0 0.0
      %1815 = vmatpush2.msra.mxu0 0.0
      %1816 = vmatprep.subr.mxu0 0.0
      %1817 = vmatpush2.msra.mxu0 0.0
      %1818 = vmatprep.subr.mxu0 0.0
      %1819 = vmatpush2.msra.mxu0 0.0
      %1820 = vmatprep.subr.mxu0 0.0
      %1821 = vmatpush2.msra.mxu0 0.0
      %1822 = vmatprep.subr.mxu0 0.0
      %1823 = vmatpush2.msra.mxu0 0.0
      %1824 = vmatprep.subr.mxu0 0.0
      %1825 = vmatpush2.msra.mxu0 0.0
      %1826 = vmatprep.subr.mxu0 0.0
      %1827 = vmatpush2.msra.mxu0 0.0
      %1828 = vmatprep.subr.mxu0 0.0
      %1829 = vmatpush2.msra.mxu0 0.0
      %1830 = vmatprep.subr.mxu0 0.0
      %1831 = vmatpush2.msra.mxu0 0.0
      %1832 = vmatprep.subr.mxu0 0.0
      %1833 = vmatpush2.msra.mxu0 0.0
      %1834 = vmatprep.subr.mxu0 0.0
      %1835 = vmatpush2.msra.mxu0 0.0
      %1836 = vmatprep.subr.mxu0 0.0
      %1837 = vmatpush2.msra.mxu0 0.0
      %1838 = vmatprep.mubr.f32.mxu0 0.0
      %1839 = vmatmul.mubr.f32.gmra.mxu0 %v1751
      %v1840 = vpop.f32.mrf.mxu0
      %v1841 = vadd.f32 %v1712, %v1840
      %v1842 = vpop.f32.mrf.mxu0
      %1843 = vmatprep.mubr.f32.mxu0 0.0
      %1844 = vmatmul.mubr.f32.gmra.mxu0 %v1754
      %v1845 = vpop.f32.mrf.mxu0
      %v1846 = vadd.f32 %v1717, %v1845
      %v1847 = vpop.f32.mrf.mxu0
      %1848 = vmatprep.mubr.f32.mxu0 0.0
      %1849 = vmatmul.mubr.f32.gmra.mxu0 %v1757
      %v1850 = vpop.f32.mrf.mxu0
      %v1851 = vadd.f32 %v1722, %v1850
      %v1852 = vpop.f32.mrf.mxu0
      %1853 = vmatprep.mubr.f32.mxu0 0.0
      %1854 = vmatmul.mubr.f32.gmra.mxu0 %v1760
      %v1855 = vpop.f32.mrf.mxu0
      %v1856 = vadd.f32 %v1727, %v1855
      %v1857 = vpop.f32.mrf.mxu0
      %1858 = vmatprep.mubr.f32.mxu0 0.0
      %1859 = vmatmul.mubr.f32.gmra.mxu0 %v1763
      %v1860 = vpop.f32.mrf.mxu0
      %v1861 = vadd.f32 %v1732, %v1860
      %v1862 = vpop.f32.mrf.mxu0
      %1863 = vmatprep.mubr.f32.mxu0 0.0
      %1864 = vmatmul.mubr.f32.gmra.mxu0 %v1766
      %v1865 = vpop.f32.mrf.mxu0
      %v1866 = vadd.f32 %v1737, %v1865
      %v1867 = vpop.f32.mrf.mxu0
      %1868 = vmatprep.mubr.f32.mxu0 0.0
      %1869 = vmatmul.mubr.f32.gmra.mxu0 %v1769
      %v1870 = vpop.f32.mrf.mxu0
      %v1871 = vadd.f32 %v1742, %v1870
      %v1872 = vpop.f32.mrf.mxu0
      %1873 = vmatprep.mubr.f32.mxu0 0.0
      %1874 = vmatmul.mubr.f32.gmra.mxu0 %v1772
      %v1875 = vpop.f32.mrf.mxu0
      %v1876 = vadd.f32 %v1747, %v1875
      %v1877 = vpop.f32.mrf.mxu0
      %1878 = vdwg.mxu0
      %1879 = vrot.lane.b32.xlu0 %v971, 112
      %v1880 = vpop.permute.xlu0 %1879
      %1881 = vrot.lane.b32.xlu0 %v972, 112
      %v1882 = vpop.permute.xlu0 %1881
      %1883 = vrot.lane.b32.xlu0 %v973, 112
      %v1884 = vpop.permute.xlu0 %1883
      %1885 = vrot.lane.b32.xlu0 %v974, 112
      %v1886 = vpop.permute.xlu0 %1885
      %1887 = vrot.lane.b32.xlu0 %v975, 112
      %v1888 = vpop.permute.xlu0 %1887
      %1889 = vrot.lane.b32.xlu0 %v976, 112
      %v1890 = vpop.permute.xlu0 %1889
      %1891 = vrot.lane.b32.xlu0 %v977, 112
      %v1892 = vpop.permute.xlu0 %1891
      %1893 = vrot.lane.b32.xlu0 %v978, 112
      %v1894 = vpop.permute.xlu0 %1893
      %v1903 = vsel %vm954, %v1880, %v1573
      %v1904 = vsel %vm954, %v1882, %v1574
      %v1905 = vsel %vm954, %v1884, %v1575
      %v1906 = vsel %vm954, %v1886, %v1576
      %v1907 = vsel %vm954, %v1888, %v1577
      %v1908 = vsel %vm954, %v1890, %v1578
      %v1909 = vsel %vm954, %v1892, %v1579
      %v1910 = vsel %vm954, %v1894, %v1580
      %v1912 = vsel %vm1059, %v1903, 0
      %v1915 = vsel %vm1059, %v1904, 0
      %v1918 = vsel %vm1059, %v1905, 0
      %v1921 = vsel %vm1059, %v1906, 0
      %v1924 = vsel %vm1059, %v1907, 0
      %v1927 = vsel %vm1059, %v1908, 0
      %v1930 = vsel %vm1059, %v1909, 0
      %v1933 = vsel %vm1059, %v1910, 0
      %1935 = vmatprep.subr.mxu0 0.0
      %1936 = vmatpush1.msra.mxu0 0.0
      %1937 = vmatprep.subr.mxu0 0.0
      %1938 = vmatpush1.msra.mxu0 0.0
      %1939 = vmatprep.subr.mxu0 0.0
      %1940 = vmatpush1.msra.mxu0 0.0
      %1941 = vmatprep.subr.mxu0 0.0
      %1942 = vmatpush1.msra.mxu0 0.0
      %1943 = vmatprep.subr.mxu0 0.0
      %1944 = vmatpush1.msra.mxu0 0.0
      %1945 = vmatprep.subr.mxu0 0.0
      %1946 = vmatpush1.msra.mxu0 0.0
      %1947 = vmatprep.subr.mxu0 0.0
      %1948 = vmatpush1.msra.mxu0 0.0
      %1949 = vmatprep.subr.mxu0 0.0
      %1950 = vmatpush1.msra.mxu0 0.0
      %1951 = vmatprep.subr.mxu0 0.0
      %1952 = vmatpush1.msra.mxu0 0.0
      %1953 = vmatprep.subr.mxu0 0.0
      %1954 = vmatpush1.msra.mxu0 0.0
      %1955 = vmatprep.subr.mxu0 0.0
      %1956 = vmatpush1.msra.mxu0 0.0
      %1957 = vmatprep.subr.mxu0 0.0
      %1958 = vmatpush1.msra.mxu0 0.0
      %1959 = vmatprep.subr.mxu0 0.0
      %1960 = vmatpush1.msra.mxu0 0.0
      %1961 = vmatprep.subr.mxu0 0.0
      %1962 = vmatpush1.msra.mxu0 %v865
      %1963 = vmatprep.subr.mxu0 0.0
      %1964 = vmatpush1.msra.mxu0 %v864
      %1965 = vmatprep.subr.mxu0 0.0
      %1966 = vmatpush1.msra.mxu0 %v863
      %1967 = vmatprep.subr.mxu0 0.0
      %1968 = vmatpush2.msra.mxu0 0.0
      %1969 = vmatprep.subr.mxu0 0.0
      %1970 = vmatpush2.msra.mxu0 0.0
      %1971 = vmatprep.subr.mxu0 0.0
      %1972 = vmatpush2.msra.mxu0 0.0
      %1973 = vmatprep.subr.mxu0 0.0
      %1974 = vmatpush2.msra.mxu0 0.0
      %1975 = vmatprep.subr.mxu0 0.0
      %1976 = vmatpush2.msra.mxu0 0.0
      %1977 = vmatprep.subr.mxu0 0.0
      %1978 = vmatpush2.msra.mxu0 0.0
      %1979 = vmatprep.subr.mxu0 0.0
      %1980 = vmatpush2.msra.mxu0 0.0
      %1981 = vmatprep.subr.mxu0 0.0
      %1982 = vmatpush2.msra.mxu0 0.0
      %1983 = vmatprep.subr.mxu0 0.0
      %1984 = vmatpush2.msra.mxu0 0.0
      %1985 = vmatprep.subr.mxu0 0.0
      %1986 = vmatpush2.msra.mxu0 0.0
      %1987 = vmatprep.subr.mxu0 0.0
      %1988 = vmatpush2.msra.mxu0 0.0
      %1989 = vmatprep.subr.mxu0 0.0
      %1990 = vmatpush2.msra.mxu0 0.0
      %1991 = vmatprep.subr.mxu0 0.0
      %1992 = vmatpush2.msra.mxu0 0.0
      %1993 = vmatprep.subr.mxu0 0.0
      %1994 = vmatpush2.msra.mxu0 0.0
      %1995 = vmatprep.subr.mxu0 0.0
      %1996 = vmatpush2.msra.mxu0 0.0
      %1997 = vmatprep.subr.mxu0 0.0
      %1998 = vmatpush2.msra.mxu0 0.0
      %1999 = vmatprep.mubr.f32.mxu0 0.0
      %2000 = vmatmul.mubr.f32.gmra.mxu0 %v1912
      %v2001 = vpop.f32.mrf.mxu0
      %v2002 = vadd.f32 0.0, %v2001
      %v2003 = vpop.f32.mrf.mxu0
      %2004 = vmatprep.mubr.f32.mxu0 0.0
      %2005 = vmatmul.mubr.f32.gmra.mxu0 %v1915
      %v2006 = vpop.f32.mrf.mxu0
      %v2007 = vadd.f32 0.0, %v2006
      %v2008 = vpop.f32.mrf.mxu0
      %2009 = vmatprep.mubr.f32.mxu0 0.0
      %2010 = vmatmul.mubr.f32.gmra.mxu0 %v1918
      %v2011 = vpop.f32.mrf.mxu0
      %v2012 = vadd.f32 0.0, %v2011
      %v2013 = vpop.f32.mrf.mxu0
      %2014 = vmatprep.mubr.f32.mxu0 0.0
      %2015 = vmatmul.mubr.f32.gmra.mxu0 %v1921
      %v2016 = vpop.f32.mrf.mxu0
      %v2017 = vadd.f32 0.0, %v2016
      %v2018 = vpop.f32.mrf.mxu0
      %2019 = vmatprep.mubr.f32.mxu0 0.0
      %2020 = vmatmul.mubr.f32.gmra.mxu0 %v1924
      %v2021 = vpop.f32.mrf.mxu0
      %v2022 = vadd.f32 0.0, %v2021
      %v2023 = vpop.f32.mrf.mxu0
      %2024 = vmatprep.mubr.f32.mxu0 0.0
      %2025 = vmatmul.mubr.f32.gmra.mxu0 %v1927
      %v2026 = vpop.f32.mrf.mxu0
      %v2027 = vadd.f32 0.0, %v2026
      %v2028 = vpop.f32.mrf.mxu0
      %2029 = vmatprep.mubr.f32.mxu0 0.0
      %2030 = vmatmul.mubr.f32.gmra.mxu0 %v1930
      %v2031 = vpop.f32.mrf.mxu0
      %v2032 = vadd.f32 0.0, %v2031
      %v2033 = vpop.f32.mrf.mxu0
      %2034 = vmatprep.mubr.f32.mxu0 0.0
      %2035 = vmatmul.mubr.f32.gmra.mxu0 %v1933
      %v2036 = vpop.f32.mrf.mxu0
      %v2037 = vadd.f32 0.0, %v2036
      %v2038 = vpop.f32.mrf.mxu0
      %2039 = vdwg.mxu0
      %v2040 = vadd.f32 %v1841, %v2002
      %v2041 = vadd.f32 %v1846, %v2007
      %v2042 = vadd.f32 %v1851, %v2012
      %v2043 = vadd.f32 %v1856, %v2017
      %v2044 = vadd.f32 %v1861, %v2022
      %v2045 = vadd.f32 %v1866, %v2027
      %v2046 = vadd.f32 %v1871, %v2032
      %v2047 = vadd.f32 %v1876, %v2037
      %v2048 = vadd.f32 %v2040, %v1523
      %v2049 = vadd.f32 %v2041, %v1523
      %v2050 = vadd.f32 %v2042, %v1523
      %v2051 = vadd.f32 %v2043, %v1523
      %v2052 = vadd.f32 %v2044, %v1523
      %v2053 = vadd.f32 %v2045, %v1523
      %v2054 = vadd.f32 %v2046, %v1523
      %v2055 = vadd.f32 %v2047, %v1523
      %2056 = vmatprep.subr.mxu0 0.0
      %2057 = vmatpush1.msra.mxu0 0.0
      %2058 = vmatprep.subr.mxu0 0.0
      %2059 = vmatpush1.msra.mxu0 0.0
      %2060 = vmatprep.subr.mxu0 0.0
      %2061 = vmatpush1.msra.mxu0 0.0
      %2062 = vmatprep.subr.mxu0 0.0
      %2063 = vmatpush1.msra.mxu0 0.0
      %2064 = vmatprep.subr.mxu0 0.0
      %2065 = vmatpush1.msra.mxu0 0.0
      %2066 = vmatprep.subr.mxu0 0.0
      %2067 = vmatpush1.msra.mxu0 0.0
      %2068 = vmatprep.subr.mxu0 0.0
      %2069 = vmatpush1.msra.mxu0 0.0
      %2070 = vmatprep.subr.mxu0 0.0
      %2071 = vmatpush1.msra.mxu0 0.0
      %2072 = vmatprep.subr.mxu0 0.0
      %2073 = vmatpush1.msra.mxu0 0.0
      %2074 = vmatprep.subr.mxu0 0.0
      %2075 = vmatpush1.msra.mxu0 0.0
      %2076 = vmatprep.subr.mxu0 0.0
      %2077 = vmatpush1.msra.mxu0 0.0
      %2078 = vmatprep.subr.mxu0 0.0
      %2079 = vmatpush1.msra.mxu0 0.0
      %2080 = vmatprep.subr.mxu0 0.0
      %2081 = vmatpush1.msra.mxu0 0.0
      %2082 = vmatprep.subr.mxu0 0.0
      %2083 = vmatpush1.msra.mxu0 %v862
      %2084 = vmatprep.subr.mxu0 0.0
      %2085 = vmatpush1.msra.mxu0 %v861
      %2086 = vmatprep.subr.mxu0 0.0
      %2087 = vmatpush1.msra.mxu0 %v860
      %2088 = vmatprep.subr.mxu0 0.0
      %2089 = vmatpush2.msra.mxu0 0.0
      %2090 = vmatprep.subr.mxu0 0.0
      %2091 = vmatpush2.msra.mxu0 0.0
      %2092 = vmatprep.subr.mxu0 0.0
      %2093 = vmatpush2.msra.mxu0 0.0
      %2094 = vmatprep.subr.mxu0 0.0
      %2095 = vmatpush2.msra.mxu0 0.0
      %2096 = vmatprep.subr.mxu0 0.0
      %2097 = vmatpush2.msra.mxu0 0.0
      %2098 = vmatprep.subr.mxu0 0.0
      %2099 = vmatpush2.msra.mxu0 0.0
      %2100 = vmatprep.subr.mxu0 0.0
      %2101 = vmatpush2.msra.mxu0 0.0
      %2102 = vmatprep.subr.mxu0 0.0
      %2103 = vmatpush2.msra.mxu0 0.0
      %2104 = vmatprep.subr.mxu0 0.0
      %2105 = vmatpush2.msra.mxu0 0.0
      %2106 = vmatprep.subr.mxu0 0.0
      %2107 = vmatpush2.msra.mxu0 0.0
      %2108 = vmatprep.subr.mxu0 0.0
      %2109 = vmatpush2.msra.mxu0 0.0
      %2110 = vmatprep.subr.mxu0 0.0
      %2111 = vmatpush2.msra.mxu0 0.0
      %2112 = vmatprep.subr.mxu0 0.0
      %2113 = vmatpush2.msra.mxu0 0.0
      %2114 = vmatprep.subr.mxu0 0.0
      %2115 = vmatpush2.msra.mxu0 0.0
      %2116 = vmatprep.subr.mxu0 0.0
      %2117 = vmatpush2.msra.mxu0 0.0
      %2118 = vmatprep.subr.mxu0 0.0
      %2119 = vmatpush2.msra.mxu0 0.0
      %2120 = vmatprep.mubr.f32.mxu0 0.0
      %2121 = vmatmul.mubr.f32.gmra.mxu0 %v1383
      %v2122 = vpop.f32.mrf.mxu0
      %v2123 = vadd.f32 0.0, %v2122
      %v2124 = vpop.f32.mrf.mxu0
      %2125 = vmatprep.mubr.f32.mxu0 0.0
      %2126 = vmatmul.mubr.f32.gmra.mxu0 %v1386
      %v2127 = vpop.f32.mrf.mxu0
      %v2128 = vadd.f32 0.0, %v2127
      %v2129 = vpop.f32.mrf.mxu0
      %2130 = vmatprep.mubr.f32.mxu0 0.0
      %2131 = vmatmul.mubr.f32.gmra.mxu0 %v1389
      %v2132 = vpop.f32.mrf.mxu0
      %v2133 = vadd.f32 0.0, %v2132
      %v2134 = vpop.f32.mrf.mxu0
      %2135 = vmatprep.mubr.f32.mxu0 0.0
      %2136 = vmatmul.mubr.f32.gmra.mxu0 %v1392
      %v2137 = vpop.f32.mrf.mxu0
      %v2138 = vadd.f32 0.0, %v2137
      %v2139 = vpop.f32.mrf.mxu0
      %2140 = vmatprep.mubr.f32.mxu0 0.0
      %2141 = vmatmul.mubr.f32.gmra.mxu0 %v1395
      %v2142 = vpop.f32.mrf.mxu0
      %v2143 = vadd.f32 0.0, %v2142
      %v2144 = vpop.f32.mrf.mxu0
      %2145 = vmatprep.mubr.f32.mxu0 0.0
      %2146 = vmatmul.mubr.f32.gmra.mxu0 %v1398
      %v2147 = vpop.f32.mrf.mxu0
      %v2148 = vadd.f32 0.0, %v2147
      %v2149 = vpop.f32.mrf.mxu0
      %2150 = vmatprep.mubr.f32.mxu0 0.0
      %2151 = vmatmul.mubr.f32.gmra.mxu0 %v1401
      %v2152 = vpop.f32.mrf.mxu0
      %v2153 = vadd.f32 0.0, %v2152
      %v2154 = vpop.f32.mrf.mxu0
      %2155 = vmatprep.mubr.f32.mxu0 0.0
      %2156 = vmatmul.mubr.f32.gmra.mxu0 %v1404
      %v2157 = vpop.f32.mrf.mxu0
      %v2158 = vadd.f32 0.0, %v2157
      %v2159 = vpop.f32.mrf.mxu0
      %2160 = vdwg.mxu0
      %2161 = vmatprep.subr.mxu0 0.0
      %2162 = vmatpush1.msra.mxu0 0.0
      %2163 = vmatprep.subr.mxu0 0.0
      %2164 = vmatpush1.msra.mxu0 0.0
      %2165 = vmatprep.subr.mxu0 0.0
      %2166 = vmatpush1.msra.mxu0 0.0
      %2167 = vmatprep.subr.mxu0 0.0
      %2168 = vmatpush1.msra.mxu0 0.0
      %2169 = vmatprep.subr.mxu0 0.0
      %2170 = vmatpush1.msra.mxu0 0.0
      %2171 = vmatprep.subr.mxu0 0.0
      %2172 = vmatpush1.msra.mxu0 0.0
      %2173 = vmatprep.subr.mxu0 0.0
      %2174 = vmatpush1.msra.mxu0 0.0
      %2175 = vmatprep.subr.mxu0 0.0
      %2176 = vmatpush1.msra.mxu0 0.0
      %2177 = vmatprep.subr.mxu0 0.0
      %2178 = vmatpush1.msra.mxu0 0.0
      %2179 = vmatprep.subr.mxu0 0.0
      %2180 = vmatpush1.msra.mxu0 0.0
      %2181 = vmatprep.subr.mxu0 0.0
      %2182 = vmatpush1.msra.mxu0 0.0
      %2183 = vmatprep.subr.mxu0 0.0
      %2184 = vmatpush1.msra.mxu0 0.0
      %2185 = vmatprep.subr.mxu0 0.0
      %2186 = vmatpush1.msra.mxu0 0.0
      %2187 = vmatprep.subr.mxu0 0.0
      %2188 = vmatpush1.msra.mxu0 %v859
      %2189 = vmatprep.subr.mxu0 0.0
      %2190 = vmatpush1.msra.mxu0 %v858
      %2191 = vmatprep.subr.mxu0 0.0
      %2192 = vmatpush1.msra.mxu0 %v857
      %2193 = vmatprep.subr.mxu0 0.0
      %2194 = vmatpush2.msra.mxu0 0.0
      %2195 = vmatprep.subr.mxu0 0.0
      %2196 = vmatpush2.msra.mxu0 0.0
      %2197 = vmatprep.subr.mxu0 0.0
      %2198 = vmatpush2.msra.mxu0 0.0
      %2199 = vmatprep.subr.mxu0 0.0
      %2200 = vmatpush2.msra.mxu0 0.0
      %2201 = vmatprep.subr.mxu0 0.0
      %2202 = vmatpush2.msra.mxu0 0.0
      %2203 = vmatprep.subr.mxu0 0.0
      %2204 = vmatpush2.msra.mxu0 0.0
      %2205 = vmatprep.subr.mxu0 0.0
      %2206 = vmatpush2.msra.mxu0 0.0
      %2207 = vmatprep.subr.mxu0 0.0
      %2208 = vmatpush2.msra.mxu0 0.0
      %2209 = vmatprep.subr.mxu0 0.0
      %2210 = vmatpush2.msra.mxu0 0.0
      %2211 = vmatprep.subr.mxu0 0.0
      %2212 = vmatpush2.msra.mxu0 0.0
      %2213 = vmatprep.subr.mxu0 0.0
      %2214 = vmatpush2.msra.mxu0 0.0
      %2215 = vmatprep.subr.mxu0 0.0
      %2216 = vmatpush2.msra.mxu0 0.0
      %2217 = vmatprep.subr.mxu0 0.0
      %2218 = vmatpush2.msra.mxu0 0.0
      %2219 = vmatprep.subr.mxu0 0.0
      %2220 = vmatpush2.msra.mxu0 0.0
      %2221 = vmatprep.subr.mxu0 0.0
      %2222 = vmatpush2.msra.mxu0 0.0
      %2223 = vmatprep.subr.mxu0 0.0
      %2224 = vmatpush2.msra.mxu0 0.0
      %2225 = vmatprep.mubr.f32.mxu0 0.0
      %2226 = vmatmul.mubr.f32.gmra.mxu0 %v1061
      %v2227 = vpop.f32.mrf.mxu0
      %v2228 = vadd.f32 %v2123, %v2227
      %v2229 = vpop.f32.mrf.mxu0
      %2230 = vmatprep.mubr.f32.mxu0 0.0
      %2231 = vmatmul.mubr.f32.gmra.mxu0 %v1064
      %v2232 = vpop.f32.mrf.mxu0
      %v2233 = vadd.f32 %v2128, %v2232
      %v2234 = vpop.f32.mrf.mxu0
      %2235 = vmatprep.mubr.f32.mxu0 0.0
      %2236 = vmatmul.mubr.f32.gmra.mxu0 %v1067
      %v2237 = vpop.f32.mrf.mxu0
      %v2238 = vadd.f32 %v2133, %v2237
      %v2239 = vpop.f32.mrf.mxu0
      %2240 = vmatprep.mubr.f32.mxu0 0.0
      %2241 = vmatmul.mubr.f32.gmra.mxu0 %v1070
      %v2242 = vpop.f32.mrf.mxu0
      %v2243 = vadd.f32 %v2138, %v2242
      %v2244 = vpop.f32.mrf.mxu0
      %2245 = vmatprep.mubr.f32.mxu0 0.0
      %2246 = vmatmul.mubr.f32.gmra.mxu0 %v1073
      %v2247 = vpop.f32.mrf.mxu0
      %v2248 = vadd.f32 %v2143, %v2247
      %v2249 = vpop.f32.mrf.mxu0
      %2250 = vmatprep.mubr.f32.mxu0 0.0
      %2251 = vmatmul.mubr.f32.gmra.mxu0 %v1076
      %v2252 = vpop.f32.mrf.mxu0
      %v2253 = vadd.f32 %v2148, %v2252
      %v2254 = vpop.f32.mrf.mxu0
      %2255 = vmatprep.mubr.f32.mxu0 0.0
      %2256 = vmatmul.mubr.f32.gmra.mxu0 %v1079
      %v2257 = vpop.f32.mrf.mxu0
      %v2258 = vadd.f32 %v2153, %v2257
      %v2259 = vpop.f32.mrf.mxu0
      %2260 = vmatprep.mubr.f32.mxu0 0.0
      %2261 = vmatmul.mubr.f32.gmra.mxu0 %v1082
      %v2262 = vpop.f32.mrf.mxu0
      %v2263 = vadd.f32 %v2158, %v2262
      %v2264 = vpop.f32.mrf.mxu0
      %2265 = vdwg.mxu0
      %s2266 = scalar_lea.vmem [#allocation2], 48
      %v2267 = vld [vmem:[%s2266] sm:$0xff]
      %v2268 = vld [vmem:[%s2266 + $0x8] sm:$0xff]
      %v2269 = vld [vmem:[%s2266 + $0x18] sm:$0xff]
      %v2270 = vld [vmem:[%s2266 + $0x20] sm:$0xff]
      %v2271 = vld [vmem:[%s2266 + $0x30] sm:$0xff]
      %v2272 = vld [vmem:[%s2266 + $0x38] sm:$0xff]
      %v2273 = vld [vmem:[%s2266 + $0x48] sm:$0xff]
      %v2274 = vld [vmem:[%s2266 + $0x50] sm:$0xff]
      %v2275 = vld [vmem:[%s2266 + $0x1] sm:$0xff]
      %v2276 = vld [vmem:[%s2266 + $0x9] sm:$0xff]
      %v2277 = vld [vmem:[%s2266 + $0x19] sm:$0xff]
      %v2278 = vld [vmem:[%s2266 + $0x21] sm:$0xff]
      %v2279 = vld [vmem:[%s2266 + $0x31] sm:$0xff]
      %v2280 = vld [vmem:[%s2266 + $0x39] sm:$0xff]
      %v2281 = vld [vmem:[%s2266 + $0x49] sm:$0xff]
      %v2282 = vld [vmem:[%s2266 + $0x51] sm:$0xff]
      %2291 = vrot.lane.b32.xlu0 %v2267, 120
      %v2292 = vpop.permute.xlu0 %2291
      %2293 = vrot.lane.b32.xlu0 %v2268, 120
      %v2294 = vpop.permute.xlu0 %2293
      %2295 = vrot.lane.b32.xlu0 %v2269, 120
      %v2296 = vpop.permute.xlu0 %2295
      %2297 = vrot.lane.b32.xlu0 %v2270, 120
      %v2298 = vpop.permute.xlu0 %2297
      %2299 = vrot.lane.b32.xlu0 %v2271, 120
      %v2300 = vpop.permute.xlu0 %2299
      %2301 = vrot.lane.b32.xlu0 %v2272, 120
      %v2302 = vpop.permute.xlu0 %2301
      %2303 = vrot.lane.b32.xlu0 %v2273, 120
      %v2304 = vpop.permute.xlu0 %2303
      %2305 = vrot.lane.b32.xlu0 %v2274, 120
      %v2306 = vpop.permute.xlu0 %2305
      %2323 = vrot.lane.b32.xlu0 %v2275, 8
      %v2324 = vpop.permute.xlu0 %2323
      %2325 = vrot.lane.b32.xlu0 %v2276, 8
      %v2326 = vpop.permute.xlu0 %2325
      %2327 = vrot.lane.b32.xlu0 %v2277, 8
      %v2328 = vpop.permute.xlu0 %2327
      %2329 = vrot.lane.b32.xlu0 %v2278, 8
      %v2330 = vpop.permute.xlu0 %2329
      %2331 = vrot.lane.b32.xlu0 %v2279, 8
      %v2332 = vpop.permute.xlu0 %2331
      %2333 = vrot.lane.b32.xlu0 %v2280, 8
      %v2334 = vpop.permute.xlu0 %2333
      %2335 = vrot.lane.b32.xlu0 %v2281, 8
      %v2336 = vpop.permute.xlu0 %2335
      %2337 = vrot.lane.b32.xlu0 %v2282, 8
      %v2338 = vpop.permute.xlu0 %2337
      %v2347 = vsel %vm524, %v2292, %v2324
      %v2348 = vsel %vm524, %v2294, %v2326
      %v2349 = vsel %vm524, %v2296, %v2328
      %v2350 = vsel %vm524, %v2298, %v2330
      %v2351 = vsel %vm524, %v2300, %v2332
      %v2352 = vsel %vm524, %v2302, %v2334
      %v2353 = vsel %vm524, %v2304, %v2336
      %v2354 = vsel %vm524, %v2306, %v2338
      %v2355 = vsel %vm954, %v2347, %v2324
      %v2356 = vsel %vm954, %v2348, %v2326
      %v2357 = vsel %vm954, %v2349, %v2328
      %v2358 = vsel %vm954, %v2350, %v2330
      %v2359 = vsel %vm954, %v2351, %v2332
      %v2360 = vsel %vm954, %v2352, %v2334
      %v2361 = vsel %vm954, %v2353, %v2336
      %v2362 = vsel %vm954, %v2354, %v2338
      %v2364 = vsel %vm1059, %v2355, 0
      %v2367 = vsel %vm1059, %v2356, 0
      %v2370 = vsel %vm1059, %v2357, 0
      %v2373 = vsel %vm1059, %v2358, 0
      %v2376 = vsel %vm1059, %v2359, 0
      %v2379 = vsel %vm1059, %v2360, 0
      %v2382 = vsel %vm1059, %v2361, 0
      %v2385 = vsel %vm1059, %v2362, 0
      %2387 = vmatprep.subr.mxu0 0.0
      %2388 = vmatpush1.msra.mxu0 0.0
      %2389 = vmatprep.subr.mxu0 0.0
      %2390 = vmatpush1.msra.mxu0 0.0
      %2391 = vmatprep.subr.mxu0 0.0
      %2392 = vmatpush1.msra.mxu0 0.0
      %2393 = vmatprep.subr.mxu0 0.0
      %2394 = vmatpush1.msra.mxu0 0.0
      %2395 = vmatprep.subr.mxu0 0.0
      %2396 = vmatpush1.msra.mxu0 0.0
      %2397 = vmatprep.subr.mxu0 0.0
      %2398 = vmatpush1.msra.mxu0 0.0
      %2399 = vmatprep.subr.mxu0 0.0
      %2400 = vmatpush1.msra.mxu0 0.0
      %2401 = vmatprep.subr.mxu0 0.0
      %2402 = vmatpush1.msra.mxu0 0.0
      %2403 = vmatprep.subr.mxu0 0.0
      %2404 = vmatpush1.msra.mxu0 0.0
      %2405 = vmatprep.subr.mxu0 0.0
      %2406 = vmatpush1.msra.mxu0 0.0
      %2407 = vmatprep.subr.mxu0 0.0
      %2408 = vmatpush1.msra.mxu0 0.0
      %2409 = vmatprep.subr.mxu0 0.0
      %2410 = vmatpush1.msra.mxu0 0.0
      %2411 = vmatprep.subr.mxu0 0.0
      %2412 = vmatpush1.msra.mxu0 0.0
      %2413 = vmatprep.subr.mxu0 0.0
      %2414 = vmatpush1.msra.mxu0 %v865
      %2415 = vmatprep.subr.mxu0 0.0
      %2416 = vmatpush1.msra.mxu0 %v864
      %2417 = vmatprep.subr.mxu0 0.0
      %2418 = vmatpush1.msra.mxu0 %v863
      %2419 = vmatprep.subr.mxu0 0.0
      %2420 = vmatpush2.msra.mxu0 0.0
      %2421 = vmatprep.subr.mxu0 0.0
      %2422 = vmatpush2.msra.mxu0 0.0
      %2423 = vmatprep.subr.mxu0 0.0
      %2424 = vmatpush2.msra.mxu0 0.0
      %2425 = vmatprep.subr.mxu0 0.0
      %2426 = vmatpush2.msra.mxu0 0.0
      %2427 = vmatprep.subr.mxu0 0.0
      %2428 = vmatpush2.msra.mxu0 0.0
      %2429 = vmatprep.subr.mxu0 0.0
      %2430 = vmatpush2.msra.mxu0 0.0
      %2431 = vmatprep.subr.mxu0 0.0
      %2432 = vmatpush2.msra.mxu0 0.0
      %2433 = vmatprep.subr.mxu0 0.0
      %2434 = vmatpush2.msra.mxu0 0.0
      %2435 = vmatprep.subr.mxu0 0.0
      %2436 = vmatpush2.msra.mxu0 0.0
      %2437 = vmatprep.subr.mxu0 0.0
      %2438 = vmatpush2.msra.mxu0 0.0
      %2439 = vmatprep.subr.mxu0 0.0
      %2440 = vmatpush2.msra.mxu0 0.0
      %2441 = vmatprep.subr.mxu0 0.0
      %2442 = vmatpush2.msra.mxu0 0.0
      %2443 = vmatprep.subr.mxu0 0.0
      %2444 = vmatpush2.msra.mxu0 0.0
      %2445 = vmatprep.subr.mxu0 0.0
      %2446 = vmatpush2.msra.mxu0 0.0
      %2447 = vmatprep.subr.mxu0 0.0
      %2448 = vmatpush2.msra.mxu0 0.0
      %2449 = vmatprep.subr.mxu0 0.0
      %2450 = vmatpush2.msra.mxu0 0.0
      %2451 = vmatprep.mubr.f32.mxu0 0.0
      %2452 = vmatmul.mubr.f32.gmra.mxu0 %v2364
      %v2453 = vpop.f32.mrf.mxu0
      %v2454 = vadd.f32 0.0, %v2453
      %v2455 = vpop.f32.mrf.mxu0
      %2456 = vmatprep.mubr.f32.mxu0 0.0
      %2457 = vmatmul.mubr.f32.gmra.mxu0 %v2367
      %v2458 = vpop.f32.mrf.mxu0
      %v2459 = vadd.f32 0.0, %v2458
      %v2460 = vpop.f32.mrf.mxu0
      %2461 = vmatprep.mubr.f32.mxu0 0.0
      %2462 = vmatmul.mubr.f32.gmra.mxu0 %v2370
      %v2463 = vpop.f32.mrf.mxu0
      %v2464 = vadd.f32 0.0, %v2463
      %v2465 = vpop.f32.mrf.mxu0
      %2466 = vmatprep.mubr.f32.mxu0 0.0
      %2467 = vmatmul.mubr.f32.gmra.mxu0 %v2373
      %v2468 = vpop.f32.mrf.mxu0
      %v2469 = vadd.f32 0.0, %v2468
      %v2470 = vpop.f32.mrf.mxu0
      %2471 = vmatprep.mubr.f32.mxu0 0.0
      %2472 = vmatmul.mubr.f32.gmra.mxu0 %v2376
      %v2473 = vpop.f32.mrf.mxu0
      %v2474 = vadd.f32 0.0, %v2473
      %v2475 = vpop.f32.mrf.mxu0
      %2476 = vmatprep.mubr.f32.mxu0 0.0
      %2477 = vmatmul.mubr.f32.gmra.mxu0 %v2379
      %v2478 = vpop.f32.mrf.mxu0
      %v2479 = vadd.f32 0.0, %v2478
      %v2480 = vpop.f32.mrf.mxu0
      %2481 = vmatprep.mubr.f32.mxu0 0.0
      %2482 = vmatmul.mubr.f32.gmra.mxu0 %v2382
      %v2483 = vpop.f32.mrf.mxu0
      %v2484 = vadd.f32 0.0, %v2483
      %v2485 = vpop.f32.mrf.mxu0
      %2486 = vmatprep.mubr.f32.mxu0 0.0
      %2487 = vmatmul.mubr.f32.gmra.mxu0 %v2385
      %v2488 = vpop.f32.mrf.mxu0
      %v2489 = vadd.f32 0.0, %v2488
      %v2490 = vpop.f32.mrf.mxu0
      %2491 = vdwg.mxu0
      %v2492 = vadd.f32 %v2228, %v2454
      %v2493 = vadd.f32 %v2233, %v2459
      %v2494 = vadd.f32 %v2238, %v2464
      %v2495 = vadd.f32 %v2243, %v2469
      %v2496 = vadd.f32 %v2248, %v2474
      %v2497 = vadd.f32 %v2253, %v2479
      %v2498 = vadd.f32 %v2258, %v2484
      %v2499 = vadd.f32 %v2263, %v2489
      %v2500 = vadd.f32 %v2492, %v1523
      %v2501 = vadd.f32 %v2493, %v1523
      %v2502 = vadd.f32 %v2494, %v1523
      %v2503 = vadd.f32 %v2495, %v1523
      %v2504 = vadd.f32 %v2496, %v1523
      %v2505 = vadd.f32 %v2497, %v1523
      %v2506 = vadd.f32 %v2498, %v1523
      %v2507 = vadd.f32 %v2499, %v1523
      %2508 = vmatprep.subr.mxu0 0.0
      %2509 = vmatpush1.msra.mxu0 0.0
      %2510 = vmatprep.subr.mxu0 0.0
      %2511 = vmatpush1.msra.mxu0 0.0
      %2512 = vmatprep.subr.mxu0 0.0
      %2513 = vmatpush1.msra.mxu0 0.0
      %2514 = vmatprep.subr.mxu0 0.0
      %2515 = vmatpush1.msra.mxu0 0.0
      %2516 = vmatprep.subr.mxu0 0.0
      %2517 = vmatpush1.msra.mxu0 0.0
      %2518 = vmatprep.subr.mxu0 0.0
      %2519 = vmatpush1.msra.mxu0 0.0
      %2520 = vmatprep.subr.mxu0 0.0
      %2521 = vmatpush1.msra.mxu0 0.0
      %2522 = vmatprep.subr.mxu0 0.0
      %2523 = vmatpush1.msra.mxu0 0.0
      %2524 = vmatprep.subr.mxu0 0.0
      %2525 = vmatpush1.msra.mxu0 0.0
      %2526 = vmatprep.subr.mxu0 0.0
      %2527 = vmatpush1.msra.mxu0 0.0
      %2528 = vmatprep.subr.mxu0 0.0
      %2529 = vmatpush1.msra.mxu0 0.0
      %2530 = vmatprep.subr.mxu0 0.0
      %2531 = vmatpush1.msra.mxu0 0.0
      %2532 = vmatprep.subr.mxu0 0.0
      %2533 = vmatpush1.msra.mxu0 0.0
      %2534 = vmatprep.subr.mxu0 0.0
      %2535 = vmatpush1.msra.mxu0 %v862
      %2536 = vmatprep.subr.mxu0 0.0
      %2537 = vmatpush1.msra.mxu0 %v861
      %2538 = vmatprep.subr.mxu0 0.0
      %2539 = vmatpush1.msra.mxu0 %v860
      %2540 = vmatprep.subr.mxu0 0.0
      %2541 = vmatpush2.msra.mxu0 0.0
      %2542 = vmatprep.subr.mxu0 0.0
      %2543 = vmatpush2.msra.mxu0 0.0
      %2544 = vmatprep.subr.mxu0 0.0
      %2545 = vmatpush2.msra.mxu0 0.0
      %2546 = vmatprep.subr.mxu0 0.0
      %2547 = vmatpush2.msra.mxu0 0.0
      %2548 = vmatprep.subr.mxu0 0.0
      %2549 = vmatpush2.msra.mxu0 0.0
      %2550 = vmatprep.subr.mxu0 0.0
      %2551 = vmatpush2.msra.mxu0 0.0
      %2552 = vmatprep.subr.mxu0 0.0
      %2553 = vmatpush2.msra.mxu0 0.0
      %2554 = vmatprep.subr.mxu0 0.0
      %2555 = vmatpush2.msra.mxu0 0.0
      %2556 = vmatprep.subr.mxu0 0.0
      %2557 = vmatpush2.msra.mxu0 0.0
      %2558 = vmatprep.subr.mxu0 0.0
      %2559 = vmatpush2.msra.mxu0 0.0
      %2560 = vmatprep.subr.mxu0 0.0
      %2561 = vmatpush2.msra.mxu0 0.0
      %2562 = vmatprep.subr.mxu0 0.0
      %2563 = vmatpush2.msra.mxu0 0.0
      %2564 = vmatprep.subr.mxu0 0.0
      %2565 = vmatpush2.msra.mxu0 0.0
      %2566 = vmatprep.subr.mxu0 0.0
      %2567 = vmatpush2.msra.mxu0 0.0
      %2568 = vmatprep.subr.mxu0 0.0
      %2569 = vmatpush2.msra.mxu0 0.0
      %2570 = vmatprep.subr.mxu0 0.0
      %2571 = vmatpush2.msra.mxu0 0.0
      %2572 = vmatprep.mubr.f32.mxu0 0.0
      %2573 = vmatmul.mubr.f32.gmra.mxu0 %v1912
      %v2574 = vpop.f32.mrf.mxu0
      %v2575 = vadd.f32 0.0, %v2574
      %v2576 = vpop.f32.mrf.mxu0
      %2577 = vmatprep.mubr.f32.mxu0 0.0
      %2578 = vmatmul.mubr.f32.gmra.mxu0 %v1915
      %v2579 = vpop.f32.mrf.mxu0
      %v2580 = vadd.f32 0.0, %v2579
      %v2581 = vpop.f32.mrf.mxu0
      %2582 = vmatprep.mubr.f32.mxu0 0.0
      %2583 = vmatmul.mubr.f32.gmra.mxu0 %v1918
      %v2584 = vpop.f32.mrf.mxu0
      %v2585 = vadd.f32 0.0, %v2584
      %v2586 = vpop.f32.mrf.mxu0
      %2587 = vmatprep.mubr.f32.mxu0 0.0
      %2588 = vmatmul.mubr.f32.gmra.mxu0 %v1921
      %v2589 = vpop.f32.mrf.mxu0
      %v2590 = vadd.f32 0.0, %v2589
      %v2591 = vpop.f32.mrf.mxu0
      %2592 = vmatprep.mubr.f32.mxu0 0.0
      %2593 = vmatmul.mubr.f32.gmra.mxu0 %v1924
      %v2594 = vpop.f32.mrf.mxu0
      %v2595 = vadd.f32 0.0, %v2594
      %v2596 = vpop.f32.mrf.mxu0
      %2597 = vmatprep.mubr.f32.mxu0 0.0
      %2598 = vmatmul.mubr.f32.gmra.mxu0 %v1927
      %v2599 = vpop.f32.mrf.mxu0
      %v2600 = vadd.f32 0.0, %v2599
      %v2601 = vpop.f32.mrf.mxu0
      %2602 = vmatprep.mubr.f32.mxu0 0.0
      %2603 = vmatmul.mubr.f32.gmra.mxu0 %v1930
      %v2604 = vpop.f32.mrf.mxu0
      %v2605 = vadd.f32 0.0, %v2604
      %v2606 = vpop.f32.mrf.mxu0
      %2607 = vmatprep.mubr.f32.mxu0 0.0
      %2608 = vmatmul.mubr.f32.gmra.mxu0 %v1933
      %v2609 = vpop.f32.mrf.mxu0
      %v2610 = vadd.f32 0.0, %v2609
      %v2611 = vpop.f32.mrf.mxu0
      %2612 = vdwg.mxu0
      %2613 = vmatprep.subr.mxu0 0.0
      %2614 = vmatpush1.msra.mxu0 0.0
      %2615 = vmatprep.subr.mxu0 0.0
      %2616 = vmatpush1.msra.mxu0 0.0
      %2617 = vmatprep.subr.mxu0 0.0
      %2618 = vmatpush1.msra.mxu0 0.0
      %2619 = vmatprep.subr.mxu0 0.0
      %2620 = vmatpush1.msra.mxu0 0.0
      %2621 = vmatprep.subr.mxu0 0.0
      %2622 = vmatpush1.msra.mxu0 0.0
      %2623 = vmatprep.subr.mxu0 0.0
      %2624 = vmatpush1.msra.mxu0 0.0
      %2625 = vmatprep.subr.mxu0 0.0
      %2626 = vmatpush1.msra.mxu0 0.0
      %2627 = vmatprep.subr.mxu0 0.0
      %2628 = vmatpush1.msra.mxu0 0.0
      %2629 = vmatprep.subr.mxu0 0.0
      %2630 = vmatpush1.msra.mxu0 0.0
      %2631 = vmatprep.subr.mxu0 0.0
      %2632 = vmatpush1.msra.mxu0 0.0
      %2633 = vmatprep.subr.mxu0 0.0
      %2634 = vmatpush1.msra.mxu0 0.0
      %2635 = vmatprep.subr.mxu0 0.0
      %2636 = vmatpush1.msra.mxu0 0.0
      %2637 = vmatprep.subr.mxu0 0.0
      %2638 = vmatpush1.msra.mxu0 0.0
      %2639 = vmatprep.subr.mxu0 0.0
      %2640 = vmatpush1.msra.mxu0 %v859
      %2641 = vmatprep.subr.mxu0 0.0
      %2642 = vmatpush1.msra.mxu0 %v858
      %2643 = vmatprep.subr.mxu0 0.0
      %2644 = vmatpush1.msra.mxu0 %v857
      %2645 = vmatprep.subr.mxu0 0.0
      %2646 = vmatpush2.msra.mxu0 0.0
      %2647 = vmatprep.subr.mxu0 0.0
      %2648 = vmatpush2.msra.mxu0 0.0
      %2649 = vmatprep.subr.mxu0 0.0
      %2650 = vmatpush2.msra.mxu0 0.0
      %2651 = vmatprep.subr.mxu0 0.0
      %2652 = vmatpush2.msra.mxu0 0.0
      %2653 = vmatprep.subr.mxu0 0.0
      %2654 = vmatpush2.msra.mxu0 0.0
      %2655 = vmatprep.subr.mxu0 0.0
      %2656 = vmatpush2.msra.mxu0 0.0
      %2657 = vmatprep.subr.mxu0 0.0
      %2658 = vmatpush2.msra.mxu0 0.0
      %2659 = vmatprep.subr.mxu0 0.0
      %2660 = vmatpush2.msra.mxu0 0.0
      %2661 = vmatprep.subr.mxu0 0.0
      %2662 = vmatpush2.msra.mxu0 0.0
      %2663 = vmatprep.subr.mxu0 0.0
      %2664 = vmatpush2.msra.mxu0 0.0
      %2665 = vmatprep.subr.mxu0 0.0
      %2666 = vmatpush2.msra.mxu0 0.0
      %2667 = vmatprep.subr.mxu0 0.0
      %2668 = vmatpush2.msra.mxu0 0.0
      %2669 = vmatprep.subr.mxu0 0.0
      %2670 = vmatpush2.msra.mxu0 0.0
      %2671 = vmatprep.subr.mxu0 0.0
      %2672 = vmatpush2.msra.mxu0 0.0
      %2673 = vmatprep.subr.mxu0 0.0
      %2674 = vmatpush2.msra.mxu0 0.0
      %2675 = vmatprep.subr.mxu0 0.0
      %2676 = vmatpush2.msra.mxu0 0.0
      %2677 = vmatprep.mubr.f32.mxu0 0.0
      %2678 = vmatmul.mubr.f32.gmra.mxu0 %v1622
      %v2679 = vpop.f32.mrf.mxu0
      %v2680 = vadd.f32 %v2575, %v2679
      %v2681 = vpop.f32.mrf.mxu0
      %2682 = vmatprep.mubr.f32.mxu0 0.0
      %2683 = vmatmul.mubr.f32.gmra.mxu0 %v1625
      %v2684 = vpop.f32.mrf.mxu0
      %v2685 = vadd.f32 %v2580, %v2684
      %v2686 = vpop.f32.mrf.mxu0
      %2687 = vmatprep.mubr.f32.mxu0 0.0
      %2688 = vmatmul.mubr.f32.gmra.mxu0 %v1628
      %v2689 = vpop.f32.mrf.mxu0
      %v2690 = vadd.f32 %v2585, %v2689
      %v2691 = vpop.f32.mrf.mxu0
      %2692 = vmatprep.mubr.f32.mxu0 0.0
      %2693 = vmatmul.mubr.f32.gmra.mxu0 %v1631
      %v2694 = vpop.f32.mrf.mxu0
      %v2695 = vadd.f32 %v2590, %v2694
      %v2696 = vpop.f32.mrf.mxu0
      %2697 = vmatprep.mubr.f32.mxu0 0.0
      %2698 = vmatmul.mubr.f32.gmra.mxu0 %v1634
      %v2699 = vpop.f32.mrf.mxu0
      %v2700 = vadd.f32 %v2595, %v2699
      %v2701 = vpop.f32.mrf.mxu0
      %2702 = vmatprep.mubr.f32.mxu0 0.0
      %2703 = vmatmul.mubr.f32.gmra.mxu0 %v1637
      %v2704 = vpop.f32.mrf.mxu0
      %v2705 = vadd.f32 %v2600, %v2704
      %v2706 = vpop.f32.mrf.mxu0
      %2707 = vmatprep.mubr.f32.mxu0 0.0
      %2708 = vmatmul.mubr.f32.gmra.mxu0 %v1640
      %v2709 = vpop.f32.mrf.mxu0
      %v2710 = vadd.f32 %v2605, %v2709
      %v2711 = vpop.f32.mrf.mxu0
      %2712 = vmatprep.mubr.f32.mxu0 0.0
      %2713 = vmatmul.mubr.f32.gmra.mxu0 %v1643
      %v2714 = vpop.f32.mrf.mxu0
      %v2715 = vadd.f32 %v2610, %v2714
      %v2716 = vpop.f32.mrf.mxu0
      %2717 = vdwg.mxu0
      %v2718 = vld [vmem:[%s2266 + $0x2] sm:$0xff]
      %v2719 = vld [vmem:[%s2266 + $0xa] sm:$0xff]
      %v2720 = vld [vmem:[%s2266 + $0x1a] sm:$0xff]
      %v2721 = vld [vmem:[%s2266 + $0x22] sm:$0xff]
      %v2722 = vld [vmem:[%s2266 + $0x32] sm:$0xff]
      %v2723 = vld [vmem:[%s2266 + $0x3a] sm:$0xff]
      %v2724 = vld [vmem:[%s2266 + $0x4a] sm:$0xff]
      %v2725 = vld [vmem:[%s2266 + $0x52] sm:$0xff]
      %2734 = vrot.lane.b32.xlu0 %v2718, 16
      %v2735 = vpop.permute.xlu0 %2734
      %2736 = vrot.lane.b32.xlu0 %v2719, 16
      %v2737 = vpop.permute.xlu0 %2736
      %2738 = vrot.lane.b32.xlu0 %v2720, 16
      %v2739 = vpop.permute.xlu0 %2738
      %2740 = vrot.lane.b32.xlu0 %v2721, 16
      %v2741 = vpop.permute.xlu0 %2740
      %2742 = vrot.lane.b32.xlu0 %v2722, 16
      %v2743 = vpop.permute.xlu0 %2742
      %2744 = vrot.lane.b32.xlu0 %v2723, 16
      %v2745 = vpop.permute.xlu0 %2744
      %2746 = vrot.lane.b32.xlu0 %v2724, 16
      %v2747 = vpop.permute.xlu0 %2746
      %2748 = vrot.lane.b32.xlu0 %v2725, 16
      %v2749 = vpop.permute.xlu0 %2748
      %v2758 = vsel %vm954, %v2275, %v2735
      %v2759 = vsel %vm954, %v2276, %v2737
      %v2760 = vsel %vm954, %v2277, %v2739
      %v2761 = vsel %vm954, %v2278, %v2741
      %v2762 = vsel %vm954, %v2279, %v2743
      %v2763 = vsel %vm954, %v2280, %v2745
      %v2764 = vsel %vm954, %v2281, %v2747
      %v2765 = vsel %vm954, %v2282, %v2749
      %v2767 = vsel %vm1059, %v2758, 0
      %v2770 = vsel %vm1059, %v2759, 0
      %v2773 = vsel %vm1059, %v2760, 0
      %v2776 = vsel %vm1059, %v2761, 0
      %v2779 = vsel %vm1059, %v2762, 0
      %v2782 = vsel %vm1059, %v2763, 0
      %v2785 = vsel %vm1059, %v2764, 0
      %v2788 = vsel %vm1059, %v2765, 0
      %2790 = vmatprep.subr.mxu0 0.0
      %2791 = vmatpush1.msra.mxu0 0.0
      %2792 = vmatprep.subr.mxu0 0.0
      %2793 = vmatpush1.msra.mxu0 0.0
      %2794 = vmatprep.subr.mxu0 0.0
      %2795 = vmatpush1.msra.mxu0 0.0
      %2796 = vmatprep.subr.mxu0 0.0
      %2797 = vmatpush1.msra.mxu0 0.0
      %2798 = vmatprep.subr.mxu0 0.0
      %2799 = vmatpush1.msra.mxu0 0.0
      %2800 = vmatprep.subr.mxu0 0.0
      %2801 = vmatpush1.msra.mxu0 0.0
      %2802 = vmatprep.subr.mxu0 0.0
      %2803 = vmatpush1.msra.mxu0 0.0
      %2804 = vmatprep.subr.mxu0 0.0
      %2805 = vmatpush1.msra.mxu0 0.0
      %2806 = vmatprep.subr.mxu0 0.0
      %2807 = vmatpush1.msra.mxu0 0.0
      %2808 = vmatprep.subr.mxu0 0.0
      %2809 = vmatpush1.msra.mxu0 0.0
      %2810 = vmatprep.subr.mxu0 0.0
      %2811 = vmatpush1.msra.mxu0 0.0
      %2812 = vmatprep.subr.mxu0 0.0
      %2813 = vmatpush1.msra.mxu0 0.0
      %2814 = vmatprep.subr.mxu0 0.0
      %2815 = vmatpush1.msra.mxu0 0.0
      %2816 = vmatprep.subr.mxu0 0.0
      %2817 = vmatpush1.msra.mxu0 %v865
      %2818 = vmatprep.subr.mxu0 0.0
      %2819 = vmatpush1.msra.mxu0 %v864
      %2820 = vmatprep.subr.mxu0 0.0
      %2821 = vmatpush1.msra.mxu0 %v863
      %2822 = vmatprep.subr.mxu0 0.0
      %2823 = vmatpush2.msra.mxu0 0.0
      %2824 = vmatprep.subr.mxu0 0.0
      %2825 = vmatpush2.msra.mxu0 0.0
      %2826 = vmatprep.subr.mxu0 0.0
      %2827 = vmatpush2.msra.mxu0 0.0
      %2828 = vmatprep.subr.mxu0 0.0
      %2829 = vmatpush2.msra.mxu0 0.0
      %2830 = vmatprep.subr.mxu0 0.0
      %2831 = vmatpush2.msra.mxu0 0.0
      %2832 = vmatprep.subr.mxu0 0.0
      %2833 = vmatpush2.msra.mxu0 0.0
      %2834 = vmatprep.subr.mxu0 0.0
      %2835 = vmatpush2.msra.mxu0 0.0
      %2836 = vmatprep.subr.mxu0 0.0
      %2837 = vmatpush2.msra.mxu0 0.0
      %2838 = vmatprep.subr.mxu0 0.0
      %2839 = vmatpush2.msra.mxu0 0.0
      %2840 = vmatprep.subr.mxu0 0.0
      %2841 = vmatpush2.msra.mxu0 0.0
      %2842 = vmatprep.subr.mxu0 0.0
      %2843 = vmatpush2.msra.mxu0 0.0
      %2844 = vmatprep.subr.mxu0 0.0
      %2845 = vmatpush2.msra.mxu0 0.0
      %2846 = vmatprep.subr.mxu0 0.0
      %2847 = vmatpush2.msra.mxu0 0.0
      %2848 = vmatprep.subr.mxu0 0.0
      %2849 = vmatpush2.msra.mxu0 0.0
      %2850 = vmatprep.subr.mxu0 0.0
      %2851 = vmatpush2.msra.mxu0 0.0
      %2852 = vmatprep.subr.mxu0 0.0
      %2853 = vmatpush2.msra.mxu0 0.0
      %2854 = vmatprep.mubr.f32.mxu0 0.0
      %2855 = vmatmul.mubr.f32.gmra.mxu0 %v2767
      %v2856 = vpop.f32.mrf.mxu0
      %v2857 = vadd.f32 0.0, %v2856
      %v2858 = vpop.f32.mrf.mxu0
      %2859 = vmatprep.mubr.f32.mxu0 0.0
      %2860 = vmatmul.mubr.f32.gmra.mxu0 %v2770
      %v2861 = vpop.f32.mrf.mxu0
      %v2862 = vadd.f32 0.0, %v2861
      %v2863 = vpop.f32.mrf.mxu0
      %2864 = vmatprep.mubr.f32.mxu0 0.0
      %2865 = vmatmul.mubr.f32.gmra.mxu0 %v2773
      %v2866 = vpop.f32.mrf.mxu0
      %v2867 = vadd.f32 0.0, %v2866
      %v2868 = vpop.f32.mrf.mxu0
      %2869 = vmatprep.mubr.f32.mxu0 0.0
      %2870 = vmatmul.mubr.f32.gmra.mxu0 %v2776
      %v2871 = vpop.f32.mrf.mxu0
      %v2872 = vadd.f32 0.0, %v2871
      %v2873 = vpop.f32.mrf.mxu0
      %2874 = vmatprep.mubr.f32.mxu0 0.0
      %2875 = vmatmul.mubr.f32.gmra.mxu0 %v2779
      %v2876 = vpop.f32.mrf.mxu0
      %v2877 = vadd.f32 0.0, %v2876
      %v2878 = vpop.f32.mrf.mxu0
      %2879 = vmatprep.mubr.f32.mxu0 0.0
      %2880 = vmatmul.mubr.f32.gmra.mxu0 %v2782
      %v2881 = vpop.f32.mrf.mxu0
      %v2882 = vadd.f32 0.0, %v2881
      %v2883 = vpop.f32.mrf.mxu0
      %2884 = vmatprep.mubr.f32.mxu0 0.0
      %2885 = vmatmul.mubr.f32.gmra.mxu0 %v2785
      %v2886 = vpop.f32.mrf.mxu0
      %v2887 = vadd.f32 0.0, %v2886
      %v2888 = vpop.f32.mrf.mxu0
      %2889 = vmatprep.mubr.f32.mxu0 0.0
      %2890 = vmatmul.mubr.f32.gmra.mxu0 %v2788
      %v2891 = vpop.f32.mrf.mxu0
      %v2892 = vadd.f32 0.0, %v2891
      %v2893 = vpop.f32.mrf.mxu0
      %2894 = vdwg.mxu0
      %v2895 = vadd.f32 %v2680, %v2857
      %v2896 = vadd.f32 %v2685, %v2862
      %v2897 = vadd.f32 %v2690, %v2867
      %v2898 = vadd.f32 %v2695, %v2872
      %v2899 = vadd.f32 %v2700, %v2877
      %v2900 = vadd.f32 %v2705, %v2882
      %v2901 = vadd.f32 %v2710, %v2887
      %v2902 = vadd.f32 %v2715, %v2892
      %v2903 = vadd.f32 %v2895, %v1523
      %v2904 = vadd.f32 %v2896, %v1523
      %v2905 = vadd.f32 %v2897, %v1523
      %v2906 = vadd.f32 %v2898, %v1523
      %v2907 = vadd.f32 %v2899, %v1523
      %v2908 = vadd.f32 %v2900, %v1523
      %v2909 = vadd.f32 %v2901, %v1523
      %v2910 = vadd.f32 %v2902, %v1523
      %2919 = vrot.lane.b32.xlu0 %v2048, 8
      %v2920 = vpop.permute.xlu0 %2919
      %2921 = vrot.lane.b32.xlu0 %v2049, 8
      %v2922 = vpop.permute.xlu0 %2921
      %2923 = vrot.lane.b32.xlu0 %v2050, 8
      %v2924 = vpop.permute.xlu0 %2923
      %2925 = vrot.lane.b32.xlu0 %v2051, 8
      %v2926 = vpop.permute.xlu0 %2925
      %2927 = vrot.lane.b32.xlu0 %v2052, 8
      %v2928 = vpop.permute.xlu0 %2927
      %2929 = vrot.lane.b32.xlu0 %v2053, 8
      %v2930 = vpop.permute.xlu0 %2929
      %2931 = vrot.lane.b32.xlu0 %v2054, 8
      %v2932 = vpop.permute.xlu0 %2931
      %2933 = vrot.lane.b32.xlu0 %v2055, 8
      %v2934 = vpop.permute.xlu0 %2933
      %2951 = vrot.lane.b32.xlu0 %v2500, 16
      %v2952 = vpop.permute.xlu0 %2951
      %2953 = vrot.lane.b32.xlu0 %v2501, 16
      %v2954 = vpop.permute.xlu0 %2953
      %2955 = vrot.lane.b32.xlu0 %v2502, 16
      %v2956 = vpop.permute.xlu0 %2955
      %2957 = vrot.lane.b32.xlu0 %v2503, 16
      %v2958 = vpop.permute.xlu0 %2957
      %2959 = vrot.lane.b32.xlu0 %v2504, 16
      %v2960 = vpop.permute.xlu0 %2959
      %2961 = vrot.lane.b32.xlu0 %v2505, 16
      %v2962 = vpop.permute.xlu0 %2961
      %2963 = vrot.lane.b32.xlu0 %v2506, 16
      %v2964 = vpop.permute.xlu0 %2963
      %2965 = vrot.lane.b32.xlu0 %v2507, 16
      %v2966 = vpop.permute.xlu0 %2965
      %2983 = vrot.lane.b32.xlu0 %v2903, 24
      %v2984 = vpop.permute.xlu0 %2983
      %2985 = vrot.lane.b32.xlu0 %v2904, 24
      %v2986 = vpop.permute.xlu0 %2985
      %2987 = vrot.lane.b32.xlu0 %v2905, 24
      %v2988 = vpop.permute.xlu0 %2987
      %2989 = vrot.lane.b32.xlu0 %v2906, 24
      %v2990 = vpop.permute.xlu0 %2989
      %2991 = vrot.lane.b32.xlu0 %v2907, 24
      %v2992 = vpop.permute.xlu0 %2991
      %2993 = vrot.lane.b32.xlu0 %v2908, 24
      %v2994 = vpop.permute.xlu0 %2993
      %2995 = vrot.lane.b32.xlu0 %v2909, 24
      %v2996 = vpop.permute.xlu0 %2995
      %2997 = vrot.lane.b32.xlu0 %v2910, 24
      %v2998 = vpop.permute.xlu0 %2997
      %v3007 = vsel %vm524, %v1525, %v2920
      %v3008 = vsel %vm524, %v1526, %v2922
      %v3009 = vsel %vm524, %v1527, %v2924
      %v3010 = vsel %vm524, %v1528, %v2926
      %v3011 = vsel %vm524, %v1529, %v2928
      %v3012 = vsel %vm524, %v1530, %v2930
      %v3013 = vsel %vm524, %v1531, %v2932
      %v3014 = vsel %vm524, %v1532, %v2934
      %v3015 = vsel %vm954, %v3007, %v2952
      %v3016 = vsel %vm954, %v3008, %v2954
      %v3017 = vsel %vm954, %v3009, %v2956
      %v3018 = vsel %vm954, %v3010, %v2958
      %v3019 = vsel %vm954, %v3011, %v2960
      %v3020 = vsel %vm954, %v3012, %v2962
      %v3021 = vsel %vm954, %v3013, %v2964
      %v3022 = vsel %vm954, %v3014, %v2966
      %v3023 = vsel %vm1059, %v3015, %v2984
      %v3024 = vsel %vm1059, %v3016, %v2986
      %v3025 = vsel %vm1059, %v3017, %v2988
      %v3026 = vsel %vm1059, %v3018, %v2990
      %v3027 = vsel %vm1059, %v3019, %v2992
      %v3028 = vsel %vm1059, %v3020, %v2994
      %v3029 = vsel %vm1059, %v3021, %v2996
      %v3030 = vsel %vm1059, %v3022, %v2998
      %3031 = vst.msk [vmem:[%s485] sm:$0xff] %vm655, %v3023
      %3032 = vst.msk [vmem:[%s485 + $0x8] sm:$0xff] %vm655, %v3024
      %3033 = vst.msk [vmem:[%s485 + $0x10] sm:$0xff] %vm655, %v3025
      %3034 = vst.msk [vmem:[%s485 + $0x18] sm:$0xff] %vm655, %v3026
      %3035 = vst.msk [vmem:[%s485 + $0x20] sm:$0xff] %vm655, %v3027
      %3036 = vst.msk [vmem:[%s485 + $0x28] sm:$0xff] %vm655, %v3028
      %3037 = vst.msk [vmem:[%s485 + $0x30] sm:$0xff] %vm655, %v3029
      %3038 = vst.msk [vmem:[%s485 + $0x38] sm:$0xff] %vm655, %v3030
      %v3039 = vsel %vm655, %v3023, 0.0
      %v3040 = vsel %vm655, %v3024, 0.0
      %v3041 = vadd.f32 %v3039, %v3040
      %v3042 = vsel %vm655, %v3025, 0.0
      %v3043 = vadd.f32 %v3041, %v3042
      %v3044 = vsel %vm655, %v3026, 0.0
      %v3045 = vadd.f32 %v3043, %v3044
      %v3046 = vsel %vm655, %v3027, 0.0
      %v3047 = vadd.f32 %v3045, %v3046
      %v3048 = vsel %vm655, %v3028, 0.0
      %v3049 = vadd.f32 %v3047, %v3048
      %v3050 = vsel %vm655, %v3029, 0.0
      %v3051 = vadd.f32 %v3049, %v3050
      %v3052 = vsel %vm655, %v3030, 0.0
      %v3053 = vadd.f32 %v3051, %v3052
      %v3054 = vrot.slane %v3053, 4
      %v3055 = vadd.f32 %v3053, %v3054
      %v3056 = vrot.slane %v3055, 2
      %v3057 = vadd.f32 %v3055, %v3056
      %v3058 = vrot.slane %v3057, 1
      %v3059 = vadd.f32 %v3057, %v3058
      %v3060 = vmul.f32 %v3023, %v3023
      %v3061 = vmul.f32 %v3024, %v3024
      %v3062 = vmul.f32 %v3025, %v3025
      %v3063 = vmul.f32 %v3026, %v3026
      %v3064 = vmul.f32 %v3027, %v3027
      %v3065 = vmul.f32 %v3028, %v3028
      %v3066 = vmul.f32 %v3029, %v3029
      %v3067 = vmul.f32 %v3030, %v3030
      %v3068 = vsel %vm655, %v3060, 0.0
      %v3069 = vsel %vm655, %v3061, 0.0
      %v3070 = vadd.f32 %v3068, %v3069
      %v3071 = vsel %vm655, %v3062, 0.0
      %v3072 = vadd.f32 %v3070, %v3071
      %v3073 = vsel %vm655, %v3063, 0.0
      %v3074 = vadd.f32 %v3072, %v3073
      %v3075 = vsel %vm655, %v3064, 0.0
      %v3076 = vadd.f32 %v3074, %v3075
      %v3077 = vsel %vm655, %v3065, 0.0
      %v3078 = vadd.f32 %v3076, %v3077
      %v3079 = vsel %vm655, %v3066, 0.0
      %v3080 = vadd.f32 %v3078, %v3079
      %v3081 = vsel %vm655, %v3067, 0.0
      %v3082 = vadd.f32 %v3080, %v3081
      %v3083 = vrot.slane %v3082, 4
      %v3084 = vadd.f32 %v3082, %v3083
      %v3085 = vrot.slane %v3084, 2
      %v3086 = vadd.f32 %v3084, %v3085
      %v3087 = vrot.slane %v3086, 1
      %v3088 = vadd.f32 %v3086, %v3087
      %vm3089 = vcmask 1040384
      %v3090 = vsel %vm3089, %v3059, %v3088
      %vm3091 = vcmask 254976
      %3092 = vst.msk [vmem:[%s494] sm:$0x3] %vm3091, %v3090
      %s3093 = smul.u32 4, %s25
      %p3094 = scmp.lt.s32.totalorder %s24, 1
      %s3095 = scalar_select %p3094, %s24, 1
      %p3096 = scmp.lt.s32.totalorder %s3093, 15
      %s3097 = scalar_select %p3096, %s3093, 15
      %s3098 = smul.addr %s3097, 2
      %s3099 = smul.addr %s3095, 32
      %s3100 = sadd.s32 %s3098, %s3099
      %s3101 = smul.addr %s3100, 8
      %s3102 = scalar_lea.vmem %s7, %s3101
      %p3103 = scmp.lt.s32.totalorder %s24, 1
      %s3104 = scalar_select %p3103, %s24, 1
      %p3105 = scmp.lt.s32.totalorder %s25, 3
      %s3106 = scalar_select %p3105, %s25, 3
      %s3107 = smul.addr %s3104, 4
      %s3108 = sadd.s32 %s3106, %s3107
      %s3109 = smul.addr %s3108, 2
      %s3110 = scalar_lea.vmem %s8, %s3109
      // Predicated region
      $region65: #{conv_up_forward.2} parent=47 // pred_check
        %p3111 = pneg %p236
      $region66: #{conv_up_forward.2} parent=47 // pred_check_branch
        %3113 = sbr.rel (%p3111) target = $region68
      $region67: #{conv_up_forward.2} parent=47 // pred_region
        %s3114 = smul.u32 4, %s25
      $region68: #{conv_up_forward.2} parent=47 // pred_fallthru
        _
      // Predicated region
      $region69: #{conv_up_forward.2} parent=47 // pred_check
        %p3115 = pneg %p264
      $region70: #{conv_up_forward.2} parent=47 // pred_check_branch
        %3117 = sbr.rel (%p3115) target = $region72
      $region71: #{conv_up_forward.2} parent=47 // pred_region
        _
      $region72: #{conv_up_forward.2} parent=47 // pred_fallthru
        _
    $region48: #{conv_up_forward.2} parent=5 // pred_fallthru
      _
    %p3118 = scmp.le.s32.totalorder 2, %s15
    // Predicated region
    $region73: #{conv_up_forward.2} parent=5 // pred_check
      %p3119 = pneg %p3118
    $region74: #{conv_up_forward.2} parent=5 // pred_check_branch
      %3121 = sbr.rel (%p3119) target = $region76
    $region75: #{conv_up_forward.2} parent=5 // pred_region
      %s3122 = ssub.s32 %s15, 2
      // Predicated region
      $region77: #{conv_up_forward.2} parent=75 // pred_check
        %p3123 = pneg %p242
      $region78: #{conv_up_forward.2} parent=75 // pred_check_branch
        %3125 = sbr.rel (%p3123) target = $region80
      $region79: #{conv_up_forward.2} parent=75 // pred_region
        %s3126 = smul.u32 4, %s27
        %p3127 = scmp.lt.s32.totalorder %s26, 1
        %s3128 = scalar_select %p3127, %s26, 1
        %p3129 = scmp.lt.s32.totalorder %s3126, 15
        %s3130 = scalar_select %p3129, %s3126, 15
        %s3131 = smul.addr %s3130, 2
        %s3132 = smul.addr %s3128, 32
        %s3133 = sadd.s32 %s3131, %s3132
        %s3134 = smul.addr %s3133, 8
        %s3135 = scalar_lea.vmem %s7, %s3134
      $region80: #{conv_up_forward.2} parent=75 // pred_fallthru
        _
      // Predicated region
      $region81: #{conv_up_forward.2} parent=75 // pred_check
        %p3136 = pneg %p270
      $region82: #{conv_up_forward.2} parent=75 // pred_check_branch
        %3138 = sbr.rel (%p3136) target = $region84
      $region83: #{conv_up_forward.2} parent=75 // pred_region
        %p3139 = scmp.lt.s32.totalorder %s26, 1
        %s3140 = scalar_select %p3139, %s26, 1
        %p3141 = scmp.lt.s32.totalorder %s27, 3
        %s3142 = scalar_select %p3141, %s27, 3
        %s3143 = smul.addr %s3140, 4
        %s3144 = sadd.s32 %s3142, %s3143
        %s3145 = smul.addr %s3144, 2
        %s3146 = scalar_lea.vmem %s8, %s3145
      $region84: #{conv_up_forward.2} parent=75 // pred_fallthru
        _
    $region76: #{conv_up_forward.2} parent=5 // pred_fallthru
      _
  $region6: #{conv_up_forward.2} parent=0 // loop_footer
    %s19 = sadd.s32 1, %s15
  $region7: #{conv_up_forward.2} parent=0 // loop_footer_branch
    %14 = sbr.rel target = $region3
  $region8: #{conv_up_forward.2} parent=0 // loop_exit
    _

</llo_original>
